<compile_context>
chip_gen: v5e
topology: v5e:2x2
jax: 0.10.0
libtpu: 0.0.40
codegen_flags: <defaults>
</compile_context>

<pallas_src>
import functools

import jax
import jax.numpy as jnp
import numpy as np
from jax.experimental import pallas as pl
from jax.experimental.pallas import tpu as pltpu

EPS = 1e-10


# ---------------------------------------------------------------------------
# Shared math (used inside the Pallas kernel and by the pure-JAX reference).
# ---------------------------------------------------------------------------
def _forward_math(BT, U, F, S, D, data, params, recip):
    (iu_ids, if_ids, ifu_ids, qi, p_t, er_i, q_a, q_a_s, er_s) = data
    (w1_w, w1_b, w2_w, w2_b, w3_w, w3_b, w4_w, w4_b,
     gu_w1_a, gu_w1_b, gu_b1, gu_w2, gu_b2,
     atti_w1_a, atti_w1_b, atti_b1, atti_w2, atti_b2,
     aggui_w, aggui_b,
     ifr_w1_a, ifr_w1_b, ifr_b1, ifr_w2, ifr_b2,
     aggif_w, aggif_b,
     att_w1_a, att_w1_b, att_b1, att_w2, att_b2,
     aggu_w, aggu_b,
     iff_w1_a, iff_w1_b, iff_b1, iff_w2, iff_b2,
     aggiff_w, aggiff_b,
     cmb_w1_a, cmb_w1_b, cmb_w1_c, cmb_b1, cmb_w2, cmb_b2) = params

    f32 = jnp.float32
    bf16 = jnp.bfloat16

    def lin(x, w, b=None):
        y = jnp.dot(x.astype(bf16), w, preferred_element_type=f32)
        return y if b is None else y + b

    def leaky(x):
        return jnp.where(x > 0, x, 0.2 * x)

    def relu(x):
        return jnp.maximum(x, 0.0)

    def att_score(xa, xb, wa, wb, b1, w2row, b2, lead_shape):
        # _MultiLayerPercep(2D -> 1) with the concat removed (split weight) and
        # the final Linear(D, 1) done as a lane reduce.
        h = leaky(lin(xa, wa) + lin(xb, wb) + b1).reshape(lead_shape + (D,))
        return jnp.sum(h * w2row, axis=-1, keepdims=True) + b2

    def masked_softmax(score, mask, axis):
        # exp(score)*mask / (sum + eps) with max-subtraction for stability.
        s = jnp.where(mask > 0, score, -1e30)
        m = jnp.max(s, axis=axis, keepdims=True)
        e = jnp.exp(s - m) * mask
        denom = jnp.sum(e, axis=axis, keepdims=True)
        return e * recip(denom + EPS)

    mask_i = (iu_ids > 0).astype(f32)[..., None]     # (BT, U, 1)
    mask_u = (if_ids > 0).astype(f32)[..., None]     # (BT, F, 1)
    mask_s = (ifu_ids > 0).astype(f32)[..., None]    # (BT, F, S, 1)

    # Hoisted projections of broadcast quantities: w(mask*q) + b == mask*(q@W)+b
    w1q_base = lin(qi, w1_w)                               # (BT, D)
    w2q_base = lin(qi, w2_w)                               # (BT, D)
    w4q_base = lin(qi, w4_w)                               # (BT, D)
    q_a2 = q_a.reshape(BT * F, D)
    w3qa_base = lin(q_a2, w3_w).reshape(BT, F, D)          # (BT, F, D)

    # ---- z_j: attention over the item's interacting users ------------------
    p_t2 = p_t.reshape(BT * U, D)
    er_i2 = er_i.reshape(BT * U, D)
    h_gu = leaky(lin(p_t2, gu_w1_a) + lin(er_i2, gu_w1_b) + gu_b1)
    f_jt = lin(h_gu, gu_w2, gu_b2)                         # (BT*U, D)
    w1f = lin(f_jt, w1_w, w1_b)                            # (BT*U, D)
    w1q = mask_i * w1q_base[:, None, :] + w1_b             # (BT, U, D)
    s_i = att_score(w1f, w1q.reshape(BT * U, D),
                    atti_w1_a, atti_w1_b, atti_b1, atti_w2, atti_b2, (BT, U))
    miu = masked_softmax(s_i, mask_i, axis=1)              # (BT, U, 1)
    z_j = relu(lin(jnp.sum(miu * w1f.reshape(BT, U, D), axis=1),
                   aggui_w, aggui_b))                      # (BT, D)

    # ---- z_if: attention over the item's friend items -----------------------
    w2q = lin(q_a2, w2_w, w2_b)                            # (BT*F, D)
    w2p = mask_u * w2q_base[:, None, :] + w2_b             # (BT, F, D)
    s_f = att_score(w2q, w2p.reshape(BT * F, D),
                    ifr_w1_a, ifr_w1_b, ifr_b1, ifr_w2, ifr_b2, (BT, F))
    alpha = masked_softmax(s_f, mask_u, axis=1)            # (BT, F, 1)
    z_if = relu(lin(jnp.sum(alpha * w2q.reshape(BT, F, D), axis=1),
                    aggif_w, aggif_b))                     # (BT, D)

    # ---- h_oI: attention over each friend item's users ----------------------
    q_a_s2 = q_a_s.reshape(BT * F * S, D)
    er_s2 = er_s.reshape(BT * F * S, D)
    h_gus = leaky(lin(q_a_s2, gu_w1_a) + lin(er_s2, gu_w1_b) + gu_b1)
    x_ia_s = lin(h_gus, gu_w2, gu_b2)                      # (BT*F*S, D)
    w3x = lin(x_ia_s, w3_w, w3_b)                          # (BT*F*S, D)
    w3p = mask_s * w3qa_base[:, :, None, :] + w3_b         # (BT, F, S, D)
    s_s = att_score(w3x, w3p.reshape(BT * F * S, D),
                    att_w1_a, att_w1_b, att_b1, att_w2, att_b2, (BT, F, S))
    alpha_s = masked_softmax(s_s, mask_s, axis=2)          # (BT, F, S, 1)
    h_oI_tmp = jnp.sum(alpha_s * w3x.reshape(BT, F, S, D), axis=2)  # (BT, F, D)
    h_oI2 = relu(lin(h_oI_tmp.reshape(BT * F, D), aggu_w, aggu_b))  # (BT*F, D)
    h_oI = h_oI2.reshape(BT, F, D)

    # ---- z_uf: attention over friend-level summaries ------------------------
    w4h = lin(h_oI2, w4_w, w4_b)                           # (BT*F, D)
    w4p = mask_u * w4q_base[:, None, :] + w4_b             # (BT, F, D)
    s_uf = att_score(w4h, w4p.reshape(BT * F, D),
                     iff_w1_a, iff_w1_b, iff_b1, iff_w2, iff_b2, (BT, F))
    alpha_i = masked_softmax(s_uf, mask_u, axis=1)         # (BT, F, 1)
    z_uf = relu(lin(jnp.sum(alpha_i * h_oI, axis=1), aggiff_w, aggiff_b))

    # ---- combine_mlp (concat replaced by split weight slices) ---------------
    h_c = relu(lin(z_if, cmb_w1_a) + lin(z_j, cmb_w1_b)
               + lin(z_uf, cmb_w1_c) + cmb_b1)             # (BT, 2D)
    return relu(lin(h_c, cmb_w2, cmb_b2))                  # (BT, D)


# ---------------------------------------------------------------------------
# Kernel body.
# ---------------------------------------------------------------------------
def _item_model_kernel(BT, U, F, S, D, n_data, *refs):
    *in_refs, out_ref = refs
    vals = [r[...] for r in in_refs]
    out_ref[...] = _forward_math(
        BT, U, F, S, D, tuple(vals[:n_data]), tuple(vals[n_data:]),
        recip=lambda x: pl.reciprocal(x, approx=True))


# ---------------------------------------------------------------------------
# Parameter prep: split concat-weights, cast MXU path to bf16.
# ---------------------------------------------------------------------------
def _prep_params(params, D):
    (w1_w, w1_b, w2_w, w2_b, w3_w, w3_b, w4_w, w4_b,
     gu_w1, gu_b1, gu_w2, gu_b2,
     atti_w1, atti_b1, atti_w2, atti_b2,
     aggui_w, aggui_b,
     ifr_w1, ifr_b1, ifr_w2, ifr_b2,
     aggif_w, aggif_b,
     att_w1, att_b1, att_w2, att_b2,
     aggu_w, aggu_b,
     iff_w1, iff_b1, iff_w2, iff_b2,
     aggiff_w, aggiff_b,
     cmb_w1, cmb_b1, cmb_w2, cmb_b2) = params

    bf = lambda x: x.astype(jnp.bfloat16)
    f32 = lambda x: x.astype(jnp.float32)

    def split2(w):  # (2D, D) -> two (D, D)
        return bf(w[:D]), bf(w[D:2 * D])

    gu_a, gu_b_ = split2(gu_w1)
    atti_a, atti_b_ = split2(atti_w1)
    ifr_a, ifr_b_ = split2(ifr_w1)
    att_a, att_b_ = split2(att_w1)
    iff_a, iff_b_ = split2(iff_w1)
    cmb_a, cmb_bm, cmb_c = bf(cmb_w1[:D]), bf(cmb_w1[D:2 * D]), bf(cmb_w1[2 * D:])

    return (
        bf(w1_w), f32(w1_b), bf(w2_w), f32(w2_b),
        bf(w3_w), f32(w3_b), bf(w4_w), f32(w4_b),
        gu_a, gu_b_, f32(gu_b1), bf(gu_w2), f32(gu_b2),
        atti_a, atti_b_, f32(atti_b1), f32(atti_w2), f32(atti_b2),
        bf(aggui_w), f32(aggui_b),
        ifr_a, ifr_b_, f32(ifr_b1), f32(ifr_w2), f32(ifr_b2),
        bf(aggif_w), f32(aggif_b),
        att_a, att_b_, f32(att_b1), f32(att_w2), f32(att_b2),
        bf(aggu_w), f32(aggu_b),
        iff_a, iff_b_, f32(iff_b1), f32(iff_w2), f32(iff_b2),
        bf(aggiff_w), f32(aggiff_b),
        cmb_a, cmb_bm, cmb_c, f32(cmb_b1), bf(cmb_w2), f32(cmb_b2),
    )


def _gather_inputs(emb_tables, iids, i_user_pad, i_friends_pad, i_friends_user_pad):
    """nn.Embedding lookups (glue, stays in XLA) + int id tiles for in-kernel masks."""
    user_emb, item_emb, rate_emb = emb_tables
    bf = jnp.bfloat16
    iu_ids = i_user_pad[:, :, 0].astype(jnp.int32)                  # (B, U)
    if_ids = i_friends_pad[:, :, 0].astype(jnp.int32)               # (B, F)
    ifu_ids = i_friends_user_pad[:, :, :, 0].astype(jnp.int32)      # (B, F, S)
    qi = item_emb[iids].astype(bf)                                  # (B, D)
    p_t = user_emb[iu_ids].astype(bf)                               # (B, U, D)
    er_i = rate_emb[i_user_pad[:, :, 1]].astype(bf)                 # (B, U, D)
    q_a = item_emb[if_ids].astype(bf)                               # (B, F, D)
    q_a_s = user_emb[ifu_ids].astype(bf)                            # (B, F, S, D)
    er_s = rate_emb[i_friends_user_pad[:, :, :, 1]].astype(bf)      # (B, F, S, D)
    return [iu_ids, if_ids, ifu_ids, qi, p_t, er_i, q_a, q_a_s, er_s]


def _pad_batch(x, b_pad):
    pad = b_pad - x.shape[0]
    if pad == 0:
        return x
    return jnp.pad(x, ((0, pad),) + ((0, 0),) * (x.ndim - 1))


def _batch_spec(arr, bt):
    nd = arr.ndim
    return pl.BlockSpec((bt,) + tuple(arr.shape[1:]),
                        lambda b, _nd=nd: (b,) + (0,) * (_nd - 1))


def _rep_spec(arr):
    nd = arr.ndim
    return pl.BlockSpec(tuple(arr.shape), lambda b, _nd=nd: (0,) * _nd)


# ---------------------------------------------------------------------------
# Public entry points.
# ---------------------------------------------------------------------------
def item_model_forward(params, emb_tables, uids, iids, i_user_pad,
                       i_friends_pad, i_friends_user_pad, batch_tile=8):
    del uids  # present in torch signature, unused by the forward pass
    B, U, _ = i_user_pad.shape
    F = i_friends_pad.shape[1]
    S = i_friends_user_pad.shape[2]
    D = emb_tables[1].shape[1]

    data = _gather_inputs(emb_tables, iids, i_user_pad, i_friends_pad,
                          i_friends_user_pad)
    prepped = list(_prep_params(params, D))

    BT = batch_tile
    B_pad = ((B + BT - 1) // BT) * BT
    data_p = [_pad_batch(x, B_pad) for x in data]
    inputs = data_p + prepped
    n_data = len(data_p)

    in_specs = ([_batch_spec(x, BT) for x in data_p]
                + [_rep_spec(p) for p in prepped])
    out_spec = pl.BlockSpec((BT, D), lambda b: (b, 0))

    flops = 2 * D * D * B_pad * (12 * (U + F * S) + 16 * F + 24)
    transcendentals = B_pad * (U + F * S + 2 * F + 4)
    bytes_accessed = int(sum(int(x.size) * int(x.dtype.itemsize) for x in inputs)
                         + B_pad * D * 4)

    kernel = functools.partial(_item_model_kernel, BT, U, F, S, D, n_data)
    out = pl.pallas_call(
        kernel,
        out_shape=jax.ShapeDtypeStruct((B_pad, D), jnp.float32),
        grid=(B_pad // BT,),
        in_specs=in_specs,
        out_specs=out_spec,
        compiler_params=pltpu.CompilerParams(
            dimension_semantics=("parallel",),
            vmem_limit_bytes=32 * 1024 * 1024),
        cost_estimate=pl.CostEstimate(flops=int(flops),
                                      transcendentals=int(transcendentals),
                                      bytes_accessed=bytes_accessed),
    )(*inputs)
    return out[:B]


def item_model_reference(params, emb_tables, uids, iids, i_user_pad,
                         i_friends_pad, i_friends_user_pad):
    del uids
    B, U, _ = i_user_pad.shape
    F = i_friends_pad.shape[1]
    S = i_friends_user_pad.shape[2]
    D = emb_tables[1].shape[1]
    data = _gather_inputs(emb_tables, iids, i_user_pad, i_friends_pad,
                          i_friends_user_pad)
    prepped = _prep_params(params, D)
    return _forward_math(B, U, F, S, D, tuple(data), prepped,
                         recip=lambda x: 1.0 / x)


def init_params(key, D):
    """Deterministic synthetic parameters, torch-like layout (weights (in,out))."""
    it = iter(jax.random.split(key, 80))

    def dense(shape, scale=0.05):
        return scale * jax.random.normal(next(it), shape, dtype=jnp.float32)

    params = []

    def add_linear(din, dout):
        params.append(dense((din, dout)))   # weight, stored (in, out)
        params.append(dense((1, dout)))     # bias

    def add_att_mlp():
        add_linear(2 * D, D)                # Linear(2D, D)
        params.append(dense((1, D)))        # Linear(D, 1) weight (row)
        params.append(dense((1, 1)))        # Linear(D, 1) bias

    for _ in range(4):                      # w1 .. w4
        add_linear(D, D)
    add_linear(2 * D, D); add_linear(D, D)  # g_u  (g_v defined but unused)
    add_att_mlp(); add_linear(D, D)         # item_users_att_i, aggre_users_i
    add_att_mlp(); add_linear(D, D)         # i_friends_att,    aggre_i_friends
    add_att_mlp(); add_linear(D, D)         # item_users_att,   aggre_users
    add_att_mlp(); add_linear(D, D)         # if_friends_att,   aggre_if_friends
    add_linear(3 * D, 2 * D); add_linear(2 * D, D)   # combine_mlp
    return params


if __name__ == "__main__":
    B, U, F, S, D = 16, 8, 4, 8, 128
    n_users, n_items, n_rates = 50, 40, 6

    key = jax.random.PRNGKey(0)
    k_emb, k_par, k_dat = jax.random.split(key, 3)
    ku, ki, kr = jax.random.split(k_emb, 3)
    user_emb = 0.1 * jax.random.normal(ku, (n_users, D), dtype=jnp.float32)
    item_emb = 0.1 * jax.random.normal(ki, (n_items, D), dtype=jnp.float32)
    rate_emb = 0.1 * jax.random.normal(kr, (n_rates, D), dtype=jnp.float32)
    emb_tables = (user_emb, item_emb, rate_emb)

    params = init_params(k_par, D)

    kd = jax.random.split(k_dat, 7)
    uids = jax.random.randint(kd[6], (B,), 1, n_users)
    iids = jax.random.randint(kd[0], (B,), 1, n_items)
    iu_ids = jax.random.randint(kd[1], (B, U), 1, n_users).at[:, U - 2:].set(0)
    iu_rates = jax.random.randint(kd[2], (B, U), 0, n_rates)
    i_user_pad = jnp.stack([iu_ids, iu_rates], axis=-1)                   # (B,U,2)
    if_ids = jax.random.randint(kd[3], (B, F), 1, n_items).at[:, F - 1:].set(0)
    i_friends_pad = jnp.stack([if_ids, jnp.zeros((B, F), jnp.int32)], axis=-1)  # (B,F,2)
    ifu_ids = jax.random.randint(kd[4], (B, F, S), 1, n_users).at[:, :, S - 3:].set(0)
    ifu_rates = jax.random.randint(kd[5], (B, F, S), 0, n_rates)
    i_friends_user_pad = jnp.stack([ifu_ids, ifu_rates], axis=-1)         # (B,F,S,2)

    out = item_model_forward(params, emb_tables, uids, iids, i_user_pad,
                             i_friends_pad, i_friends_user_pad)
    out = jax.block_until_ready(out)

    ref = item_model_reference(params, emb_tables, uids, iids, i_user_pad,
                               i_friends_pad, i_friends_user_pad)
    np.testing.assert_allclose(np.asarray(out), np.asarray(ref),
                               rtol=2e-2, atol=2e-2)
    print("KERNEL_OK")
</pallas_src>

<mosaic_0001>
module attributes {stable_mosaic.version = 11 : i64} {
  func.func @_item_model_kernel(%arg0: i32, %arg1: memref<8x8xi32, #tpu.memory_space<vmem>>, %arg2: memref<8x4xi32, #tpu.memory_space<vmem>>, %arg3: memref<8x4x8xi32, #tpu.memory_space<vmem>>, %arg4: memref<8x128xbf16, #tpu.memory_space<vmem>>, %arg5: memref<8x8x128xbf16, #tpu.memory_space<vmem>>, %arg6: memref<8x8x128xbf16, #tpu.memory_space<vmem>>, %arg7: memref<8x4x128xbf16, #tpu.memory_space<vmem>>, %arg8: memref<8x4x8x128xbf16, #tpu.memory_space<vmem>>, %arg9: memref<8x4x8x128xbf16, #tpu.memory_space<vmem>>, %arg10: memref<128x128xbf16, #tpu.memory_space<vmem>>, %arg11: memref<1x128xf32, #tpu.memory_space<vmem>>, %arg12: memref<128x128xbf16, #tpu.memory_space<vmem>>, %arg13: memref<1x128xf32, #tpu.memory_space<vmem>>, %arg14: memref<128x128xbf16, #tpu.memory_space<vmem>>, %arg15: memref<1x128xf32, #tpu.memory_space<vmem>>, %arg16: memref<128x128xbf16, #tpu.memory_space<vmem>>, %arg17: memref<1x128xf32, #tpu.memory_space<vmem>>, %arg18: memref<128x128xbf16, #tpu.memory_space<vmem>>, %arg19: memref<128x128xbf16, #tpu.memory_space<vmem>>, %arg20: memref<1x128xf32, #tpu.memory_space<vmem>>, %arg21: memref<128x128xbf16, #tpu.memory_space<vmem>>, %arg22: memref<1x128xf32, #tpu.memory_space<vmem>>, %arg23: memref<128x128xbf16, #tpu.memory_space<vmem>>, %arg24: memref<128x128xbf16, #tpu.memory_space<vmem>>, %arg25: memref<1x128xf32, #tpu.memory_space<vmem>>, %arg26: memref<1x128xf32, #tpu.memory_space<vmem>>, %arg27: memref<1x1xf32, #tpu.memory_space<vmem>>, %arg28: memref<128x128xbf16, #tpu.memory_space<vmem>>, %arg29: memref<1x128xf32, #tpu.memory_space<vmem>>, %arg30: memref<128x128xbf16, #tpu.memory_space<vmem>>, %arg31: memref<128x128xbf16, #tpu.memory_space<vmem>>, %arg32: memref<1x128xf32, #tpu.memory_space<vmem>>, %arg33: memref<1x128xf32, #tpu.memory_space<vmem>>, %arg34: memref<1x1xf32, #tpu.memory_space<vmem>>, %arg35: memref<128x128xbf16, #tpu.memory_space<vmem>>, %arg36: memref<1x128xf32, #tpu.memory_space<vmem>>, %arg37: memref<128x128xbf16, #tpu.memory_space<vmem>>, %arg38: memref<128x128xbf16, #tpu.memory_space<vmem>>, %arg39: memref<1x128xf32, #tpu.memory_space<vmem>>, %arg40: memref<1x128xf32, #tpu.memory_space<vmem>>, %arg41: memref<1x1xf32, #tpu.memory_space<vmem>>, %arg42: memref<128x128xbf16, #tpu.memory_space<vmem>>, %arg43: memref<1x128xf32, #tpu.memory_space<vmem>>, %arg44: memref<128x128xbf16, #tpu.memory_space<vmem>>, %arg45: memref<128x128xbf16, #tpu.memory_space<vmem>>, %arg46: memref<1x128xf32, #tpu.memory_space<vmem>>, %arg47: memref<1x128xf32, #tpu.memory_space<vmem>>, %arg48: memref<1x1xf32, #tpu.memory_space<vmem>>, %arg49: memref<128x128xbf16, #tpu.memory_space<vmem>>, %arg50: memref<1x128xf32, #tpu.memory_space<vmem>>, %arg51: memref<128x256xbf16, #tpu.memory_space<vmem>>, %arg52: memref<128x256xbf16, #tpu.memory_space<vmem>>, %arg53: memref<128x256xbf16, #tpu.memory_space<vmem>>, %arg54: memref<1x256xf32, #tpu.memory_space<vmem>>, %arg55: memref<256x128xbf16, #tpu.memory_space<vmem>>, %arg56: memref<1x128xf32, #tpu.memory_space<vmem>>, %arg57: memref<8x128xf32, #tpu.memory_space<vmem>>) attributes {dimension_semantics = [#tpu.dimension_semantics<parallel>], iteration_bounds = array<i64: 2>, scalar_prefetch = 0 : i64, scratch_operands = 0 : i64, tpu.core_type = #tpu.core_type<tc>, window_params = [{transform_indices = @transform_0, window_bounds = array<i64: 8, 8>}, {transform_indices = @transform_1, window_bounds = array<i64: 8, 4>}, {transform_indices = @transform_2, window_bounds = array<i64: 8, 4, 8>}, {transform_indices = @transform_3, window_bounds = array<i64: 8, 128>}, {transform_indices = @transform_4, window_bounds = array<i64: 8, 8, 128>}, {transform_indices = @transform_5, window_bounds = array<i64: 8, 8, 128>}, {transform_indices = @transform_6, window_bounds = array<i64: 8, 4, 128>}, {transform_indices = @transform_7, window_bounds = array<i64: 8, 4, 8, 128>}, {transform_indices = @transform_8, window_bounds = array<i64: 8, 4, 8, 128>}, {pipeline_mode = #tpu.pipeline_mode<synchronous>, transform_indices = @transform_9, window_bounds = array<i64: 128, 128>}, {pipeline_mode = #tpu.pipeline_mode<synchronous>, transform_indices = @transform_10, window_bounds = array<i64: 1, 128>}, {pipeline_mode = #tpu.pipeline_mode<synchronous>, transform_indices = @transform_11, window_bounds = array<i64: 128, 128>}, {pipeline_mode = #tpu.pipeline_mode<synchronous>, transform_indices = @transform_12, window_bounds = array<i64: 1, 128>}, {pipeline_mode = #tpu.pipeline_mode<synchronous>, transform_indices = @transform_13, window_bounds = array<i64: 128, 128>}, {pipeline_mode = #tpu.pipeline_mode<synchronous>, transform_indices = @transform_14, window_bounds = array<i64: 1, 128>}, {pipeline_mode = #tpu.pipeline_mode<synchronous>, transform_indices = @transform_15, window_bounds = array<i64: 128, 128>}, {pipeline_mode = #tpu.pipeline_mode<synchronous>, transform_indices = @transform_16, window_bounds = array<i64: 1, 128>}, {pipeline_mode = #tpu.pipeline_mode<synchronous>, transform_indices = @transform_17, window_bounds = array<i64: 128, 128>}, {pipeline_mode = #tpu.pipeline_mode<synchronous>, transform_indices = @transform_18, window_bounds = array<i64: 128, 128>}, {pipeline_mode = #tpu.pipeline_mode<synchronous>, transform_indices = @transform_19, window_bounds = array<i64: 1, 128>}, {pipeline_mode = #tpu.pipeline_mode<synchronous>, transform_indices = @transform_20, window_bounds = array<i64: 128, 128>}, {pipeline_mode = #tpu.pipeline_mode<synchronous>, transform_indices = @transform_21, window_bounds = array<i64: 1, 128>}, {pipeline_mode = #tpu.pipeline_mode<synchronous>, transform_indices = @transform_22, window_bounds = array<i64: 128, 128>}, {pipeline_mode = #tpu.pipeline_mode<synchronous>, transform_indices = @transform_23, window_bounds = array<i64: 128, 128>}, {pipeline_mode = #tpu.pipeline_mode<synchronous>, transform_indices = @transform_24, window_bounds = array<i64: 1, 128>}, {pipeline_mode = #tpu.pipeline_mode<synchronous>, transform_indices = @transform_25, window_bounds = array<i64: 1, 128>}, {pipeline_mode = #tpu.pipeline_mode<synchronous>, transform_indices = @transform_26, window_bounds = array<i64: 1, 1>}, {pipeline_mode = #tpu.pipeline_mode<synchronous>, transform_indices = @transform_27, window_bounds = array<i64: 128, 128>}, {pipeline_mode = #tpu.pipeline_mode<synchronous>, transform_indices = @transform_28, window_bounds = array<i64: 1, 128>}, {pipeline_mode = #tpu.pipeline_mode<synchronous>, transform_indices = @transform_29, window_bounds = array<i64: 128, 128>}, {pipeline_mode = #tpu.pipeline_mode<synchronous>, transform_indices = @transform_30, window_bounds = array<i64: 128, 128>}, {pipeline_mode = #tpu.pipeline_mode<synchronous>, transform_indices = @transform_31, window_bounds = array<i64: 1, 128>}, {pipeline_mode = #tpu.pipeline_mode<synchronous>, transform_indices = @transform_32, window_bounds = array<i64: 1, 128>}, {pipeline_mode = #tpu.pipeline_mode<synchronous>, transform_indices = @transform_33, window_bounds = array<i64: 1, 1>}, {pipeline_mode = #tpu.pipeline_mode<synchronous>, transform_indices = @transform_34, window_bounds = array<i64: 128, 128>}, {pipeline_mode = #tpu.pipeline_mode<synchronous>, transform_indices = @transform_35, window_bounds = array<i64: 1, 128>}, {pipeline_mode = #tpu.pipeline_mode<synchronous>, transform_indices = @transform_36, window_bounds = array<i64: 128, 128>}, {pipeline_mode = #tpu.pipeline_mode<synchronous>, transform_indices = @transform_37, window_bounds = array<i64: 128, 128>}, {pipeline_mode = #tpu.pipeline_mode<synchronous>, transform_indices = @transform_38, window_bounds = array<i64: 1, 128>}, {pipeline_mode = #tpu.pipeline_mode<synchronous>, transform_indices = @transform_39, window_bounds = array<i64: 1, 128>}, {pipeline_mode = #tpu.pipeline_mode<synchronous>, transform_indices = @transform_40, window_bounds = array<i64: 1, 1>}, {pipeline_mode = #tpu.pipeline_mode<synchronous>, transform_indices = @transform_41, window_bounds = array<i64: 128, 128>}, {pipeline_mode = #tpu.pipeline_mode<synchronous>, transform_indices = @transform_42, window_bounds = array<i64: 1, 128>}, {pipeline_mode = #tpu.pipeline_mode<synchronous>, transform_indices = @transform_43, window_bounds = array<i64: 128, 128>}, {pipeline_mode = #tpu.pipeline_mode<synchronous>, transform_indices = @transform_44, window_bounds = array<i64: 128, 128>}, {pipeline_mode = #tpu.pipeline_mode<synchronous>, transform_indices = @transform_45, window_bounds = array<i64: 1, 128>}, {pipeline_mode = #tpu.pipeline_mode<synchronous>, transform_indices = @transform_46, window_bounds = array<i64: 1, 128>}, {pipeline_mode = #tpu.pipeline_mode<synchronous>, transform_indices = @transform_47, window_bounds = array<i64: 1, 1>}, {pipeline_mode = #tpu.pipeline_mode<synchronous>, transform_indices = @transform_48, window_bounds = array<i64: 128, 128>}, {pipeline_mode = #tpu.pipeline_mode<synchronous>, transform_indices = @transform_49, window_bounds = array<i64: 1, 128>}, {pipeline_mode = #tpu.pipeline_mode<synchronous>, transform_indices = @transform_50, window_bounds = array<i64: 128, 256>}, {pipeline_mode = #tpu.pipeline_mode<synchronous>, transform_indices = @transform_51, window_bounds = array<i64: 128, 256>}, {pipeline_mode = #tpu.pipeline_mode<synchronous>, transform_indices = @transform_52, window_bounds = array<i64: 128, 256>}, {pipeline_mode = #tpu.pipeline_mode<synchronous>, transform_indices = @transform_53, window_bounds = array<i64: 1, 256>}, {pipeline_mode = #tpu.pipeline_mode<synchronous>, transform_indices = @transform_54, window_bounds = array<i64: 256, 128>}, {pipeline_mode = #tpu.pipeline_mode<synchronous>, transform_indices = @transform_55, window_bounds = array<i64: 1, 128>}, {transform_indices = @transform_56, window_bounds = array<i64: 8, 128>}]} {
    %c0 = arith.constant 0 : index
    %c0_0 = arith.constant 0 : index
    %0 = vector.load %arg1[%c0, %c0_0] : memref<8x8xi32, #tpu.memory_space<vmem>>, vector<8x8xi32>
    %c0_1 = arith.constant 0 : index
    %c0_2 = arith.constant 0 : index
    %1 = vector.load %arg2[%c0_1, %c0_2] : memref<8x4xi32, #tpu.memory_space<vmem>>, vector<8x4xi32>
    %c0_3 = arith.constant 0 : index
    %c0_4 = arith.constant 0 : index
    %c0_5 = arith.constant 0 : index
    %2 = vector.load %arg3[%c0_3, %c0_4, %c0_5] : memref<8x4x8xi32, #tpu.memory_space<vmem>>, vector<8x4x8xi32>
    %c0_6 = arith.constant 0 : index
    %c0_7 = arith.constant 0 : index
    %3 = vector.load %arg4[%c0_6, %c0_7] : memref<8x128xbf16, #tpu.memory_space<vmem>>, vector<8x128xbf16>
    %c0_8 = arith.constant 0 : index
    %c0_9 = arith.constant 0 : index
    %c0_10 = arith.constant 0 : index
    %4 = vector.load %arg5[%c0_8, %c0_9, %c0_10] : memref<8x8x128xbf16, #tpu.memory_space<vmem>>, vector<8x8x128xbf16>
    %c0_11 = arith.constant 0 : index
    %c0_12 = arith.constant 0 : index
    %c0_13 = arith.constant 0 : index
    %5 = vector.load %arg6[%c0_11, %c0_12, %c0_13] : memref<8x8x128xbf16, #tpu.memory_space<vmem>>, vector<8x8x128xbf16>
    %c0_14 = arith.constant 0 : index
    %c0_15 = arith.constant 0 : index
    %c0_16 = arith.constant 0 : index
    %6 = vector.load %arg7[%c0_14, %c0_15, %c0_16] : memref<8x4x128xbf16, #tpu.memory_space<vmem>>, vector<8x4x128xbf16>
    %c0_17 = arith.constant 0 : index
    %c0_18 = arith.constant 0 : index
    %c0_19 = arith.constant 0 : index
    %c0_20 = arith.constant 0 : index
    %7 = vector.load %arg8[%c0_17, %c0_18, %c0_19, %c0_20] : memref<8x4x8x128xbf16, #tpu.memory_space<vmem>>, vector<8x4x8x128xbf16>
    %c0_21 = arith.constant 0 : index
    %c0_22 = arith.constant 0 : index
    %c0_23 = arith.constant 0 : index
    %c0_24 = arith.constant 0 : index
    %8 = vector.load %arg9[%c0_21, %c0_22, %c0_23, %c0_24] : memref<8x4x8x128xbf16, #tpu.memory_space<vmem>>, vector<8x4x8x128xbf16>
    %c0_25 = arith.constant 0 : index
    %c0_26 = arith.constant 0 : index
    %9 = vector.load %arg10[%c0_25, %c0_26] : memref<128x128xbf16, #tpu.memory_space<vmem>>, vector<128x128xbf16>
    %c0_27 = arith.constant 0 : index
    %c0_28 = arith.constant 0 : index
    %10 = vector.load %arg11[%c0_27, %c0_28] : memref<1x128xf32, #tpu.memory_space<vmem>>, vector<1x128xf32>
    %c0_29 = arith.constant 0 : index
    %c0_30 = arith.constant 0 : index
    %11 = vector.load %arg12[%c0_29, %c0_30] : memref<128x128xbf16, #tpu.memory_space<vmem>>, vector<128x128xbf16>
    %c0_31 = arith.constant 0 : index
    %c0_32 = arith.constant 0 : index
    %12 = vector.load %arg13[%c0_31, %c0_32] : memref<1x128xf32, #tpu.memory_space<vmem>>, vector<1x128xf32>
    %c0_33 = arith.constant 0 : index
    %c0_34 = arith.constant 0 : index
    %13 = vector.load %arg14[%c0_33, %c0_34] : memref<128x128xbf16, #tpu.memory_space<vmem>>, vector<128x128xbf16>
    %c0_35 = arith.constant 0 : index
    %c0_36 = arith.constant 0 : index
    %14 = vector.load %arg15[%c0_35, %c0_36] : memref<1x128xf32, #tpu.memory_space<vmem>>, vector<1x128xf32>
    %c0_37 = arith.constant 0 : index
    %c0_38 = arith.constant 0 : index
    %15 = vector.load %arg16[%c0_37, %c0_38] : memref<128x128xbf16, #tpu.memory_space<vmem>>, vector<128x128xbf16>
    %c0_39 = arith.constant 0 : index
    %c0_40 = arith.constant 0 : index
    %16 = vector.load %arg17[%c0_39, %c0_40] : memref<1x128xf32, #tpu.memory_space<vmem>>, vector<1x128xf32>
    %c0_41 = arith.constant 0 : index
    %c0_42 = arith.constant 0 : index
    %17 = vector.load %arg18[%c0_41, %c0_42] : memref<128x128xbf16, #tpu.memory_space<vmem>>, vector<128x128xbf16>
    %c0_43 = arith.constant 0 : index
    %c0_44 = arith.constant 0 : index
    %18 = vector.load %arg19[%c0_43, %c0_44] : memref<128x128xbf16, #tpu.memory_space<vmem>>, vector<128x128xbf16>
    %c0_45 = arith.constant 0 : index
    %c0_46 = arith.constant 0 : index
    %19 = vector.load %arg20[%c0_45, %c0_46] : memref<1x128xf32, #tpu.memory_space<vmem>>, vector<1x128xf32>
    %c0_47 = arith.constant 0 : index
    %c0_48 = arith.constant 0 : index
    %20 = vector.load %arg21[%c0_47, %c0_48] : memref<128x128xbf16, #tpu.memory_space<vmem>>, vector<128x128xbf16>
    %c0_49 = arith.constant 0 : index
    %c0_50 = arith.constant 0 : index
    %21 = vector.load %arg22[%c0_49, %c0_50] : memref<1x128xf32, #tpu.memory_space<vmem>>, vector<1x128xf32>
    %c0_51 = arith.constant 0 : index
    %c0_52 = arith.constant 0 : index
    %22 = vector.load %arg23[%c0_51, %c0_52] : memref<128x128xbf16, #tpu.memory_space<vmem>>, vector<128x128xbf16>
    %c0_53 = arith.constant 0 : index
    %c0_54 = arith.constant 0 : index
    %23 = vector.load %arg24[%c0_53, %c0_54] : memref<128x128xbf16, #tpu.memory_space<vmem>>, vector<128x128xbf16>
    %c0_55 = arith.constant 0 : index
    %c0_56 = arith.constant 0 : index
    %24 = vector.load %arg25[%c0_55, %c0_56] : memref<1x128xf32, #tpu.memory_space<vmem>>, vector<1x128xf32>
    %c0_57 = arith.constant 0 : index
    %c0_58 = arith.constant 0 : index
    %25 = vector.load %arg26[%c0_57, %c0_58] : memref<1x128xf32, #tpu.memory_space<vmem>>, vector<1x128xf32>
    %c0_59 = arith.constant 0 : index
    %c0_60 = arith.constant 0 : index
    %26 = vector.load %arg27[%c0_59, %c0_60] : memref<1x1xf32, #tpu.memory_space<vmem>>, vector<1x1xf32>
    %c0_61 = arith.constant 0 : index
    %c0_62 = arith.constant 0 : index
    %27 = vector.load %arg28[%c0_61, %c0_62] : memref<128x128xbf16, #tpu.memory_space<vmem>>, vector<128x128xbf16>
    %c0_63 = arith.constant 0 : index
    %c0_64 = arith.constant 0 : index
    %28 = vector.load %arg29[%c0_63, %c0_64] : memref<1x128xf32, #tpu.memory_space<vmem>>, vector<1x128xf32>
    %c0_65 = arith.constant 0 : index
    %c0_66 = arith.constant 0 : index
    %29 = vector.load %arg30[%c0_65, %c0_66] : memref<128x128xbf16, #tpu.memory_space<vmem>>, vector<128x128xbf16>
    %c0_67 = arith.constant 0 : index
    %c0_68 = arith.constant 0 : index
    %30 = vector.load %arg31[%c0_67, %c0_68] : memref<128x128xbf16, #tpu.memory_space<vmem>>, vector<128x128xbf16>
    %c0_69 = arith.constant 0 : index
    %c0_70 = arith.constant 0 : index
    %31 = vector.load %arg32[%c0_69, %c0_70] : memref<1x128xf32, #tpu.memory_space<vmem>>, vector<1x128xf32>
    %c0_71 = arith.constant 0 : index
    %c0_72 = arith.constant 0 : index
    %32 = vector.load %arg33[%c0_71, %c0_72] : memref<1x128xf32, #tpu.memory_space<vmem>>, vector<1x128xf32>
    %c0_73 = arith.constant 0 : index
    %c0_74 = arith.constant 0 : index
    %33 = vector.load %arg34[%c0_73, %c0_74] : memref<1x1xf32, #tpu.memory_space<vmem>>, vector<1x1xf32>
    %c0_75 = arith.constant 0 : index
    %c0_76 = arith.constant 0 : index
    %34 = vector.load %arg35[%c0_75, %c0_76] : memref<128x128xbf16, #tpu.memory_space<vmem>>, vector<128x128xbf16>
    %c0_77 = arith.constant 0 : index
    %c0_78 = arith.constant 0 : index
    %35 = vector.load %arg36[%c0_77, %c0_78] : memref<1x128xf32, #tpu.memory_space<vmem>>, vector<1x128xf32>
    %c0_79 = arith.constant 0 : index
    %c0_80 = arith.constant 0 : index
    %36 = vector.load %arg37[%c0_79, %c0_80] : memref<128x128xbf16, #tpu.memory_space<vmem>>, vector<128x128xbf16>
    %c0_81 = arith.constant 0 : index
    %c0_82 = arith.constant 0 : index
    %37 = vector.load %arg38[%c0_81, %c0_82] : memref<128x128xbf16, #tpu.memory_space<vmem>>, vector<128x128xbf16>
    %c0_83 = arith.constant 0 : index
    %c0_84 = arith.constant 0 : index
    %38 = vector.load %arg39[%c0_83, %c0_84] : memref<1x128xf32, #tpu.memory_space<vmem>>, vector<1x128xf32>
    %c0_85 = arith.constant 0 : index
    %c0_86 = arith.constant 0 : index
    %39 = vector.load %arg40[%c0_85, %c0_86] : memref<1x128xf32, #tpu.memory_space<vmem>>, vector<1x128xf32>
    %c0_87 = arith.constant 0 : index
    %c0_88 = arith.constant 0 : index
    %40 = vector.load %arg41[%c0_87, %c0_88] : memref<1x1xf32, #tpu.memory_space<vmem>>, vector<1x1xf32>
    %c0_89 = arith.constant 0 : index
    %c0_90 = arith.constant 0 : index
    %41 = vector.load %arg42[%c0_89, %c0_90] : memref<128x128xbf16, #tpu.memory_space<vmem>>, vector<128x128xbf16>
    %c0_91 = arith.constant 0 : index
    %c0_92 = arith.constant 0 : index
    %42 = vector.load %arg43[%c0_91, %c0_92] : memref<1x128xf32, #tpu.memory_space<vmem>>, vector<1x128xf32>
    %c0_93 = arith.constant 0 : index
    %c0_94 = arith.constant 0 : index
    %43 = vector.load %arg44[%c0_93, %c0_94] : memref<128x128xbf16, #tpu.memory_space<vmem>>, vector<128x128xbf16>
    %c0_95 = arith.constant 0 : index
    %c0_96 = arith.constant 0 : index
    %44 = vector.load %arg45[%c0_95, %c0_96] : memref<128x128xbf16, #tpu.memory_space<vmem>>, vector<128x128xbf16>
    %c0_97 = arith.constant 0 : index
    %c0_98 = arith.constant 0 : index
    %45 = vector.load %arg46[%c0_97, %c0_98] : memref<1x128xf32, #tpu.memory_space<vmem>>, vector<1x128xf32>
    %c0_99 = arith.constant 0 : index
    %c0_100 = arith.constant 0 : index
    %46 = vector.load %arg47[%c0_99, %c0_100] : memref<1x128xf32, #tpu.memory_space<vmem>>, vector<1x128xf32>
    %c0_101 = arith.constant 0 : index
    %c0_102 = arith.constant 0 : index
    %47 = vector.load %arg48[%c0_101, %c0_102] : memref<1x1xf32, #tpu.memory_space<vmem>>, vector<1x1xf32>
    %c0_103 = arith.constant 0 : index
    %c0_104 = arith.constant 0 : index
    %48 = vector.load %arg49[%c0_103, %c0_104] : memref<128x128xbf16, #tpu.memory_space<vmem>>, vector<128x128xbf16>
    %c0_105 = arith.constant 0 : index
    %c0_106 = arith.constant 0 : index
    %49 = vector.load %arg50[%c0_105, %c0_106] : memref<1x128xf32, #tpu.memory_space<vmem>>, vector<1x128xf32>
    %c0_107 = arith.constant 0 : index
    %c0_108 = arith.constant 0 : index
    %50 = vector.load %arg51[%c0_107, %c0_108] : memref<128x256xbf16, #tpu.memory_space<vmem>>, vector<128x256xbf16>
    %c0_109 = arith.constant 0 : index
    %c0_110 = arith.constant 0 : index
    %51 = vector.load %arg52[%c0_109, %c0_110] : memref<128x256xbf16, #tpu.memory_space<vmem>>, vector<128x256xbf16>
    %c0_111 = arith.constant 0 : index
    %c0_112 = arith.constant 0 : index
    %52 = vector.load %arg53[%c0_111, %c0_112] : memref<128x256xbf16, #tpu.memory_space<vmem>>, vector<128x256xbf16>
    %c0_113 = arith.constant 0 : index
    %c0_114 = arith.constant 0 : index
    %53 = vector.load %arg54[%c0_113, %c0_114] : memref<1x256xf32, #tpu.memory_space<vmem>>, vector<1x256xf32>
    %c0_115 = arith.constant 0 : index
    %c0_116 = arith.constant 0 : index
    %54 = vector.load %arg55[%c0_115, %c0_116] : memref<256x128xbf16, #tpu.memory_space<vmem>>, vector<256x128xbf16>
    %c0_117 = arith.constant 0 : index
    %c0_118 = arith.constant 0 : index
    %55 = vector.load %arg56[%c0_117, %c0_118] : memref<1x128xf32, #tpu.memory_space<vmem>>, vector<1x128xf32>
    %c0_i32 = arith.constant 0 : i32
    %56 = vector.broadcast %c0_i32 : i32 to vector<8x8xi32>
    %57 = arith.cmpi sgt, %0, %56 : vector<8x8xi32>
    %58 = arith.extui %57 : vector<8x8xi1> to vector<8x8xi32>
    %59 = arith.sitofp %58 : vector<8x8xi32> to vector<8x8xf32>
    %60 = vector.shape_cast %59 : vector<8x8xf32> to vector<8x8x1xf32>
    %c0_i32_119 = arith.constant 0 : i32
    %61 = vector.broadcast %c0_i32_119 : i32 to vector<8x4xi32>
    %62 = arith.cmpi sgt, %1, %61 : vector<8x4xi32>
    %63 = arith.extui %62 : vector<8x4xi1> to vector<8x4xi32>
    %64 = arith.sitofp %63 : vector<8x4xi32> to vector<8x4xf32>
    %65 = vector.shape_cast %64 : vector<8x4xf32> to vector<8x4x1xf32>
    %c0_i32_120 = arith.constant 0 : i32
    %66 = vector.broadcast %c0_i32_120 : i32 to vector<8x4x8xi32>
    %67 = arith.cmpi sgt, %2, %66 : vector<8x4x8xi32>
    %68 = arith.extui %67 : vector<8x4x8xi1> to vector<8x4x8xi32>
    %69 = arith.sitofp %68 : vector<8x4x8xi32> to vector<8x4x8xf32>
    %70 = vector.shape_cast %69 : vector<8x4x8xf32> to vector<8x4x8x1xf32>
    %cst = arith.constant dense<0.000000e+00> : vector<8x128xf32>
    %71 = tpu.matmul %3, %9, %cst {dimension_numbers = #tpu.dot_dimension_numbers<[1], [0], [0], [1], [0, 0, 1, 1], [], []>} : vector<8x128xbf16>, vector<128x128xbf16>, vector<8x128xf32> -> vector<8x128xf32>
    %cst_121 = arith.constant dense<0.000000e+00> : vector<8x128xf32>
    %72 = tpu.matmul %3, %11, %cst_121 {dimension_numbers = #tpu.dot_dimension_numbers<[1], [0], [0], [1], [0, 0, 1, 1], [], []>} : vector<8x128xbf16>, vector<128x128xbf16>, vector<8x128xf32> -> vector<8x128xf32>
    %cst_122 = arith.constant dense<0.000000e+00> : vector<8x128xf32>
    %73 = tpu.matmul %3, %15, %cst_122 {dimension_numbers = #tpu.dot_dimension_numbers<[1], [0], [0], [1], [0, 0, 1, 1], [], []>} : vector<8x128xbf16>, vector<128x128xbf16>, vector<8x128xf32> -> vector<8x128xf32>
    %74 = vector.shape_cast %6 : vector<8x4x128xbf16> to vector<32x128xbf16>
    %cst_123 = arith.constant dense<0.000000e+00> : vector<32x128xf32>
    %75 = tpu.matmul %74, %13, %cst_123 {dimension_numbers = #tpu.dot_dimension_numbers<[1], [0], [0], [1], [0, 0, 1, 1], [], []>} : vector<32x128xbf16>, vector<128x128xbf16>, vector<32x128xf32> -> vector<32x128xf32>
    %76 = vector.shape_cast %75 : vector<32x128xf32> to vector<8x4x128xf32>
    %77 = vector.shape_cast %4 : vector<8x8x128xbf16> to vector<64x128xbf16>
    %78 = vector.shape_cast %5 : vector<8x8x128xbf16> to vector<64x128xbf16>
    %cst_124 = arith.constant dense<0.000000e+00> : vector<64x128xf32>
    %79 = tpu.matmul %77, %17, %cst_124 {dimension_numbers = #tpu.dot_dimension_numbers<[1], [0], [0], [1], [0, 0, 1, 1], [], []>} : vector<64x128xbf16>, vector<128x128xbf16>, vector<64x128xf32> -> vector<64x128xf32>
    %cst_125 = arith.constant dense<0.000000e+00> : vector<64x128xf32>
    %80 = tpu.matmul %78, %18, %cst_125 {dimension_numbers = #tpu.dot_dimension_numbers<[1], [0], [0], [1], [0, 0, 1, 1], [], []>} : vector<64x128xbf16>, vector<128x128xbf16>, vector<64x128xf32> -> vector<64x128xf32>
    %81 = arith.addf %79, %80 : vector<64x128xf32>
    %82 = vector.broadcast %19 : vector<1x128xf32> to vector<64x128xf32>
    %83 = arith.addf %81, %82 : vector<64x128xf32>
    %cst_126 = arith.constant 0.000000e+00 : f32
    %84 = vector.broadcast %cst_126 : f32 to vector<64x128xf32>
    %85 = arith.cmpf ogt, %83, %84 : vector<64x128xf32>
    %cst_127 = arith.constant 2.000000e-01 : f32
    %86 = vector.broadcast %cst_127 : f32 to vector<64x128xf32>
    %87 = arith.mulf %86, %83 : vector<64x128xf32>
    %88 = arith.select %85, %83, %87 : vector<64x128xi1>, vector<64x128xf32>
    %89 = arith.truncf %88 : vector<64x128xf32> to vector<64x128xbf16>
    %cst_128 = arith.constant dense<0.000000e+00> : vector<64x128xf32>
    %90 = tpu.matmul %89, %20, %cst_128 {dimension_numbers = #tpu.dot_dimension_numbers<[1], [0], [0], [1], [0, 0, 1, 1], [], []>} : vector<64x128xbf16>, vector<128x128xbf16>, vector<64x128xf32> -> vector<64x128xf32>
    %91 = vector.broadcast %21 : vector<1x128xf32> to vector<64x128xf32>
    %92 = arith.addf %90, %91 : vector<64x128xf32>
    %93 = arith.truncf %92 : vector<64x128xf32> to vector<64x128xbf16>
    %cst_129 = arith.constant dense<0.000000e+00> : vector<64x128xf32>
    %94 = tpu.matmul %93, %9, %cst_129 {dimension_numbers = #tpu.dot_dimension_numbers<[1], [0], [0], [1], [0, 0, 1, 1], [], []>} : vector<64x128xbf16>, vector<128x128xbf16>, vector<64x128xf32> -> vector<64x128xf32>
    %95 = vector.broadcast %10 : vector<1x128xf32> to vector<64x128xf32>
    %96 = arith.addf %94, %95 : vector<64x128xf32>
    %97 = vector.shape_cast %71 : vector<8x128xf32> to vector<8x1x128xf32>
    %98 = vector.broadcast %60 : vector<8x8x1xf32> to vector<8x8x128xf32>
    %99 = vector.broadcast %97 : vector<8x1x128xf32> to vector<8x8x128xf32>
    %100 = arith.mulf %98, %99 : vector<8x8x128xf32>
    %101 = vector.shape_cast %10 : vector<1x128xf32> to vector<1x1x128xf32>
    %102 = vector.broadcast %101 : vector<1x1x128xf32> to vector<8x8x128xf32>
    %103 = arith.addf %100, %102 : vector<8x8x128xf32>
    %104 = vector.shape_cast %103 : vector<8x8x128xf32> to vector<64x128xf32>
    %105 = arith.truncf %96 : vector<64x128xf32> to vector<64x128xbf16>
    %cst_130 = arith.constant dense<0.000000e+00> : vector<64x128xf32>
    %106 = tpu.matmul %105, %22, %cst_130 {dimension_numbers = #tpu.dot_dimension_numbers<[1], [0], [0], [1], [0, 0, 1, 1], [], []>} : vector<64x128xbf16>, vector<128x128xbf16>, vector<64x128xf32> -> vector<64x128xf32>
    %107 = arith.truncf %104 : vector<64x128xf32> to vector<64x128xbf16>
    %cst_131 = arith.constant dense<0.000000e+00> : vector<64x128xf32>
    %108 = tpu.matmul %107, %23, %cst_131 {dimension_numbers = #tpu.dot_dimension_numbers<[1], [0], [0], [1], [0, 0, 1, 1], [], []>} : vector<64x128xbf16>, vector<128x128xbf16>, vector<64x128xf32> -> vector<64x128xf32>
    %109 = arith.addf %106, %108 : vector<64x128xf32>
    %110 = vector.broadcast %24 : vector<1x128xf32> to vector<64x128xf32>
    %111 = arith.addf %109, %110 : vector<64x128xf32>
    %cst_132 = arith.constant 0.000000e+00 : f32
    %112 = vector.broadcast %cst_132 : f32 to vector<64x128xf32>
    %113 = arith.cmpf ogt, %111, %112 : vector<64x128xf32>
    %cst_133 = arith.constant 2.000000e-01 : f32
    %114 = vector.broadcast %cst_133 : f32 to vector<64x128xf32>
    %115 = arith.mulf %114, %111 : vector<64x128xf32>
    %116 = arith.select %113, %111, %115 : vector<64x128xi1>, vector<64x128xf32>
    %117 = vector.shape_cast %116 : vector<64x128xf32> to vector<8x8x128xf32>
    %118 = vector.shape_cast %25 : vector<1x128xf32> to vector<1x1x128xf32>
    %119 = vector.broadcast %118 : vector<1x1x128xf32> to vector<8x8x128xf32>
    %120 = arith.mulf %117, %119 : vector<8x8x128xf32>
    %cst_134 = arith.constant dense<0.000000e+00> : vector<8x8xf32>
    %121 = vector.multi_reduction <add>, %120, %cst_134 [2] : vector<8x8x128xf32> to vector<8x8xf32>
    %122 = vector.shape_cast %121 : vector<8x8xf32> to vector<8x8x1xf32>
    %123 = vector.shape_cast %26 : vector<1x1xf32> to vector<1x1x1xf32>
    %124 = vector.broadcast %123 : vector<1x1x1xf32> to vector<8x8x1xf32>
    %125 = arith.addf %122, %124 : vector<8x8x1xf32>
    %cst_135 = arith.constant 0.000000e+00 : f32
    %126 = vector.broadcast %cst_135 : f32 to vector<8x8x1xf32>
    %127 = arith.cmpf ogt, %60, %126 : vector<8x8x1xf32>
    %cst_136 = arith.constant -1.000000e+30 : f32
    %128 = vector.broadcast %cst_136 : f32 to vector<8x8x1xf32>
    %129 = arith.select %127, %125, %128 : vector<8x8x1xi1>, vector<8x8x1xf32>
    %cst_137 = arith.constant dense<0xFF800000> : vector<8x1xf32>
    %130 = vector.multi_reduction <maximumf>, %129, %cst_137 [1] : vector<8x8x1xf32> to vector<8x1xf32>
    %131 = vector.shape_cast %130 : vector<8x1xf32> to vector<8x1x1xf32>
    %132 = vector.broadcast %131 : vector<8x1x1xf32> to vector<8x8x1xf32>
    %133 = arith.subf %129, %132 : vector<8x8x1xf32>
    %134 = math.exp %133 : vector<8x8x1xf32>
    %135 = arith.mulf %134, %60 : vector<8x8x1xf32>
    %cst_138 = arith.constant dense<0.000000e+00> : vector<8x1xf32>
    %136 = vector.multi_reduction <add>, %135, %cst_138 [1] : vector<8x8x1xf32> to vector<8x1xf32>
    %137 = vector.shape_cast %136 : vector<8x1xf32> to vector<8x1x1xf32>
    %cst_139 = arith.constant 1.000000e-10 : f32
    %138 = vector.broadcast %cst_139 : f32 to vector<8x1x1xf32>
    %139 = arith.addf %137, %138 : vector<8x1x1xf32>
    %140 = tpu.reciprocal %139 {approx = true} : vector<8x1x1xf32> -> vector<8x1x1xf32>
    %141 = vector.broadcast %140 : vector<8x1x1xf32> to vector<8x8x1xf32>
    %142 = arith.mulf %135, %141 : vector<8x8x1xf32>
    %143 = vector.shape_cast %96 : vector<64x128xf32> to vector<8x8x128xf32>
    %144 = vector.broadcast %142 : vector<8x8x1xf32> to vector<8x8x128xf32>
    %145 = arith.mulf %144, %143 : vector<8x8x128xf32>
    %cst_140 = arith.constant dense<0.000000e+00> : vector<8x128xf32>
    %146 = vector.multi_reduction <add>, %145, %cst_140 [1] : vector<8x8x128xf32> to vector<8x128xf32>
    %147 = arith.truncf %146 : vector<8x128xf32> to vector<8x128xbf16>
    %cst_141 = arith.constant dense<0.000000e+00> : vector<8x128xf32>
    %148 = tpu.matmul %147, %27, %cst_141 {dimension_numbers = #tpu.dot_dimension_numbers<[1], [0], [0], [1], [0, 0, 1, 1], [], []>} : vector<8x128xbf16>, vector<128x128xbf16>, vector<8x128xf32> -> vector<8x128xf32>
    %149 = vector.broadcast %28 : vector<1x128xf32> to vector<8x128xf32>
    %150 = arith.addf %148, %149 : vector<8x128xf32>
    %cst_142 = arith.constant 0.000000e+00 : f32
    %151 = vector.broadcast %cst_142 : f32 to vector<8x128xf32>
    %152 = arith.maximumf %150, %151 : vector<8x128xf32>
    %cst_143 = arith.constant dense<0.000000e+00> : vector<32x128xf32>
    %153 = tpu.matmul %74, %11, %cst_143 {dimension_numbers = #tpu.dot_dimension_numbers<[1], [0], [0], [1], [0, 0, 1, 1], [], []>} : vector<32x128xbf16>, vector<128x128xbf16>, vector<32x128xf32> -> vector<32x128xf32>
    %154 = vector.broadcast %12 : vector<1x128xf32> to vector<32x128xf32>
    %155 = arith.addf %153, %154 : vector<32x128xf32>
    %156 = vector.shape_cast %72 : vector<8x128xf32> to vector<8x1x128xf32>
    %157 = vector.broadcast %65 : vector<8x4x1xf32> to vector<8x4x128xf32>
    %158 = vector.broadcast %156 : vector<8x1x128xf32> to vector<8x4x128xf32>
    %159 = arith.mulf %157, %158 : vector<8x4x128xf32>
    %160 = vector.shape_cast %12 : vector<1x128xf32> to vector<1x1x128xf32>
    %161 = vector.broadcast %160 : vector<1x1x128xf32> to vector<8x4x128xf32>
    %162 = arith.addf %159, %161 : vector<8x4x128xf32>
    %163 = vector.shape_cast %162 : vector<8x4x128xf32> to vector<32x128xf32>
    %164 = arith.truncf %155 : vector<32x128xf32> to vector<32x128xbf16>
    %cst_144 = arith.constant dense<0.000000e+00> : vector<32x128xf32>
    %165 = tpu.matmul %164, %29, %cst_144 {dimension_numbers = #tpu.dot_dimension_numbers<[1], [0], [0], [1], [0, 0, 1, 1], [], []>} : vector<32x128xbf16>, vector<128x128xbf16>, vector<32x128xf32> -> vector<32x128xf32>
    %166 = arith.truncf %163 : vector<32x128xf32> to vector<32x128xbf16>
    %cst_145 = arith.constant dense<0.000000e+00> : vector<32x128xf32>
    %167 = tpu.matmul %166, %30, %cst_145 {dimension_numbers = #tpu.dot_dimension_numbers<[1], [0], [0], [1], [0, 0, 1, 1], [], []>} : vector<32x128xbf16>, vector<128x128xbf16>, vector<32x128xf32> -> vector<32x128xf32>
    %168 = arith.addf %165, %167 : vector<32x128xf32>
    %169 = vector.broadcast %31 : vector<1x128xf32> to vector<32x128xf32>
    %170 = arith.addf %168, %169 : vector<32x128xf32>
    %cst_146 = arith.constant 0.000000e+00 : f32
    %171 = vector.broadcast %cst_146 : f32 to vector<32x128xf32>
    %172 = arith.cmpf ogt, %170, %171 : vector<32x128xf32>
    %cst_147 = arith.constant 2.000000e-01 : f32
    %173 = vector.broadcast %cst_147 : f32 to vector<32x128xf32>
    %174 = arith.mulf %173, %170 : vector<32x128xf32>
    %175 = arith.select %172, %170, %174 : vector<32x128xi1>, vector<32x128xf32>
    %176 = vector.shape_cast %175 : vector<32x128xf32> to vector<8x4x128xf32>
    %177 = vector.shape_cast %32 : vector<1x128xf32> to vector<1x1x128xf32>
    %178 = vector.broadcast %177 : vector<1x1x128xf32> to vector<8x4x128xf32>
    %179 = arith.mulf %176, %178 : vector<8x4x128xf32>
    %cst_148 = arith.constant dense<0.000000e+00> : vector<8x4xf32>
    %180 = vector.multi_reduction <add>, %179, %cst_148 [2] : vector<8x4x128xf32> to vector<8x4xf32>
    %181 = vector.shape_cast %180 : vector<8x4xf32> to vector<8x4x1xf32>
    %182 = vector.shape_cast %33 : vector<1x1xf32> to vector<1x1x1xf32>
    %183 = vector.broadcast %182 : vector<1x1x1xf32> to vector<8x4x1xf32>
    %184 = arith.addf %181, %183 : vector<8x4x1xf32>
    %cst_149 = arith.constant 0.000000e+00 : f32
    %185 = vector.broadcast %cst_149 : f32 to vector<8x4x1xf32>
    %186 = arith.cmpf ogt, %65, %185 : vector<8x4x1xf32>
    %cst_150 = arith.constant -1.000000e+30 : f32
    %187 = vector.broadcast %cst_150 : f32 to vector<8x4x1xf32>
    %188 = arith.select %186, %184, %187 : vector<8x4x1xi1>, vector<8x4x1xf32>
    %cst_151 = arith.constant dense<0xFF800000> : vector<8x1xf32>
    %189 = vector.multi_reduction <maximumf>, %188, %cst_151 [1] : vector<8x4x1xf32> to vector<8x1xf32>
    %190 = vector.shape_cast %189 : vector<8x1xf32> to vector<8x1x1xf32>
    %191 = vector.broadcast %190 : vector<8x1x1xf32> to vector<8x4x1xf32>
    %192 = arith.subf %188, %191 : vector<8x4x1xf32>
    %193 = math.exp %192 : vector<8x4x1xf32>
    %194 = arith.mulf %193, %65 : vector<8x4x1xf32>
    %cst_152 = arith.constant dense<0.000000e+00> : vector<8x1xf32>
    %195 = vector.multi_reduction <add>, %194, %cst_152 [1] : vector<8x4x1xf32> to vector<8x1xf32>
    %196 = vector.shape_cast %195 : vector<8x1xf32> to vector<8x1x1xf32>
    %cst_153 = arith.constant 1.000000e-10 : f32
    %197 = vector.broadcast %cst_153 : f32 to vector<8x1x1xf32>
    %198 = arith.addf %196, %197 : vector<8x1x1xf32>
    %199 = tpu.reciprocal %198 {approx = true} : vector<8x1x1xf32> -> vector<8x1x1xf32>
    %200 = vector.broadcast %199 : vector<8x1x1xf32> to vector<8x4x1xf32>
    %201 = arith.mulf %194, %200 : vector<8x4x1xf32>
    %202 = vector.shape_cast %155 : vector<32x128xf32> to vector<8x4x128xf32>
    %203 = vector.broadcast %201 : vector<8x4x1xf32> to vector<8x4x128xf32>
    %204 = arith.mulf %203, %202 : vector<8x4x128xf32>
    %cst_154 = arith.constant dense<0.000000e+00> : vector<8x128xf32>
    %205 = vector.multi_reduction <add>, %204, %cst_154 [1] : vector<8x4x128xf32> to vector<8x128xf32>
    %206 = arith.truncf %205 : vector<8x128xf32> to vector<8x128xbf16>
    %cst_155 = arith.constant dense<0.000000e+00> : vector<8x128xf32>
    %207 = tpu.matmul %206, %34, %cst_155 {dimension_numbers = #tpu.dot_dimension_numbers<[1], [0], [0], [1], [0, 0, 1, 1], [], []>} : vector<8x128xbf16>, vector<128x128xbf16>, vector<8x128xf32> -> vector<8x128xf32>
    %208 = vector.broadcast %35 : vector<1x128xf32> to vector<8x128xf32>
    %209 = arith.addf %207, %208 : vector<8x128xf32>
    %cst_156 = arith.constant 0.000000e+00 : f32
    %210 = vector.broadcast %cst_156 : f32 to vector<8x128xf32>
    %211 = arith.maximumf %209, %210 : vector<8x128xf32>
    %212 = vector.shape_cast %7 : vector<8x4x8x128xbf16> to vector<256x128xbf16>
    %213 = vector.shape_cast %8 : vector<8x4x8x128xbf16> to vector<256x128xbf16>
    %cst_157 = arith.constant dense<0.000000e+00> : vector<256x128xf32>
    %214 = tpu.matmul %212, %17, %cst_157 {dimension_numbers = #tpu.dot_dimension_numbers<[1], [0], [0], [1], [0, 0, 1, 1], [], []>} : vector<256x128xbf16>, vector<128x128xbf16>, vector<256x128xf32> -> vector<256x128xf32>
    %cst_158 = arith.constant dense<0.000000e+00> : vector<256x128xf32>
    %215 = tpu.matmul %213, %18, %cst_158 {dimension_numbers = #tpu.dot_dimension_numbers<[1], [0], [0], [1], [0, 0, 1, 1], [], []>} : vector<256x128xbf16>, vector<128x128xbf16>, vector<256x128xf32> -> vector<256x128xf32>
    %216 = arith.addf %214, %215 : vector<256x128xf32>
    %217 = vector.broadcast %19 : vector<1x128xf32> to vector<256x128xf32>
    %218 = arith.addf %216, %217 : vector<256x128xf32>
    %cst_159 = arith.constant 0.000000e+00 : f32
    %219 = vector.broadcast %cst_159 : f32 to vector<256x128xf32>
    %220 = arith.cmpf ogt, %218, %219 : vector<256x128xf32>
    %cst_160 = arith.constant 2.000000e-01 : f32
    %221 = vector.broadcast %cst_160 : f32 to vector<256x128xf32>
    %222 = arith.mulf %221, %218 : vector<256x128xf32>
    %223 = arith.select %220, %218, %222 : vector<256x128xi1>, vector<256x128xf32>
    %224 = arith.truncf %223 : vector<256x128xf32> to vector<256x128xbf16>
    %cst_161 = arith.constant dense<0.000000e+00> : vector<256x128xf32>
    %225 = tpu.matmul %224, %20, %cst_161 {dimension_numbers = #tpu.dot_dimension_numbers<[1], [0], [0], [1], [0, 0, 1, 1], [], []>} : vector<256x128xbf16>, vector<128x128xbf16>, vector<256x128xf32> -> vector<256x128xf32>
    %226 = vector.broadcast %21 : vector<1x128xf32> to vector<256x128xf32>
    %227 = arith.addf %225, %226 : vector<256x128xf32>
    %228 = arith.truncf %227 : vector<256x128xf32> to vector<256x128xbf16>
    %cst_162 = arith.constant dense<0.000000e+00> : vector<256x128xf32>
    %229 = tpu.matmul %228, %13, %cst_162 {dimension_numbers = #tpu.dot_dimension_numbers<[1], [0], [0], [1], [0, 0, 1, 1], [], []>} : vector<256x128xbf16>, vector<128x128xbf16>, vector<256x128xf32> -> vector<256x128xf32>
    %230 = vector.broadcast %14 : vector<1x128xf32> to vector<256x128xf32>
    %231 = arith.addf %229, %230 : vector<256x128xf32>
    %232 = vector.shape_cast %76 : vector<8x4x128xf32> to vector<8x4x1x128xf32>
    %233 = vector.broadcast %70 : vector<8x4x8x1xf32> to vector<8x4x8x128xf32>
    %234 = vector.broadcast %232 : vector<8x4x1x128xf32> to vector<8x4x8x128xf32>
    %235 = arith.mulf %233, %234 : vector<8x4x8x128xf32>
    %236 = vector.shape_cast %14 : vector<1x128xf32> to vector<1x1x1x128xf32>
    %237 = vector.broadcast %236 : vector<1x1x1x128xf32> to vector<8x4x8x128xf32>
    %238 = arith.addf %235, %237 : vector<8x4x8x128xf32>
    %239 = vector.shape_cast %238 : vector<8x4x8x128xf32> to vector<256x128xf32>
    %240 = arith.truncf %231 : vector<256x128xf32> to vector<256x128xbf16>
    %cst_163 = arith.constant dense<0.000000e+00> : vector<256x128xf32>
    %241 = tpu.matmul %240, %36, %cst_163 {dimension_numbers = #tpu.dot_dimension_numbers<[1], [0], [0], [1], [0, 0, 1, 1], [], []>} : vector<256x128xbf16>, vector<128x128xbf16>, vector<256x128xf32> -> vector<256x128xf32>
    %242 = arith.truncf %239 : vector<256x128xf32> to vector<256x128xbf16>
    %cst_164 = arith.constant dense<0.000000e+00> : vector<256x128xf32>
    %243 = tpu.matmul %242, %37, %cst_164 {dimension_numbers = #tpu.dot_dimension_numbers<[1], [0], [0], [1], [0, 0, 1, 1], [], []>} : vector<256x128xbf16>, vector<128x128xbf16>, vector<256x128xf32> -> vector<256x128xf32>
    %244 = arith.addf %241, %243 : vector<256x128xf32>
    %245 = vector.broadcast %38 : vector<1x128xf32> to vector<256x128xf32>
    %246 = arith.addf %244, %245 : vector<256x128xf32>
    %cst_165 = arith.constant 0.000000e+00 : f32
    %247 = vector.broadcast %cst_165 : f32 to vector<256x128xf32>
    %248 = arith.cmpf ogt, %246, %247 : vector<256x128xf32>
    %cst_166 = arith.constant 2.000000e-01 : f32
    %249 = vector.broadcast %cst_166 : f32 to vector<256x128xf32>
    %250 = arith.mulf %249, %246 : vector<256x128xf32>
    %251 = arith.select %248, %246, %250 : vector<256x128xi1>, vector<256x128xf32>
    %252 = vector.shape_cast %251 : vector<256x128xf32> to vector<8x4x8x128xf32>
    %253 = vector.shape_cast %39 : vector<1x128xf32> to vector<1x1x1x128xf32>
    %254 = vector.broadcast %253 : vector<1x1x1x128xf32> to vector<8x4x8x128xf32>
    %255 = arith.mulf %252, %254 : vector<8x4x8x128xf32>
    %cst_167 = arith.constant dense<0.000000e+00> : vector<8x4x8xf32>
    %256 = vector.multi_reduction <add>, %255, %cst_167 [3] : vector<8x4x8x128xf32> to vector<8x4x8xf32>
    %257 = vector.shape_cast %256 : vector<8x4x8xf32> to vector<8x4x8x1xf32>
    %258 = vector.shape_cast %40 : vector<1x1xf32> to vector<1x1x1x1xf32>
    %259 = vector.broadcast %258 : vector<1x1x1x1xf32> to vector<8x4x8x1xf32>
    %260 = arith.addf %257, %259 : vector<8x4x8x1xf32>
    %cst_168 = arith.constant 0.000000e+00 : f32
    %261 = vector.broadcast %cst_168 : f32 to vector<8x4x8x1xf32>
    %262 = arith.cmpf ogt, %70, %261 : vector<8x4x8x1xf32>
    %cst_169 = arith.constant -1.000000e+30 : f32
    %263 = vector.broadcast %cst_169 : f32 to vector<8x4x8x1xf32>
    %264 = arith.select %262, %260, %263 : vector<8x4x8x1xi1>, vector<8x4x8x1xf32>
    %cst_170 = arith.constant dense<0xFF800000> : vector<8x4x1xf32>
    %265 = vector.multi_reduction <maximumf>, %264, %cst_170 [2] : vector<8x4x8x1xf32> to vector<8x4x1xf32>
    %266 = vector.shape_cast %265 : vector<8x4x1xf32> to vector<8x4x1x1xf32>
    %267 = vector.broadcast %266 : vector<8x4x1x1xf32> to vector<8x4x8x1xf32>
    %268 = arith.subf %264, %267 : vector<8x4x8x1xf32>
    %269 = math.exp %268 : vector<8x4x8x1xf32>
    %270 = arith.mulf %269, %70 : vector<8x4x8x1xf32>
    %cst_171 = arith.constant dense<0.000000e+00> : vector<8x4x1xf32>
    %271 = vector.multi_reduction <add>, %270, %cst_171 [2] : vector<8x4x8x1xf32> to vector<8x4x1xf32>
    %272 = vector.shape_cast %271 : vector<8x4x1xf32> to vector<8x4x1x1xf32>
    %cst_172 = arith.constant 1.000000e-10 : f32
    %273 = vector.broadcast %cst_172 : f32 to vector<8x4x1x1xf32>
    %274 = arith.addf %272, %273 : vector<8x4x1x1xf32>
    %275 = tpu.reciprocal %274 {approx = true} : vector<8x4x1x1xf32> -> vector<8x4x1x1xf32>
    %276 = vector.broadcast %275 : vector<8x4x1x1xf32> to vector<8x4x8x1xf32>
    %277 = arith.mulf %270, %276 : vector<8x4x8x1xf32>
    %278 = vector.shape_cast %231 : vector<256x128xf32> to vector<8x4x8x128xf32>
    %279 = vector.broadcast %277 : vector<8x4x8x1xf32> to vector<8x4x8x128xf32>
    %280 = arith.mulf %279, %278 : vector<8x4x8x128xf32>
    %cst_173 = arith.constant dense<0.000000e+00> : vector<8x4x128xf32>
    %281 = vector.multi_reduction <add>, %280, %cst_173 [2] : vector<8x4x8x128xf32> to vector<8x4x128xf32>
    %282 = vector.shape_cast %281 : vector<8x4x128xf32> to vector<32x128xf32>
    %283 = arith.truncf %282 : vector<32x128xf32> to vector<32x128xbf16>
    %cst_174 = arith.constant dense<0.000000e+00> : vector<32x128xf32>
    %284 = tpu.matmul %283, %41, %cst_174 {dimension_numbers = #tpu.dot_dimension_numbers<[1], [0], [0], [1], [0, 0, 1, 1], [], []>} : vector<32x128xbf16>, vector<128x128xbf16>, vector<32x128xf32> -> vector<32x128xf32>
    %285 = vector.broadcast %42 : vector<1x128xf32> to vector<32x128xf32>
    %286 = arith.addf %284, %285 : vector<32x128xf32>
    %cst_175 = arith.constant 0.000000e+00 : f32
    %287 = vector.broadcast %cst_175 : f32 to vector<32x128xf32>
    %288 = arith.maximumf %286, %287 : vector<32x128xf32>
    %289 = vector.shape_cast %288 : vector<32x128xf32> to vector<8x4x128xf32>
    %290 = arith.truncf %288 : vector<32x128xf32> to vector<32x128xbf16>
    %cst_176 = arith.constant dense<0.000000e+00> : vector<32x128xf32>
    %291 = tpu.matmul %290, %15, %cst_176 {dimension_numbers = #tpu.dot_dimension_numbers<[1], [0], [0], [1], [0, 0, 1, 1], [], []>} : vector<32x128xbf16>, vector<128x128xbf16>, vector<32x128xf32> -> vector<32x128xf32>
    %292 = vector.broadcast %16 : vector<1x128xf32> to vector<32x128xf32>
    %293 = arith.addf %291, %292 : vector<32x128xf32>
    %294 = vector.shape_cast %73 : vector<8x128xf32> to vector<8x1x128xf32>
    %295 = vector.broadcast %65 : vector<8x4x1xf32> to vector<8x4x128xf32>
    %296 = vector.broadcast %294 : vector<8x1x128xf32> to vector<8x4x128xf32>
    %297 = arith.mulf %295, %296 : vector<8x4x128xf32>
    %298 = vector.shape_cast %16 : vector<1x128xf32> to vector<1x1x128xf32>
    %299 = vector.broadcast %298 : vector<1x1x128xf32> to vector<8x4x128xf32>
    %300 = arith.addf %297, %299 : vector<8x4x128xf32>
    %301 = vector.shape_cast %300 : vector<8x4x128xf32> to vector<32x128xf32>
    %302 = arith.truncf %293 : vector<32x128xf32> to vector<32x128xbf16>
    %cst_177 = arith.constant dense<0.000000e+00> : vector<32x128xf32>
    %303 = tpu.matmul %302, %43, %cst_177 {dimension_numbers = #tpu.dot_dimension_numbers<[1], [0], [0], [1], [0, 0, 1, 1], [], []>} : vector<32x128xbf16>, vector<128x128xbf16>, vector<32x128xf32> -> vector<32x128xf32>
    %304 = arith.truncf %301 : vector<32x128xf32> to vector<32x128xbf16>
    %cst_178 = arith.constant dense<0.000000e+00> : vector<32x128xf32>
    %305 = tpu.matmul %304, %44, %cst_178 {dimension_numbers = #tpu.dot_dimension_numbers<[1], [0], [0], [1], [0, 0, 1, 1], [], []>} : vector<32x128xbf16>, vector<128x128xbf16>, vector<32x128xf32> -> vector<32x128xf32>
    %306 = arith.addf %303, %305 : vector<32x128xf32>
    %307 = vector.broadcast %45 : vector<1x128xf32> to vector<32x128xf32>
    %308 = arith.addf %306, %307 : vector<32x128xf32>
    %cst_179 = arith.constant 0.000000e+00 : f32
    %309 = vector.broadcast %cst_179 : f32 to vector<32x128xf32>
    %310 = arith.cmpf ogt, %308, %309 : vector<32x128xf32>
    %cst_180 = arith.constant 2.000000e-01 : f32
    %311 = vector.broadcast %cst_180 : f32 to vector<32x128xf32>
    %312 = arith.mulf %311, %308 : vector<32x128xf32>
    %313 = arith.select %310, %308, %312 : vector<32x128xi1>, vector<32x128xf32>
    %314 = vector.shape_cast %313 : vector<32x128xf32> to vector<8x4x128xf32>
    %315 = vector.shape_cast %46 : vector<1x128xf32> to vector<1x1x128xf32>
    %316 = vector.broadcast %315 : vector<1x1x128xf32> to vector<8x4x128xf32>
    %317 = arith.mulf %314, %316 : vector<8x4x128xf32>
    %cst_181 = arith.constant dense<0.000000e+00> : vector<8x4xf32>
    %318 = vector.multi_reduction <add>, %317, %cst_181 [2] : vector<8x4x128xf32> to vector<8x4xf32>
    %319 = vector.shape_cast %318 : vector<8x4xf32> to vector<8x4x1xf32>
    %320 = vector.shape_cast %47 : vector<1x1xf32> to vector<1x1x1xf32>
    %321 = vector.broadcast %320 : vector<1x1x1xf32> to vector<8x4x1xf32>
    %322 = arith.addf %319, %321 : vector<8x4x1xf32>
    %cst_182 = arith.constant 0.000000e+00 : f32
    %323 = vector.broadcast %cst_182 : f32 to vector<8x4x1xf32>
    %324 = arith.cmpf ogt, %65, %323 : vector<8x4x1xf32>
    %cst_183 = arith.constant -1.000000e+30 : f32
    %325 = vector.broadcast %cst_183 : f32 to vector<8x4x1xf32>
    %326 = arith.select %324, %322, %325 : vector<8x4x1xi1>, vector<8x4x1xf32>
    %cst_184 = arith.constant dense<0xFF800000> : vector<8x1xf32>
    %327 = vector.multi_reduction <maximumf>, %326, %cst_184 [1] : vector<8x4x1xf32> to vector<8x1xf32>
    %328 = vector.shape_cast %327 : vector<8x1xf32> to vector<8x1x1xf32>
    %329 = vector.broadcast %328 : vector<8x1x1xf32> to vector<8x4x1xf32>
    %330 = arith.subf %326, %329 : vector<8x4x1xf32>
    %331 = math.exp %330 : vector<8x4x1xf32>
    %332 = arith.mulf %331, %65 : vector<8x4x1xf32>
    %cst_185 = arith.constant dense<0.000000e+00> : vector<8x1xf32>
    %333 = vector.multi_reduction <add>, %332, %cst_185 [1] : vector<8x4x1xf32> to vector<8x1xf32>
    %334 = vector.shape_cast %333 : vector<8x1xf32> to vector<8x1x1xf32>
    %cst_186 = arith.constant 1.000000e-10 : f32
    %335 = vector.broadcast %cst_186 : f32 to vector<8x1x1xf32>
    %336 = arith.addf %334, %335 : vector<8x1x1xf32>
    %337 = tpu.reciprocal %336 {approx = true} : vector<8x1x1xf32> -> vector<8x1x1xf32>
    %338 = vector.broadcast %337 : vector<8x1x1xf32> to vector<8x4x1xf32>
    %339 = arith.mulf %332, %338 : vector<8x4x1xf32>
    %340 = vector.broadcast %339 : vector<8x4x1xf32> to vector<8x4x128xf32>
    %341 = arith.mulf %340, %289 : vector<8x4x128xf32>
    %cst_187 = arith.constant dense<0.000000e+00> : vector<8x128xf32>
    %342 = vector.multi_reduction <add>, %341, %cst_187 [1] : vector<8x4x128xf32> to vector<8x128xf32>
    %343 = arith.truncf %342 : vector<8x128xf32> to vector<8x128xbf16>
    %cst_188 = arith.constant dense<0.000000e+00> : vector<8x128xf32>
    %344 = tpu.matmul %343, %48, %cst_188 {dimension_numbers = #tpu.dot_dimension_numbers<[1], [0], [0], [1], [0, 0, 1, 1], [], []>} : vector<8x128xbf16>, vector<128x128xbf16>, vector<8x128xf32> -> vector<8x128xf32>
    %345 = vector.broadcast %49 : vector<1x128xf32> to vector<8x128xf32>
    %346 = arith.addf %344, %345 : vector<8x128xf32>
    %cst_189 = arith.constant 0.000000e+00 : f32
    %347 = vector.broadcast %cst_189 : f32 to vector<8x128xf32>
    %348 = arith.maximumf %346, %347 : vector<8x128xf32>
    %349 = arith.truncf %211 : vector<8x128xf32> to vector<8x128xbf16>
    %cst_190 = arith.constant dense<0.000000e+00> : vector<8x256xf32>
    %350 = tpu.matmul %349, %50, %cst_190 {dimension_numbers = #tpu.dot_dimension_numbers<[1], [0], [0], [1], [0, 0, 1, 1], [], []>} : vector<8x128xbf16>, vector<128x256xbf16>, vector<8x256xf32> -> vector<8x256xf32>
    %351 = arith.truncf %152 : vector<8x128xf32> to vector<8x128xbf16>
    %cst_191 = arith.constant dense<0.000000e+00> : vector<8x256xf32>
    %352 = tpu.matmul %351, %51, %cst_191 {dimension_numbers = #tpu.dot_dimension_numbers<[1], [0], [0], [1], [0, 0, 1, 1], [], []>} : vector<8x128xbf16>, vector<128x256xbf16>, vector<8x256xf32> -> vector<8x256xf32>
    %353 = arith.addf %350, %352 : vector<8x256xf32>
    %354 = arith.truncf %348 : vector<8x128xf32> to vector<8x128xbf16>
    %cst_192 = arith.constant dense<0.000000e+00> : vector<8x256xf32>
    %355 = tpu.matmul %354, %52, %cst_192 {dimension_numbers = #tpu.dot_dimension_numbers<[1], [0], [0], [1], [0, 0, 1, 1], [], []>} : vector<8x128xbf16>, vector<128x256xbf16>, vector<8x256xf32> -> vector<8x256xf32>
    %356 = arith.addf %353, %355 : vector<8x256xf32>
    %357 = vector.broadcast %53 : vector<1x256xf32> to vector<8x256xf32>
    %358 = arith.addf %356, %357 : vector<8x256xf32>
    %cst_193 = arith.constant 0.000000e+00 : f32
    %359 = vector.broadcast %cst_193 : f32 to vector<8x256xf32>
    %360 = arith.maximumf %358, %359 : vector<8x256xf32>
    %361 = arith.truncf %360 : vector<8x256xf32> to vector<8x256xbf16>
    %cst_194 = arith.constant dense<0.000000e+00> : vector<8x128xf32>
    %362 = tpu.matmul %361, %54, %cst_194 {dimension_numbers = #tpu.dot_dimension_numbers<[1], [0], [0], [1], [0, 0, 1, 1], [], []>} : vector<8x256xbf16>, vector<256x128xbf16>, vector<8x128xf32> -> vector<8x128xf32>
    %363 = vector.broadcast %55 : vector<1x128xf32> to vector<8x128xf32>
    %364 = arith.addf %362, %363 : vector<8x128xf32>
    %cst_195 = arith.constant 0.000000e+00 : f32
    %365 = vector.broadcast %cst_195 : f32 to vector<8x128xf32>
    %366 = arith.maximumf %364, %365 : vector<8x128xf32>
    %c0_196 = arith.constant 0 : index
    %c0_197 = arith.constant 0 : index
    %367 = vector.load %arg57[%c0_196, %c0_197] : memref<8x128xf32, #tpu.memory_space<vmem>>, vector<8x128xf32>
    tpu.vector_store %arg57[%c0_196, %c0_197], %366 {strides = array<i32>} : memref<8x128xf32, #tpu.memory_space<vmem>>, vector<8x128xf32>,
    return
  }
  func.func @transform_0(%arg0: i32) -> (i32, i32) {
    %c0_i32 = arith.constant 0 : i32
    %c0_i32_0 = arith.constant 0 : i32
    return %arg0, %c0_i32 : i32, i32
  }
  func.func @transform_1(%arg0: i32) -> (i32, i32) {
    %c0_i32 = arith.constant 0 : i32
    %c0_i32_0 = arith.constant 0 : i32
    return %arg0, %c0_i32 : i32, i32
  }
  func.func @transform_2(%arg0: i32) -> (i32, i32, i32) {
    %c0_i32 = arith.constant 0 : i32
    %c0_i32_0 = arith.constant 0 : i32
    %c0_i32_1 = arith.constant 0 : i32
    return %arg0, %c0_i32, %c0_i32_0 : i32, i32, i32
  }
  func.func @transform_3(%arg0: i32) -> (i32, i32) {
    %c0_i32 = arith.constant 0 : i32
    %c0_i32_0 = arith.constant 0 : i32
    return %arg0, %c0_i32 : i32, i32
  }
  func.func @transform_4(%arg0: i32) -> (i32, i32, i32) {
    %c0_i32 = arith.constant 0 : i32
    %c0_i32_0 = arith.constant 0 : i32
    %c0_i32_1 = arith.constant 0 : i32
    return %arg0, %c0_i32, %c0_i32_0 : i32, i32, i32
  }
  func.func @transform_5(%arg0: i32) -> (i32, i32, i32) {
    %c0_i32 = arith.constant 0 : i32
    %c0_i32_0 = arith.constant 0 : i32
    %c0_i32_1 = arith.constant 0 : i32
    return %arg0, %c0_i32, %c0_i32_0 : i32, i32, i32
  }
  func.func @transform_6(%arg0: i32) -> (i32, i32, i32) {
    %c0_i32 = arith.constant 0 : i32
    %c0_i32_0 = arith.constant 0 : i32
    %c0_i32_1 = arith.constant 0 : i32
    return %arg0, %c0_i32, %c0_i32_0 : i32, i32, i32
  }
  func.func @transform_7(%arg0: i32) -> (i32, i32, i32, i32) {
    %c0_i32 = arith.constant 0 : i32
    %c0_i32_0 = arith.constant 0 : i32
    %c0_i32_1 = arith.constant 0 : i32
    %c0_i32_2 = arith.constant 0 : i32
    return %arg0, %c0_i32, %c0_i32_0, %c0_i32_1 : i32, i32, i32, i32
  }
  func.func @transform_8(%arg0: i32) -> (i32, i32, i32, i32) {
    %c0_i32 = arith.constant 0 : i32
    %c0_i32_0 = arith.constant 0 : i32
    %c0_i32_1 = arith.constant 0 : i32
    %c0_i32_2 = arith.constant 0 : i32
    return %arg0, %c0_i32, %c0_i32_0, %c0_i32_1 : i32, i32, i32, i32
  }
  func.func @transform_9(%arg0: i32) -> (i32, i32) {
    %c0_i32 = arith.constant 0 : i32
    %c0_i32_0 = arith.constant 0 : i32
    %c0_i32_1 = arith.constant 0 : i32
    return %c0_i32, %c0_i32_0 : i32, i32
  }
  func.func @transform_10(%arg0: i32) -> (i32, i32) {
    %c0_i32 = arith.constant 0 : i32
    %c0_i32_0 = arith.constant 0 : i32
    %c0_i32_1 = arith.constant 0 : i32
    return %c0_i32, %c0_i32_0 : i32, i32
  }
  func.func @transform_11(%arg0: i32) -> (i32, i32) {
    %c0_i32 = arith.constant 0 : i32
    %c0_i32_0 = arith.constant 0 : i32
    %c0_i32_1 = arith.constant 0 : i32
    return %c0_i32, %c0_i32_0 : i32, i32
  }
  func.func @transform_12(%arg0: i32) -> (i32, i32) {
    %c0_i32 = arith.constant 0 : i32
    %c0_i32_0 = arith.constant 0 : i32
    %c0_i32_1 = arith.constant 0 : i32
    return %c0_i32, %c0_i32_0 : i32, i32
  }
  func.func @transform_13(%arg0: i32) -> (i32, i32) {
    %c0_i32 = arith.constant 0 : i32
    %c0_i32_0 = arith.constant 0 : i32
    %c0_i32_1 = arith.constant 0 : i32
    return %c0_i32, %c0_i32_0 : i32, i32
  }
  func.func @transform_14(%arg0: i32) -> (i32, i32) {
    %c0_i32 = arith.constant 0 : i32
    %c0_i32_0 = arith.constant 0 : i32
    %c0_i32_1 = arith.constant 0 : i32
    return %c0_i32, %c0_i32_0 : i32, i32
  }
  func.func @transform_15(%arg0: i32) -> (i32, i32) {
    %c0_i32 = arith.constant 0 : i32
    %c0_i32_0 = arith.constant 0 : i32
    %c0_i32_1 = arith.constant 0 : i32
    return %c0_i32, %c0_i32_0 : i32, i32
  }
  func.func @transform_16(%arg0: i32) -> (i32, i32) {
    %c0_i32 = arith.constant 0 : i32
    %c0_i32_0 = arith.constant 0 : i32
    %c0_i32_1 = arith.constant 0 : i32
    return %c0_i32, %c0_i32_0 : i32, i32
  }
  func.func @transform_17(%arg0: i32) -> (i32, i32) {
    %c0_i32 = arith.constant 0 : i32
    %c0_i32_0 = arith.constant 0 : i32
    %c0_i32_1 = arith.constant 0 : i32
    return %c0_i32, %c0_i32_0 : i32, i32
  }
  func.func @transform_18(%arg0: i32) -> (i32, i32) {
    %c0_i32 = arith.constant 0 : i32
    %c0_i32_0 = arith.constant 0 : i32
    %c0_i32_1 = arith.constant 0 : i32
    return %c0_i32, %c0_i32_0 : i32, i32
  }
  func.func @transform_19(%arg0: i32) -> (i32, i32) {
    %c0_i32 = arith.constant 0 : i32
    %c0_i32_0 = arith.constant 0 : i32
    %c0_i32_1 = arith.constant 0 : i32
    return %c0_i32, %c0_i32_0 : i32, i32
  }
  func.func @transform_20(%arg0: i32) -> (i32, i32) {
    %c0_i32 = arith.constant 0 : i32
    %c0_i32_0 = arith.constant 0 : i32
    %c0_i32_1 = arith.constant 0 : i32
    return %c0_i32, %c0_i32_0 : i32, i32
  }
  func.func @transform_21(%arg0: i32) -> (i32, i32) {
    %c0_i32 = arith.constant 0 : i32
    %c0_i32_0 = arith.constant 0 : i32
    %c0_i32_1 = arith.constant 0 : i32
    return %c0_i32, %c0_i32_0 : i32, i32
  }
  func.func @transform_22(%arg0: i32) -> (i32, i32) {
    %c0_i32 = arith.constant 0 : i32
    %c0_i32_0 = arith.constant 0 : i32
    %c0_i32_1 = arith.constant 0 : i32
    return %c0_i32, %c0_i32_0 : i32, i32
  }
  func.func @transform_23(%arg0: i32) -> (i32, i32) {
    %c0_i32 = arith.constant 0 : i32
    %c0_i32_0 = arith.constant 0 : i32
    %c0_i32_1 = arith.constant 0 : i32
    return %c0_i32, %c0_i32_0 : i32, i32
  }
  func.func @transform_24(%arg0: i32) -> (i32, i32) {
    %c0_i32 = arith.constant 0 : i32
    %c0_i32_0 = arith.constant 0 : i32
    %c0_i32_1 = arith.constant 0 : i32
    return %c0_i32, %c0_i32_0 : i32, i32
  }
  func.func @transform_25(%arg0: i32) -> (i32, i32) {
    %c0_i32 = arith.constant 0 : i32
    %c0_i32_0 = arith.constant 0 : i32
    %c0_i32_1 = arith.constant 0 : i32
    return %c0_i32, %c0_i32_0 : i32, i32
  }
  func.func @transform_26(%arg0: i32) -> (i32, i32) {
    %c0_i32 = arith.constant 0 : i32
    %c0_i32_0 = arith.constant 0 : i32
    %c0_i32_1 = arith.constant 0 : i32
    return %c0_i32, %c0_i32_0 : i32, i32
  }
  func.func @transform_27(%arg0: i32) -> (i32, i32) {
    %c0_i32 = arith.constant 0 : i32
    %c0_i32_0 = arith.constant 0 : i32
    %c0_i32_1 = arith.constant 0 : i32
    return %c0_i32, %c0_i32_0 : i32, i32
  }
  func.func @transform_28(%arg0: i32) -> (i32, i32) {
    %c0_i32 = arith.constant 0 : i32
    %c0_i32_0 = arith.constant 0 : i32
    %c0_i32_1 = arith.constant 0 : i32
    return %c0_i32, %c0_i32_0 : i32, i32
  }
  func.func @transform_29(%arg0: i32) -> (i32, i32) {
    %c0_i32 = arith.constant 0 : i32
    %c0_i32_0 = arith.constant 0 : i32
    %c0_i32_1 = arith.constant 0 : i32
    return %c0_i32, %c0_i32_0 : i32, i32
  }
  func.func @transform_30(%arg0: i32) -> (i32, i32) {
    %c0_i32 = arith.constant 0 : i32
    %c0_i32_0 = arith.constant 0 : i32
    %c0_i32_1 = arith.constant 0 : i32
    return %c0_i32, %c0_i32_0 : i32, i32
  }
  func.func @transform_31(%arg0: i32) -> (i32, i32) {
    %c0_i32 = arith.constant 0 : i32
    %c0_i32_0 = arith.constant 0 : i32
    %c0_i32_1 = arith.constant 0 : i32
    return %c0_i32, %c0_i32_0 : i32, i32
  }
  func.func @transform_32(%arg0: i32) -> (i32, i32) {
    %c0_i32 = arith.constant 0 : i32
    %c0_i32_0 = arith.constant 0 : i32
    %c0_i32_1 = arith.constant 0 : i32
    return %c0_i32, %c0_i32_0 : i32, i32
  }
  func.func @transform_33(%arg0: i32) -> (i32, i32) {
    %c0_i32 = arith.constant 0 : i32
    %c0_i32_0 = arith.constant 0 : i32
    %c0_i32_1 = arith.constant 0 : i32
    return %c0_i32, %c0_i32_0 : i32, i32
  }
  func.func @transform_34(%arg0: i32) -> (i32, i32) {
    %c0_i32 = arith.constant 0 : i32
    %c0_i32_0 = arith.constant 0 : i32
    %c0_i32_1 = arith.constant 0 : i32
    return %c0_i32, %c0_i32_0 : i32, i32
  }
  func.func @transform_35(%arg0: i32) -> (i32, i32) {
    %c0_i32 = arith.constant 0 : i32
    %c0_i32_0 = arith.constant 0 : i32
    %c0_i32_1 = arith.constant 0 : i32
    return %c0_i32, %c0_i32_0 : i32, i32
  }
  func.func @transform_36(%arg0: i32) -> (i32, i32) {
    %c0_i32 = arith.constant 0 : i32
    %c0_i32_0 = arith.constant 0 : i32
    %c0_i32_1 = arith.constant 0 : i32
    return %c0_i32, %c0_i32_0 : i32, i32
  }
  func.func @transform_37(%arg0: i32) -> (i32, i32) {
    %c0_i32 = arith.constant 0 : i32
    %c0_i32_0 = arith.constant 0 : i32
    %c0_i32_1 = arith.constant 0 : i32
    return %c0_i32, %c0_i32_0 : i32, i32
  }
  func.func @transform_38(%arg0: i32) -> (i32, i32) {
    %c0_i32 = arith.constant 0 : i32
    %c0_i32_0 = arith.constant 0 : i32
    %c0_i32_1 = arith.constant 0 : i32
    return %c0_i32, %c0_i32_0 : i32, i32
  }
  func.func @transform_39(%arg0: i32) -> (i32, i32) {
    %c0_i32 = arith.constant 0 : i32
    %c0_i32_0 = arith.constant 0 : i32
    %c0_i32_1 = arith.constant 0 : i32
    return %c0_i32, %c0_i32_0 : i32, i32
  }
  func.func @transform_40(%arg0: i32) -> (i32, i32) {
    %c0_i32 = arith.constant 0 : i32
    %c0_i32_0 = arith.constant 0 : i32
    %c0_i32_1 = arith.constant 0 : i32
    return %c0_i32, %c0_i32_0 : i32, i32
  }
  func.func @transform_41(%arg0: i32) -> (i32, i32) {
    %c0_i32 = arith.constant 0 : i32
    %c0_i32_0 = arith.constant 0 : i32
    %c0_i32_1 = arith.constant 0 : i32
    return %c0_i32, %c0_i32_0 : i32, i32
  }
  func.func @transform_42(%arg0: i32) -> (i32, i32) {
    %c0_i32 = arith.constant 0 : i32
    %c0_i32_0 = arith.constant 0 : i32
    %c0_i32_1 = arith.constant 0 : i32
    return %c0_i32, %c0_i32_0 : i32, i32
  }
  func.func @transform_43(%arg0: i32) -> (i32, i32) {
    %c0_i32 = arith.constant 0 : i32
    %c0_i32_0 = arith.constant 0 : i32
    %c0_i32_1 = arith.constant 0 : i32
    return %c0_i32, %c0_i32_0 : i32, i32
  }
  func.func @transform_44(%arg0: i32) -> (i32, i32) {
    %c0_i32 = arith.constant 0 : i32
    %c0_i32_0 = arith.constant 0 : i32
    %c0_i32_1 = arith.constant 0 : i32
    return %c0_i32, %c0_i32_0 : i32, i32
  }
  func.func @transform_45(%arg0: i32) -> (i32, i32) {
    %c0_i32 = arith.constant 0 : i32
    %c0_i32_0 = arith.constant 0 : i32
    %c0_i32_1 = arith.constant 0 : i32
    return %c0_i32, %c0_i32_0 : i32, i32
  }
  func.func @transform_46(%arg0: i32) -> (i32, i32) {
    %c0_i32 = arith.constant 0 : i32
    %c0_i32_0 = arith.constant 0 : i32
    %c0_i32_1 = arith.constant 0 : i32
    return %c0_i32, %c0_i32_0 : i32, i32
  }
  func.func @transform_47(%arg0: i32) -> (i32, i32) {
    %c0_i32 = arith.constant 0 : i32
    %c0_i32_0 = arith.constant 0 : i32
    %c0_i32_1 = arith.constant 0 : i32
    return %c0_i32, %c0_i32_0 : i32, i32
  }
  func.func @transform_48(%arg0: i32) -> (i32, i32) {
    %c0_i32 = arith.constant 0 : i32
    %c0_i32_0 = arith.constant 0 : i32
    %c0_i32_1 = arith.constant 0 : i32
    return %c0_i32, %c0_i32_0 : i32, i32
  }
  func.func @transform_49(%arg0: i32) -> (i32, i32) {
    %c0_i32 = arith.constant 0 : i32
    %c0_i32_0 = arith.constant 0 : i32
    %c0_i32_1 = arith.constant 0 : i32
    return %c0_i32, %c0_i32_0 : i32, i32
  }
  func.func @transform_50(%arg0: i32) -> (i32, i32) {
    %c0_i32 = arith.constant 0 : i32
    %c0_i32_0 = arith.constant 0 : i32
    %c0_i32_1 = arith.constant 0 : i32
    return %c0_i32, %c0_i32_0 : i32, i32
  }
  func.func @transform_51(%arg0: i32) -> (i32, i32) {
    %c0_i32 = arith.constant 0 : i32
    %c0_i32_0 = arith.constant 0 : i32
    %c0_i32_1 = arith.constant 0 : i32
    return %c0_i32, %c0_i32_0 : i32, i32
  }
  func.func @transform_52(%arg0: i32) -> (i32, i32) {
    %c0_i32 = arith.constant 0 : i32
    %c0_i32_0 = arith.constant 0 : i32
    %c0_i32_1 = arith.constant 0 : i32
    return %c0_i32, %c0_i32_0 : i32, i32
  }
  func.func @transform_53(%arg0: i32) -> (i32, i32) {
    %c0_i32 = arith.constant 0 : i32
    %c0_i32_0 = arith.constant 0 : i32
    %c0_i32_1 = arith.constant 0 : i32
    return %c0_i32, %c0_i32_0 : i32, i32
  }
  func.func @transform_54(%arg0: i32) -> (i32, i32) {
    %c0_i32 = arith.constant 0 : i32
    %c0_i32_0 = arith.constant 0 : i32
    %c0_i32_1 = arith.constant 0 : i32
    return %c0_i32, %c0_i32_0 : i32, i32
  }
  func.func @transform_55(%arg0: i32) -> (i32, i32) {
    %c0_i32 = arith.constant 0 : i32
    %c0_i32_0 = arith.constant 0 : i32
    %c0_i32_1 = arith.constant 0 : i32
    return %c0_i32, %c0_i32_0 : i32, i32
  }
  func.func @transform_56(%arg0: i32) -> (i32, i32) {
    %c0_i32 = arith.constant 0 : i32
    %c0_i32_0 = arith.constant 0 : i32
    return %arg0, %c0_i32 : i32, i32
  }
}

</mosaic_0001>

<llo_original>
// kernel: tpu_custom_call.1
$region0: #{tpu_custom_call.1}
  #allocation0 [shape = 'u32[]', space=smem, size = 0x4, offset = 0x4, fixed_abs, tag = 'smem constant byte address 0x4 - core index']
  #allocation1 [shape = 'u32[72,128]{1,0:T(1,128)}', space=vmem, size = 0x9000, scoped, tag = 'internal scratch']
  #allocation2 [shape = 'f32[1,1]{1,0:T(1,128)S(1)}', space=vmem, size = 0x200, scoped, tag = 'scoped memory for tpu_custom_call.1']
  #allocation3 [shape = 'f32[1,1]{1,0:T(1,128)S(1)}', space=vmem, size = 0x200, scoped, tag = 'scoped memory for tpu_custom_call.1']
  #allocation4 [shape = 'f32[1,1]{1,0:T(1,128)S(1)}', space=vmem, size = 0x200, scoped, tag = 'scoped memory for tpu_custom_call.1']
  #allocation5 [shape = 'f32[1,1]{1,0:T(1,128)S(1)}', space=vmem, size = 0x200, scoped, tag = 'scoped memory for tpu_custom_call.1']
  %s0 = inlined_call_operand.smem [shape: u32[57], index: -1, kind: input, shape index: {}]
  %s1 = sld [smem:[%s0]]
  %s2 = scalar_lea.smem %s0, 1
  %s3 = sld [smem:[%s2]]
  %s4 = scalar_lea.smem %s0, 2
  %s5 = sld [smem:[%s4]]
  %s6 = scalar_lea.smem %s0, 3
  %s7 = sld [smem:[%s6]]
  %s8 = scalar_lea.smem %s0, 4
  %s9 = sld [smem:[%s8]]
  %s10 = scalar_lea.smem %s0, 5
  %s11 = sld [smem:[%s10]]
  %s12 = scalar_lea.smem %s0, 6
  %s13 = sld [smem:[%s12]]
  %s14 = scalar_lea.smem %s0, 7
  %s15 = sld [smem:[%s14]]
  %s16 = scalar_lea.smem %s0, 8
  %s17 = sld [smem:[%s16]]
  %s18 = scalar_lea.smem %s0, 9
  %s19 = sld [smem:[%s18]]
  %s20 = scalar_lea.smem %s0, 10
  %s21 = sld [smem:[%s20]]
  %s22 = scalar_lea.smem %s0, 11
  %s23 = sld [smem:[%s22]]
  %s24 = scalar_lea.smem %s0, 12
  %s25 = sld [smem:[%s24]]
  %s26 = scalar_lea.smem %s0, 13
  %s27 = sld [smem:[%s26]]
  %s28 = scalar_lea.smem %s0, 14
  %s29 = sld [smem:[%s28]]
  %s30 = scalar_lea.smem %s0, 15
  %s31 = sld [smem:[%s30]]
  %s32 = scalar_lea.smem %s0, 16
  %s33 = sld [smem:[%s32]]
  %s34 = scalar_lea.smem %s0, 17
  %s35 = sld [smem:[%s34]]
  %s36 = scalar_lea.smem %s0, 18
  %s37 = sld [smem:[%s36]]
  %s38 = scalar_lea.smem %s0, 19
  %s39 = sld [smem:[%s38]]
  %s40 = scalar_lea.smem %s0, 20
  %s41 = sld [smem:[%s40]]
  %s42 = scalar_lea.smem %s0, 21
  %s43 = sld [smem:[%s42]]
  %s44 = scalar_lea.smem %s0, 22
  %s45 = sld [smem:[%s44]]
  %s46 = scalar_lea.smem %s0, 23
  %s47 = sld [smem:[%s46]]
  %s48 = scalar_lea.smem %s0, 24
  %s49 = sld [smem:[%s48]]
  %s50 = scalar_lea.smem %s0, 25
  %s51 = sld [smem:[%s50]]
  %s52 = scalar_lea.smem %s0, 26
  %s53 = sld [smem:[%s52]]
  %s54 = scalar_lea.smem %s0, 27
  %s55 = sld [smem:[%s54]]
  %s56 = scalar_lea.smem %s0, 28
  %s57 = sld [smem:[%s56]]
  %s58 = scalar_lea.smem %s0, 29
  %s59 = sld [smem:[%s58]]
  %s60 = scalar_lea.smem %s0, 30
  %s61 = sld [smem:[%s60]]
  %s62 = scalar_lea.smem %s0, 31
  %s63 = sld [smem:[%s62]]
  %s64 = scalar_lea.smem %s0, 32
  %s65 = sld [smem:[%s64]]
  %s66 = scalar_lea.smem %s0, 33
  %s67 = sld [smem:[%s66]]
  %s68 = scalar_lea.smem %s0, 34
  %s69 = sld [smem:[%s68]]
  %s70 = scalar_lea.smem %s0, 35
  %s71 = sld [smem:[%s70]]
  %s72 = scalar_lea.smem %s0, 36
  %s73 = sld [smem:[%s72]]
  %s74 = scalar_lea.smem %s0, 37
  %s75 = sld [smem:[%s74]]
  %s76 = scalar_lea.smem %s0, 38
  %s77 = sld [smem:[%s76]]
  %s78 = scalar_lea.smem %s0, 39
  %s79 = sld [smem:[%s78]]
  %s80 = scalar_lea.smem %s0, 40
  %s81 = sld [smem:[%s80]]
  %s82 = scalar_lea.smem %s0, 41
  %s83 = sld [smem:[%s82]]
  %s84 = scalar_lea.smem %s0, 42
  %s85 = sld [smem:[%s84]]
  %s86 = scalar_lea.smem %s0, 43
  %s87 = sld [smem:[%s86]]
  %s88 = scalar_lea.smem %s0, 44
  %s89 = sld [smem:[%s88]]
  %s90 = scalar_lea.smem %s0, 45
  %s91 = sld [smem:[%s90]]
  %s92 = scalar_lea.smem %s0, 46
  %s93 = sld [smem:[%s92]]
  %s94 = scalar_lea.smem %s0, 47
  %s95 = sld [smem:[%s94]]
  %s96 = scalar_lea.smem %s0, 48
  %s97 = sld [smem:[%s96]]
  %s98 = scalar_lea.smem %s0, 49
  %s99 = sld [smem:[%s98]]
  %s100 = scalar_lea.smem %s0, 50
  %s101 = sld [smem:[%s100]]
  %s102 = scalar_lea.smem %s0, 51
  %s103 = sld [smem:[%s102]]
  %s104 = scalar_lea.smem %s0, 52
  %s105 = sld [smem:[%s104]]
  %s106 = scalar_lea.smem %s0, 53
  %s107 = sld [smem:[%s106]]
  %s108 = scalar_lea.smem %s0, 54
  %s109 = sld [smem:[%s108]]
  %s110 = scalar_lea.smem %s0, 55
  %s111 = sld [smem:[%s110]]
  %s112 = scalar_lea.smem %s0, 56
  %s113 = sld [smem:[%s112]]
  %s114 = sld [smem:[#allocation0]]
  $region437: #{tpu_custom_call.1} parent=0
    _
  %s116 = ssub.s32 1, %s114
  %s117 = scalar_select 0, %s116, %s114
  %v118 = vstv %s53
  %119 = vst [vmem:[#allocation2] sm:$0x1] %v118
  %v120 = vstv %s67
  %121 = vst [vmem:[#allocation3] sm:$0x1] %v120
  %v122 = vstv %s81
  %123 = vst [vmem:[#allocation4] sm:$0x1] %v122
  %v124 = vstv %s95
  %125 = vst [vmem:[#allocation5] sm:$0x1] %v124
  $region1: #{tpu_custom_call.1} parent=0
    #allocation6 [shape = 'u8[4096]{0}', space=vmem, size = 0x1000, scoped, tag = 'input window, operand 3']
    #allocation7 [shape = 's32[2]{0}', space=sflag, size = 0x8, scoped, tag = 'scoped memory for tpu_custom_call.1']
    #allocation8 [shape = 's32[2]{0}', space=sflag, size = 0x8, scoped, tag = 'scoped memory for tpu_custom_call.1']
    #allocation9 [shape = 'u8[32768]{0}', space=vmem, size = 0x8000, scoped, tag = 'input window, operand 5']
    #allocation10 [shape = 's32[2]{0}', space=sflag, size = 0x8, scoped, tag = 'scoped memory for tpu_custom_call.1']
    #allocation11 [shape = 'u8[16384]{0}', space=vmem, size = 0x4000, scoped, tag = 'input window, operand 6']
    #allocation12 [shape = 'u8[131072]{0}', space=vmem, size = 0x20000, scoped, tag = 'input window, operand 7']
    #allocation13 [shape = 's32[2]{0}', space=sflag, size = 0x8, scoped, tag = 'scoped memory for tpu_custom_call.1']
    #allocation14 [shape = 'u8[131072]{0}', space=vmem, size = 0x20000, scoped, tag = 'input window, operand 8']
    #allocation15 [shape = 'u8[32768]{0}', space=vmem, size = 0x8000, scoped, tag = 'input window, operand 9, single buffered']
    #allocation16 [shape = 's32[1]{0}', space=sflag, size = 0x4, scoped, tag = 'scoped memory for tpu_custom_call.1']
    #allocation17 [shape = 'u8[512]{0}', space=vmem, size = 0x400, scoped, tag = 'input window, operand 10, single buffered']
    #allocation18 [shape = 'u8[32768]{0}', space=vmem, size = 0x8000, scoped, tag = 'input window, operand 11, single buffered']
    #allocation19 [shape = 's32[1]{0}', space=sflag, size = 0x4, scoped, tag = 'scoped memory for tpu_custom_call.1']
    #allocation20 [shape = 'u8[512]{0}', space=vmem, size = 0x400, scoped, tag = 'input window, operand 12, single buffered']
    #allocation21 [shape = 'u8[32768]{0}', space=vmem, size = 0x8000, scoped, tag = 'input window, operand 13, single buffered']
    #allocation22 [shape = 's32[1]{0}', space=sflag, size = 0x4, scoped, tag = 'scoped memory for tpu_custom_call.1']
    #allocation23 [shape = 'u8[512]{0}', space=vmem, size = 0x400, scoped, tag = 'input window, operand 14, single buffered']
    #allocation24 [shape = 'u8[32768]{0}', space=vmem, size = 0x8000, scoped, tag = 'input window, operand 15, single buffered']
    #allocation25 [shape = 's32[1]{0}', space=sflag, size = 0x4, scoped, tag = 'scoped memory for tpu_custom_call.1']
    #allocation26 [shape = 'u8[512]{0}', space=vmem, size = 0x400, scoped, tag = 'input window, operand 16, single buffered']
    #allocation27 [shape = 'u8[32768]{0}', space=vmem, size = 0x8000, scoped, tag = 'input window, operand 17, single buffered']
    #allocation28 [shape = 's32[1]{0}', space=sflag, size = 0x4, scoped, tag = 'scoped memory for tpu_custom_call.1']
    #allocation29 [shape = 'u8[32768]{0}', space=vmem, size = 0x8000, scoped, tag = 'input window, operand 18, single buffered']
    #allocation30 [shape = 'u8[512]{0}', space=vmem, size = 0x400, scoped, tag = 'input window, operand 19, single buffered']
    #allocation31 [shape = 's32[1]{0}', space=sflag, size = 0x4, scoped, tag = 'scoped memory for tpu_custom_call.1']
    #allocation32 [shape = 'u8[32768]{0}', space=vmem, size = 0x8000, scoped, tag = 'input window, operand 20, single buffered']
    #allocation33 [shape = 'u8[512]{0}', space=vmem, size = 0x400, scoped, tag = 'input window, operand 21, single buffered']
    #allocation34 [shape = 's32[1]{0}', space=sflag, size = 0x4, scoped, tag = 'scoped memory for tpu_custom_call.1']
    #allocation35 [shape = 'u8[32768]{0}', space=vmem, size = 0x8000, scoped, tag = 'input window, operand 22, single buffered']
    #allocation36 [shape = 'u8[32768]{0}', space=vmem, size = 0x8000, scoped, tag = 'input window, operand 23, single buffered']
    #allocation37 [shape = 's32[1]{0}', space=sflag, size = 0x4, scoped, tag = 'scoped memory for tpu_custom_call.1']
    #allocation38 [shape = 'u8[512]{0}', space=vmem, size = 0x400, scoped, tag = 'input window, operand 24, single buffered']
    #allocation39 [shape = 'u8[512]{0}', space=vmem, size = 0x400, scoped, tag = 'input window, operand 25, single buffered']
    #allocation40 [shape = 's32[1]{0}', space=sflag, size = 0x4, scoped, tag = 'scoped memory for tpu_custom_call.1']
    #allocation41 [shape = 'u8[32768]{0}', space=vmem, size = 0x8000, scoped, tag = 'input window, operand 27, single buffered']
    #allocation42 [shape = 'u8[512]{0}', space=vmem, size = 0x400, scoped, tag = 'input window, operand 28, single buffered']
    #allocation43 [shape = 's32[1]{0}', space=sflag, size = 0x4, scoped, tag = 'scoped memory for tpu_custom_call.1']
    #allocation44 [shape = 'u8[32768]{0}', space=vmem, size = 0x8000, scoped, tag = 'input window, operand 29, single buffered']
    #allocation45 [shape = 'u8[32768]{0}', space=vmem, size = 0x8000, scoped, tag = 'input window, operand 30, single buffered']
    #allocation46 [shape = 's32[1]{0}', space=sflag, size = 0x4, scoped, tag = 'scoped memory for tpu_custom_call.1']
    #allocation47 [shape = 'u8[512]{0}', space=vmem, size = 0x400, scoped, tag = 'input window, operand 31, single buffered']
    #allocation48 [shape = 'u8[512]{0}', space=vmem, size = 0x400, scoped, tag = 'input window, operand 32, single buffered']
    #allocation49 [shape = 's32[1]{0}', space=sflag, size = 0x4, scoped, tag = 'scoped memory for tpu_custom_call.1']
    #allocation50 [shape = 'u8[32768]{0}', space=vmem, size = 0x8000, scoped, tag = 'input window, operand 34, single buffered']
    #allocation51 [shape = 'u8[512]{0}', space=vmem, size = 0x400, scoped, tag = 'input window, operand 35, single buffered']
    #allocation52 [shape = 's32[1]{0}', space=sflag, size = 0x4, scoped, tag = 'scoped memory for tpu_custom_call.1']
    #allocation53 [shape = 'u8[32768]{0}', space=vmem, size = 0x8000, scoped, tag = 'input window, operand 36, single buffered']
    #allocation54 [shape = 'u8[32768]{0}', space=vmem, size = 0x8000, scoped, tag = 'input window, operand 37, single buffered']
    #allocation55 [shape = 's32[1]{0}', space=sflag, size = 0x4, scoped, tag = 'scoped memory for tpu_custom_call.1']
    #allocation56 [shape = 'u8[512]{0}', space=vmem, size = 0x400, scoped, tag = 'input window, operand 38, single buffered']
    #allocation57 [shape = 'u8[512]{0}', space=vmem, size = 0x400, scoped, tag = 'input window, operand 39, single buffered']
    #allocation58 [shape = 's32[1]{0}', space=sflag, size = 0x4, scoped, tag = 'scoped memory for tpu_custom_call.1']
    #allocation59 [shape = 'u8[32768]{0}', space=vmem, size = 0x8000, scoped, tag = 'input window, operand 41, single buffered']
    #allocation60 [shape = 'u8[512]{0}', space=vmem, size = 0x400, scoped, tag = 'input window, operand 42, single buffered']
    #allocation61 [shape = 's32[1]{0}', space=sflag, size = 0x4, scoped, tag = 'scoped memory for tpu_custom_call.1']
    #allocation62 [shape = 'u8[32768]{0}', space=vmem, size = 0x8000, scoped, tag = 'input window, operand 43, single buffered']
    #allocation63 [shape = 'u8[32768]{0}', space=vmem, size = 0x8000, scoped, tag = 'input window, operand 44, single buffered']
    #allocation64 [shape = 's32[1]{0}', space=sflag, size = 0x4, scoped, tag = 'scoped memory for tpu_custom_call.1']
    #allocation65 [shape = 'u8[512]{0}', space=vmem, size = 0x400, scoped, tag = 'input window, operand 45, single buffered']
    #allocation66 [shape = 'u8[512]{0}', space=vmem, size = 0x400, scoped, tag = 'input window, operand 46, single buffered']
    #allocation67 [shape = 's32[1]{0}', space=sflag, size = 0x4, scoped, tag = 'scoped memory for tpu_custom_call.1']
    #allocation68 [shape = 'u8[32768]{0}', space=vmem, size = 0x8000, scoped, tag = 'input window, operand 48, single buffered']
    #allocation69 [shape = 'u8[512]{0}', space=vmem, size = 0x400, scoped, tag = 'input window, operand 49, single buffered']
    #allocation70 [shape = 's32[1]{0}', space=sflag, size = 0x4, scoped, tag = 'scoped memory for tpu_custom_call.1']
    #allocation71 [shape = 'u8[65536]{0}', space=vmem, size = 0x10000, scoped, tag = 'input window, operand 51, single buffered']
    #allocation72 [shape = 'u8[65536]{0}', space=vmem, size = 0x10000, scoped, tag = 'input window, operand 52, single buffered']
    #allocation73 [shape = 's32[1]{0}', space=sflag, size = 0x4, scoped, tag = 'scoped memory for tpu_custom_call.1']
    #allocation74 [shape = 'u8[65536]{0}', space=vmem, size = 0x10000, scoped, tag = 'input window, operand 54, single buffered']
    #allocation75 [shape = 'u8[8192]{0}', space=vmem, size = 0x2000, scoped, tag = 'output window, operand 0']
    %126 = vsyncpa [#allocation7], 0
    %s127 = scalar_lea.sflag [#allocation7], 1
    %128 = vsyncpa %s127, 0
    %129 = vsyncpa [#allocation10], 0
    %s130 = scalar_lea.sflag [#allocation10], 1
    %131 = vsyncpa %s130, 0
    %132 = vsyncpa [#allocation13], 0
    %s133 = scalar_lea.sflag [#allocation13], 1
    %134 = vsyncpa %s133, 0
    %135 = vsyncpa [#allocation16], 0
    %136 = vsyncpa [#allocation19], 0
    %137 = vsyncpa [#allocation22], 0
    %138 = vsyncpa [#allocation25], 0
    %139 = vsyncpa [#allocation28], 0
    %140 = vsyncpa [#allocation31], 0
    %141 = vsyncpa [#allocation34], 0
    %142 = vsyncpa [#allocation37], 0
    %143 = vsyncpa [#allocation40], 0
    %144 = vsyncpa [#allocation43], 0
    %145 = vsyncpa [#allocation46], 0
    %146 = vsyncpa [#allocation49], 0
    %147 = vsyncpa [#allocation52], 0
    %148 = vsyncpa [#allocation55], 0
    %149 = vsyncpa [#allocation58], 0
    %150 = vsyncpa [#allocation61], 0
    %151 = vsyncpa [#allocation64], 0
    %152 = vsyncpa [#allocation67], 0
    %153 = vsyncpa [#allocation70], 0
    %154 = vsyncpa [#allocation73], 0
    %155 = vsyncpa [#allocation8], 0
    %s156 = scalar_lea.sflag [#allocation8], 1
    %157 = vsyncpa %s156, 0
    loop: start=0, step=1, limit=4
    $region2: #{tpu_custom_call.1} parent=1 // loop_pre_header
      _
    $region3: #{tpu_custom_call.1} parent=1 // loop_header
      %s159 = sphi 0, %s163
      %p160 = scmp.ge.s32.totalorder %s159, 4
      %s169 = sphi 0, %s171
      %s172 = sphi 0, %s169
      %s173 = sphi 0, %s172
      %s189 = sphi 0, %s173
      %s195 = sphi 0, %s197
      %s198 = sphi 0, %s195
      %s199 = sphi 0, %s198
      %s215 = sphi 0, %s199
      %s221 = sphi 0, %s223
      %s224 = sphi 0, %s221
      %s225 = sphi 0, %s224
      %s241 = sphi 0, %s225
      %s247 = sphi 0, %s249
      %s250 = sphi 0, %s247
      %s251 = sphi 0, %s250
      %s267 = sphi 0, %s251
      %s273 = sphi 0, %s275
      %s276 = sphi 0, %s273
      %s277 = sphi 0, %s276
      %s293 = sphi 0, %s277
      %s299 = sphi 0, %s301
      %s302 = sphi 0, %s299
      %s303 = sphi 0, %s302
      %s319 = sphi 0, %s303
      %s325 = sphi 0, %s327
      %s328 = sphi 0, %s325
      %s329 = sphi 0, %s328
      %s345 = sphi 0, %s329
      %s351 = sphi 0, %s353
      %s354 = sphi 0, %s351
      %s355 = sphi 0, %s354
      %s371 = sphi 0, %s355
      %s377 = sphi 0, %s379
      %s380 = sphi 0, %s377
      %s381 = sphi 0, %s380
      %s397 = sphi 0, %s381
      %s401 = sphi 0, %s401
      %s403 = sphi 0, %s401
      %s404 = sphi 0, %s403
      %s418 = sphi 0, %s404
      %s422 = sphi 0, %s422
      %s424 = sphi 0, %s422
      %s425 = sphi 0, %s424
      %s439 = sphi 0, %s425
      %s443 = sphi 0, %s443
      %s445 = sphi 0, %s443
      %s446 = sphi 0, %s445
      %s460 = sphi 0, %s446
      %s464 = sphi 0, %s464
      %s466 = sphi 0, %s464
      %s467 = sphi 0, %s466
      %s481 = sphi 0, %s467
      %s485 = sphi 0, %s485
      %s487 = sphi 0, %s485
      %s488 = sphi 0, %s487
      %s502 = sphi 0, %s488
      %s506 = sphi 0, %s506
      %s508 = sphi 0, %s506
      %s509 = sphi 0, %s508
      %s523 = sphi 0, %s509
      %s527 = sphi 0, %s527
      %s529 = sphi 0, %s527
      %s530 = sphi 0, %s529
      %s544 = sphi 0, %s530
      %s548 = sphi 0, %s548
      %s550 = sphi 0, %s548
      %s551 = sphi 0, %s550
      %s565 = sphi 0, %s551
      %s569 = sphi 0, %s569
      %s571 = sphi 0, %s569
      %s572 = sphi 0, %s571
      %s586 = sphi 0, %s572
      %s590 = sphi 0, %s590
      %s592 = sphi 0, %s590
      %s593 = sphi 0, %s592
      %s607 = sphi 0, %s593
      %s611 = sphi 0, %s611
      %s613 = sphi 0, %s611
      %s614 = sphi 0, %s613
      %s628 = sphi 0, %s614
      %s632 = sphi 0, %s632
      %s634 = sphi 0, %s632
      %s635 = sphi 0, %s634
      %s649 = sphi 0, %s635
      %s653 = sphi 0, %s653
      %s655 = sphi 0, %s653
      %s656 = sphi 0, %s655
      %s670 = sphi 0, %s656
      %s674 = sphi 0, %s674
      %s676 = sphi 0, %s674
      %s677 = sphi 0, %s676
      %s691 = sphi 0, %s677
      %s695 = sphi 0, %s695
      %s697 = sphi 0, %s695
      %s698 = sphi 0, %s697
      %s712 = sphi 0, %s698
      %s716 = sphi 0, %s716
      %s718 = sphi 0, %s716
      %s719 = sphi 0, %s718
      %s733 = sphi 0, %s719
      %s737 = sphi 0, %s737
      %s739 = sphi 0, %s737
      %s740 = sphi 0, %s739
      %s754 = sphi 0, %s740
      %s758 = sphi 0, %s758
      %s760 = sphi 0, %s758
      %s761 = sphi 0, %s760
      %s775 = sphi 0, %s761
      %s779 = sphi 0, %s779
      %s781 = sphi 0, %s779
      %s782 = sphi 0, %s781
      %s796 = sphi 0, %s782
      %s800 = sphi 0, %s800
      %s802 = sphi 0, %s800
      %s803 = sphi 0, %s802
      %s817 = sphi 0, %s803
      %s821 = sphi 0, %s821
      %s823 = sphi 0, %s821
      %s824 = sphi 0, %s823
      %s838 = sphi 0, %s824
      %s842 = sphi 0, %s842
      %s844 = sphi 0, %s842
      %s845 = sphi 0, %s844
      %s859 = sphi 0, %s845
      %s863 = sphi 0, %s863
      %s865 = sphi 0, %s863
      %s866 = sphi 0, %s865
      %s880 = sphi 0, %s866
      %s884 = sphi 0, %s884
      %s886 = sphi 0, %s884
      %s887 = sphi 0, %s886
      %s901 = sphi 0, %s887
      %s905 = sphi 0, %s905
      %s907 = sphi 0, %s905
      %s908 = sphi 0, %s907
      %s922 = sphi 0, %s908
      %s926 = sphi 0, %s926
      %s928 = sphi 0, %s926
      %s929 = sphi 0, %s928
      %s943 = sphi 0, %s929
      %s947 = sphi 0, %s947
      %s949 = sphi 0, %s947
      %s950 = sphi 0, %s949
      %s964 = sphi 0, %s950
      %s968 = sphi 0, %s968
      %s970 = sphi 0, %s968
      %s971 = sphi 0, %s970
      %s985 = sphi 0, %s971
      %s989 = sphi 0, %s989
      %s991 = sphi 0, %s989
      %s992 = sphi 0, %s991
      %s1006 = sphi 0, %s992
      %s1010 = sphi 0, %s1010
      %s1012 = sphi 0, %s1010
      %s1013 = sphi 0, %s1012
      %s1027 = sphi 0, %s1013
      %s1031 = sphi 0, %s1031
      %s1033 = sphi 0, %s1031
      %s1034 = sphi 0, %s1033
      %s1048 = sphi 0, %s1034
      %s1052 = sphi 0, %s1052
      %s1054 = sphi 0, %s1052
      %s1055 = sphi 0, %s1054
      %s1069 = sphi 0, %s1055
      %s1073 = sphi 0, %s1073
      %s1075 = sphi 0, %s1073
      %s1076 = sphi 0, %s1075
      %s1090 = sphi 0, %s1076
      %s1094 = sphi 0, %s1094
      %s1096 = sphi 0, %s1094
      %s1097 = sphi 0, %s1096
      %s1111 = sphi 0, %s1097
      %s1115 = sphi 0, %s1115
      %s1117 = sphi 0, %s1115
      %s1118 = sphi 0, %s1117
      %s1132 = sphi 0, %s1118
      %s1136 = sphi 0, %s1136
      %s1138 = sphi 0, %s1136
      %s1139 = sphi 0, %s1138
      %s1153 = sphi 0, %s1139
      %s1157 = sphi 0, %s1157
      %s1159 = sphi 0, %s1157
      %s1160 = sphi 0, %s1159
      %s1174 = sphi 0, %s1160
      %s1178 = sphi 0, %s1178
      %s1180 = sphi 0, %s1178
      %s1181 = sphi 0, %s1180
      %s1195 = sphi 0, %s1181
      %s1199 = sphi 0, %s1199
      %s1201 = sphi 0, %s1199
      %s1202 = sphi 0, %s1201
      %s1216 = sphi 0, %s1202
      %s1220 = sphi 0, %s1220
      %s1222 = sphi 0, %s1220
      %s1223 = sphi 0, %s1222
      %s1237 = sphi 0, %s1223
      %s1241 = sphi 0, %s1241
      %s1243 = sphi 0, %s1241
      %s1244 = sphi 0, %s1243
      %s1258 = sphi 0, %s1244
      %s1262 = sphi 0, %s1262
      %s1264 = sphi 0, %s1262
      %s1265 = sphi 0, %s1264
      %s1279 = sphi 0, %s1265
      %s1283 = sphi 0, %s1283
      %s1285 = sphi 0, %s1283
      %s1286 = sphi 0, %s1285
      %s1300 = sphi 0, %s1286
      %s1304 = sphi 0, %s1304
      %s1306 = sphi 0, %s1304
      %s1307 = sphi 0, %s1306
      %s1321 = sphi 0, %s1307
      %s1325 = sphi 0, %s1325
      %s1327 = sphi 0, %s1325
      %s1328 = sphi 0, %s1327
      %s1342 = sphi 0, %s1328
      %s1346 = sphi 0, %s1346
      %s1348 = sphi 0, %s1346
      %s1349 = sphi 0, %s1348
      %s1363 = sphi 0, %s1349
      %s1367 = sphi 0, %s1367
      %s1369 = sphi 0, %s1367
      %s1370 = sphi 0, %s1369
      %s1384 = sphi 0, %s1370
      %s1390 = sphi 0, %s1392
      %s1393 = sphi 0, %s1390
      %s1394 = sphi 0, %s1393
      %s1410 = sphi 0, %s1394
    $region4: #{tpu_custom_call.1} parent=1 // loop_header_branch
      %162 = sbr.rel (%p160) target = $region8
    $region5: #{tpu_custom_call.1} parent=1 // loop_body
      %s164 = ssub.s32 %s159, 1
      %s165 = ssub.s32 %s159, 2
      %s166 = sadd.s32 %s159, 1
      %s167 = ssub.s32 %s159, %s166
      %p168 = scmp.eq.s32.totalorder %s167, 0
      %s170 = sadd.s32 %s169, 1
      %s171 = scalar_select %p168, %s169, %s170
      %p174 = pneg %p168
      %p175 = scmp.eq.s32.totalorder %s159, 1
      %p176 = por %p174, %p175
      %p177 = scmp.ne.s32.totalorder %s169, %s172
      %p178 = scmp.eq.s32.totalorder %s159, 0
      %p179 = por %p177, %p178
      %p180 = scmp.ne.s32.totalorder %s169, %s172
      %p181 = scmp.eq.s32.totalorder %s164, 1
      %p182 = por %p180, %p181
      %p183 = scmp.ne.s32.totalorder %s172, %s173
      %p184 = scmp.eq.s32.totalorder %s164, 0
      %p185 = por %p183, %p184
      %p186 = scmp.ne.s32.totalorder %s172, %s173
      %p187 = scmp.eq.s32.totalorder %s165, 1
      %p188 = por %p186, %p187
      %p190 = scmp.ne.s32.totalorder %s173, %s189
      %p191 = scmp.eq.s32.totalorder %s165, 0
      %p192 = por %p190, %p191
      %s193 = ssub.s32 %s159, %s166
      %p194 = scmp.eq.s32.totalorder %s193, 0
      %s196 = sadd.s32 %s195, 1
      %s197 = scalar_select %p194, %s195, %s196
      %p200 = pneg %p194
      %p201 = scmp.eq.s32.totalorder %s159, 1
      %p202 = por %p200, %p201
      %p203 = scmp.ne.s32.totalorder %s195, %s198
      %p204 = scmp.eq.s32.totalorder %s159, 0
      %p205 = por %p203, %p204
      %p206 = scmp.ne.s32.totalorder %s195, %s198
      %p207 = scmp.eq.s32.totalorder %s164, 1
      %p208 = por %p206, %p207
      %p209 = scmp.ne.s32.totalorder %s198, %s199
      %p210 = scmp.eq.s32.totalorder %s164, 0
      %p211 = por %p209, %p210
      %p212 = scmp.ne.s32.totalorder %s198, %s199
      %p213 = scmp.eq.s32.totalorder %s165, 1
      %p214 = por %p212, %p213
      %p216 = scmp.ne.s32.totalorder %s199, %s215
      %p217 = scmp.eq.s32.totalorder %s165, 0
      %p218 = por %p216, %p217
      %s219 = ssub.s32 %s159, %s166
      %p220 = scmp.eq.s32.totalorder %s219, 0
      %s222 = sadd.s32 %s221, 1
      %s223 = scalar_select %p220, %s221, %s222
      %p226 = pneg %p220
      %p227 = scmp.eq.s32.totalorder %s159, 1
      %p228 = por %p226, %p227
      %p229 = scmp.ne.s32.totalorder %s221, %s224
      %p230 = scmp.eq.s32.totalorder %s159, 0
      %p231 = por %p229, %p230
      %p232 = scmp.ne.s32.totalorder %s221, %s224
      %p233 = scmp.eq.s32.totalorder %s164, 1
      %p234 = por %p232, %p233
      %p235 = scmp.ne.s32.totalorder %s224, %s225
      %p236 = scmp.eq.s32.totalorder %s164, 0
      %p237 = por %p235, %p236
      %p238 = scmp.ne.s32.totalorder %s224, %s225
      %p239 = scmp.eq.s32.totalorder %s165, 1
      %p240 = por %p238, %p239
      %p242 = scmp.ne.s32.totalorder %s225, %s241
      %p243 = scmp.eq.s32.totalorder %s165, 0
      %p244 = por %p242, %p243
      %s245 = ssub.s32 %s159, %s166
      %p246 = scmp.eq.s32.totalorder %s245, 0
      %s248 = sadd.s32 %s247, 1
      %s249 = scalar_select %p246, %s247, %s248
      %p252 = pneg %p246
      %p253 = scmp.eq.s32.totalorder %s159, 1
      %p254 = por %p252, %p253
      %p255 = scmp.ne.s32.totalorder %s247, %s250
      %p256 = scmp.eq.s32.totalorder %s159, 0
      %p257 = por %p255, %p256
      %p258 = scmp.ne.s32.totalorder %s247, %s250
      %p259 = scmp.eq.s32.totalorder %s164, 1
      %p260 = por %p258, %p259
      %p261 = scmp.ne.s32.totalorder %s250, %s251
      %p262 = scmp.eq.s32.totalorder %s164, 0
      %p263 = por %p261, %p262
      %p264 = scmp.ne.s32.totalorder %s250, %s251
      %p265 = scmp.eq.s32.totalorder %s165, 1
      %p266 = por %p264, %p265
      %p268 = scmp.ne.s32.totalorder %s251, %s267
      %p269 = scmp.eq.s32.totalorder %s165, 0
      %p270 = por %p268, %p269
      %s271 = ssub.s32 %s159, %s166
      %p272 = scmp.eq.s32.totalorder %s271, 0
      %s274 = sadd.s32 %s273, 1
      %s275 = scalar_select %p272, %s273, %s274
      %p278 = pneg %p272
      %p279 = scmp.eq.s32.totalorder %s159, 1
      %p280 = por %p278, %p279
      %p281 = scmp.ne.s32.totalorder %s273, %s276
      %p282 = scmp.eq.s32.totalorder %s159, 0
      %p283 = por %p281, %p282
      %p284 = scmp.ne.s32.totalorder %s273, %s276
      %p285 = scmp.eq.s32.totalorder %s164, 1
      %p286 = por %p284, %p285
      %p287 = scmp.ne.s32.totalorder %s276, %s277
      %p288 = scmp.eq.s32.totalorder %s164, 0
      %p289 = por %p287, %p288
      %p290 = scmp.ne.s32.totalorder %s276, %s277
      %p291 = scmp.eq.s32.totalorder %s165, 1
      %p292 = por %p290, %p291
      %p294 = scmp.ne.s32.totalorder %s277, %s293
      %p295 = scmp.eq.s32.totalorder %s165, 0
      %p296 = por %p294, %p295
      %s297 = ssub.s32 %s159, %s166
      %p298 = scmp.eq.s32.totalorder %s297, 0
      %s300 = sadd.s32 %s299, 1
      %s301 = scalar_select %p298, %s299, %s300
      %p304 = pneg %p298
      %p305 = scmp.eq.s32.totalorder %s159, 1
      %p306 = por %p304, %p305
      %p307 = scmp.ne.s32.totalorder %s299, %s302
      %p308 = scmp.eq.s32.totalorder %s159, 0
      %p309 = por %p307, %p308
      %p310 = scmp.ne.s32.totalorder %s299, %s302
      %p311 = scmp.eq.s32.totalorder %s164, 1
      %p312 = por %p310, %p311
      %p313 = scmp.ne.s32.totalorder %s302, %s303
      %p314 = scmp.eq.s32.totalorder %s164, 0
      %p315 = por %p313, %p314
      %p316 = scmp.ne.s32.totalorder %s302, %s303
      %p317 = scmp.eq.s32.totalorder %s165, 1
      %p318 = por %p316, %p317
      %p320 = scmp.ne.s32.totalorder %s303, %s319
      %p321 = scmp.eq.s32.totalorder %s165, 0
      %p322 = por %p320, %p321
      %s323 = ssub.s32 %s159, %s166
      %p324 = scmp.eq.s32.totalorder %s323, 0
      %s326 = sadd.s32 %s325, 1
      %s327 = scalar_select %p324, %s325, %s326
      %p330 = pneg %p324
      %p331 = scmp.eq.s32.totalorder %s159, 1
      %p332 = por %p330, %p331
      %p333 = scmp.ne.s32.totalorder %s325, %s328
      %p334 = scmp.eq.s32.totalorder %s159, 0
      %p335 = por %p333, %p334
      %p336 = scmp.ne.s32.totalorder %s325, %s328
      %p337 = scmp.eq.s32.totalorder %s164, 1
      %p338 = por %p336, %p337
      %p339 = scmp.ne.s32.totalorder %s328, %s329
      %p340 = scmp.eq.s32.totalorder %s164, 0
      %p341 = por %p339, %p340
      %p342 = scmp.ne.s32.totalorder %s328, %s329
      %p343 = scmp.eq.s32.totalorder %s165, 1
      %p344 = por %p342, %p343
      %p346 = scmp.ne.s32.totalorder %s329, %s345
      %p347 = scmp.eq.s32.totalorder %s165, 0
      %p348 = por %p346, %p347
      %s349 = ssub.s32 %s159, %s166
      %p350 = scmp.eq.s32.totalorder %s349, 0
      %s352 = sadd.s32 %s351, 1
      %s353 = scalar_select %p350, %s351, %s352
      %p356 = pneg %p350
      %p357 = scmp.eq.s32.totalorder %s159, 1
      %p358 = por %p356, %p357
      %p359 = scmp.ne.s32.totalorder %s351, %s354
      %p360 = scmp.eq.s32.totalorder %s159, 0
      %p361 = por %p359, %p360
      %p362 = scmp.ne.s32.totalorder %s351, %s354
      %p363 = scmp.eq.s32.totalorder %s164, 1
      %p364 = por %p362, %p363
      %p365 = scmp.ne.s32.totalorder %s354, %s355
      %p366 = scmp.eq.s32.totalorder %s164, 0
      %p367 = por %p365, %p366
      %p368 = scmp.ne.s32.totalorder %s354, %s355
      %p369 = scmp.eq.s32.totalorder %s165, 1
      %p370 = por %p368, %p369
      %p372 = scmp.ne.s32.totalorder %s355, %s371
      %p373 = scmp.eq.s32.totalorder %s165, 0
      %p374 = por %p372, %p373
      %s375 = ssub.s32 %s159, %s166
      %p376 = scmp.eq.s32.totalorder %s375, 0
      %s378 = sadd.s32 %s377, 1
      %s379 = scalar_select %p376, %s377, %s378
      %p382 = pneg %p376
      %p383 = scmp.eq.s32.totalorder %s159, 1
      %p384 = por %p382, %p383
      %p385 = scmp.ne.s32.totalorder %s377, %s380
      %p386 = scmp.eq.s32.totalorder %s159, 0
      %p387 = por %p385, %p386
      %p388 = scmp.ne.s32.totalorder %s377, %s380
      %p389 = scmp.eq.s32.totalorder %s164, 1
      %p390 = por %p388, %p389
      %p391 = scmp.ne.s32.totalorder %s380, %s381
      %p392 = scmp.eq.s32.totalorder %s164, 0
      %p393 = por %p391, %p392
      %p394 = scmp.ne.s32.totalorder %s380, %s381
      %p395 = scmp.eq.s32.totalorder %s165, 1
      %p396 = por %p394, %p395
      %p398 = scmp.ne.s32.totalorder %s381, %s397
      %p399 = scmp.eq.s32.totalorder %s165, 0
      %p400 = por %p398, %p399
      %s402 = sadd.s32 %s401, 1
      %p405 = scmp.eq.s32.totalorder %s159, 1
      %p406 = scmp.ne.s32.totalorder %s401, %s403
      %p407 = scmp.eq.s32.totalorder %s159, 0
      %p408 = por %p406, %p407
      %p409 = scmp.ne.s32.totalorder %s401, %s403
      %p410 = scmp.eq.s32.totalorder %s164, 1
      %p411 = por %p409, %p410
      %p412 = scmp.ne.s32.totalorder %s403, %s404
      %p413 = scmp.eq.s32.totalorder %s164, 0
      %p414 = por %p412, %p413
      %p415 = scmp.ne.s32.totalorder %s403, %s404
      %p416 = scmp.eq.s32.totalorder %s165, 1
      %p417 = por %p415, %p416
      %p419 = scmp.ne.s32.totalorder %s404, %s418
      %p420 = scmp.eq.s32.totalorder %s165, 0
      %p421 = por %p419, %p420
      %s423 = sadd.s32 %s422, 1
      %p426 = scmp.eq.s32.totalorder %s159, 1
      %p427 = scmp.ne.s32.totalorder %s422, %s424
      %p428 = scmp.eq.s32.totalorder %s159, 0
      %p429 = por %p427, %p428
      %p430 = scmp.ne.s32.totalorder %s422, %s424
      %p431 = scmp.eq.s32.totalorder %s164, 1
      %p432 = por %p430, %p431
      %p433 = scmp.ne.s32.totalorder %s424, %s425
      %p434 = scmp.eq.s32.totalorder %s164, 0
      %p435 = por %p433, %p434
      %p436 = scmp.ne.s32.totalorder %s424, %s425
      %p437 = scmp.eq.s32.totalorder %s165, 1
      %p438 = por %p436, %p437
      %p440 = scmp.ne.s32.totalorder %s425, %s439
      %p441 = scmp.eq.s32.totalorder %s165, 0
      %p442 = por %p440, %p441
      %s444 = sadd.s32 %s443, 1
      %p447 = scmp.eq.s32.totalorder %s159, 1
      %p448 = scmp.ne.s32.totalorder %s443, %s445
      %p449 = scmp.eq.s32.totalorder %s159, 0
      %p450 = por %p448, %p449
      %p451 = scmp.ne.s32.totalorder %s443, %s445
      %p452 = scmp.eq.s32.totalorder %s164, 1
      %p453 = por %p451, %p452
      %p454 = scmp.ne.s32.totalorder %s445, %s446
      %p455 = scmp.eq.s32.totalorder %s164, 0
      %p456 = por %p454, %p455
      %p457 = scmp.ne.s32.totalorder %s445, %s446
      %p458 = scmp.eq.s32.totalorder %s165, 1
      %p459 = por %p457, %p458
      %p461 = scmp.ne.s32.totalorder %s446, %s460
      %p462 = scmp.eq.s32.totalorder %s165, 0
      %p463 = por %p461, %p462
      %s465 = sadd.s32 %s464, 1
      %p468 = scmp.eq.s32.totalorder %s159, 1
      %p469 = scmp.ne.s32.totalorder %s464, %s466
      %p470 = scmp.eq.s32.totalorder %s159, 0
      %p471 = por %p469, %p470
      %p472 = scmp.ne.s32.totalorder %s464, %s466
      %p473 = scmp.eq.s32.totalorder %s164, 1
      %p474 = por %p472, %p473
      %p475 = scmp.ne.s32.totalorder %s466, %s467
      %p476 = scmp.eq.s32.totalorder %s164, 0
      %p477 = por %p475, %p476
      %p478 = scmp.ne.s32.totalorder %s466, %s467
      %p479 = scmp.eq.s32.totalorder %s165, 1
      %p480 = por %p478, %p479
      %p482 = scmp.ne.s32.totalorder %s467, %s481
      %p483 = scmp.eq.s32.totalorder %s165, 0
      %p484 = por %p482, %p483
      %s486 = sadd.s32 %s485, 1
      %p489 = scmp.eq.s32.totalorder %s159, 1
      %p490 = scmp.ne.s32.totalorder %s485, %s487
      %p491 = scmp.eq.s32.totalorder %s159, 0
      %p492 = por %p490, %p491
      %p493 = scmp.ne.s32.totalorder %s485, %s487
      %p494 = scmp.eq.s32.totalorder %s164, 1
      %p495 = por %p493, %p494
      %p496 = scmp.ne.s32.totalorder %s487, %s488
      %p497 = scmp.eq.s32.totalorder %s164, 0
      %p498 = por %p496, %p497
      %p499 = scmp.ne.s32.totalorder %s487, %s488
      %p500 = scmp.eq.s32.totalorder %s165, 1
      %p501 = por %p499, %p500
      %p503 = scmp.ne.s32.totalorder %s488, %s502
      %p504 = scmp.eq.s32.totalorder %s165, 0
      %p505 = por %p503, %p504
      %s507 = sadd.s32 %s506, 1
      %p510 = scmp.eq.s32.totalorder %s159, 1
      %p511 = scmp.ne.s32.totalorder %s506, %s508
      %p512 = scmp.eq.s32.totalorder %s159, 0
      %p513 = por %p511, %p512
      %p514 = scmp.ne.s32.totalorder %s506, %s508
      %p515 = scmp.eq.s32.totalorder %s164, 1
      %p516 = por %p514, %p515
      %p517 = scmp.ne.s32.totalorder %s508, %s509
      %p518 = scmp.eq.s32.totalorder %s164, 0
      %p519 = por %p517, %p518
      %p520 = scmp.ne.s32.totalorder %s508, %s509
      %p521 = scmp.eq.s32.totalorder %s165, 1
      %p522 = por %p520, %p521
      %p524 = scmp.ne.s32.totalorder %s509, %s523
      %p525 = scmp.eq.s32.totalorder %s165, 0
      %p526 = por %p524, %p525
      %s528 = sadd.s32 %s527, 1
      %p531 = scmp.eq.s32.totalorder %s159, 1
      %p532 = scmp.ne.s32.totalorder %s527, %s529
      %p533 = scmp.eq.s32.totalorder %s159, 0
      %p534 = por %p532, %p533
      %p535 = scmp.ne.s32.totalorder %s527, %s529
      %p536 = scmp.eq.s32.totalorder %s164, 1
      %p537 = por %p535, %p536
      %p538 = scmp.ne.s32.totalorder %s529, %s530
      %p539 = scmp.eq.s32.totalorder %s164, 0
      %p540 = por %p538, %p539
      %p541 = scmp.ne.s32.totalorder %s529, %s530
      %p542 = scmp.eq.s32.totalorder %s165, 1
      %p543 = por %p541, %p542
      %p545 = scmp.ne.s32.totalorder %s530, %s544
      %p546 = scmp.eq.s32.totalorder %s165, 0
      %p547 = por %p545, %p546
      %s549 = sadd.s32 %s548, 1
      %p552 = scmp.eq.s32.totalorder %s159, 1
      %p553 = scmp.ne.s32.totalorder %s548, %s550
      %p554 = scmp.eq.s32.totalorder %s159, 0
      %p555 = por %p553, %p554
      %p556 = scmp.ne.s32.totalorder %s548, %s550
      %p557 = scmp.eq.s32.totalorder %s164, 1
      %p558 = por %p556, %p557
      %p559 = scmp.ne.s32.totalorder %s550, %s551
      %p560 = scmp.eq.s32.totalorder %s164, 0
      %p561 = por %p559, %p560
      %p562 = scmp.ne.s32.totalorder %s550, %s551
      %p563 = scmp.eq.s32.totalorder %s165, 1
      %p564 = por %p562, %p563
      %p566 = scmp.ne.s32.totalorder %s551, %s565
      %p567 = scmp.eq.s32.totalorder %s165, 0
      %p568 = por %p566, %p567
      %s570 = sadd.s32 %s569, 1
      %p573 = scmp.eq.s32.totalorder %s159, 1
      %p574 = scmp.ne.s32.totalorder %s569, %s571
      %p575 = scmp.eq.s32.totalorder %s159, 0
      %p576 = por %p574, %p575
      %p577 = scmp.ne.s32.totalorder %s569, %s571
      %p578 = scmp.eq.s32.totalorder %s164, 1
      %p579 = por %p577, %p578
      %p580 = scmp.ne.s32.totalorder %s571, %s572
      %p581 = scmp.eq.s32.totalorder %s164, 0
      %p582 = por %p580, %p581
      %p583 = scmp.ne.s32.totalorder %s571, %s572
      %p584 = scmp.eq.s32.totalorder %s165, 1
      %p585 = por %p583, %p584
      %p587 = scmp.ne.s32.totalorder %s572, %s586
      %p588 = scmp.eq.s32.totalorder %s165, 0
      %p589 = por %p587, %p588
      %s591 = sadd.s32 %s590, 1
      %p594 = scmp.eq.s32.totalorder %s159, 1
      %p595 = scmp.ne.s32.totalorder %s590, %s592
      %p596 = scmp.eq.s32.totalorder %s159, 0
      %p597 = por %p595, %p596
      %p598 = scmp.ne.s32.totalorder %s590, %s592
      %p599 = scmp.eq.s32.totalorder %s164, 1
      %p600 = por %p598, %p599
      %p601 = scmp.ne.s32.totalorder %s592, %s593
      %p602 = scmp.eq.s32.totalorder %s164, 0
      %p603 = por %p601, %p602
      %p604 = scmp.ne.s32.totalorder %s592, %s593
      %p605 = scmp.eq.s32.totalorder %s165, 1
      %p606 = por %p604, %p605
      %p608 = scmp.ne.s32.totalorder %s593, %s607
      %p609 = scmp.eq.s32.totalorder %s165, 0
      %p610 = por %p608, %p609
      %s612 = sadd.s32 %s611, 1
      %p615 = scmp.eq.s32.totalorder %s159, 1
      %p616 = scmp.ne.s32.totalorder %s611, %s613
      %p617 = scmp.eq.s32.totalorder %s159, 0
      %p618 = por %p616, %p617
      %p619 = scmp.ne.s32.totalorder %s611, %s613
      %p620 = scmp.eq.s32.totalorder %s164, 1
      %p621 = por %p619, %p620
      %p622 = scmp.ne.s32.totalorder %s613, %s614
      %p623 = scmp.eq.s32.totalorder %s164, 0
      %p624 = por %p622, %p623
      %p625 = scmp.ne.s32.totalorder %s613, %s614
      %p626 = scmp.eq.s32.totalorder %s165, 1
      %p627 = por %p625, %p626
      %p629 = scmp.ne.s32.totalorder %s614, %s628
      %p630 = scmp.eq.s32.totalorder %s165, 0
      %p631 = por %p629, %p630
      %s633 = sadd.s32 %s632, 1
      %p636 = scmp.eq.s32.totalorder %s159, 1
      %p637 = scmp.ne.s32.totalorder %s632, %s634
      %p638 = scmp.eq.s32.totalorder %s159, 0
      %p639 = por %p637, %p638
      %p640 = scmp.ne.s32.totalorder %s632, %s634
      %p641 = scmp.eq.s32.totalorder %s164, 1
      %p642 = por %p640, %p641
      %p643 = scmp.ne.s32.totalorder %s634, %s635
      %p644 = scmp.eq.s32.totalorder %s164, 0
      %p645 = por %p643, %p644
      %p646 = scmp.ne.s32.totalorder %s634, %s635
      %p647 = scmp.eq.s32.totalorder %s165, 1
      %p648 = por %p646, %p647
      %p650 = scmp.ne.s32.totalorder %s635, %s649
      %p651 = scmp.eq.s32.totalorder %s165, 0
      %p652 = por %p650, %p651
      %s654 = sadd.s32 %s653, 1
      %p657 = scmp.eq.s32.totalorder %s159, 1
      %p658 = scmp.ne.s32.totalorder %s653, %s655
      %p659 = scmp.eq.s32.totalorder %s159, 0
      %p660 = por %p658, %p659
      %p661 = scmp.ne.s32.totalorder %s653, %s655
      %p662 = scmp.eq.s32.totalorder %s164, 1
      %p663 = por %p661, %p662
      %p664 = scmp.ne.s32.totalorder %s655, %s656
      %p665 = scmp.eq.s32.totalorder %s164, 0
      %p666 = por %p664, %p665
      %p667 = scmp.ne.s32.totalorder %s655, %s656
      %p668 = scmp.eq.s32.totalorder %s165, 1
      %p669 = por %p667, %p668
      %p671 = scmp.ne.s32.totalorder %s656, %s670
      %p672 = scmp.eq.s32.totalorder %s165, 0
      %p673 = por %p671, %p672
      %s675 = sadd.s32 %s674, 1
      %p678 = scmp.eq.s32.totalorder %s159, 1
      %p679 = scmp.ne.s32.totalorder %s674, %s676
      %p680 = scmp.eq.s32.totalorder %s159, 0
      %p681 = por %p679, %p680
      %p682 = scmp.ne.s32.totalorder %s674, %s676
      %p683 = scmp.eq.s32.totalorder %s164, 1
      %p684 = por %p682, %p683
      %p685 = scmp.ne.s32.totalorder %s676, %s677
      %p686 = scmp.eq.s32.totalorder %s164, 0
      %p687 = por %p685, %p686
      %p688 = scmp.ne.s32.totalorder %s676, %s677
      %p689 = scmp.eq.s32.totalorder %s165, 1
      %p690 = por %p688, %p689
      %p692 = scmp.ne.s32.totalorder %s677, %s691
      %p693 = scmp.eq.s32.totalorder %s165, 0
      %p694 = por %p692, %p693
      %s696 = sadd.s32 %s695, 1
      %p699 = scmp.eq.s32.totalorder %s159, 1
      %p700 = scmp.ne.s32.totalorder %s695, %s697
      %p701 = scmp.eq.s32.totalorder %s159, 0
      %p702 = por %p700, %p701
      %p703 = scmp.ne.s32.totalorder %s695, %s697
      %p704 = scmp.eq.s32.totalorder %s164, 1
      %p705 = por %p703, %p704
      %p706 = scmp.ne.s32.totalorder %s697, %s698
      %p707 = scmp.eq.s32.totalorder %s164, 0
      %p708 = por %p706, %p707
      %p709 = scmp.ne.s32.totalorder %s697, %s698
      %p710 = scmp.eq.s32.totalorder %s165, 1
      %p711 = por %p709, %p710
      %p713 = scmp.ne.s32.totalorder %s698, %s712
      %p714 = scmp.eq.s32.totalorder %s165, 0
      %p715 = por %p713, %p714
      %s717 = sadd.s32 %s716, 1
      %p720 = scmp.eq.s32.totalorder %s159, 1
      %p721 = scmp.ne.s32.totalorder %s716, %s718
      %p722 = scmp.eq.s32.totalorder %s159, 0
      %p723 = por %p721, %p722
      %p724 = scmp.ne.s32.totalorder %s716, %s718
      %p725 = scmp.eq.s32.totalorder %s164, 1
      %p726 = por %p724, %p725
      %p727 = scmp.ne.s32.totalorder %s718, %s719
      %p728 = scmp.eq.s32.totalorder %s164, 0
      %p729 = por %p727, %p728
      %p730 = scmp.ne.s32.totalorder %s718, %s719
      %p731 = scmp.eq.s32.totalorder %s165, 1
      %p732 = por %p730, %p731
      %p734 = scmp.ne.s32.totalorder %s719, %s733
      %p735 = scmp.eq.s32.totalorder %s165, 0
      %p736 = por %p734, %p735
      %s738 = sadd.s32 %s737, 1
      %p741 = scmp.eq.s32.totalorder %s159, 1
      %p742 = scmp.ne.s32.totalorder %s737, %s739
      %p743 = scmp.eq.s32.totalorder %s159, 0
      %p744 = por %p742, %p743
      %p745 = scmp.ne.s32.totalorder %s737, %s739
      %p746 = scmp.eq.s32.totalorder %s164, 1
      %p747 = por %p745, %p746
      %p748 = scmp.ne.s32.totalorder %s739, %s740
      %p749 = scmp.eq.s32.totalorder %s164, 0
      %p750 = por %p748, %p749
      %p751 = scmp.ne.s32.totalorder %s739, %s740
      %p752 = scmp.eq.s32.totalorder %s165, 1
      %p753 = por %p751, %p752
      %p755 = scmp.ne.s32.totalorder %s740, %s754
      %p756 = scmp.eq.s32.totalorder %s165, 0
      %p757 = por %p755, %p756
      %s759 = sadd.s32 %s758, 1
      %p762 = scmp.eq.s32.totalorder %s159, 1
      %p763 = scmp.ne.s32.totalorder %s758, %s760
      %p764 = scmp.eq.s32.totalorder %s159, 0
      %p765 = por %p763, %p764
      %p766 = scmp.ne.s32.totalorder %s758, %s760
      %p767 = scmp.eq.s32.totalorder %s164, 1
      %p768 = por %p766, %p767
      %p769 = scmp.ne.s32.totalorder %s760, %s761
      %p770 = scmp.eq.s32.totalorder %s164, 0
      %p771 = por %p769, %p770
      %p772 = scmp.ne.s32.totalorder %s760, %s761
      %p773 = scmp.eq.s32.totalorder %s165, 1
      %p774 = por %p772, %p773
      %p776 = scmp.ne.s32.totalorder %s761, %s775
      %p777 = scmp.eq.s32.totalorder %s165, 0
      %p778 = por %p776, %p777
      %s780 = sadd.s32 %s779, 1
      %p783 = scmp.eq.s32.totalorder %s159, 1
      %p784 = scmp.ne.s32.totalorder %s779, %s781
      %p785 = scmp.eq.s32.totalorder %s159, 0
      %p786 = por %p784, %p785
      %p787 = scmp.ne.s32.totalorder %s779, %s781
      %p788 = scmp.eq.s32.totalorder %s164, 1
      %p789 = por %p787, %p788
      %p790 = scmp.ne.s32.totalorder %s781, %s782
      %p791 = scmp.eq.s32.totalorder %s164, 0
      %p792 = por %p790, %p791
      %p793 = scmp.ne.s32.totalorder %s781, %s782
      %p794 = scmp.eq.s32.totalorder %s165, 1
      %p795 = por %p793, %p794
      %p797 = scmp.ne.s32.totalorder %s782, %s796
      %p798 = scmp.eq.s32.totalorder %s165, 0
      %p799 = por %p797, %p798
      %s801 = sadd.s32 %s800, 1
      %p804 = scmp.eq.s32.totalorder %s159, 1
      %p805 = scmp.ne.s32.totalorder %s800, %s802
      %p806 = scmp.eq.s32.totalorder %s159, 0
      %p807 = por %p805, %p806
      %p808 = scmp.ne.s32.totalorder %s800, %s802
      %p809 = scmp.eq.s32.totalorder %s164, 1
      %p810 = por %p808, %p809
      %p811 = scmp.ne.s32.totalorder %s802, %s803
      %p812 = scmp.eq.s32.totalorder %s164, 0
      %p813 = por %p811, %p812
      %p814 = scmp.ne.s32.totalorder %s802, %s803
      %p815 = scmp.eq.s32.totalorder %s165, 1
      %p816 = por %p814, %p815
      %p818 = scmp.ne.s32.totalorder %s803, %s817
      %p819 = scmp.eq.s32.totalorder %s165, 0
      %p820 = por %p818, %p819
      %s822 = sadd.s32 %s821, 1
      %p825 = scmp.eq.s32.totalorder %s159, 1
      %p826 = scmp.ne.s32.totalorder %s821, %s823
      %p827 = scmp.eq.s32.totalorder %s159, 0
      %p828 = por %p826, %p827
      %p829 = scmp.ne.s32.totalorder %s821, %s823
      %p830 = scmp.eq.s32.totalorder %s164, 1
      %p831 = por %p829, %p830
      %p832 = scmp.ne.s32.totalorder %s823, %s824
      %p833 = scmp.eq.s32.totalorder %s164, 0
      %p834 = por %p832, %p833
      %p835 = scmp.ne.s32.totalorder %s823, %s824
      %p836 = scmp.eq.s32.totalorder %s165, 1
      %p837 = por %p835, %p836
      %p839 = scmp.ne.s32.totalorder %s824, %s838
      %p840 = scmp.eq.s32.totalorder %s165, 0
      %p841 = por %p839, %p840
      %s843 = sadd.s32 %s842, 1
      %p846 = scmp.eq.s32.totalorder %s159, 1
      %p847 = scmp.ne.s32.totalorder %s842, %s844
      %p848 = scmp.eq.s32.totalorder %s159, 0
      %p849 = por %p847, %p848
      %p850 = scmp.ne.s32.totalorder %s842, %s844
      %p851 = scmp.eq.s32.totalorder %s164, 1
      %p852 = por %p850, %p851
      %p853 = scmp.ne.s32.totalorder %s844, %s845
      %p854 = scmp.eq.s32.totalorder %s164, 0
      %p855 = por %p853, %p854
      %p856 = scmp.ne.s32.totalorder %s844, %s845
      %p857 = scmp.eq.s32.totalorder %s165, 1
      %p858 = por %p856, %p857
      %p860 = scmp.ne.s32.totalorder %s845, %s859
      %p861 = scmp.eq.s32.totalorder %s165, 0
      %p862 = por %p860, %p861
      %s864 = sadd.s32 %s863, 1
      %p867 = scmp.eq.s32.totalorder %s159, 1
      %p868 = scmp.ne.s32.totalorder %s863, %s865
      %p869 = scmp.eq.s32.totalorder %s159, 0
      %p870 = por %p868, %p869
      %p871 = scmp.ne.s32.totalorder %s863, %s865
      %p872 = scmp.eq.s32.totalorder %s164, 1
      %p873 = por %p871, %p872
      %p874 = scmp.ne.s32.totalorder %s865, %s866
      %p875 = scmp.eq.s32.totalorder %s164, 0
      %p876 = por %p874, %p875
      %p877 = scmp.ne.s32.totalorder %s865, %s866
      %p878 = scmp.eq.s32.totalorder %s165, 1
      %p879 = por %p877, %p878
      %p881 = scmp.ne.s32.totalorder %s866, %s880
      %p882 = scmp.eq.s32.totalorder %s165, 0
      %p883 = por %p881, %p882
      %s885 = sadd.s32 %s884, 1
      %p888 = scmp.eq.s32.totalorder %s159, 1
      %p889 = scmp.ne.s32.totalorder %s884, %s886
      %p890 = scmp.eq.s32.totalorder %s159, 0
      %p891 = por %p889, %p890
      %p892 = scmp.ne.s32.totalorder %s884, %s886
      %p893 = scmp.eq.s32.totalorder %s164, 1
      %p894 = por %p892, %p893
      %p895 = scmp.ne.s32.totalorder %s886, %s887
      %p896 = scmp.eq.s32.totalorder %s164, 0
      %p897 = por %p895, %p896
      %p898 = scmp.ne.s32.totalorder %s886, %s887
      %p899 = scmp.eq.s32.totalorder %s165, 1
      %p900 = por %p898, %p899
      %p902 = scmp.ne.s32.totalorder %s887, %s901
      %p903 = scmp.eq.s32.totalorder %s165, 0
      %p904 = por %p902, %p903
      %s906 = sadd.s32 %s905, 1
      %p909 = scmp.eq.s32.totalorder %s159, 1
      %p910 = scmp.ne.s32.totalorder %s905, %s907
      %p911 = scmp.eq.s32.totalorder %s159, 0
      %p912 = por %p910, %p911
      %p913 = scmp.ne.s32.totalorder %s905, %s907
      %p914 = scmp.eq.s32.totalorder %s164, 1
      %p915 = por %p913, %p914
      %p916 = scmp.ne.s32.totalorder %s907, %s908
      %p917 = scmp.eq.s32.totalorder %s164, 0
      %p918 = por %p916, %p917
      %p919 = scmp.ne.s32.totalorder %s907, %s908
      %p920 = scmp.eq.s32.totalorder %s165, 1
      %p921 = por %p919, %p920
      %p923 = scmp.ne.s32.totalorder %s908, %s922
      %p924 = scmp.eq.s32.totalorder %s165, 0
      %p925 = por %p923, %p924
      %s927 = sadd.s32 %s926, 1
      %p930 = scmp.eq.s32.totalorder %s159, 1
      %p931 = scmp.ne.s32.totalorder %s926, %s928
      %p932 = scmp.eq.s32.totalorder %s159, 0
      %p933 = por %p931, %p932
      %p934 = scmp.ne.s32.totalorder %s926, %s928
      %p935 = scmp.eq.s32.totalorder %s164, 1
      %p936 = por %p934, %p935
      %p937 = scmp.ne.s32.totalorder %s928, %s929
      %p938 = scmp.eq.s32.totalorder %s164, 0
      %p939 = por %p937, %p938
      %p940 = scmp.ne.s32.totalorder %s928, %s929
      %p941 = scmp.eq.s32.totalorder %s165, 1
      %p942 = por %p940, %p941
      %p944 = scmp.ne.s32.totalorder %s929, %s943
      %p945 = scmp.eq.s32.totalorder %s165, 0
      %p946 = por %p944, %p945
      %s948 = sadd.s32 %s947, 1
      %p951 = scmp.eq.s32.totalorder %s159, 1
      %p952 = scmp.ne.s32.totalorder %s947, %s949
      %p953 = scmp.eq.s32.totalorder %s159, 0
      %p954 = por %p952, %p953
      %p955 = scmp.ne.s32.totalorder %s947, %s949
      %p956 = scmp.eq.s32.totalorder %s164, 1
      %p957 = por %p955, %p956
      %p958 = scmp.ne.s32.totalorder %s949, %s950
      %p959 = scmp.eq.s32.totalorder %s164, 0
      %p960 = por %p958, %p959
      %p961 = scmp.ne.s32.totalorder %s949, %s950
      %p962 = scmp.eq.s32.totalorder %s165, 1
      %p963 = por %p961, %p962
      %p965 = scmp.ne.s32.totalorder %s950, %s964
      %p966 = scmp.eq.s32.totalorder %s165, 0
      %p967 = por %p965, %p966
      %s969 = sadd.s32 %s968, 1
      %p972 = scmp.eq.s32.totalorder %s159, 1
      %p973 = scmp.ne.s32.totalorder %s968, %s970
      %p974 = scmp.eq.s32.totalorder %s159, 0
      %p975 = por %p973, %p974
      %p976 = scmp.ne.s32.totalorder %s968, %s970
      %p977 = scmp.eq.s32.totalorder %s164, 1
      %p978 = por %p976, %p977
      %p979 = scmp.ne.s32.totalorder %s970, %s971
      %p980 = scmp.eq.s32.totalorder %s164, 0
      %p981 = por %p979, %p980
      %p982 = scmp.ne.s32.totalorder %s970, %s971
      %p983 = scmp.eq.s32.totalorder %s165, 1
      %p984 = por %p982, %p983
      %p986 = scmp.ne.s32.totalorder %s971, %s985
      %p987 = scmp.eq.s32.totalorder %s165, 0
      %p988 = por %p986, %p987
      %s990 = sadd.s32 %s989, 1
      %p993 = scmp.eq.s32.totalorder %s159, 1
      %p994 = scmp.ne.s32.totalorder %s989, %s991
      %p995 = scmp.eq.s32.totalorder %s159, 0
      %p996 = por %p994, %p995
      %p997 = scmp.ne.s32.totalorder %s989, %s991
      %p998 = scmp.eq.s32.totalorder %s164, 1
      %p999 = por %p997, %p998
      %p1000 = scmp.ne.s32.totalorder %s991, %s992
      %p1001 = scmp.eq.s32.totalorder %s164, 0
      %p1002 = por %p1000, %p1001
      %p1003 = scmp.ne.s32.totalorder %s991, %s992
      %p1004 = scmp.eq.s32.totalorder %s165, 1
      %p1005 = por %p1003, %p1004
      %p1007 = scmp.ne.s32.totalorder %s992, %s1006
      %p1008 = scmp.eq.s32.totalorder %s165, 0
      %p1009 = por %p1007, %p1008
      %s1011 = sadd.s32 %s1010, 1
      %p1014 = scmp.eq.s32.totalorder %s159, 1
      %p1015 = scmp.ne.s32.totalorder %s1010, %s1012
      %p1016 = scmp.eq.s32.totalorder %s159, 0
      %p1017 = por %p1015, %p1016
      %p1018 = scmp.ne.s32.totalorder %s1010, %s1012
      %p1019 = scmp.eq.s32.totalorder %s164, 1
      %p1020 = por %p1018, %p1019
      %p1021 = scmp.ne.s32.totalorder %s1012, %s1013
      %p1022 = scmp.eq.s32.totalorder %s164, 0
      %p1023 = por %p1021, %p1022
      %p1024 = scmp.ne.s32.totalorder %s1012, %s1013
      %p1025 = scmp.eq.s32.totalorder %s165, 1
      %p1026 = por %p1024, %p1025
      %p1028 = scmp.ne.s32.totalorder %s1013, %s1027
      %p1029 = scmp.eq.s32.totalorder %s165, 0
      %p1030 = por %p1028, %p1029
      %s1032 = sadd.s32 %s1031, 1
      %p1035 = scmp.eq.s32.totalorder %s159, 1
      %p1036 = scmp.ne.s32.totalorder %s1031, %s1033
      %p1037 = scmp.eq.s32.totalorder %s159, 0
      %p1038 = por %p1036, %p1037
      %p1039 = scmp.ne.s32.totalorder %s1031, %s1033
      %p1040 = scmp.eq.s32.totalorder %s164, 1
      %p1041 = por %p1039, %p1040
      %p1042 = scmp.ne.s32.totalorder %s1033, %s1034
      %p1043 = scmp.eq.s32.totalorder %s164, 0
      %p1044 = por %p1042, %p1043
      %p1045 = scmp.ne.s32.totalorder %s1033, %s1034
      %p1046 = scmp.eq.s32.totalorder %s165, 1
      %p1047 = por %p1045, %p1046
      %p1049 = scmp.ne.s32.totalorder %s1034, %s1048
      %p1050 = scmp.eq.s32.totalorder %s165, 0
      %p1051 = por %p1049, %p1050
      %s1053 = sadd.s32 %s1052, 1
      %p1056 = scmp.eq.s32.totalorder %s159, 1
      %p1057 = scmp.ne.s32.totalorder %s1052, %s1054
      %p1058 = scmp.eq.s32.totalorder %s159, 0
      %p1059 = por %p1057, %p1058
      %p1060 = scmp.ne.s32.totalorder %s1052, %s1054
      %p1061 = scmp.eq.s32.totalorder %s164, 1
      %p1062 = por %p1060, %p1061
      %p1063 = scmp.ne.s32.totalorder %s1054, %s1055
      %p1064 = scmp.eq.s32.totalorder %s164, 0
      %p1065 = por %p1063, %p1064
      %p1066 = scmp.ne.s32.totalorder %s1054, %s1055
      %p1067 = scmp.eq.s32.totalorder %s165, 1
      %p1068 = por %p1066, %p1067
      %p1070 = scmp.ne.s32.totalorder %s1055, %s1069
      %p1071 = scmp.eq.s32.totalorder %s165, 0
      %p1072 = por %p1070, %p1071
      %s1074 = sadd.s32 %s1073, 1
      %p1077 = scmp.eq.s32.totalorder %s159, 1
      %p1078 = scmp.ne.s32.totalorder %s1073, %s1075
      %p1079 = scmp.eq.s32.totalorder %s159, 0
      %p1080 = por %p1078, %p1079
      %p1081 = scmp.ne.s32.totalorder %s1073, %s1075
      %p1082 = scmp.eq.s32.totalorder %s164, 1
      %p1083 = por %p1081, %p1082
      %p1084 = scmp.ne.s32.totalorder %s1075, %s1076
      %p1085 = scmp.eq.s32.totalorder %s164, 0
      %p1086 = por %p1084, %p1085
      %p1087 = scmp.ne.s32.totalorder %s1075, %s1076
      %p1088 = scmp.eq.s32.totalorder %s165, 1
      %p1089 = por %p1087, %p1088
      %p1091 = scmp.ne.s32.totalorder %s1076, %s1090
      %p1092 = scmp.eq.s32.totalorder %s165, 0
      %p1093 = por %p1091, %p1092
      %s1095 = sadd.s32 %s1094, 1
      %p1098 = scmp.eq.s32.totalorder %s159, 1
      %p1099 = scmp.ne.s32.totalorder %s1094, %s1096
      %p1100 = scmp.eq.s32.totalorder %s159, 0
      %p1101 = por %p1099, %p1100
      %p1102 = scmp.ne.s32.totalorder %s1094, %s1096
      %p1103 = scmp.eq.s32.totalorder %s164, 1
      %p1104 = por %p1102, %p1103
      %p1105 = scmp.ne.s32.totalorder %s1096, %s1097
      %p1106 = scmp.eq.s32.totalorder %s164, 0
      %p1107 = por %p1105, %p1106
      %p1108 = scmp.ne.s32.totalorder %s1096, %s1097
      %p1109 = scmp.eq.s32.totalorder %s165, 1
      %p1110 = por %p1108, %p1109
      %p1112 = scmp.ne.s32.totalorder %s1097, %s1111
      %p1113 = scmp.eq.s32.totalorder %s165, 0
      %p1114 = por %p1112, %p1113
      %s1116 = sadd.s32 %s1115, 1
      %p1119 = scmp.eq.s32.totalorder %s159, 1
      %p1120 = scmp.ne.s32.totalorder %s1115, %s1117
      %p1121 = scmp.eq.s32.totalorder %s159, 0
      %p1122 = por %p1120, %p1121
      %p1123 = scmp.ne.s32.totalorder %s1115, %s1117
      %p1124 = scmp.eq.s32.totalorder %s164, 1
      %p1125 = por %p1123, %p1124
      %p1126 = scmp.ne.s32.totalorder %s1117, %s1118
      %p1127 = scmp.eq.s32.totalorder %s164, 0
      %p1128 = por %p1126, %p1127
      %p1129 = scmp.ne.s32.totalorder %s1117, %s1118
      %p1130 = scmp.eq.s32.totalorder %s165, 1
      %p1131 = por %p1129, %p1130
      %p1133 = scmp.ne.s32.totalorder %s1118, %s1132
      %p1134 = scmp.eq.s32.totalorder %s165, 0
      %p1135 = por %p1133, %p1134
      %s1137 = sadd.s32 %s1136, 1
      %p1140 = scmp.eq.s32.totalorder %s159, 1
      %p1141 = scmp.ne.s32.totalorder %s1136, %s1138
      %p1142 = scmp.eq.s32.totalorder %s159, 0
      %p1143 = por %p1141, %p1142
      %p1144 = scmp.ne.s32.totalorder %s1136, %s1138
      %p1145 = scmp.eq.s32.totalorder %s164, 1
      %p1146 = por %p1144, %p1145
      %p1147 = scmp.ne.s32.totalorder %s1138, %s1139
      %p1148 = scmp.eq.s32.totalorder %s164, 0
      %p1149 = por %p1147, %p1148
      %p1150 = scmp.ne.s32.totalorder %s1138, %s1139
      %p1151 = scmp.eq.s32.totalorder %s165, 1
      %p1152 = por %p1150, %p1151
      %p1154 = scmp.ne.s32.totalorder %s1139, %s1153
      %p1155 = scmp.eq.s32.totalorder %s165, 0
      %p1156 = por %p1154, %p1155
      %s1158 = sadd.s32 %s1157, 1
      %p1161 = scmp.eq.s32.totalorder %s159, 1
      %p1162 = scmp.ne.s32.totalorder %s1157, %s1159
      %p1163 = scmp.eq.s32.totalorder %s159, 0
      %p1164 = por %p1162, %p1163
      %p1165 = scmp.ne.s32.totalorder %s1157, %s1159
      %p1166 = scmp.eq.s32.totalorder %s164, 1
      %p1167 = por %p1165, %p1166
      %p1168 = scmp.ne.s32.totalorder %s1159, %s1160
      %p1169 = scmp.eq.s32.totalorder %s164, 0
      %p1170 = por %p1168, %p1169
      %p1171 = scmp.ne.s32.totalorder %s1159, %s1160
      %p1172 = scmp.eq.s32.totalorder %s165, 1
      %p1173 = por %p1171, %p1172
      %p1175 = scmp.ne.s32.totalorder %s1160, %s1174
      %p1176 = scmp.eq.s32.totalorder %s165, 0
      %p1177 = por %p1175, %p1176
      %s1179 = sadd.s32 %s1178, 1
      %p1182 = scmp.eq.s32.totalorder %s159, 1
      %p1183 = scmp.ne.s32.totalorder %s1178, %s1180
      %p1184 = scmp.eq.s32.totalorder %s159, 0
      %p1185 = por %p1183, %p1184
      %p1186 = scmp.ne.s32.totalorder %s1178, %s1180
      %p1187 = scmp.eq.s32.totalorder %s164, 1
      %p1188 = por %p1186, %p1187
      %p1189 = scmp.ne.s32.totalorder %s1180, %s1181
      %p1190 = scmp.eq.s32.totalorder %s164, 0
      %p1191 = por %p1189, %p1190
      %p1192 = scmp.ne.s32.totalorder %s1180, %s1181
      %p1193 = scmp.eq.s32.totalorder %s165, 1
      %p1194 = por %p1192, %p1193
      %p1196 = scmp.ne.s32.totalorder %s1181, %s1195
      %p1197 = scmp.eq.s32.totalorder %s165, 0
      %p1198 = por %p1196, %p1197
      %s1200 = sadd.s32 %s1199, 1
      %p1203 = scmp.eq.s32.totalorder %s159, 1
      %p1204 = scmp.ne.s32.totalorder %s1199, %s1201
      %p1205 = scmp.eq.s32.totalorder %s159, 0
      %p1206 = por %p1204, %p1205
      %p1207 = scmp.ne.s32.totalorder %s1199, %s1201
      %p1208 = scmp.eq.s32.totalorder %s164, 1
      %p1209 = por %p1207, %p1208
      %p1210 = scmp.ne.s32.totalorder %s1201, %s1202
      %p1211 = scmp.eq.s32.totalorder %s164, 0
      %p1212 = por %p1210, %p1211
      %p1213 = scmp.ne.s32.totalorder %s1201, %s1202
      %p1214 = scmp.eq.s32.totalorder %s165, 1
      %p1215 = por %p1213, %p1214
      %p1217 = scmp.ne.s32.totalorder %s1202, %s1216
      %p1218 = scmp.eq.s32.totalorder %s165, 0
      %p1219 = por %p1217, %p1218
      %s1221 = sadd.s32 %s1220, 1
      %p1224 = scmp.eq.s32.totalorder %s159, 1
      %p1225 = scmp.ne.s32.totalorder %s1220, %s1222
      %p1226 = scmp.eq.s32.totalorder %s159, 0
      %p1227 = por %p1225, %p1226
      %p1228 = scmp.ne.s32.totalorder %s1220, %s1222
      %p1229 = scmp.eq.s32.totalorder %s164, 1
      %p1230 = por %p1228, %p1229
      %p1231 = scmp.ne.s32.totalorder %s1222, %s1223
      %p1232 = scmp.eq.s32.totalorder %s164, 0
      %p1233 = por %p1231, %p1232
      %p1234 = scmp.ne.s32.totalorder %s1222, %s1223
      %p1235 = scmp.eq.s32.totalorder %s165, 1
      %p1236 = por %p1234, %p1235
      %p1238 = scmp.ne.s32.totalorder %s1223, %s1237
      %p1239 = scmp.eq.s32.totalorder %s165, 0
      %p1240 = por %p1238, %p1239
      %s1242 = sadd.s32 %s1241, 1
      %p1245 = scmp.eq.s32.totalorder %s159, 1
      %p1246 = scmp.ne.s32.totalorder %s1241, %s1243
      %p1247 = scmp.eq.s32.totalorder %s159, 0
      %p1248 = por %p1246, %p1247
      %p1249 = scmp.ne.s32.totalorder %s1241, %s1243
      %p1250 = scmp.eq.s32.totalorder %s164, 1
      %p1251 = por %p1249, %p1250
      %p1252 = scmp.ne.s32.totalorder %s1243, %s1244
      %p1253 = scmp.eq.s32.totalorder %s164, 0
      %p1254 = por %p1252, %p1253
      %p1255 = scmp.ne.s32.totalorder %s1243, %s1244
      %p1256 = scmp.eq.s32.totalorder %s165, 1
      %p1257 = por %p1255, %p1256
      %p1259 = scmp.ne.s32.totalorder %s1244, %s1258
      %p1260 = scmp.eq.s32.totalorder %s165, 0
      %p1261 = por %p1259, %p1260
      %s1263 = sadd.s32 %s1262, 1
      %p1266 = scmp.eq.s32.totalorder %s159, 1
      %p1267 = scmp.ne.s32.totalorder %s1262, %s1264
      %p1268 = scmp.eq.s32.totalorder %s159, 0
      %p1269 = por %p1267, %p1268
      %p1270 = scmp.ne.s32.totalorder %s1262, %s1264
      %p1271 = scmp.eq.s32.totalorder %s164, 1
      %p1272 = por %p1270, %p1271
      %p1273 = scmp.ne.s32.totalorder %s1264, %s1265
      %p1274 = scmp.eq.s32.totalorder %s164, 0
      %p1275 = por %p1273, %p1274
      %p1276 = scmp.ne.s32.totalorder %s1264, %s1265
      %p1277 = scmp.eq.s32.totalorder %s165, 1
      %p1278 = por %p1276, %p1277
      %p1280 = scmp.ne.s32.totalorder %s1265, %s1279
      %p1281 = scmp.eq.s32.totalorder %s165, 0
      %p1282 = por %p1280, %p1281
      %s1284 = sadd.s32 %s1283, 1
      %p1287 = scmp.eq.s32.totalorder %s159, 1
      %p1288 = scmp.ne.s32.totalorder %s1283, %s1285
      %p1289 = scmp.eq.s32.totalorder %s159, 0
      %p1290 = por %p1288, %p1289
      %p1291 = scmp.ne.s32.totalorder %s1283, %s1285
      %p1292 = scmp.eq.s32.totalorder %s164, 1
      %p1293 = por %p1291, %p1292
      %p1294 = scmp.ne.s32.totalorder %s1285, %s1286
      %p1295 = scmp.eq.s32.totalorder %s164, 0
      %p1296 = por %p1294, %p1295
      %p1297 = scmp.ne.s32.totalorder %s1285, %s1286
      %p1298 = scmp.eq.s32.totalorder %s165, 1
      %p1299 = por %p1297, %p1298
      %p1301 = scmp.ne.s32.totalorder %s1286, %s1300
      %p1302 = scmp.eq.s32.totalorder %s165, 0
      %p1303 = por %p1301, %p1302
      %s1305 = sadd.s32 %s1304, 1
      %p1308 = scmp.eq.s32.totalorder %s159, 1
      %p1309 = scmp.ne.s32.totalorder %s1304, %s1306
      %p1310 = scmp.eq.s32.totalorder %s159, 0
      %p1311 = por %p1309, %p1310
      %p1312 = scmp.ne.s32.totalorder %s1304, %s1306
      %p1313 = scmp.eq.s32.totalorder %s164, 1
      %p1314 = por %p1312, %p1313
      %p1315 = scmp.ne.s32.totalorder %s1306, %s1307
      %p1316 = scmp.eq.s32.totalorder %s164, 0
      %p1317 = por %p1315, %p1316
      %p1318 = scmp.ne.s32.totalorder %s1306, %s1307
      %p1319 = scmp.eq.s32.totalorder %s165, 1
      %p1320 = por %p1318, %p1319
      %p1322 = scmp.ne.s32.totalorder %s1307, %s1321
      %p1323 = scmp.eq.s32.totalorder %s165, 0
      %p1324 = por %p1322, %p1323
      %s1326 = sadd.s32 %s1325, 1
      %p1329 = scmp.eq.s32.totalorder %s159, 1
      %p1330 = scmp.ne.s32.totalorder %s1325, %s1327
      %p1331 = scmp.eq.s32.totalorder %s159, 0
      %p1332 = por %p1330, %p1331
      %p1333 = scmp.ne.s32.totalorder %s1325, %s1327
      %p1334 = scmp.eq.s32.totalorder %s164, 1
      %p1335 = por %p1333, %p1334
      %p1336 = scmp.ne.s32.totalorder %s1327, %s1328
      %p1337 = scmp.eq.s32.totalorder %s164, 0
      %p1338 = por %p1336, %p1337
      %p1339 = scmp.ne.s32.totalorder %s1327, %s1328
      %p1340 = scmp.eq.s32.totalorder %s165, 1
      %p1341 = por %p1339, %p1340
      %p1343 = scmp.ne.s32.totalorder %s1328, %s1342
      %p1344 = scmp.eq.s32.totalorder %s165, 0
      %p1345 = por %p1343, %p1344
      %s1347 = sadd.s32 %s1346, 1
      %p1350 = scmp.eq.s32.totalorder %s159, 1
      %p1351 = scmp.ne.s32.totalorder %s1346, %s1348
      %p1352 = scmp.eq.s32.totalorder %s159, 0
      %p1353 = por %p1351, %p1352
      %p1354 = scmp.ne.s32.totalorder %s1346, %s1348
      %p1355 = scmp.eq.s32.totalorder %s164, 1
      %p1356 = por %p1354, %p1355
      %p1357 = scmp.ne.s32.totalorder %s1348, %s1349
      %p1358 = scmp.eq.s32.totalorder %s164, 0
      %p1359 = por %p1357, %p1358
      %p1360 = scmp.ne.s32.totalorder %s1348, %s1349
      %p1361 = scmp.eq.s32.totalorder %s165, 1
      %p1362 = por %p1360, %p1361
      %p1364 = scmp.ne.s32.totalorder %s1349, %s1363
      %p1365 = scmp.eq.s32.totalorder %s165, 0
      %p1366 = por %p1364, %p1365
      %s1368 = sadd.s32 %s1367, 1
      %p1371 = scmp.eq.s32.totalorder %s159, 1
      %p1372 = scmp.ne.s32.totalorder %s1367, %s1369
      %p1373 = scmp.eq.s32.totalorder %s159, 0
      %p1374 = por %p1372, %p1373
      %p1375 = scmp.ne.s32.totalorder %s1367, %s1369
      %p1376 = scmp.eq.s32.totalorder %s164, 1
      %p1377 = por %p1375, %p1376
      %p1378 = scmp.ne.s32.totalorder %s1369, %s1370
      %p1379 = scmp.eq.s32.totalorder %s164, 0
      %p1380 = por %p1378, %p1379
      %p1381 = scmp.ne.s32.totalorder %s1369, %s1370
      %p1382 = scmp.eq.s32.totalorder %s165, 1
      %p1383 = por %p1381, %p1382
      %p1385 = scmp.ne.s32.totalorder %s1370, %s1384
      %p1386 = scmp.eq.s32.totalorder %s165, 0
      %p1387 = por %p1385, %p1386
      %s1388 = ssub.s32 %s159, %s166
      %p1389 = scmp.eq.s32.totalorder %s1388, 0
      %s1391 = sadd.s32 %s1390, 1
      %s1392 = scalar_select %p1389, %s1390, %s1391
      %p1395 = pneg %p1389
      %p1396 = scmp.eq.s32.totalorder %s159, 1
      %p1397 = por %p1395, %p1396
      %p1398 = scmp.ne.s32.totalorder %s1390, %s1393
      %p1399 = scmp.eq.s32.totalorder %s159, 0
      %p1400 = por %p1398, %p1399
      %p1401 = scmp.ne.s32.totalorder %s1390, %s1393
      %p1402 = scmp.eq.s32.totalorder %s164, 1
      %p1403 = por %p1401, %p1402
      %p1404 = scmp.ne.s32.totalorder %s1393, %s1394
      %p1405 = scmp.eq.s32.totalorder %s164, 0
      %p1406 = por %p1404, %p1405
      %p1407 = scmp.ne.s32.totalorder %s1393, %s1394
      %p1408 = scmp.eq.s32.totalorder %s165, 1
      %p1409 = por %p1407, %p1408
      %p1411 = scmp.ne.s32.totalorder %s1394, %s1410
      %p1412 = scmp.eq.s32.totalorder %s165, 0
      %p1413 = por %p1411, %p1412
      %p1414 = scmp.le.s32.totalorder 1, %s159
      %p1415 = scmp.lt.s32.totalorder %s159, 3
      %p1416 = pnand %p1414, %p1415
      %p1417 = pneg %p1416
      // Predicated region
      $region9: #{tpu_custom_call.1} parent=5 // pred_check
        _
      $region10: #{tpu_custom_call.1} parent=5 // pred_check_branch
        %1419 = sbr.rel (%p1416) target = $region12
      $region11: #{tpu_custom_call.1} parent=5 // pred_region
        %s1420 = ssub.s32 %s159, 1
        // Predicated region
        $region13: #{tpu_custom_call.1} parent=11 // pred_check
          %p1421 = pneg %p414
        $region14: #{tpu_custom_call.1} parent=11 // pred_check_branch
          %1423 = sbr.rel (%p1421) target = $region16
        $region15: #{tpu_custom_call.1} parent=11 // pred_region
          %1425 = vsyncadd [#allocation16], 0
          %s1426 = sshll.u32 %s19, 4
          %s1427 = int_to_ptr.hbm [resolvable:$true] %s1426
          %s1428 = sshll.u32 [#allocation15], 4
          %s1429 = int_to_ptr.vmem [resolvable:$true] %s1428
          %1434 = dma.hbm_to_vmem [thread:$0]  %s1427, 1024, %s1429, [#allocation16], 64, 64, 4
        $region16: #{tpu_custom_call.1} parent=11 // pred_fallthru
          _
        // Predicated region
        $region17: #{tpu_custom_call.1} parent=11 // pred_check
          %p1435 = pneg %p435
        $region18: #{tpu_custom_call.1} parent=11 // pred_check_branch
          %1437 = sbr.rel (%p1435) target = $region20
        $region19: #{tpu_custom_call.1} parent=11 // pred_region
          %1439 = vsyncadd [#allocation16], 0
          %s1441 = sshll.u32 %s21, 4
          %s1442 = int_to_ptr.hbm [resolvable:$true] %s1441
          %s1443 = sshll.u32 [#allocation17], 4
          %s1444 = int_to_ptr.vmem [resolvable:$true] %s1443
          %1446 = dma.hbm_to_vmem [thread:$0]  %s1442, 16, %s1444, [#allocation16]
        $region20: #{tpu_custom_call.1} parent=11 // pred_fallthru
          _
        // Predicated region
        $region21: #{tpu_custom_call.1} parent=11 // pred_check
          %p1447 = pneg %p456
        $region22: #{tpu_custom_call.1} parent=11 // pred_check_branch
          %1449 = sbr.rel (%p1447) target = $region24
        $region23: #{tpu_custom_call.1} parent=11 // pred_region
          %1451 = vsyncadd [#allocation19], 0
          %s1452 = sshll.u32 %s23, 4
          %s1453 = int_to_ptr.hbm [resolvable:$true] %s1452
          %s1454 = sshll.u32 [#allocation18], 4
          %s1455 = int_to_ptr.vmem [resolvable:$true] %s1454
          %1460 = dma.hbm_to_vmem [thread:$0]  %s1453, 1024, %s1455, [#allocation19], 64, 64, 4
        $region24: #{tpu_custom_call.1} parent=11 // pred_fallthru
          _
        // Predicated region
        $region25: #{tpu_custom_call.1} parent=11 // pred_check
          %p1461 = pneg %p477
        $region26: #{tpu_custom_call.1} parent=11 // pred_check_branch
          %1463 = sbr.rel (%p1461) target = $region28
        $region27: #{tpu_custom_call.1} parent=11 // pred_region
          %1465 = vsyncadd [#allocation19], 0
          %s1467 = sshll.u32 %s25, 4
          %s1468 = int_to_ptr.hbm [resolvable:$true] %s1467
          %s1469 = sshll.u32 [#allocation20], 4
          %s1470 = int_to_ptr.vmem [resolvable:$true] %s1469
          %1472 = dma.hbm_to_vmem [thread:$0]  %s1468, 16, %s1470, [#allocation19]
        $region28: #{tpu_custom_call.1} parent=11 // pred_fallthru
          _
        // Predicated region
        $region29: #{tpu_custom_call.1} parent=11 // pred_check
          %p1473 = pneg %p498
        $region30: #{tpu_custom_call.1} parent=11 // pred_check_branch
          %1475 = sbr.rel (%p1473) target = $region32
        $region31: #{tpu_custom_call.1} parent=11 // pred_region
          %1477 = vsyncadd [#allocation22], 0
          %s1478 = sshll.u32 %s27, 4
          %s1479 = int_to_ptr.hbm [resolvable:$true] %s1478
          %s1480 = sshll.u32 [#allocation21], 4
          %s1481 = int_to_ptr.vmem [resolvable:$true] %s1480
          %1486 = dma.hbm_to_vmem [thread:$0]  %s1479, 1024, %s1481, [#allocation22], 64, 64, 4
        $region32: #{tpu_custom_call.1} parent=11 // pred_fallthru
          _
        // Predicated region
        $region33: #{tpu_custom_call.1} parent=11 // pred_check
          %p1487 = pneg %p519
        $region34: #{tpu_custom_call.1} parent=11 // pred_check_branch
          %1489 = sbr.rel (%p1487) target = $region36
        $region35: #{tpu_custom_call.1} parent=11 // pred_region
          %1491 = vsyncadd [#allocation22], 0
          %s1493 = sshll.u32 %s29, 4
          %s1494 = int_to_ptr.hbm [resolvable:$true] %s1493
          %s1495 = sshll.u32 [#allocation23], 4
          %s1496 = int_to_ptr.vmem [resolvable:$true] %s1495
          %1498 = dma.hbm_to_vmem [thread:$0]  %s1494, 16, %s1496, [#allocation22]
        $region36: #{tpu_custom_call.1} parent=11 // pred_fallthru
          _
        // Predicated region
        $region37: #{tpu_custom_call.1} parent=11 // pred_check
          %p1499 = pneg %p540
        $region38: #{tpu_custom_call.1} parent=11 // pred_check_branch
          %1501 = sbr.rel (%p1499) target = $region40
        $region39: #{tpu_custom_call.1} parent=11 // pred_region
          %1503 = vsyncadd [#allocation25], 0
          %s1504 = sshll.u32 %s31, 4
          %s1505 = int_to_ptr.hbm [resolvable:$true] %s1504
          %s1506 = sshll.u32 [#allocation24], 4
          %s1507 = int_to_ptr.vmem [resolvable:$true] %s1506
          %1512 = dma.hbm_to_vmem [thread:$0]  %s1505, 1024, %s1507, [#allocation25], 64, 64, 4
        $region40: #{tpu_custom_call.1} parent=11 // pred_fallthru
          _
        // Predicated region
        $region41: #{tpu_custom_call.1} parent=11 // pred_check
          %p1513 = pneg %p561
        $region42: #{tpu_custom_call.1} parent=11 // pred_check_branch
          %1515 = sbr.rel (%p1513) target = $region44
        $region43: #{tpu_custom_call.1} parent=11 // pred_region
          %1517 = vsyncadd [#allocation25], 0
          %s1519 = sshll.u32 %s33, 4
          %s1520 = int_to_ptr.hbm [resolvable:$true] %s1519
          %s1521 = sshll.u32 [#allocation26], 4
          %s1522 = int_to_ptr.vmem [resolvable:$true] %s1521
          %1524 = dma.hbm_to_vmem [thread:$0]  %s1520, 16, %s1522, [#allocation25]
        $region44: #{tpu_custom_call.1} parent=11 // pred_fallthru
          _
        // Predicated region
        $region45: #{tpu_custom_call.1} parent=11 // pred_check
          %p1525 = pneg %p582
        $region46: #{tpu_custom_call.1} parent=11 // pred_check_branch
          %1527 = sbr.rel (%p1525) target = $region48
        $region47: #{tpu_custom_call.1} parent=11 // pred_region
          %1529 = vsyncadd [#allocation28], 0
          %s1530 = sshll.u32 %s35, 4
          %s1531 = int_to_ptr.hbm [resolvable:$true] %s1530
          %s1532 = sshll.u32 [#allocation27], 4
          %s1533 = int_to_ptr.vmem [resolvable:$true] %s1532
          %1538 = dma.hbm_to_vmem [thread:$0]  %s1531, 1024, %s1533, [#allocation28], 64, 64, 4
        $region48: #{tpu_custom_call.1} parent=11 // pred_fallthru
          _
        // Predicated region
        $region49: #{tpu_custom_call.1} parent=11 // pred_check
          %p1539 = pneg %p603
        $region50: #{tpu_custom_call.1} parent=11 // pred_check_branch
          %1541 = sbr.rel (%p1539) target = $region52
        $region51: #{tpu_custom_call.1} parent=11 // pred_region
          %1543 = vsyncadd [#allocation28], 0
          %s1544 = sshll.u32 %s37, 4
          %s1545 = int_to_ptr.hbm [resolvable:$true] %s1544
          %s1546 = sshll.u32 [#allocation29], 4
          %s1547 = int_to_ptr.vmem [resolvable:$true] %s1546
          %1552 = dma.hbm_to_vmem [thread:$0]  %s1545, 1024, %s1547, [#allocation28], 64, 64, 4
        $region52: #{tpu_custom_call.1} parent=11 // pred_fallthru
          _
        // Predicated region
        $region53: #{tpu_custom_call.1} parent=11 // pred_check
          %p1553 = pneg %p624
        $region54: #{tpu_custom_call.1} parent=11 // pred_check_branch
          %1555 = sbr.rel (%p1553) target = $region56
        $region55: #{tpu_custom_call.1} parent=11 // pred_region
          %1557 = vsyncadd [#allocation31], 0
          %s1559 = sshll.u32 %s39, 4
          %s1560 = int_to_ptr.hbm [resolvable:$true] %s1559
          %s1561 = sshll.u32 [#allocation30], 4
          %s1562 = int_to_ptr.vmem [resolvable:$true] %s1561
          %1564 = dma.hbm_to_vmem [thread:$0]  %s1560, 16, %s1562, [#allocation31]
        $region56: #{tpu_custom_call.1} parent=11 // pred_fallthru
          _
        // Predicated region
        $region57: #{tpu_custom_call.1} parent=11 // pred_check
          %p1565 = pneg %p645
        $region58: #{tpu_custom_call.1} parent=11 // pred_check_branch
          %1567 = sbr.rel (%p1565) target = $region60
        $region59: #{tpu_custom_call.1} parent=11 // pred_region
          %1569 = vsyncadd [#allocation31], 0
          %s1570 = sshll.u32 %s41, 4
          %s1571 = int_to_ptr.hbm [resolvable:$true] %s1570
          %s1572 = sshll.u32 [#allocation32], 4
          %s1573 = int_to_ptr.vmem [resolvable:$true] %s1572
          %1578 = dma.hbm_to_vmem [thread:$0]  %s1571, 1024, %s1573, [#allocation31], 64, 64, 4
        $region60: #{tpu_custom_call.1} parent=11 // pred_fallthru
          _
        // Predicated region
        $region61: #{tpu_custom_call.1} parent=11 // pred_check
          %p1579 = pneg %p666
        $region62: #{tpu_custom_call.1} parent=11 // pred_check_branch
          %1581 = sbr.rel (%p1579) target = $region64
        $region63: #{tpu_custom_call.1} parent=11 // pred_region
          %1583 = vsyncadd [#allocation34], 0
          %s1585 = sshll.u32 %s43, 4
          %s1586 = int_to_ptr.hbm [resolvable:$true] %s1585
          %s1587 = sshll.u32 [#allocation33], 4
          %s1588 = int_to_ptr.vmem [resolvable:$true] %s1587
          %1590 = dma.hbm_to_vmem [thread:$0]  %s1586, 16, %s1588, [#allocation34]
        $region64: #{tpu_custom_call.1} parent=11 // pred_fallthru
          _
        // Predicated region
        $region65: #{tpu_custom_call.1} parent=11 // pred_check
          %p1591 = pneg %p687
        $region66: #{tpu_custom_call.1} parent=11 // pred_check_branch
          %1593 = sbr.rel (%p1591) target = $region68
        $region67: #{tpu_custom_call.1} parent=11 // pred_region
          %1595 = vsyncadd [#allocation34], 0
          %s1596 = sshll.u32 %s45, 4
          %s1597 = int_to_ptr.hbm [resolvable:$true] %s1596
          %s1598 = sshll.u32 [#allocation35], 4
          %s1599 = int_to_ptr.vmem [resolvable:$true] %s1598
          %1604 = dma.hbm_to_vmem [thread:$0]  %s1597, 1024, %s1599, [#allocation34], 64, 64, 4
        $region68: #{tpu_custom_call.1} parent=11 // pred_fallthru
          _
        // Predicated region
        $region69: #{tpu_custom_call.1} parent=11 // pred_check
          %p1605 = pneg %p708
        $region70: #{tpu_custom_call.1} parent=11 // pred_check_branch
          %1607 = sbr.rel (%p1605) target = $region72
        $region71: #{tpu_custom_call.1} parent=11 // pred_region
          %1609 = vsyncadd [#allocation37], 0
          %s1610 = sshll.u32 %s47, 4
          %s1611 = int_to_ptr.hbm [resolvable:$true] %s1610
          %s1612 = sshll.u32 [#allocation36], 4
          %s1613 = int_to_ptr.vmem [resolvable:$true] %s1612
          %1618 = dma.hbm_to_vmem [thread:$0]  %s1611, 1024, %s1613, [#allocation37], 64, 64, 4
        $region72: #{tpu_custom_call.1} parent=11 // pred_fallthru
          _
        // Predicated region
        $region73: #{tpu_custom_call.1} parent=11 // pred_check
          %p1619 = pneg %p729
        $region74: #{tpu_custom_call.1} parent=11 // pred_check_branch
          %1621 = sbr.rel (%p1619) target = $region76
        $region75: #{tpu_custom_call.1} parent=11 // pred_region
          %1623 = vsyncadd [#allocation37], 0
          %s1625 = sshll.u32 %s49, 4
          %s1626 = int_to_ptr.hbm [resolvable:$true] %s1625
          %s1627 = sshll.u32 [#allocation38], 4
          %s1628 = int_to_ptr.vmem [resolvable:$true] %s1627
          %1630 = dma.hbm_to_vmem [thread:$0]  %s1626, 16, %s1628, [#allocation37]
        $region76: #{tpu_custom_call.1} parent=11 // pred_fallthru
          _
        // Predicated region
        $region77: #{tpu_custom_call.1} parent=11 // pred_check
          %p1631 = pneg %p750
        $region78: #{tpu_custom_call.1} parent=11 // pred_check_branch
          %1633 = sbr.rel (%p1631) target = $region80
        $region79: #{tpu_custom_call.1} parent=11 // pred_region
          %1635 = vsyncadd [#allocation40], 0
          %s1637 = sshll.u32 %s51, 4
          %s1638 = int_to_ptr.hbm [resolvable:$true] %s1637
          %s1639 = sshll.u32 [#allocation39], 4
          %s1640 = int_to_ptr.vmem [resolvable:$true] %s1639
          %1642 = dma.hbm_to_vmem [thread:$0]  %s1638, 16, %s1640, [#allocation40]
        $region80: #{tpu_custom_call.1} parent=11 // pred_fallthru
          _
        // Predicated region
        $region81: #{tpu_custom_call.1} parent=11 // pred_check
          %p1643 = pneg %p771
        $region82: #{tpu_custom_call.1} parent=11 // pred_check_branch
          %1645 = sbr.rel (%p1643) target = $region84
        $region83: #{tpu_custom_call.1} parent=11 // pred_region
          _
        $region84: #{tpu_custom_call.1} parent=11 // pred_fallthru
          _
        // Predicated region
        $region85: #{tpu_custom_call.1} parent=11 // pred_check
          %p1646 = pneg %p792
        $region86: #{tpu_custom_call.1} parent=11 // pred_check_branch
          %1648 = sbr.rel (%p1646) target = $region88
        $region87: #{tpu_custom_call.1} parent=11 // pred_region
          %1650 = vsyncadd [#allocation40], 0
          %s1651 = sshll.u32 %s55, 4
          %s1652 = int_to_ptr.hbm [resolvable:$true] %s1651
          %s1653 = sshll.u32 [#allocation41], 4
          %s1654 = int_to_ptr.vmem [resolvable:$true] %s1653
          %1659 = dma.hbm_to_vmem [thread:$0]  %s1652, 1024, %s1654, [#allocation40], 64, 64, 4
        $region88: #{tpu_custom_call.1} parent=11 // pred_fallthru
          _
        // Predicated region
        $region89: #{tpu_custom_call.1} parent=11 // pred_check
          %p1660 = pneg %p813
        $region90: #{tpu_custom_call.1} parent=11 // pred_check_branch
          %1662 = sbr.rel (%p1660) target = $region92
        $region91: #{tpu_custom_call.1} parent=11 // pred_region
          %1664 = vsyncadd [#allocation43], 0
          %s1666 = sshll.u32 %s57, 4
          %s1667 = int_to_ptr.hbm [resolvable:$true] %s1666
          %s1668 = sshll.u32 [#allocation42], 4
          %s1669 = int_to_ptr.vmem [resolvable:$true] %s1668
          %1671 = dma.hbm_to_vmem [thread:$0]  %s1667, 16, %s1669, [#allocation43]
        $region92: #{tpu_custom_call.1} parent=11 // pred_fallthru
          _
        // Predicated region
        $region93: #{tpu_custom_call.1} parent=11 // pred_check
          %p1672 = pneg %p834
        $region94: #{tpu_custom_call.1} parent=11 // pred_check_branch
          %1674 = sbr.rel (%p1672) target = $region96
        $region95: #{tpu_custom_call.1} parent=11 // pred_region
          %1676 = vsyncadd [#allocation43], 0
          %s1677 = sshll.u32 %s59, 4
          %s1678 = int_to_ptr.hbm [resolvable:$true] %s1677
          %s1679 = sshll.u32 [#allocation44], 4
          %s1680 = int_to_ptr.vmem [resolvable:$true] %s1679
          %1685 = dma.hbm_to_vmem [thread:$0]  %s1678, 1024, %s1680, [#allocation43], 64, 64, 4
        $region96: #{tpu_custom_call.1} parent=11 // pred_fallthru
          _
        // Predicated region
        $region97: #{tpu_custom_call.1} parent=11 // pred_check
          %p1686 = pneg %p855
        $region98: #{tpu_custom_call.1} parent=11 // pred_check_branch
          %1688 = sbr.rel (%p1686) target = $region100
        $region99: #{tpu_custom_call.1} parent=11 // pred_region
          %1690 = vsyncadd [#allocation46], 0
          %s1691 = sshll.u32 %s61, 4
          %s1692 = int_to_ptr.hbm [resolvable:$true] %s1691
          %s1693 = sshll.u32 [#allocation45], 4
          %s1694 = int_to_ptr.vmem [resolvable:$true] %s1693
          %1699 = dma.hbm_to_vmem [thread:$0]  %s1692, 1024, %s1694, [#allocation46], 64, 64, 4
        $region100: #{tpu_custom_call.1} parent=11 // pred_fallthru
          _
        // Predicated region
        $region101: #{tpu_custom_call.1} parent=11 // pred_check
          %p1700 = pneg %p876
        $region102: #{tpu_custom_call.1} parent=11 // pred_check_branch
          %1702 = sbr.rel (%p1700) target = $region104
        $region103: #{tpu_custom_call.1} parent=11 // pred_region
          %1704 = vsyncadd [#allocation46], 0
          %s1706 = sshll.u32 %s63, 4
          %s1707 = int_to_ptr.hbm [resolvable:$true] %s1706
          %s1708 = sshll.u32 [#allocation47], 4
          %s1709 = int_to_ptr.vmem [resolvable:$true] %s1708
          %1711 = dma.hbm_to_vmem [thread:$0]  %s1707, 16, %s1709, [#allocation46]
        $region104: #{tpu_custom_call.1} parent=11 // pred_fallthru
          _
        // Predicated region
        $region105: #{tpu_custom_call.1} parent=11 // pred_check
          %p1712 = pneg %p897
        $region106: #{tpu_custom_call.1} parent=11 // pred_check_branch
          %1714 = sbr.rel (%p1712) target = $region108
        $region107: #{tpu_custom_call.1} parent=11 // pred_region
          %1716 = vsyncadd [#allocation49], 0
          %s1718 = sshll.u32 %s65, 4
          %s1719 = int_to_ptr.hbm [resolvable:$true] %s1718
          %s1720 = sshll.u32 [#allocation48], 4
          %s1721 = int_to_ptr.vmem [resolvable:$true] %s1720
          %1723 = dma.hbm_to_vmem [thread:$0]  %s1719, 16, %s1721, [#allocation49]
        $region108: #{tpu_custom_call.1} parent=11 // pred_fallthru
          _
        // Predicated region
        $region109: #{tpu_custom_call.1} parent=11 // pred_check
          %p1724 = pneg %p918
        $region110: #{tpu_custom_call.1} parent=11 // pred_check_branch
          %1726 = sbr.rel (%p1724) target = $region112
        $region111: #{tpu_custom_call.1} parent=11 // pred_region
          _
        $region112: #{tpu_custom_call.1} parent=11 // pred_fallthru
          _
        // Predicated region
        $region113: #{tpu_custom_call.1} parent=11 // pred_check
          %p1727 = pneg %p939
        $region114: #{tpu_custom_call.1} parent=11 // pred_check_branch
          %1729 = sbr.rel (%p1727) target = $region116
        $region115: #{tpu_custom_call.1} parent=11 // pred_region
          %1731 = vsyncadd [#allocation49], 0
          %s1732 = sshll.u32 %s69, 4
          %s1733 = int_to_ptr.hbm [resolvable:$true] %s1732
          %s1734 = sshll.u32 [#allocation50], 4
          %s1735 = int_to_ptr.vmem [resolvable:$true] %s1734
          %1740 = dma.hbm_to_vmem [thread:$0]  %s1733, 1024, %s1735, [#allocation49], 64, 64, 4
        $region116: #{tpu_custom_call.1} parent=11 // pred_fallthru
          _
        // Predicated region
        $region117: #{tpu_custom_call.1} parent=11 // pred_check
          %p1741 = pneg %p960
        $region118: #{tpu_custom_call.1} parent=11 // pred_check_branch
          %1743 = sbr.rel (%p1741) target = $region120
        $region119: #{tpu_custom_call.1} parent=11 // pred_region
          %1745 = vsyncadd [#allocation52], 0
          %s1747 = sshll.u32 %s71, 4
          %s1748 = int_to_ptr.hbm [resolvable:$true] %s1747
          %s1749 = sshll.u32 [#allocation51], 4
          %s1750 = int_to_ptr.vmem [resolvable:$true] %s1749
          %1752 = dma.hbm_to_vmem [thread:$0]  %s1748, 16, %s1750, [#allocation52]
        $region120: #{tpu_custom_call.1} parent=11 // pred_fallthru
          _
        // Predicated region
        $region121: #{tpu_custom_call.1} parent=11 // pred_check
          %p1753 = pneg %p981
        $region122: #{tpu_custom_call.1} parent=11 // pred_check_branch
          %1755 = sbr.rel (%p1753) target = $region124
        $region123: #{tpu_custom_call.1} parent=11 // pred_region
          %1757 = vsyncadd [#allocation52], 0
          %s1758 = sshll.u32 %s73, 4
          %s1759 = int_to_ptr.hbm [resolvable:$true] %s1758
          %s1760 = sshll.u32 [#allocation53], 4
          %s1761 = int_to_ptr.vmem [resolvable:$true] %s1760
          %1766 = dma.hbm_to_vmem [thread:$0]  %s1759, 1024, %s1761, [#allocation52], 64, 64, 4
        $region124: #{tpu_custom_call.1} parent=11 // pred_fallthru
          _
        // Predicated region
        $region125: #{tpu_custom_call.1} parent=11 // pred_check
          %p1767 = pneg %p1002
        $region126: #{tpu_custom_call.1} parent=11 // pred_check_branch
          %1769 = sbr.rel (%p1767) target = $region128
        $region127: #{tpu_custom_call.1} parent=11 // pred_region
          %1771 = vsyncadd [#allocation55], 0
          %s1772 = sshll.u32 %s75, 4
          %s1773 = int_to_ptr.hbm [resolvable:$true] %s1772
          %s1774 = sshll.u32 [#allocation54], 4
          %s1775 = int_to_ptr.vmem [resolvable:$true] %s1774
          %1780 = dma.hbm_to_vmem [thread:$0]  %s1773, 1024, %s1775, [#allocation55], 64, 64, 4
        $region128: #{tpu_custom_call.1} parent=11 // pred_fallthru
          _
        // Predicated region
        $region129: #{tpu_custom_call.1} parent=11 // pred_check
          %p1781 = pneg %p1023
        $region130: #{tpu_custom_call.1} parent=11 // pred_check_branch
          %1783 = sbr.rel (%p1781) target = $region132
        $region131: #{tpu_custom_call.1} parent=11 // pred_region
          %1785 = vsyncadd [#allocation55], 0
          %s1787 = sshll.u32 %s77, 4
          %s1788 = int_to_ptr.hbm [resolvable:$true] %s1787
          %s1789 = sshll.u32 [#allocation56], 4
          %s1790 = int_to_ptr.vmem [resolvable:$true] %s1789
          %1792 = dma.hbm_to_vmem [thread:$0]  %s1788, 16, %s1790, [#allocation55]
        $region132: #{tpu_custom_call.1} parent=11 // pred_fallthru
          _
        // Predicated region
        $region133: #{tpu_custom_call.1} parent=11 // pred_check
          %p1793 = pneg %p1044
        $region134: #{tpu_custom_call.1} parent=11 // pred_check_branch
          %1795 = sbr.rel (%p1793) target = $region136
        $region135: #{tpu_custom_call.1} parent=11 // pred_region
          %1797 = vsyncadd [#allocation58], 0
          %s1799 = sshll.u32 %s79, 4
          %s1800 = int_to_ptr.hbm [resolvable:$true] %s1799
          %s1801 = sshll.u32 [#allocation57], 4
          %s1802 = int_to_ptr.vmem [resolvable:$true] %s1801
          %1804 = dma.hbm_to_vmem [thread:$0]  %s1800, 16, %s1802, [#allocation58]
        $region136: #{tpu_custom_call.1} parent=11 // pred_fallthru
          _
        // Predicated region
        $region137: #{tpu_custom_call.1} parent=11 // pred_check
          %p1805 = pneg %p1065
        $region138: #{tpu_custom_call.1} parent=11 // pred_check_branch
          %1807 = sbr.rel (%p1805) target = $region140
        $region139: #{tpu_custom_call.1} parent=11 // pred_region
          _
        $region140: #{tpu_custom_call.1} parent=11 // pred_fallthru
          _
        // Predicated region
        $region141: #{tpu_custom_call.1} parent=11 // pred_check
          %p1808 = pneg %p1086
        $region142: #{tpu_custom_call.1} parent=11 // pred_check_branch
          %1810 = sbr.rel (%p1808) target = $region144
        $region143: #{tpu_custom_call.1} parent=11 // pred_region
          %1812 = vsyncadd [#allocation58], 0
          %s1813 = sshll.u32 %s83, 4
          %s1814 = int_to_ptr.hbm [resolvable:$true] %s1813
          %s1815 = sshll.u32 [#allocation59], 4
          %s1816 = int_to_ptr.vmem [resolvable:$true] %s1815
          %1821 = dma.hbm_to_vmem [thread:$0]  %s1814, 1024, %s1816, [#allocation58], 64, 64, 4
        $region144: #{tpu_custom_call.1} parent=11 // pred_fallthru
          _
        // Predicated region
        $region145: #{tpu_custom_call.1} parent=11 // pred_check
          %p1822 = pneg %p1107
        $region146: #{tpu_custom_call.1} parent=11 // pred_check_branch
          %1824 = sbr.rel (%p1822) target = $region148
        $region147: #{tpu_custom_call.1} parent=11 // pred_region
          %1826 = vsyncadd [#allocation61], 0
          %s1828 = sshll.u32 %s85, 4
          %s1829 = int_to_ptr.hbm [resolvable:$true] %s1828
          %s1830 = sshll.u32 [#allocation60], 4
          %s1831 = int_to_ptr.vmem [resolvable:$true] %s1830
          %1833 = dma.hbm_to_vmem [thread:$0]  %s1829, 16, %s1831, [#allocation61]
        $region148: #{tpu_custom_call.1} parent=11 // pred_fallthru
          _
        // Predicated region
        $region149: #{tpu_custom_call.1} parent=11 // pred_check
          %p1834 = pneg %p1128
        $region150: #{tpu_custom_call.1} parent=11 // pred_check_branch
          %1836 = sbr.rel (%p1834) target = $region152
        $region151: #{tpu_custom_call.1} parent=11 // pred_region
          %1838 = vsyncadd [#allocation61], 0
          %s1839 = sshll.u32 %s87, 4
          %s1840 = int_to_ptr.hbm [resolvable:$true] %s1839
          %s1841 = sshll.u32 [#allocation62], 4
          %s1842 = int_to_ptr.vmem [resolvable:$true] %s1841
          %1847 = dma.hbm_to_vmem [thread:$0]  %s1840, 1024, %s1842, [#allocation61], 64, 64, 4
        $region152: #{tpu_custom_call.1} parent=11 // pred_fallthru
          _
        // Predicated region
        $region153: #{tpu_custom_call.1} parent=11 // pred_check
          %p1848 = pneg %p1149
        $region154: #{tpu_custom_call.1} parent=11 // pred_check_branch
          %1850 = sbr.rel (%p1848) target = $region156
        $region155: #{tpu_custom_call.1} parent=11 // pred_region
          %1852 = vsyncadd [#allocation64], 0
          %s1853 = sshll.u32 %s89, 4
          %s1854 = int_to_ptr.hbm [resolvable:$true] %s1853
          %s1855 = sshll.u32 [#allocation63], 4
          %s1856 = int_to_ptr.vmem [resolvable:$true] %s1855
          %1861 = dma.hbm_to_vmem [thread:$0]  %s1854, 1024, %s1856, [#allocation64], 64, 64, 4
        $region156: #{tpu_custom_call.1} parent=11 // pred_fallthru
          _
        // Predicated region
        $region157: #{tpu_custom_call.1} parent=11 // pred_check
          %p1862 = pneg %p1170
        $region158: #{tpu_custom_call.1} parent=11 // pred_check_branch
          %1864 = sbr.rel (%p1862) target = $region160
        $region159: #{tpu_custom_call.1} parent=11 // pred_region
          %1866 = vsyncadd [#allocation64], 0
          %s1868 = sshll.u32 %s91, 4
          %s1869 = int_to_ptr.hbm [resolvable:$true] %s1868
          %s1870 = sshll.u32 [#allocation65], 4
          %s1871 = int_to_ptr.vmem [resolvable:$true] %s1870
          %1873 = dma.hbm_to_vmem [thread:$0]  %s1869, 16, %s1871, [#allocation64]
        $region160: #{tpu_custom_call.1} parent=11 // pred_fallthru
          _
        // Predicated region
        $region161: #{tpu_custom_call.1} parent=11 // pred_check
          %p1874 = pneg %p1191
        $region162: #{tpu_custom_call.1} parent=11 // pred_check_branch
          %1876 = sbr.rel (%p1874) target = $region164
        $region163: #{tpu_custom_call.1} parent=11 // pred_region
          %1878 = vsyncadd [#allocation67], 0
          %s1880 = sshll.u32 %s93, 4
          %s1881 = int_to_ptr.hbm [resolvable:$true] %s1880
          %s1882 = sshll.u32 [#allocation66], 4
          %s1883 = int_to_ptr.vmem [resolvable:$true] %s1882
          %1885 = dma.hbm_to_vmem [thread:$0]  %s1881, 16, %s1883, [#allocation67]
        $region164: #{tpu_custom_call.1} parent=11 // pred_fallthru
          _
        // Predicated region
        $region165: #{tpu_custom_call.1} parent=11 // pred_check
          %p1886 = pneg %p1212
        $region166: #{tpu_custom_call.1} parent=11 // pred_check_branch
          %1888 = sbr.rel (%p1886) target = $region168
        $region167: #{tpu_custom_call.1} parent=11 // pred_region
          _
        $region168: #{tpu_custom_call.1} parent=11 // pred_fallthru
          _
        // Predicated region
        $region169: #{tpu_custom_call.1} parent=11 // pred_check
          %p1889 = pneg %p1233
        $region170: #{tpu_custom_call.1} parent=11 // pred_check_branch
          %1891 = sbr.rel (%p1889) target = $region172
        $region171: #{tpu_custom_call.1} parent=11 // pred_region
          %1893 = vsyncadd [#allocation67], 0
          %s1894 = sshll.u32 %s97, 4
          %s1895 = int_to_ptr.hbm [resolvable:$true] %s1894
          %s1896 = sshll.u32 [#allocation68], 4
          %s1897 = int_to_ptr.vmem [resolvable:$true] %s1896
          %1902 = dma.hbm_to_vmem [thread:$0]  %s1895, 1024, %s1897, [#allocation67], 64, 64, 4
        $region172: #{tpu_custom_call.1} parent=11 // pred_fallthru
          _
        // Predicated region
        $region173: #{tpu_custom_call.1} parent=11 // pred_check
          %p1903 = pneg %p1254
        $region174: #{tpu_custom_call.1} parent=11 // pred_check_branch
          %1905 = sbr.rel (%p1903) target = $region176
        $region175: #{tpu_custom_call.1} parent=11 // pred_region
          %1907 = vsyncadd [#allocation70], 0
          %s1909 = sshll.u32 %s99, 4
          %s1910 = int_to_ptr.hbm [resolvable:$true] %s1909
          %s1911 = sshll.u32 [#allocation69], 4
          %s1912 = int_to_ptr.vmem [resolvable:$true] %s1911
          %1914 = dma.hbm_to_vmem [thread:$0]  %s1910, 16, %s1912, [#allocation70]
        $region176: #{tpu_custom_call.1} parent=11 // pred_fallthru
          _
        // Predicated region
        $region177: #{tpu_custom_call.1} parent=11 // pred_check
          %p1915 = pneg %p1275
        $region178: #{tpu_custom_call.1} parent=11 // pred_check_branch
          %1917 = sbr.rel (%p1915) target = $region180
        $region179: #{tpu_custom_call.1} parent=11 // pred_region
          _
        $region180: #{tpu_custom_call.1} parent=11 // pred_fallthru
          _
        // Predicated region
        $region181: #{tpu_custom_call.1} parent=11 // pred_check
          %p1918 = pneg %p1296
        $region182: #{tpu_custom_call.1} parent=11 // pred_check_branch
          %1920 = sbr.rel (%p1918) target = $region184
        $region183: #{tpu_custom_call.1} parent=11 // pred_region
          %1922 = vsyncadd [#allocation70], 0
          %s1923 = sshll.u32 %s103, 4
          %s1924 = int_to_ptr.hbm [resolvable:$true] %s1923
          %s1925 = sshll.u32 [#allocation71], 4
          %s1926 = int_to_ptr.vmem [resolvable:$true] %s1925
          %1931 = dma.hbm_to_vmem [thread:$0]  %s1924, 2048, %s1926, [#allocation70], 128, 128, 8
        $region184: #{tpu_custom_call.1} parent=11 // pred_fallthru
          _
        // Predicated region
        $region185: #{tpu_custom_call.1} parent=11 // pred_check
          %p1932 = pneg %p1317
        $region186: #{tpu_custom_call.1} parent=11 // pred_check_branch
          %1934 = sbr.rel (%p1932) target = $region188
        $region187: #{tpu_custom_call.1} parent=11 // pred_region
          %1936 = vsyncadd [#allocation73], 0
          %s1937 = sshll.u32 %s105, 4
          %s1938 = int_to_ptr.hbm [resolvable:$true] %s1937
          %s1939 = sshll.u32 [#allocation72], 4
          %s1940 = int_to_ptr.vmem [resolvable:$true] %s1939
          %1945 = dma.hbm_to_vmem [thread:$0]  %s1938, 2048, %s1940, [#allocation73], 128, 128, 8
        $region188: #{tpu_custom_call.1} parent=11 // pred_fallthru
          _
        // Predicated region
        $region189: #{tpu_custom_call.1} parent=11 // pred_check
          %p1946 = pneg %p1338
        $region190: #{tpu_custom_call.1} parent=11 // pred_check_branch
          %1948 = sbr.rel (%p1946) target = $region192
        $region191: #{tpu_custom_call.1} parent=11 // pred_region
          _
        $region192: #{tpu_custom_call.1} parent=11 // pred_fallthru
          _
        // Predicated region
        $region193: #{tpu_custom_call.1} parent=11 // pred_check
          %p1949 = pneg %p1359
        $region194: #{tpu_custom_call.1} parent=11 // pred_check_branch
          %1951 = sbr.rel (%p1949) target = $region196
        $region195: #{tpu_custom_call.1} parent=11 // pred_region
          %1953 = vsyncadd [#allocation73], 0
          %s1954 = sshll.u32 %s109, 4
          %s1955 = int_to_ptr.hbm [resolvable:$true] %s1954
          %s1956 = sshll.u32 [#allocation74], 4
          %s1957 = int_to_ptr.vmem [resolvable:$true] %s1956
          %1962 = dma.hbm_to_vmem [thread:$0]  %s1955, 2048, %s1957, [#allocation73], 64, 64, 4
        $region196: #{tpu_custom_call.1} parent=11 // pred_fallthru
          _
        // Predicated region
        $region197: #{tpu_custom_call.1} parent=11 // pred_check
          %p1963 = pneg %p1380
        $region198: #{tpu_custom_call.1} parent=11 // pred_check_branch
          %1965 = sbr.rel (%p1963) target = $region200
        $region199: #{tpu_custom_call.1} parent=11 // pred_region
          _
        $region200: #{tpu_custom_call.1} parent=11 // pred_fallthru
          _
      $region12: #{tpu_custom_call.1} parent=5 // pred_fallthru
        _
      %p1966 = scmp.lt.s32.totalorder %s159, 2
      // Predicated region
      $region201: #{tpu_custom_call.1} parent=5 // pred_check
        %p1967 = pneg %p1966
      $region202: #{tpu_custom_call.1} parent=5 // pred_check_branch
        %1969 = sbr.rel (%p1967) target = $region204
      $region203: #{tpu_custom_call.1} parent=5 // pred_region
        // Predicated region
        $region205: #{tpu_custom_call.1} parent=203 // pred_check
          %p1970 = pneg %p179
        $region206: #{tpu_custom_call.1} parent=203 // pred_check_branch
          %1972 = sbr.rel (%p1970) target = $region208
        $region207: #{tpu_custom_call.1} parent=203 // pred_region
          %p1973 = scmp.lt.s32.totalorder %s159, 1
          %s1974 = scalar_select %p1973, %s159, 1
          %s1975 = smul.addr %s1974, 8
          %s1976 = scalar_lea.vmem %s1, %s1975
        $region208: #{tpu_custom_call.1} parent=203 // pred_fallthru
          _
        // Predicated region
        $region209: #{tpu_custom_call.1} parent=203 // pred_check
          %p1977 = pneg %p205
        $region210: #{tpu_custom_call.1} parent=203 // pred_check_branch
          %1979 = sbr.rel (%p1977) target = $region212
        $region211: #{tpu_custom_call.1} parent=203 // pred_region
          %p1980 = scmp.lt.s32.totalorder %s159, 1
          %s1981 = scalar_select %p1980, %s159, 1
          %s1982 = smul.addr %s1981, 8
          %s1983 = scalar_lea.vmem %s3, %s1982
        $region212: #{tpu_custom_call.1} parent=203 // pred_fallthru
          _
        // Predicated region
        $region213: #{tpu_custom_call.1} parent=203 // pred_check
          %p1984 = pneg %p231
        $region214: #{tpu_custom_call.1} parent=203 // pred_check_branch
          %1986 = sbr.rel (%p1984) target = $region216
        $region215: #{tpu_custom_call.1} parent=203 // pred_region
          %s1987 = smul.u32 8, %s159
          %p1988 = scmp.lt.s32.totalorder %s1987, 15
          %s1989 = scalar_select %p1988, %s1987, 15
          %s1990 = smul.addr %s1989, 4
          %s1991 = scalar_lea.vmem %s5, %s1990
          %s1992 = smul.u32 8, %s159
        $region216: #{tpu_custom_call.1} parent=203 // pred_fallthru
          _
        // Predicated region
        $region217: #{tpu_custom_call.1} parent=203 // pred_check
          %p1993 = pneg %p257
        $region218: #{tpu_custom_call.1} parent=203 // pred_check_branch
          %1995 = sbr.rel (%p1993) target = $region220
        $region219: #{tpu_custom_call.1} parent=203 // pred_region
          %s1996 = sand.u32 %s247, 1
          %s1997 = scalar_lea.sflag [#allocation7], %s1996
          %s1998 = sand.u32 %s247, 1
          %s1999 = smul.addr %s1998, 4
          %s2000 = scalar_lea.vmem [#allocation6], %s1999
          %2002 = vsyncadd %s1997, 0
          %s2003 = smul.addr %s159, 4
          %s2004 = scalar_lea.hbm %s7, %s2003
          %s2006 = sshll.u32 %s2004, 4
          %s2007 = int_to_ptr.hbm [resolvable:$true] %s2006
          %s2008 = sshll.u32 %s2000, 4
          %s2009 = int_to_ptr.vmem [resolvable:$true] %s2008
          %2011 = dma.hbm_to_vmem [thread:$0]  %s2007, 64, %s2009, %s1997
        $region220: #{tpu_custom_call.1} parent=203 // pred_fallthru
          _
        // Predicated region
        $region221: #{tpu_custom_call.1} parent=203 // pred_check
          %p2012 = pneg %p283
        $region222: #{tpu_custom_call.1} parent=203 // pred_check_branch
          %2014 = sbr.rel (%p2012) target = $region224
        $region223: #{tpu_custom_call.1} parent=203 // pred_region
          %s2015 = smul.u32 8, %s159
          %p2016 = scmp.lt.s32.totalorder %s2015, 15
          %s2017 = scalar_select %p2016, %s2015, 15
          %s2018 = smul.addr %s2017, 4
          %s2019 = scalar_lea.vmem %s9, %s2018
          %s2020 = smul.u32 8, %s159
        $region224: #{tpu_custom_call.1} parent=203 // pred_fallthru
          _
        // Predicated region
        $region225: #{tpu_custom_call.1} parent=203 // pred_check
          %p2021 = pneg %p309
        $region226: #{tpu_custom_call.1} parent=203 // pred_check_branch
          %2023 = sbr.rel (%p2021) target = $region228
        $region227: #{tpu_custom_call.1} parent=203 // pred_region
          %s2024 = sand.u32 %s159, 1
          %s2025 = scalar_lea.sflag [#allocation10], %s2024
          %s2026 = sand.u32 %s299, 1
          %s2027 = smul.addr %s2026, 32
          %s2028 = scalar_lea.vmem [#allocation9], %s2027
          %s2029 = smul.u32 8, %s159
          %2031 = vsyncadd %s2025, 0
          %s2032 = smul.addr %s2029, 4
          %s2033 = scalar_lea.hbm %s11, %s2032
          %s2034 = sshll.u32 %s2033, 4
          %s2035 = int_to_ptr.hbm [resolvable:$true] %s2034
          %s2036 = sshll.u32 %s2028, 4
          %s2037 = int_to_ptr.vmem [resolvable:$true] %s2036
          %2042 = dma.hbm_to_vmem [thread:$0]  %s2035, 512, %s2037, %s2025, 64, 64, 4
        $region228: #{tpu_custom_call.1} parent=203 // pred_fallthru
          _
        // Predicated region
        $region229: #{tpu_custom_call.1} parent=203 // pred_check
          %p2043 = pneg %p335
        $region230: #{tpu_custom_call.1} parent=203 // pred_check_branch
          %2045 = sbr.rel (%p2043) target = $region232
        $region231: #{tpu_custom_call.1} parent=203 // pred_region
          %s2046 = sand.u32 %s159, 1
          %s2047 = scalar_lea.sflag [#allocation10], %s2046
          %s2048 = sand.u32 %s325, 1
          %s2049 = smul.addr %s2048, 16
          %s2050 = scalar_lea.vmem [#allocation11], %s2049
          %s2051 = smul.u32 8, %s159
          %2053 = vsyncadd %s2047, 0
          %s2054 = smul.addr %s2051, 2
          %s2055 = scalar_lea.hbm %s13, %s2054
          %s2056 = sshll.u32 %s2055, 4
          %s2057 = int_to_ptr.hbm [resolvable:$true] %s2056
          %s2058 = sshll.u32 %s2050, 4
          %s2059 = int_to_ptr.vmem [resolvable:$true] %s2058
          %2064 = dma.hbm_to_vmem [thread:$0]  %s2057, 256, %s2059, %s2047, 32, 32, 2
        $region232: #{tpu_custom_call.1} parent=203 // pred_fallthru
          _
        // Predicated region
        $region233: #{tpu_custom_call.1} parent=203 // pred_check
          %p2065 = pneg %p361
        $region234: #{tpu_custom_call.1} parent=203 // pred_check_branch
          %2067 = sbr.rel (%p2065) target = $region236
        $region235: #{tpu_custom_call.1} parent=203 // pred_region
          %s2068 = sand.u32 %s159, 1
          %s2069 = scalar_lea.sflag [#allocation13], %s2068
          %s2070 = sand.u32 %s351, 1
          %s2071 = smul.addr %s2070, 128
          %s2072 = scalar_lea.vmem [#allocation12], %s2071
          %s2073 = smul.u32 8, %s159
          %2075 = vsyncadd %s2069, 0
          %s2076 = smul.addr %s2073, 4
          %s2077 = smul.addr %s2076, 4
          %s2078 = scalar_lea.hbm %s15, %s2077
          %s2079 = sshll.u32 %s2078, 4
          %s2080 = int_to_ptr.hbm [resolvable:$true] %s2079
          %s2081 = sshll.u32 %s2072, 4
          %s2082 = int_to_ptr.vmem [resolvable:$true] %s2081
          %2087 = dma.hbm_to_vmem [thread:$0]  %s2080, 2048, %s2082, %s2069, 64, 64, 4
        $region236: #{tpu_custom_call.1} parent=203 // pred_fallthru
          _
        // Predicated region
        $region237: #{tpu_custom_call.1} parent=203 // pred_check
          %p2088 = pneg %p387
        $region238: #{tpu_custom_call.1} parent=203 // pred_check_branch
          %2090 = sbr.rel (%p2088) target = $region240
        $region239: #{tpu_custom_call.1} parent=203 // pred_region
          %s2091 = sand.u32 %s159, 1
          %s2092 = scalar_lea.sflag [#allocation13], %s2091
          %s2093 = sand.u32 %s377, 1
          %s2094 = smul.addr %s2093, 128
          %s2095 = scalar_lea.vmem [#allocation14], %s2094
          %s2096 = smul.u32 8, %s159
          %2098 = vsyncadd %s2092, 0
          %s2099 = smul.addr %s2096, 4
          %s2100 = smul.addr %s2099, 4
          %s2101 = scalar_lea.hbm %s17, %s2100
          %s2102 = sshll.u32 %s2101, 4
          %s2103 = int_to_ptr.hbm [resolvable:$true] %s2102
          %s2104 = sshll.u32 %s2095, 4
          %s2105 = int_to_ptr.vmem [resolvable:$true] %s2104
          %2110 = dma.hbm_to_vmem [thread:$0]  %s2103, 2048, %s2105, %s2092, 64, 64, 4
        $region240: #{tpu_custom_call.1} parent=203 // pred_fallthru
          _
      $region204: #{tpu_custom_call.1} parent=5 // pred_fallthru
        _
      %p2111 = scmp.le.s32.totalorder 1, %s159
      %p2112 = scmp.lt.s32.totalorder %s159, 3
      %p2113 = pnand %p2111, %p2112
      %p2114 = pneg %p2113
      // Predicated region
      $region241: #{tpu_custom_call.1} parent=5 // pred_check
        _
      $region242: #{tpu_custom_call.1} parent=5 // pred_check_branch
        %2116 = sbr.rel (%p2113) target = $region244
      $region243: #{tpu_custom_call.1} parent=5 // pred_region
        %s2117 = ssub.s32 %s159, 1
        %s2118 = sand.u32 %s250, 1
        %s2119 = scalar_lea.sflag [#allocation7], %s2118
        %s2120 = sand.u32 %s250, 1
        %s2121 = smul.addr %s2120, 4
        %s2122 = scalar_lea.vmem [#allocation6], %s2121
        // Predicated region
        $region245: #{tpu_custom_call.1} parent=243 // pred_check
          %p2123 = pneg %p263
        $region246: #{tpu_custom_call.1} parent=243 // pred_check_branch
          %2125 = sbr.rel (%p2123) target = $region248
        $region247: #{tpu_custom_call.1} parent=243 // pred_region
          %2127 = dma.done %s2119, 64
        $region248: #{tpu_custom_call.1} parent=243 // pred_fallthru
          _
        %s2128 = sand.u32 %s164, 1
        %s2129 = scalar_lea.sflag [#allocation10], %s2128
        %s2130 = sand.u32 %s302, 1
        %s2131 = smul.addr %s2130, 32
        %s2132 = scalar_lea.vmem [#allocation9], %s2131
        // Predicated region
        $region249: #{tpu_custom_call.1} parent=243 // pred_check
          %p2133 = pneg %p315
        $region250: #{tpu_custom_call.1} parent=243 // pred_check_branch
          %2135 = sbr.rel (%p2133) target = $region252
        $region251: #{tpu_custom_call.1} parent=243 // pred_region
          %2137 = dma.done %s2129, 512
        $region252: #{tpu_custom_call.1} parent=243 // pred_fallthru
          _
        %s2138 = sand.u32 %s164, 1
        %s2139 = scalar_lea.sflag [#allocation10], %s2138
        %s2140 = sand.u32 %s328, 1
        %s2141 = smul.addr %s2140, 16
        %s2142 = scalar_lea.vmem [#allocation11], %s2141
        // Predicated region
        $region253: #{tpu_custom_call.1} parent=243 // pred_check
          %p2143 = pneg %p341
        $region254: #{tpu_custom_call.1} parent=243 // pred_check_branch
          %2145 = sbr.rel (%p2143) target = $region256
        $region255: #{tpu_custom_call.1} parent=243 // pred_region
          %2147 = dma.done %s2139, 256
        $region256: #{tpu_custom_call.1} parent=243 // pred_fallthru
          _
        %s2148 = sand.u32 %s164, 1
        %s2149 = scalar_lea.sflag [#allocation13], %s2148
        %s2150 = sand.u32 %s354, 1
        %s2151 = smul.addr %s2150, 128
        %s2152 = scalar_lea.vmem [#allocation12], %s2151
        // Predicated region
        $region257: #{tpu_custom_call.1} parent=243 // pred_check
          %p2153 = pneg %p367
        $region258: #{tpu_custom_call.1} parent=243 // pred_check_branch
          %2155 = sbr.rel (%p2153) target = $region260
        $region259: #{tpu_custom_call.1} parent=243 // pred_region
          %2157 = dma.done %s2149, 2048
        $region260: #{tpu_custom_call.1} parent=243 // pred_fallthru
          _
        %s2158 = sand.u32 %s164, 1
        %s2159 = scalar_lea.sflag [#allocation13], %s2158
        %s2160 = sand.u32 %s380, 1
        %s2161 = smul.addr %s2160, 128
        %s2162 = scalar_lea.vmem [#allocation14], %s2161
        // Predicated region
        $region261: #{tpu_custom_call.1} parent=243 // pred_check
          %p2163 = pneg %p393
        $region262: #{tpu_custom_call.1} parent=243 // pred_check_branch
          %2165 = sbr.rel (%p2163) target = $region264
        $region263: #{tpu_custom_call.1} parent=243 // pred_region
          %2167 = dma.done %s2159, 2048
        $region264: #{tpu_custom_call.1} parent=243 // pred_fallthru
          _
        // Predicated region
        $region265: #{tpu_custom_call.1} parent=243 // pred_check
          %p2168 = pneg %p414
        $region266: #{tpu_custom_call.1} parent=243 // pred_check_branch
          %2170 = sbr.rel (%p2168) target = $region268
        $region267: #{tpu_custom_call.1} parent=243 // pred_region
          %2172 = dma.done [#allocation16], 1024
        $region268: #{tpu_custom_call.1} parent=243 // pred_fallthru
          _
        // Predicated region
        $region269: #{tpu_custom_call.1} parent=243 // pred_check
          %p2173 = pneg %p435
        $region270: #{tpu_custom_call.1} parent=243 // pred_check_branch
          %2175 = sbr.rel (%p2173) target = $region272
        $region271: #{tpu_custom_call.1} parent=243 // pred_region
          %2177 = dma.done [#allocation16], 16
        $region272: #{tpu_custom_call.1} parent=243 // pred_fallthru
          _
        // Predicated region
        $region273: #{tpu_custom_call.1} parent=243 // pred_check
          %p2178 = pneg %p456
        $region274: #{tpu_custom_call.1} parent=243 // pred_check_branch
          %2180 = sbr.rel (%p2178) target = $region276
        $region275: #{tpu_custom_call.1} parent=243 // pred_region
          %2182 = dma.done [#allocation19], 1024
        $region276: #{tpu_custom_call.1} parent=243 // pred_fallthru
          _
        // Predicated region
        $region277: #{tpu_custom_call.1} parent=243 // pred_check
          %p2183 = pneg %p477
        $region278: #{tpu_custom_call.1} parent=243 // pred_check_branch
          %2185 = sbr.rel (%p2183) target = $region280
        $region279: #{tpu_custom_call.1} parent=243 // pred_region
          %2187 = dma.done [#allocation19], 16
        $region280: #{tpu_custom_call.1} parent=243 // pred_fallthru
          _
        // Predicated region
        $region281: #{tpu_custom_call.1} parent=243 // pred_check
          %p2188 = pneg %p498
        $region282: #{tpu_custom_call.1} parent=243 // pred_check_branch
          %2190 = sbr.rel (%p2188) target = $region284
        $region283: #{tpu_custom_call.1} parent=243 // pred_region
          %2192 = dma.done [#allocation22], 1024
        $region284: #{tpu_custom_call.1} parent=243 // pred_fallthru
          _
        // Predicated region
        $region285: #{tpu_custom_call.1} parent=243 // pred_check
          %p2193 = pneg %p519
        $region286: #{tpu_custom_call.1} parent=243 // pred_check_branch
          %2195 = sbr.rel (%p2193) target = $region288
        $region287: #{tpu_custom_call.1} parent=243 // pred_region
          %2197 = dma.done [#allocation22], 16
        $region288: #{tpu_custom_call.1} parent=243 // pred_fallthru
          _
        // Predicated region
        $region289: #{tpu_custom_call.1} parent=243 // pred_check
          %p2198 = pneg %p540
        $region290: #{tpu_custom_call.1} parent=243 // pred_check_branch
          %2200 = sbr.rel (%p2198) target = $region292
        $region291: #{tpu_custom_call.1} parent=243 // pred_region
          %2202 = dma.done [#allocation25], 1024
        $region292: #{tpu_custom_call.1} parent=243 // pred_fallthru
          _
        // Predicated region
        $region293: #{tpu_custom_call.1} parent=243 // pred_check
          %p2203 = pneg %p561
        $region294: #{tpu_custom_call.1} parent=243 // pred_check_branch
          %2205 = sbr.rel (%p2203) target = $region296
        $region295: #{tpu_custom_call.1} parent=243 // pred_region
          %2207 = dma.done [#allocation25], 16
        $region296: #{tpu_custom_call.1} parent=243 // pred_fallthru
          _
        // Predicated region
        $region297: #{tpu_custom_call.1} parent=243 // pred_check
          %p2208 = pneg %p582
        $region298: #{tpu_custom_call.1} parent=243 // pred_check_branch
          %2210 = sbr.rel (%p2208) target = $region300
        $region299: #{tpu_custom_call.1} parent=243 // pred_region
          %2212 = dma.done [#allocation28], 1024
        $region300: #{tpu_custom_call.1} parent=243 // pred_fallthru
          _
        // Predicated region
        $region301: #{tpu_custom_call.1} parent=243 // pred_check
          %p2213 = pneg %p603
        $region302: #{tpu_custom_call.1} parent=243 // pred_check_branch
          %2215 = sbr.rel (%p2213) target = $region304
        $region303: #{tpu_custom_call.1} parent=243 // pred_region
          %2217 = dma.done [#allocation28], 1024
        $region304: #{tpu_custom_call.1} parent=243 // pred_fallthru
          _
        // Predicated region
        $region305: #{tpu_custom_call.1} parent=243 // pred_check
          %p2218 = pneg %p624
        $region306: #{tpu_custom_call.1} parent=243 // pred_check_branch
          %2220 = sbr.rel (%p2218) target = $region308
        $region307: #{tpu_custom_call.1} parent=243 // pred_region
          %2222 = dma.done [#allocation31], 16
        $region308: #{tpu_custom_call.1} parent=243 // pred_fallthru
          _
        // Predicated region
        $region309: #{tpu_custom_call.1} parent=243 // pred_check
          %p2223 = pneg %p645
        $region310: #{tpu_custom_call.1} parent=243 // pred_check_branch
          %2225 = sbr.rel (%p2223) target = $region312
        $region311: #{tpu_custom_call.1} parent=243 // pred_region
          %2227 = dma.done [#allocation31], 1024
        $region312: #{tpu_custom_call.1} parent=243 // pred_fallthru
          _
        // Predicated region
        $region313: #{tpu_custom_call.1} parent=243 // pred_check
          %p2228 = pneg %p666
        $region314: #{tpu_custom_call.1} parent=243 // pred_check_branch
          %2230 = sbr.rel (%p2228) target = $region316
        $region315: #{tpu_custom_call.1} parent=243 // pred_region
          %2232 = dma.done [#allocation34], 16
        $region316: #{tpu_custom_call.1} parent=243 // pred_fallthru
          _
        // Predicated region
        $region317: #{tpu_custom_call.1} parent=243 // pred_check
          %p2233 = pneg %p687
        $region318: #{tpu_custom_call.1} parent=243 // pred_check_branch
          %2235 = sbr.rel (%p2233) target = $region320
        $region319: #{tpu_custom_call.1} parent=243 // pred_region
          %2237 = dma.done [#allocation34], 1024
        $region320: #{tpu_custom_call.1} parent=243 // pred_fallthru
          _
        // Predicated region
        $region321: #{tpu_custom_call.1} parent=243 // pred_check
          %p2238 = pneg %p708
        $region322: #{tpu_custom_call.1} parent=243 // pred_check_branch
          %2240 = sbr.rel (%p2238) target = $region324
        $region323: #{tpu_custom_call.1} parent=243 // pred_region
          %2242 = dma.done [#allocation37], 1024
        $region324: #{tpu_custom_call.1} parent=243 // pred_fallthru
          _
        // Predicated region
        $region325: #{tpu_custom_call.1} parent=243 // pred_check
          %p2243 = pneg %p729
        $region326: #{tpu_custom_call.1} parent=243 // pred_check_branch
          %2245 = sbr.rel (%p2243) target = $region328
        $region327: #{tpu_custom_call.1} parent=243 // pred_region
          %2247 = dma.done [#allocation37], 16
        $region328: #{tpu_custom_call.1} parent=243 // pred_fallthru
          _
        // Predicated region
        $region329: #{tpu_custom_call.1} parent=243 // pred_check
          %p2248 = pneg %p750
        $region330: #{tpu_custom_call.1} parent=243 // pred_check_branch
          %2250 = sbr.rel (%p2248) target = $region332
        $region331: #{tpu_custom_call.1} parent=243 // pred_region
          %2252 = dma.done [#allocation40], 16
        $region332: #{tpu_custom_call.1} parent=243 // pred_fallthru
          _
        // Predicated region
        $region333: #{tpu_custom_call.1} parent=243 // pred_check
          %p2253 = pneg %p792
        $region334: #{tpu_custom_call.1} parent=243 // pred_check_branch
          %2255 = sbr.rel (%p2253) target = $region336
        $region335: #{tpu_custom_call.1} parent=243 // pred_region
          %2257 = dma.done [#allocation40], 1024
        $region336: #{tpu_custom_call.1} parent=243 // pred_fallthru
          _
        // Predicated region
        $region337: #{tpu_custom_call.1} parent=243 // pred_check
          %p2258 = pneg %p813
        $region338: #{tpu_custom_call.1} parent=243 // pred_check_branch
          %2260 = sbr.rel (%p2258) target = $region340
        $region339: #{tpu_custom_call.1} parent=243 // pred_region
          %2262 = dma.done [#allocation43], 16
        $region340: #{tpu_custom_call.1} parent=243 // pred_fallthru
          _
        // Predicated region
        $region341: #{tpu_custom_call.1} parent=243 // pred_check
          %p2263 = pneg %p834
        $region342: #{tpu_custom_call.1} parent=243 // pred_check_branch
          %2265 = sbr.rel (%p2263) target = $region344
        $region343: #{tpu_custom_call.1} parent=243 // pred_region
          %2267 = dma.done [#allocation43], 1024
        $region344: #{tpu_custom_call.1} parent=243 // pred_fallthru
          _
        // Predicated region
        $region345: #{tpu_custom_call.1} parent=243 // pred_check
          %p2268 = pneg %p855
        $region346: #{tpu_custom_call.1} parent=243 // pred_check_branch
          %2270 = sbr.rel (%p2268) target = $region348
        $region347: #{tpu_custom_call.1} parent=243 // pred_region
          %2272 = dma.done [#allocation46], 1024
        $region348: #{tpu_custom_call.1} parent=243 // pred_fallthru
          _
        // Predicated region
        $region349: #{tpu_custom_call.1} parent=243 // pred_check
          %p2273 = pneg %p876
        $region350: #{tpu_custom_call.1} parent=243 // pred_check_branch
          %2275 = sbr.rel (%p2273) target = $region352
        $region351: #{tpu_custom_call.1} parent=243 // pred_region
          %2277 = dma.done [#allocation46], 16
        $region352: #{tpu_custom_call.1} parent=243 // pred_fallthru
          _
        // Predicated region
        $region353: #{tpu_custom_call.1} parent=243 // pred_check
          %p2278 = pneg %p897
        $region354: #{tpu_custom_call.1} parent=243 // pred_check_branch
          %2280 = sbr.rel (%p2278) target = $region356
        $region355: #{tpu_custom_call.1} parent=243 // pred_region
          %2282 = dma.done [#allocation49], 16
        $region356: #{tpu_custom_call.1} parent=243 // pred_fallthru
          _
        // Predicated region
        $region357: #{tpu_custom_call.1} parent=243 // pred_check
          %p2283 = pneg %p939
        $region358: #{tpu_custom_call.1} parent=243 // pred_check_branch
          %2285 = sbr.rel (%p2283) target = $region360
        $region359: #{tpu_custom_call.1} parent=243 // pred_region
          %2287 = dma.done [#allocation49], 1024
        $region360: #{tpu_custom_call.1} parent=243 // pred_fallthru
          _
        // Predicated region
        $region361: #{tpu_custom_call.1} parent=243 // pred_check
          %p2288 = pneg %p960
        $region362: #{tpu_custom_call.1} parent=243 // pred_check_branch
          %2290 = sbr.rel (%p2288) target = $region364
        $region363: #{tpu_custom_call.1} parent=243 // pred_region
          %2292 = dma.done [#allocation52], 16
        $region364: #{tpu_custom_call.1} parent=243 // pred_fallthru
          _
        // Predicated region
        $region365: #{tpu_custom_call.1} parent=243 // pred_check
          %p2293 = pneg %p981
        $region366: #{tpu_custom_call.1} parent=243 // pred_check_branch
          %2295 = sbr.rel (%p2293) target = $region368
        $region367: #{tpu_custom_call.1} parent=243 // pred_region
          %2297 = dma.done [#allocation52], 1024
        $region368: #{tpu_custom_call.1} parent=243 // pred_fallthru
          _
        // Predicated region
        $region369: #{tpu_custom_call.1} parent=243 // pred_check
          %p2298 = pneg %p1002
        $region370: #{tpu_custom_call.1} parent=243 // pred_check_branch
          %2300 = sbr.rel (%p2298) target = $region372
        $region371: #{tpu_custom_call.1} parent=243 // pred_region
          %2302 = dma.done [#allocation55], 1024
        $region372: #{tpu_custom_call.1} parent=243 // pred_fallthru
          _
        // Predicated region
        $region373: #{tpu_custom_call.1} parent=243 // pred_check
          %p2303 = pneg %p1023
        $region374: #{tpu_custom_call.1} parent=243 // pred_check_branch
          %2305 = sbr.rel (%p2303) target = $region376
        $region375: #{tpu_custom_call.1} parent=243 // pred_region
          %2307 = dma.done [#allocation55], 16
        $region376: #{tpu_custom_call.1} parent=243 // pred_fallthru
          _
        // Predicated region
        $region377: #{tpu_custom_call.1} parent=243 // pred_check
          %p2308 = pneg %p1044
        $region378: #{tpu_custom_call.1} parent=243 // pred_check_branch
          %2310 = sbr.rel (%p2308) target = $region380
        $region379: #{tpu_custom_call.1} parent=243 // pred_region
          %2312 = dma.done [#allocation58], 16
        $region380: #{tpu_custom_call.1} parent=243 // pred_fallthru
          _
        // Predicated region
        $region381: #{tpu_custom_call.1} parent=243 // pred_check
          %p2313 = pneg %p1086
        $region382: #{tpu_custom_call.1} parent=243 // pred_check_branch
          %2315 = sbr.rel (%p2313) target = $region384
        $region383: #{tpu_custom_call.1} parent=243 // pred_region
          %2317 = dma.done [#allocation58], 1024
        $region384: #{tpu_custom_call.1} parent=243 // pred_fallthru
          _
        // Predicated region
        $region385: #{tpu_custom_call.1} parent=243 // pred_check
          %p2318 = pneg %p1107
        $region386: #{tpu_custom_call.1} parent=243 // pred_check_branch
          %2320 = sbr.rel (%p2318) target = $region388
        $region387: #{tpu_custom_call.1} parent=243 // pred_region
          %2322 = dma.done [#allocation61], 16
        $region388: #{tpu_custom_call.1} parent=243 // pred_fallthru
          _
        // Predicated region
        $region389: #{tpu_custom_call.1} parent=243 // pred_check
          %p2323 = pneg %p1128
        $region390: #{tpu_custom_call.1} parent=243 // pred_check_branch
          %2325 = sbr.rel (%p2323) target = $region392
        $region391: #{tpu_custom_call.1} parent=243 // pred_region
          %2327 = dma.done [#allocation61], 1024
        $region392: #{tpu_custom_call.1} parent=243 // pred_fallthru
          _
        // Predicated region
        $region393: #{tpu_custom_call.1} parent=243 // pred_check
          %p2328 = pneg %p1149
        $region394: #{tpu_custom_call.1} parent=243 // pred_check_branch
          %2330 = sbr.rel (%p2328) target = $region396
        $region395: #{tpu_custom_call.1} parent=243 // pred_region
          %2332 = dma.done [#allocation64], 1024
        $region396: #{tpu_custom_call.1} parent=243 // pred_fallthru
          _
        // Predicated region
        $region397: #{tpu_custom_call.1} parent=243 // pred_check
          %p2333 = pneg %p1170
        $region398: #{tpu_custom_call.1} parent=243 // pred_check_branch
          %2335 = sbr.rel (%p2333) target = $region400
        $region399: #{tpu_custom_call.1} parent=243 // pred_region
          %2337 = dma.done [#allocation64], 16
        $region400: #{tpu_custom_call.1} parent=243 // pred_fallthru
          _
        // Predicated region
        $region401: #{tpu_custom_call.1} parent=243 // pred_check
          %p2338 = pneg %p1191
        $region402: #{tpu_custom_call.1} parent=243 // pred_check_branch
          %2340 = sbr.rel (%p2338) target = $region404
        $region403: #{tpu_custom_call.1} parent=243 // pred_region
          %2342 = dma.done [#allocation67], 16
        $region404: #{tpu_custom_call.1} parent=243 // pred_fallthru
          _
        // Predicated region
        $region405: #{tpu_custom_call.1} parent=243 // pred_check
          %p2343 = pneg %p1233
        $region406: #{tpu_custom_call.1} parent=243 // pred_check_branch
          %2345 = sbr.rel (%p2343) target = $region408
        $region407: #{tpu_custom_call.1} parent=243 // pred_region
          %2347 = dma.done [#allocation67], 1024
        $region408: #{tpu_custom_call.1} parent=243 // pred_fallthru
          _
        // Predicated region
        $region409: #{tpu_custom_call.1} parent=243 // pred_check
          %p2348 = pneg %p1254
        $region410: #{tpu_custom_call.1} parent=243 // pred_check_branch
          %2350 = sbr.rel (%p2348) target = $region412
        $region411: #{tpu_custom_call.1} parent=243 // pred_region
          %2352 = dma.done [#allocation70], 16
        $region412: #{tpu_custom_call.1} parent=243 // pred_fallthru
          _
        // Predicated region
        $region413: #{tpu_custom_call.1} parent=243 // pred_check
          %p2353 = pneg %p1296
        $region414: #{tpu_custom_call.1} parent=243 // pred_check_branch
          %2355 = sbr.rel (%p2353) target = $region416
        $region415: #{tpu_custom_call.1} parent=243 // pred_region
          %2357 = dma.done [#allocation70], 2048
        $region416: #{tpu_custom_call.1} parent=243 // pred_fallthru
          _
        // Predicated region
        $region417: #{tpu_custom_call.1} parent=243 // pred_check
          %p2358 = pneg %p1317
        $region418: #{tpu_custom_call.1} parent=243 // pred_check_branch
          %2360 = sbr.rel (%p2358) target = $region420
        $region419: #{tpu_custom_call.1} parent=243 // pred_region
          %2362 = dma.done [#allocation73], 2048
        $region420: #{tpu_custom_call.1} parent=243 // pred_fallthru
          _
        // Predicated region
        $region421: #{tpu_custom_call.1} parent=243 // pred_check
          %p2363 = pneg %p1359
        $region422: #{tpu_custom_call.1} parent=243 // pred_check_branch
          %2365 = sbr.rel (%p2363) target = $region424
        $region423: #{tpu_custom_call.1} parent=243 // pred_region
          %2367 = dma.done [#allocation73], 2048
        $region424: #{tpu_custom_call.1} parent=243 // pred_fallthru
          _
        %p2368 = scmp.lt.s32.totalorder %s164, 1
        %s2369 = scalar_select %p2368, %s164, 1
        %s2370 = smul.addr %s2369, 8
        %s2371 = scalar_lea.vmem %s1, %s2370
        %p2372 = pneg %p185
        %p2373 = pneg %p182
        %p2374 = scmp.lt.s32.totalorder %s164, 1
        %s2375 = scalar_select %p2374, %s164, 1
        %s2376 = smul.addr %s2375, 8
        %s2377 = scalar_lea.vmem %s3, %s2376
        %p2378 = pneg %p211
        %p2379 = pneg %p208
        %s2380 = smul.u32 8, %s164
        %p2381 = scmp.lt.s32.totalorder %s2380, 15
        %s2382 = scalar_select %p2381, %s2380, 15
        %s2383 = smul.addr %s2382, 4
        %s2384 = scalar_lea.vmem %s5, %s2383
        %p2385 = pneg %p237
        %p2386 = pneg %p234
        %s2387 = sand.u32 %s250, 1
        %s2388 = scalar_lea.sflag [#allocation7], %s2387
        %s2389 = sand.u32 %s250, 1
        %s2390 = smul.addr %s2389, 4
        %s2391 = scalar_lea.vmem [#allocation6], %s2390
        %p2392 = pneg %p263
        %p2393 = pneg %p260
        %s2394 = smul.u32 8, %s164
        %p2395 = scmp.lt.s32.totalorder %s2394, 15
        %s2396 = scalar_select %p2395, %s2394, 15
        %s2397 = smul.addr %s2396, 4
        %s2398 = scalar_lea.vmem %s9, %s2397
        %p2399 = pneg %p289
        %p2400 = pneg %p286
        %s2401 = sand.u32 %s164, 1
        %s2402 = scalar_lea.sflag [#allocation10], %s2401
        %s2403 = sand.u32 %s302, 1
        %s2404 = smul.addr %s2403, 32
        %s2405 = scalar_lea.vmem [#allocation9], %s2404
        %p2406 = pneg %p315
        %p2407 = pneg %p312
        %s2408 = sand.u32 %s164, 1
        %s2409 = scalar_lea.sflag [#allocation10], %s2408
        %s2410 = sand.u32 %s328, 1
        %s2411 = smul.addr %s2410, 16
        %s2412 = scalar_lea.vmem [#allocation11], %s2411
        %p2413 = pneg %p341
        %p2414 = pneg %p338
        %s2415 = sand.u32 %s164, 1
        %s2416 = scalar_lea.sflag [#allocation13], %s2415
        %s2417 = sand.u32 %s354, 1
        %s2418 = smul.addr %s2417, 128
        %s2419 = scalar_lea.vmem [#allocation12], %s2418
        %p2420 = pneg %p367
        %p2421 = pneg %p364
        %s2422 = sand.u32 %s164, 1
        %s2423 = scalar_lea.sflag [#allocation13], %s2422
        %s2424 = sand.u32 %s380, 1
        %s2425 = smul.addr %s2424, 128
        %s2426 = scalar_lea.vmem [#allocation14], %s2425
        %p2427 = pneg %p393
        %p2428 = pneg %p390
        %p2429 = pneg %p414
        %p2430 = pneg %p411
        %p2431 = pneg %p435
        %p2432 = pneg %p432
        %p2433 = pneg %p456
        %p2434 = pneg %p453
        %p2435 = pneg %p477
        %p2436 = pneg %p474
        %p2437 = pneg %p498
        %p2438 = pneg %p495
        %p2439 = pneg %p519
        %p2440 = pneg %p516
        %p2441 = pneg %p540
        %p2442 = pneg %p537
        %p2443 = pneg %p561
        %p2444 = pneg %p558
        %p2445 = pneg %p582
        %p2446 = pneg %p579
        %p2447 = pneg %p603
        %p2448 = pneg %p600
        %p2449 = pneg %p624
        %p2450 = pneg %p621
        %p2451 = pneg %p645
        %p2452 = pneg %p642
        %p2453 = pneg %p666
        %p2454 = pneg %p663
        %p2455 = pneg %p687
        %p2456 = pneg %p684
        %p2457 = pneg %p708
        %p2458 = pneg %p705
        %p2459 = pneg %p729
        %p2460 = pneg %p726
        %p2461 = pneg %p750
        %p2462 = pneg %p747
        %p2463 = pneg %p771
        %p2464 = pneg %p768
        %p2465 = pneg %p792
        %p2466 = pneg %p789
        %p2467 = pneg %p813
        %p2468 = pneg %p810
        %p2469 = pneg %p834
        %p2470 = pneg %p831
        %p2471 = pneg %p855
        %p2472 = pneg %p852
        %p2473 = pneg %p876
        %p2474 = pneg %p873
        %p2475 = pneg %p897
        %p2476 = pneg %p894
        %p2477 = pneg %p918
        %p2478 = pneg %p915
        %p2479 = pneg %p939
        %p2480 = pneg %p936
        %p2481 = pneg %p960
        %p2482 = pneg %p957
        %p2483 = pneg %p981
        %p2484 = pneg %p978
        %p2485 = pneg %p1002
        %p2486 = pneg %p999
        %p2487 = pneg %p1023
        %p2488 = pneg %p1020
        %p2489 = pneg %p1044
        %p2490 = pneg %p1041
        %p2491 = pneg %p1065
        %p2492 = pneg %p1062
        %p2493 = pneg %p1086
        %p2494 = pneg %p1083
        %p2495 = pneg %p1107
        %p2496 = pneg %p1104
        %p2497 = pneg %p1128
        %p2498 = pneg %p1125
        %p2499 = pneg %p1149
        %p2500 = pneg %p1146
        %p2501 = pneg %p1170
        %p2502 = pneg %p1167
        %p2503 = pneg %p1191
        %p2504 = pneg %p1188
        %p2505 = pneg %p1212
        %p2506 = pneg %p1209
        %p2507 = pneg %p1233
        %p2508 = pneg %p1230
        %p2509 = pneg %p1254
        %p2510 = pneg %p1251
        %p2511 = pneg %p1275
        %p2512 = pneg %p1272
        %p2513 = pneg %p1296
        %p2514 = pneg %p1293
        %p2515 = pneg %p1317
        %p2516 = pneg %p1314
        %p2517 = pneg %p1338
        %p2518 = pneg %p1335
        %p2519 = pneg %p1359
        %p2520 = pneg %p1356
        %p2521 = pneg %p1380
        %p2522 = pneg %p1377
        %p2523 = pneg %p1406
        %p2524 = pneg %p1403
        %s2525 = sand.u32 %s1393, 1
        %s2526 = scalar_lea.sflag [#allocation8], %s2525
        %s2527 = sand.u32 %s1393, 1
        %s2528 = smul.addr %s2527, 8
        %s2529 = scalar_lea.vmem [#allocation75], %s2528
        %p2530 = scmp.lt.s32.totalorder %s164, 1
        %s2531 = scalar_select %p2530, %s164, 1
        %s2532 = smul.addr %s2531, 8
        %s2533 = scalar_lea.vmem %s1, %s2532
        %p2534 = scmp.lt.s32.totalorder %s164, 1
        %s2535 = scalar_select %p2534, %s164, 1
        %s2536 = smul.addr %s2535, 8
        %s2537 = scalar_lea.vmem %s3, %s2536
        %s2538 = smul.u32 8, %s164
        %p2539 = scmp.lt.s32.totalorder %s2538, 15
        %s2540 = scalar_select %p2539, %s2538, 15
        %s2541 = smul.addr %s2540, 4
        %s2542 = scalar_lea.vmem %s5, %s2541
        %s2543 = smul.u32 8, %s164
        %s2544 = smul.u32 8, %s164
        %p2545 = scmp.lt.s32.totalorder %s2544, 15
        %s2546 = scalar_select %p2545, %s2544, 15
        %s2547 = smul.addr %s2546, 4
        %s2548 = scalar_lea.vmem %s9, %s2547
        %s2549 = smul.u32 8, %s164
        %s2550 = smul.u32 8, %s164
        %s2551 = smul.u32 8, %s164
        %s2552 = smul.u32 8, %s164
        %s2553 = smul.u32 8, %s164
        %v2554 = vld [vmem:[%s2533] sm:$0xff]
        %v2555 = vld [vmem:[%s2537] sm:$0xff]
        %v2556 = vld [vmem:[%s2542] sm:$0xf]
        %v2557 = vld [vmem:[%s2542 + $0x4] sm:$0xf]
        %v2558 = vld [vmem:[%s2542 + $0x8] sm:$0xf]
        %v2559 = vld [vmem:[%s2542 + $0xc] sm:$0xf]
        %v2560 = vld [vmem:[%s2542 + $0x10] sm:$0xf]
        %v2561 = vld [vmem:[%s2542 + $0x14] sm:$0xf]
        %v2562 = vld [vmem:[%s2542 + $0x18] sm:$0xf]
        %v2563 = vld [vmem:[%s2542 + $0x1c] sm:$0xf]
        %v2564 = vld [vmem:[%s2122] sm:$0xf]
        %v2565 = vld [vmem:[%s2548] sm:$0xf]
        %v2566 = vld [vmem:[%s2548 + $0x4] sm:$0xf]
        %v2567 = vld [vmem:[%s2548 + $0x8] sm:$0xf]
        %v2568 = vld [vmem:[%s2548 + $0xc] sm:$0xf]
        %v2569 = vld [vmem:[%s2548 + $0x10] sm:$0xf]
        %v2570 = vld [vmem:[%s2548 + $0x14] sm:$0xf]
        %v2571 = vld [vmem:[%s2548 + $0x18] sm:$0xf]
        %v2572 = vld [vmem:[%s2548 + $0x1c] sm:$0xf]
        %v2573 = vld [vmem:[%s2132] sm:$0xf]
        %v2574 = vld [vmem:[%s2132 + $0x4] sm:$0xf]
        %v2575 = vld [vmem:[%s2132 + $0x8] sm:$0xf]
        %v2576 = vld [vmem:[%s2132 + $0xc] sm:$0xf]
        %v2577 = vld [vmem:[%s2132 + $0x10] sm:$0xf]
        %v2578 = vld [vmem:[%s2132 + $0x14] sm:$0xf]
        %v2579 = vld [vmem:[%s2132 + $0x18] sm:$0xf]
        %v2580 = vld [vmem:[%s2132 + $0x1c] sm:$0xf]
        %v2581 = vld [vmem:[%s2142] sm:$0x3]
        %v2582 = vld [vmem:[%s2142 + $0x2] sm:$0x3]
        %v2583 = vld [vmem:[%s2142 + $0x4] sm:$0x3]
        %v2584 = vld [vmem:[%s2142 + $0x6] sm:$0x3]
        %v2585 = vld [vmem:[%s2142 + $0x8] sm:$0x3]
        %v2586 = vld [vmem:[%s2142 + $0xa] sm:$0x3]
        %v2587 = vld [vmem:[%s2142 + $0xc] sm:$0x3]
        %v2588 = vld [vmem:[%s2142 + $0xe] sm:$0x3]
        %v2589 = vld [vmem:[%s2152] sm:$0xf]
        %v2590 = vld [vmem:[%s2152 + $0x4] sm:$0xf]
        %v2591 = vld [vmem:[%s2152 + $0x8] sm:$0xf]
        %v2592 = vld [vmem:[%s2152 + $0xc] sm:$0xf]
        %v2593 = vld [vmem:[%s2152 + $0x10] sm:$0xf]
        %v2594 = vld [vmem:[%s2152 + $0x14] sm:$0xf]
        %v2595 = vld [vmem:[%s2152 + $0x18] sm:$0xf]
        %v2596 = vld [vmem:[%s2152 + $0x1c] sm:$0xf]
        %v2597 = vld [vmem:[%s2152 + $0x20] sm:$0xf]
        %v2598 = vld [vmem:[%s2152 + $0x24] sm:$0xf]
        %v2599 = vld [vmem:[%s2152 + $0x28] sm:$0xf]
        %v2600 = vld [vmem:[%s2152 + $0x2c] sm:$0xf]
        %v2601 = vld [vmem:[%s2152 + $0x30] sm:$0xf]
        %v2602 = vld [vmem:[%s2152 + $0x34] sm:$0xf]
        %v2603 = vld [vmem:[%s2152 + $0x38] sm:$0xf]
        %v2604 = vld [vmem:[%s2152 + $0x3c] sm:$0xf]
        %v2605 = vld [vmem:[%s2152 + $0x40] sm:$0xf]
        %v2606 = vld [vmem:[%s2152 + $0x44] sm:$0xf]
        %v2607 = vld [vmem:[%s2152 + $0x48] sm:$0xf]
        %v2608 = vld [vmem:[%s2152 + $0x4c] sm:$0xf]
        %v2609 = vld [vmem:[%s2152 + $0x50] sm:$0xf]
        %v2610 = vld [vmem:[%s2152 + $0x54] sm:$0xf]
        %v2611 = vld [vmem:[%s2152 + $0x58] sm:$0xf]
        %v2612 = vld [vmem:[%s2152 + $0x5c] sm:$0xf]
        %v2613 = vld [vmem:[%s2152 + $0x60] sm:$0xf]
        %v2614 = vld [vmem:[%s2152 + $0x64] sm:$0xf]
        %v2615 = vld [vmem:[%s2152 + $0x68] sm:$0xf]
        %v2616 = vld [vmem:[%s2152 + $0x6c] sm:$0xf]
        %v2617 = vld [vmem:[%s2152 + $0x70] sm:$0xf]
        %v2618 = vld [vmem:[%s2152 + $0x74] sm:$0xf]
        %v2619 = vld [vmem:[%s2152 + $0x78] sm:$0xf]
        %v2620 = vld [vmem:[%s2152 + $0x7c] sm:$0xf]
        %v2621 = vld [vmem:[%s2162] sm:$0xf]
        %v2622 = vld [vmem:[%s2162 + $0x4] sm:$0xf]
        %v2623 = vld [vmem:[%s2162 + $0x8] sm:$0xf]
        %v2624 = vld [vmem:[%s2162 + $0xc] sm:$0xf]
        %v2625 = vld [vmem:[%s2162 + $0x10] sm:$0xf]
        %v2626 = vld [vmem:[%s2162 + $0x14] sm:$0xf]
        %v2627 = vld [vmem:[%s2162 + $0x18] sm:$0xf]
        %v2628 = vld [vmem:[%s2162 + $0x1c] sm:$0xf]
        %v2629 = vld [vmem:[%s2162 + $0x20] sm:$0xf]
        %v2630 = vld [vmem:[%s2162 + $0x24] sm:$0xf]
        %v2631 = vld [vmem:[%s2162 + $0x28] sm:$0xf]
        %v2632 = vld [vmem:[%s2162 + $0x2c] sm:$0xf]
        %v2633 = vld [vmem:[%s2162 + $0x30] sm:$0xf]
        %v2634 = vld [vmem:[%s2162 + $0x34] sm:$0xf]
        %v2635 = vld [vmem:[%s2162 + $0x38] sm:$0xf]
        %v2636 = vld [vmem:[%s2162 + $0x3c] sm:$0xf]
        %v2637 = vld [vmem:[%s2162 + $0x40] sm:$0xf]
        %v2638 = vld [vmem:[%s2162 + $0x44] sm:$0xf]
        %v2639 = vld [vmem:[%s2162 + $0x48] sm:$0xf]
        %v2640 = vld [vmem:[%s2162 + $0x4c] sm:$0xf]
        %v2641 = vld [vmem:[%s2162 + $0x50] sm:$0xf]
        %v2642 = vld [vmem:[%s2162 + $0x54] sm:$0xf]
        %v2643 = vld [vmem:[%s2162 + $0x58] sm:$0xf]
        %v2644 = vld [vmem:[%s2162 + $0x5c] sm:$0xf]
        %v2645 = vld [vmem:[%s2162 + $0x60] sm:$0xf]
        %v2646 = vld [vmem:[%s2162 + $0x64] sm:$0xf]
        %v2647 = vld [vmem:[%s2162 + $0x68] sm:$0xf]
        %v2648 = vld [vmem:[%s2162 + $0x6c] sm:$0xf]
        %v2649 = vld [vmem:[%s2162 + $0x70] sm:$0xf]
        %v2650 = vld [vmem:[%s2162 + $0x74] sm:$0xf]
        %v2651 = vld [vmem:[%s2162 + $0x78] sm:$0xf]
        %v2652 = vld [vmem:[%s2162 + $0x7c] sm:$0xf]
        %v2653 = vld [vmem:[#allocation15] sm:$0xf]
        %v2654 = vld [vmem:[#allocation15 + $0x4] sm:$0xf]
        %v2655 = vld [vmem:[#allocation15 + $0x8] sm:$0xf]
        %v2656 = vld [vmem:[#allocation15 + $0xc] sm:$0xf]
        %v2657 = vld [vmem:[#allocation15 + $0x10] sm:$0xf]
        %v2658 = vld [vmem:[#allocation15 + $0x14] sm:$0xf]
        %v2659 = vld [vmem:[#allocation15 + $0x18] sm:$0xf]
        %v2660 = vld [vmem:[#allocation15 + $0x1c] sm:$0xf]
        %v2661 = vld [vmem:[#allocation15 + $0x20] sm:$0xf]
        %v2662 = vld [vmem:[#allocation15 + $0x24] sm:$0xf]
        %v2663 = vld [vmem:[#allocation15 + $0x28] sm:$0xf]
        %v2664 = vld [vmem:[#allocation15 + $0x2c] sm:$0xf]
        %v2665 = vld [vmem:[#allocation15 + $0x30] sm:$0xf]
        %v2666 = vld [vmem:[#allocation15 + $0x34] sm:$0xf]
        %v2667 = vld [vmem:[#allocation15 + $0x38] sm:$0xf]
        %v2668 = vld [vmem:[#allocation15 + $0x3c] sm:$0xf]
        %v2669 = vld [vmem:[#allocation17] sm:$0x1]
        %v2670 = vld [vmem:[#allocation18] sm:$0xf]
        %v2671 = vld [vmem:[#allocation18 + $0x4] sm:$0xf]
        %v2672 = vld [vmem:[#allocation18 + $0x8] sm:$0xf]
        %v2673 = vld [vmem:[#allocation18 + $0xc] sm:$0xf]
        %v2674 = vld [vmem:[#allocation18 + $0x10] sm:$0xf]
        %v2675 = vld [vmem:[#allocation18 + $0x14] sm:$0xf]
        %v2676 = vld [vmem:[#allocation18 + $0x18] sm:$0xf]
        %v2677 = vld [vmem:[#allocation18 + $0x1c] sm:$0xf]
        %v2678 = vld [vmem:[#allocation18 + $0x20] sm:$0xf]
        %v2679 = vld [vmem:[#allocation18 + $0x24] sm:$0xf]
        %v2680 = vld [vmem:[#allocation18 + $0x28] sm:$0xf]
        %v2681 = vld [vmem:[#allocation18 + $0x2c] sm:$0xf]
        %v2682 = vld [vmem:[#allocation18 + $0x30] sm:$0xf]
        %v2683 = vld [vmem:[#allocation18 + $0x34] sm:$0xf]
        %v2684 = vld [vmem:[#allocation18 + $0x38] sm:$0xf]
        %v2685 = vld [vmem:[#allocation18 + $0x3c] sm:$0xf]
        %v2686 = vld [vmem:[#allocation20] sm:$0x1]
        %v2687 = vld [vmem:[#allocation21] sm:$0xf]
        %v2688 = vld [vmem:[#allocation21 + $0x4] sm:$0xf]
        %v2689 = vld [vmem:[#allocation21 + $0x8] sm:$0xf]
        %v2690 = vld [vmem:[#allocation21 + $0xc] sm:$0xf]
        %v2691 = vld [vmem:[#allocation21 + $0x10] sm:$0xf]
        %v2692 = vld [vmem:[#allocation21 + $0x14] sm:$0xf]
        %v2693 = vld [vmem:[#allocation21 + $0x18] sm:$0xf]
        %v2694 = vld [vmem:[#allocation21 + $0x1c] sm:$0xf]
        %v2695 = vld [vmem:[#allocation21 + $0x20] sm:$0xf]
        %v2696 = vld [vmem:[#allocation21 + $0x24] sm:$0xf]
        %v2697 = vld [vmem:[#allocation21 + $0x28] sm:$0xf]
        %v2698 = vld [vmem:[#allocation21 + $0x2c] sm:$0xf]
        %v2699 = vld [vmem:[#allocation21 + $0x30] sm:$0xf]
        %v2700 = vld [vmem:[#allocation21 + $0x34] sm:$0xf]
        %v2701 = vld [vmem:[#allocation21 + $0x38] sm:$0xf]
        %v2702 = vld [vmem:[#allocation21 + $0x3c] sm:$0xf]
        %v2703 = vld [vmem:[#allocation23] sm:$0x1]
        %v2704 = vld [vmem:[#allocation24] sm:$0xf]
        %v2705 = vld [vmem:[#allocation24 + $0x4] sm:$0xf]
        %v2706 = vld [vmem:[#allocation24 + $0x8] sm:$0xf]
        %v2707 = vld [vmem:[#allocation24 + $0xc] sm:$0xf]
        %v2708 = vld [vmem:[#allocation24 + $0x10] sm:$0xf]
        %v2709 = vld [vmem:[#allocation24 + $0x14] sm:$0xf]
        %v2710 = vld [vmem:[#allocation24 + $0x18] sm:$0xf]
        %v2711 = vld [vmem:[#allocation24 + $0x1c] sm:$0xf]
        %v2712 = vld [vmem:[#allocation24 + $0x20] sm:$0xf]
        %v2713 = vld [vmem:[#allocation24 + $0x24] sm:$0xf]
        %v2714 = vld [vmem:[#allocation24 + $0x28] sm:$0xf]
        %v2715 = vld [vmem:[#allocation24 + $0x2c] sm:$0xf]
        %v2716 = vld [vmem:[#allocation24 + $0x30] sm:$0xf]
        %v2717 = vld [vmem:[#allocation24 + $0x34] sm:$0xf]
        %v2718 = vld [vmem:[#allocation24 + $0x38] sm:$0xf]
        %v2719 = vld [vmem:[#allocation24 + $0x3c] sm:$0xf]
        %v2720 = vld [vmem:[#allocation26] sm:$0x1]
        %v2721 = vld [vmem:[#allocation27] sm:$0xf]
        %v2722 = vld [vmem:[#allocation27 + $0x4] sm:$0xf]
        %v2723 = vld [vmem:[#allocation27 + $0x8] sm:$0xf]
        %v2724 = vld [vmem:[#allocation27 + $0xc] sm:$0xf]
        %v2725 = vld [vmem:[#allocation27 + $0x10] sm:$0xf]
        %v2726 = vld [vmem:[#allocation27 + $0x14] sm:$0xf]
        %v2727 = vld [vmem:[#allocation27 + $0x18] sm:$0xf]
        %v2728 = vld [vmem:[#allocation27 + $0x1c] sm:$0xf]
        %v2729 = vld [vmem:[#allocation27 + $0x20] sm:$0xf]
        %v2730 = vld [vmem:[#allocation27 + $0x24] sm:$0xf]
        %v2731 = vld [vmem:[#allocation27 + $0x28] sm:$0xf]
        %v2732 = vld [vmem:[#allocation27 + $0x2c] sm:$0xf]
        %v2733 = vld [vmem:[#allocation27 + $0x30] sm:$0xf]
        %v2734 = vld [vmem:[#allocation27 + $0x34] sm:$0xf]
        %v2735 = vld [vmem:[#allocation27 + $0x38] sm:$0xf]
        %v2736 = vld [vmem:[#allocation27 + $0x3c] sm:$0xf]
        %v2737 = vld [vmem:[#allocation29] sm:$0xf]
        %v2738 = vld [vmem:[#allocation29 + $0x4] sm:$0xf]
        %v2739 = vld [vmem:[#allocation29 + $0x8] sm:$0xf]
        %v2740 = vld [vmem:[#allocation29 + $0xc] sm:$0xf]
        %v2741 = vld [vmem:[#allocation29 + $0x10] sm:$0xf]
        %v2742 = vld [vmem:[#allocation29 + $0x14] sm:$0xf]
        %v2743 = vld [vmem:[#allocation29 + $0x18] sm:$0xf]
        %v2744 = vld [vmem:[#allocation29 + $0x1c] sm:$0xf]
        %v2745 = vld [vmem:[#allocation29 + $0x20] sm:$0xf]
        %v2746 = vld [vmem:[#allocation29 + $0x24] sm:$0xf]
        %v2747 = vld [vmem:[#allocation29 + $0x28] sm:$0xf]
        %v2748 = vld [vmem:[#allocation29 + $0x2c] sm:$0xf]
        %v2749 = vld [vmem:[#allocation29 + $0x30] sm:$0xf]
        %v2750 = vld [vmem:[#allocation29 + $0x34] sm:$0xf]
        %v2751 = vld [vmem:[#allocation29 + $0x38] sm:$0xf]
        %v2752 = vld [vmem:[#allocation29 + $0x3c] sm:$0xf]
        %v2753 = vld [vmem:[#allocation30] sm:$0x1]
        %v2754 = vld [vmem:[#allocation32] sm:$0xf]
        %v2755 = vld [vmem:[#allocation32 + $0x4] sm:$0xf]
        %v2756 = vld [vmem:[#allocation32 + $0x8] sm:$0xf]
        %v2757 = vld [vmem:[#allocation32 + $0xc] sm:$0xf]
        %v2758 = vld [vmem:[#allocation32 + $0x10] sm:$0xf]
        %v2759 = vld [vmem:[#allocation32 + $0x14] sm:$0xf]
        %v2760 = vld [vmem:[#allocation32 + $0x18] sm:$0xf]
        %v2761 = vld [vmem:[#allocation32 + $0x1c] sm:$0xf]
        %v2762 = vld [vmem:[#allocation32 + $0x20] sm:$0xf]
        %v2763 = vld [vmem:[#allocation32 + $0x24] sm:$0xf]
        %v2764 = vld [vmem:[#allocation32 + $0x28] sm:$0xf]
        %v2765 = vld [vmem:[#allocation32 + $0x2c] sm:$0xf]
        %v2766 = vld [vmem:[#allocation32 + $0x30] sm:$0xf]
        %v2767 = vld [vmem:[#allocation32 + $0x34] sm:$0xf]
        %v2768 = vld [vmem:[#allocation32 + $0x38] sm:$0xf]
        %v2769 = vld [vmem:[#allocation32 + $0x3c] sm:$0xf]
        %v2770 = vld [vmem:[#allocation33] sm:$0x1]
        %v2771 = vld [vmem:[#allocation35] sm:$0xf]
        %v2772 = vld [vmem:[#allocation35 + $0x4] sm:$0xf]
        %v2773 = vld [vmem:[#allocation35 + $0x8] sm:$0xf]
        %v2774 = vld [vmem:[#allocation35 + $0xc] sm:$0xf]
        %v2775 = vld [vmem:[#allocation35 + $0x10] sm:$0xf]
        %v2776 = vld [vmem:[#allocation35 + $0x14] sm:$0xf]
        %v2777 = vld [vmem:[#allocation35 + $0x18] sm:$0xf]
        %v2778 = vld [vmem:[#allocation35 + $0x1c] sm:$0xf]
        %v2779 = vld [vmem:[#allocation35 + $0x20] sm:$0xf]
        %v2780 = vld [vmem:[#allocation35 + $0x24] sm:$0xf]
        %v2781 = vld [vmem:[#allocation35 + $0x28] sm:$0xf]
        %v2782 = vld [vmem:[#allocation35 + $0x2c] sm:$0xf]
        %v2783 = vld [vmem:[#allocation35 + $0x30] sm:$0xf]
        %v2784 = vld [vmem:[#allocation35 + $0x34] sm:$0xf]
        %v2785 = vld [vmem:[#allocation35 + $0x38] sm:$0xf]
        %v2786 = vld [vmem:[#allocation35 + $0x3c] sm:$0xf]
        %v2787 = vld [vmem:[#allocation36] sm:$0xf]
        %v2788 = vld [vmem:[#allocation36 + $0x4] sm:$0xf]
        %v2789 = vld [vmem:[#allocation36 + $0x8] sm:$0xf]
        %v2790 = vld [vmem:[#allocation36 + $0xc] sm:$0xf]
        %v2791 = vld [vmem:[#allocation36 + $0x10] sm:$0xf]
        %v2792 = vld [vmem:[#allocation36 + $0x14] sm:$0xf]
        %v2793 = vld [vmem:[#allocation36 + $0x18] sm:$0xf]
        %v2794 = vld [vmem:[#allocation36 + $0x1c] sm:$0xf]
        %v2795 = vld [vmem:[#allocation36 + $0x20] sm:$0xf]
        %v2796 = vld [vmem:[#allocation36 + $0x24] sm:$0xf]
        %v2797 = vld [vmem:[#allocation36 + $0x28] sm:$0xf]
        %v2798 = vld [vmem:[#allocation36 + $0x2c] sm:$0xf]
        %v2799 = vld [vmem:[#allocation36 + $0x30] sm:$0xf]
        %v2800 = vld [vmem:[#allocation36 + $0x34] sm:$0xf]
        %v2801 = vld [vmem:[#allocation36 + $0x38] sm:$0xf]
        %v2802 = vld [vmem:[#allocation36 + $0x3c] sm:$0xf]
        %v2803 = vld [vmem:[#allocation38] sm:$0x1]
        %v2804 = vld [vmem:[#allocation39] sm:$0x1]
        %v2805 = vld [vmem:[#allocation2] sm:$0x1]
        %v2806 = vld [vmem:[#allocation41] sm:$0xf]
        %v2807 = vld [vmem:[#allocation41 + $0x4] sm:$0xf]
        %v2808 = vld [vmem:[#allocation41 + $0x8] sm:$0xf]
        %v2809 = vld [vmem:[#allocation41 + $0xc] sm:$0xf]
        %v2810 = vld [vmem:[#allocation41 + $0x10] sm:$0xf]
        %v2811 = vld [vmem:[#allocation41 + $0x14] sm:$0xf]
        %v2812 = vld [vmem:[#allocation41 + $0x18] sm:$0xf]
        %v2813 = vld [vmem:[#allocation41 + $0x1c] sm:$0xf]
        %v2814 = vld [vmem:[#allocation41 + $0x20] sm:$0xf]
        %v2815 = vld [vmem:[#allocation41 + $0x24] sm:$0xf]
        %v2816 = vld [vmem:[#allocation41 + $0x28] sm:$0xf]
        %v2817 = vld [vmem:[#allocation41 + $0x2c] sm:$0xf]
        %v2818 = vld [vmem:[#allocation41 + $0x30] sm:$0xf]
        %v2819 = vld [vmem:[#allocation41 + $0x34] sm:$0xf]
        %v2820 = vld [vmem:[#allocation41 + $0x38] sm:$0xf]
        %v2821 = vld [vmem:[#allocation41 + $0x3c] sm:$0xf]
        %v2822 = vld [vmem:[#allocation42] sm:$0x1]
        %v2823 = vld [vmem:[#allocation44] sm:$0xf]
        %v2824 = vld [vmem:[#allocation44 + $0x4] sm:$0xf]
        %v2825 = vld [vmem:[#allocation44 + $0x8] sm:$0xf]
        %v2826 = vld [vmem:[#allocation44 + $0xc] sm:$0xf]
        %v2827 = vld [vmem:[#allocation44 + $0x10] sm:$0xf]
        %v2828 = vld [vmem:[#allocation44 + $0x14] sm:$0xf]
        %v2829 = vld [vmem:[#allocation44 + $0x18] sm:$0xf]
        %v2830 = vld [vmem:[#allocation44 + $0x1c] sm:$0xf]
        %v2831 = vld [vmem:[#allocation44 + $0x20] sm:$0xf]
        %v2832 = vld [vmem:[#allocation44 + $0x24] sm:$0xf]
        %v2833 = vld [vmem:[#allocation44 + $0x28] sm:$0xf]
        %v2834 = vld [vmem:[#allocation44 + $0x2c] sm:$0xf]
        %v2835 = vld [vmem:[#allocation44 + $0x30] sm:$0xf]
        %v2836 = vld [vmem:[#allocation44 + $0x34] sm:$0xf]
        %v2837 = vld [vmem:[#allocation44 + $0x38] sm:$0xf]
        %v2838 = vld [vmem:[#allocation44 + $0x3c] sm:$0xf]
        %v2839 = vld [vmem:[#allocation45] sm:$0xf]
        %v2840 = vld [vmem:[#allocation45 + $0x4] sm:$0xf]
        %v2841 = vld [vmem:[#allocation45 + $0x8] sm:$0xf]
        %v2842 = vld [vmem:[#allocation45 + $0xc] sm:$0xf]
        %v2843 = vld [vmem:[#allocation45 + $0x10] sm:$0xf]
        %v2844 = vld [vmem:[#allocation45 + $0x14] sm:$0xf]
        %v2845 = vld [vmem:[#allocation45 + $0x18] sm:$0xf]
        %v2846 = vld [vmem:[#allocation45 + $0x1c] sm:$0xf]
        %v2847 = vld [vmem:[#allocation45 + $0x20] sm:$0xf]
        %v2848 = vld [vmem:[#allocation45 + $0x24] sm:$0xf]
        %v2849 = vld [vmem:[#allocation45 + $0x28] sm:$0xf]
        %v2850 = vld [vmem:[#allocation45 + $0x2c] sm:$0xf]
        %v2851 = vld [vmem:[#allocation45 + $0x30] sm:$0xf]
        %v2852 = vld [vmem:[#allocation45 + $0x34] sm:$0xf]
        %v2853 = vld [vmem:[#allocation45 + $0x38] sm:$0xf]
        %v2854 = vld [vmem:[#allocation45 + $0x3c] sm:$0xf]
        %v2855 = vld [vmem:[#allocation47] sm:$0x1]
        %v2856 = vld [vmem:[#allocation48] sm:$0x1]
        %v2857 = vld [vmem:[#allocation3] sm:$0x1]
        %v2858 = vld [vmem:[#allocation50] sm:$0xf]
        %v2859 = vld [vmem:[#allocation50 + $0x4] sm:$0xf]
        %v2860 = vld [vmem:[#allocation50 + $0x8] sm:$0xf]
        %v2861 = vld [vmem:[#allocation50 + $0xc] sm:$0xf]
        %v2862 = vld [vmem:[#allocation50 + $0x10] sm:$0xf]
        %v2863 = vld [vmem:[#allocation50 + $0x14] sm:$0xf]
        %v2864 = vld [vmem:[#allocation50 + $0x18] sm:$0xf]
        %v2865 = vld [vmem:[#allocation50 + $0x1c] sm:$0xf]
        %v2866 = vld [vmem:[#allocation50 + $0x20] sm:$0xf]
        %v2867 = vld [vmem:[#allocation50 + $0x24] sm:$0xf]
        %v2868 = vld [vmem:[#allocation50 + $0x28] sm:$0xf]
        %v2869 = vld [vmem:[#allocation50 + $0x2c] sm:$0xf]
        %v2870 = vld [vmem:[#allocation50 + $0x30] sm:$0xf]
        %v2871 = vld [vmem:[#allocation50 + $0x34] sm:$0xf]
        %v2872 = vld [vmem:[#allocation50 + $0x38] sm:$0xf]
        %v2873 = vld [vmem:[#allocation50 + $0x3c] sm:$0xf]
        %v2874 = vld [vmem:[#allocation51] sm:$0x1]
        %v2875 = vld [vmem:[#allocation53] sm:$0xf]
        %v2876 = vld [vmem:[#allocation53 + $0x4] sm:$0xf]
        %v2877 = vld [vmem:[#allocation53 + $0x8] sm:$0xf]
        %v2878 = vld [vmem:[#allocation53 + $0xc] sm:$0xf]
        %v2879 = vld [vmem:[#allocation53 + $0x10] sm:$0xf]
        %v2880 = vld [vmem:[#allocation53 + $0x14] sm:$0xf]
        %v2881 = vld [vmem:[#allocation53 + $0x18] sm:$0xf]
        %v2882 = vld [vmem:[#allocation53 + $0x1c] sm:$0xf]
        %v2883 = vld [vmem:[#allocation53 + $0x20] sm:$0xf]
        %v2884 = vld [vmem:[#allocation53 + $0x24] sm:$0xf]
        %v2885 = vld [vmem:[#allocation53 + $0x28] sm:$0xf]
        %v2886 = vld [vmem:[#allocation53 + $0x2c] sm:$0xf]
        %v2887 = vld [vmem:[#allocation53 + $0x30] sm:$0xf]
        %v2888 = vld [vmem:[#allocation53 + $0x34] sm:$0xf]
        %v2889 = vld [vmem:[#allocation53 + $0x38] sm:$0xf]
        %v2890 = vld [vmem:[#allocation53 + $0x3c] sm:$0xf]
        %v2891 = vld [vmem:[#allocation54] sm:$0xf]
        %v2892 = vld [vmem:[#allocation54 + $0x4] sm:$0xf]
        %v2893 = vld [vmem:[#allocation54 + $0x8] sm:$0xf]
        %v2894 = vld [vmem:[#allocation54 + $0xc] sm:$0xf]
        %v2895 = vld [vmem:[#allocation54 + $0x10] sm:$0xf]
        %v2896 = vld [vmem:[#allocation54 + $0x14] sm:$0xf]
        %v2897 = vld [vmem:[#allocation54 + $0x18] sm:$0xf]
        %v2898 = vld [vmem:[#allocation54 + $0x1c] sm:$0xf]
        %v2899 = vld [vmem:[#allocation54 + $0x20] sm:$0xf]
        %v2900 = vld [vmem:[#allocation54 + $0x24] sm:$0xf]
        %v2901 = vld [vmem:[#allocation54 + $0x28] sm:$0xf]
        %v2902 = vld [vmem:[#allocation54 + $0x2c] sm:$0xf]
        %v2903 = vld [vmem:[#allocation54 + $0x30] sm:$0xf]
        %v2904 = vld [vmem:[#allocation54 + $0x34] sm:$0xf]
        %v2905 = vld [vmem:[#allocation54 + $0x38] sm:$0xf]
        %v2906 = vld [vmem:[#allocation54 + $0x3c] sm:$0xf]
        %v2907 = vld [vmem:[#allocation56] sm:$0x1]
        %v2908 = vld [vmem:[#allocation57] sm:$0x1]
        %v2909 = vld [vmem:[#allocation4] sm:$0x1]
        %v2910 = vld [vmem:[#allocation59] sm:$0xf]
        %v2911 = vld [vmem:[#allocation59 + $0x4] sm:$0xf]
        %v2912 = vld [vmem:[#allocation59 + $0x8] sm:$0xf]
        %v2913 = vld [vmem:[#allocation59 + $0xc] sm:$0xf]
        %v2914 = vld [vmem:[#allocation59 + $0x10] sm:$0xf]
        %v2915 = vld [vmem:[#allocation59 + $0x14] sm:$0xf]
        %v2916 = vld [vmem:[#allocation59 + $0x18] sm:$0xf]
        %v2917 = vld [vmem:[#allocation59 + $0x1c] sm:$0xf]
        %v2918 = vld [vmem:[#allocation59 + $0x20] sm:$0xf]
        %v2919 = vld [vmem:[#allocation59 + $0x24] sm:$0xf]
        %v2920 = vld [vmem:[#allocation59 + $0x28] sm:$0xf]
        %v2921 = vld [vmem:[#allocation59 + $0x2c] sm:$0xf]
        %v2922 = vld [vmem:[#allocation59 + $0x30] sm:$0xf]
        %v2923 = vld [vmem:[#allocation59 + $0x34] sm:$0xf]
        %v2924 = vld [vmem:[#allocation59 + $0x38] sm:$0xf]
        %v2925 = vld [vmem:[#allocation59 + $0x3c] sm:$0xf]
        %v2926 = vld [vmem:[#allocation60] sm:$0x1]
        %v2927 = vld [vmem:[#allocation62] sm:$0xf]
        %v2928 = vld [vmem:[#allocation62 + $0x4] sm:$0xf]
        %v2929 = vld [vmem:[#allocation62 + $0x8] sm:$0xf]
        %v2930 = vld [vmem:[#allocation62 + $0xc] sm:$0xf]
        %v2931 = vld [vmem:[#allocation62 + $0x10] sm:$0xf]
        %v2932 = vld [vmem:[#allocation62 + $0x14] sm:$0xf]
        %v2933 = vld [vmem:[#allocation62 + $0x18] sm:$0xf]
        %v2934 = vld [vmem:[#allocation62 + $0x1c] sm:$0xf]
        %v2935 = vld [vmem:[#allocation62 + $0x20] sm:$0xf]
        %v2936 = vld [vmem:[#allocation62 + $0x24] sm:$0xf]
        %v2937 = vld [vmem:[#allocation62 + $0x28] sm:$0xf]
        %v2938 = vld [vmem:[#allocation62 + $0x2c] sm:$0xf]
        %v2939 = vld [vmem:[#allocation62 + $0x30] sm:$0xf]
        %v2940 = vld [vmem:[#allocation62 + $0x34] sm:$0xf]
        %v2941 = vld [vmem:[#allocation62 + $0x38] sm:$0xf]
        %v2942 = vld [vmem:[#allocation62 + $0x3c] sm:$0xf]
        %v2943 = vld [vmem:[#allocation63] sm:$0xf]
        %v2944 = vld [vmem:[#allocation63 + $0x4] sm:$0xf]
        %v2945 = vld [vmem:[#allocation63 + $0x8] sm:$0xf]
        %v2946 = vld [vmem:[#allocation63 + $0xc] sm:$0xf]
        %v2947 = vld [vmem:[#allocation63 + $0x10] sm:$0xf]
        %v2948 = vld [vmem:[#allocation63 + $0x14] sm:$0xf]
        %v2949 = vld [vmem:[#allocation63 + $0x18] sm:$0xf]
        %v2950 = vld [vmem:[#allocation63 + $0x1c] sm:$0xf]
        %v2951 = vld [vmem:[#allocation63 + $0x20] sm:$0xf]
        %v2952 = vld [vmem:[#allocation63 + $0x24] sm:$0xf]
        %v2953 = vld [vmem:[#allocation63 + $0x28] sm:$0xf]
        %v2954 = vld [vmem:[#allocation63 + $0x2c] sm:$0xf]
        %v2955 = vld [vmem:[#allocation63 + $0x30] sm:$0xf]
        %v2956 = vld [vmem:[#allocation63 + $0x34] sm:$0xf]
        %v2957 = vld [vmem:[#allocation63 + $0x38] sm:$0xf]
        %v2958 = vld [vmem:[#allocation63 + $0x3c] sm:$0xf]
        %v2959 = vld [vmem:[#allocation65] sm:$0x1]
        %v2960 = vld [vmem:[#allocation66] sm:$0x1]
        %v2961 = vld [vmem:[#allocation5] sm:$0x1]
        %v2962 = vld [vmem:[#allocation68] sm:$0xf]
        %v2963 = vld [vmem:[#allocation68 + $0x4] sm:$0xf]
        %v2964 = vld [vmem:[#allocation68 + $0x8] sm:$0xf]
        %v2965 = vld [vmem:[#allocation68 + $0xc] sm:$0xf]
        %v2966 = vld [vmem:[#allocation68 + $0x10] sm:$0xf]
        %v2967 = vld [vmem:[#allocation68 + $0x14] sm:$0xf]
        %v2968 = vld [vmem:[#allocation68 + $0x18] sm:$0xf]
        %v2969 = vld [vmem:[#allocation68 + $0x1c] sm:$0xf]
        %v2970 = vld [vmem:[#allocation68 + $0x20] sm:$0xf]
        %v2971 = vld [vmem:[#allocation68 + $0x24] sm:$0xf]
        %v2972 = vld [vmem:[#allocation68 + $0x28] sm:$0xf]
        %v2973 = vld [vmem:[#allocation68 + $0x2c] sm:$0xf]
        %v2974 = vld [vmem:[#allocation68 + $0x30] sm:$0xf]
        %v2975 = vld [vmem:[#allocation68 + $0x34] sm:$0xf]
        %v2976 = vld [vmem:[#allocation68 + $0x38] sm:$0xf]
        %v2977 = vld [vmem:[#allocation68 + $0x3c] sm:$0xf]
        %v2978 = vld [vmem:[#allocation69] sm:$0x1]
        %v2979 = vld [vmem:[%s101] sm:$0xff]
        %v2980 = vld [vmem:[%s101 + $0x8] sm:$0xff]
        %v2981 = vld [vmem:[%s101 + $0x10] sm:$0xff]
        %v2982 = vld [vmem:[%s101 + $0x18] sm:$0xff]
        %v2983 = vld [vmem:[%s101 + $0x20] sm:$0xff]
        %v2984 = vld [vmem:[%s101 + $0x28] sm:$0xff]
        %v2985 = vld [vmem:[%s101 + $0x30] sm:$0xff]
        %v2986 = vld [vmem:[%s101 + $0x38] sm:$0xff]
        %v2987 = vld [vmem:[%s101 + $0x40] sm:$0xff]
        %v2988 = vld [vmem:[%s101 + $0x48] sm:$0xff]
        %v2989 = vld [vmem:[%s101 + $0x50] sm:$0xff]
        %v2990 = vld [vmem:[%s101 + $0x58] sm:$0xff]
        %v2991 = vld [vmem:[%s101 + $0x60] sm:$0xff]
        %v2992 = vld [vmem:[%s101 + $0x68] sm:$0xff]
        %v2993 = vld [vmem:[%s101 + $0x70] sm:$0xff]
        %v2994 = vld [vmem:[%s101 + $0x78] sm:$0xff]
        %v2995 = vld [vmem:[#allocation71] sm:$0xff]
        %v2996 = vld [vmem:[#allocation71 + $0x8] sm:$0xff]
        %v2997 = vld [vmem:[#allocation71 + $0x10] sm:$0xff]
        %v2998 = vld [vmem:[#allocation71 + $0x18] sm:$0xff]
        %v2999 = vld [vmem:[#allocation71 + $0x20] sm:$0xff]
        %v3000 = vld [vmem:[#allocation71 + $0x28] sm:$0xff]
        %v3001 = vld [vmem:[#allocation71 + $0x30] sm:$0xff]
        %v3002 = vld [vmem:[#allocation71 + $0x38] sm:$0xff]
        %v3003 = vld [vmem:[#allocation71 + $0x40] sm:$0xff]
        %v3004 = vld [vmem:[#allocation71 + $0x48] sm:$0xff]
        %v3005 = vld [vmem:[#allocation71 + $0x50] sm:$0xff]
        %v3006 = vld [vmem:[#allocation71 + $0x58] sm:$0xff]
        %v3007 = vld [vmem:[#allocation71 + $0x60] sm:$0xff]
        %v3008 = vld [vmem:[#allocation71 + $0x68] sm:$0xff]
        %v3009 = vld [vmem:[#allocation71 + $0x70] sm:$0xff]
        %v3010 = vld [vmem:[#allocation71 + $0x78] sm:$0xff]
        %v3011 = vld [vmem:[#allocation72] sm:$0xff]
        %v3012 = vld [vmem:[#allocation72 + $0x8] sm:$0xff]
        %v3013 = vld [vmem:[#allocation72 + $0x10] sm:$0xff]
        %v3014 = vld [vmem:[#allocation72 + $0x18] sm:$0xff]
        %v3015 = vld [vmem:[#allocation72 + $0x20] sm:$0xff]
        %v3016 = vld [vmem:[#allocation72 + $0x28] sm:$0xff]
        %v3017 = vld [vmem:[#allocation72 + $0x30] sm:$0xff]
        %v3018 = vld [vmem:[#allocation72 + $0x38] sm:$0xff]
        %v3019 = vld [vmem:[#allocation72 + $0x40] sm:$0xff]
        %v3020 = vld [vmem:[#allocation72 + $0x48] sm:$0xff]
        %v3021 = vld [vmem:[#allocation72 + $0x50] sm:$0xff]
        %v3022 = vld [vmem:[#allocation72 + $0x58] sm:$0xff]
        %v3023 = vld [vmem:[#allocation72 + $0x60] sm:$0xff]
        %v3024 = vld [vmem:[#allocation72 + $0x68] sm:$0xff]
        %v3025 = vld [vmem:[#allocation72 + $0x70] sm:$0xff]
        %v3026 = vld [vmem:[#allocation72 + $0x78] sm:$0xff]
        %v3027 = vld [vmem:[%s107] sm:$0x3]
        %v3028 = vld [vmem:[#allocation74] sm:$0xf]
        %v3029 = vld [vmem:[#allocation74 + $0x4] sm:$0xf]
        %v3030 = vld [vmem:[#allocation74 + $0x8] sm:$0xf]
        %v3031 = vld [vmem:[#allocation74 + $0xc] sm:$0xf]
        %v3032 = vld [vmem:[#allocation74 + $0x10] sm:$0xf]
        %v3033 = vld [vmem:[#allocation74 + $0x14] sm:$0xf]
        %v3034 = vld [vmem:[#allocation74 + $0x18] sm:$0xf]
        %v3035 = vld [vmem:[#allocation74 + $0x1c] sm:$0xf]
        %v3036 = vld [vmem:[#allocation74 + $0x20] sm:$0xf]
        %v3037 = vld [vmem:[#allocation74 + $0x24] sm:$0xf]
        %v3038 = vld [vmem:[#allocation74 + $0x28] sm:$0xf]
        %v3039 = vld [vmem:[#allocation74 + $0x2c] sm:$0xf]
        %v3040 = vld [vmem:[#allocation74 + $0x30] sm:$0xf]
        %v3041 = vld [vmem:[#allocation74 + $0x34] sm:$0xf]
        %v3042 = vld [vmem:[#allocation74 + $0x38] sm:$0xf]
        %v3043 = vld [vmem:[#allocation74 + $0x3c] sm:$0xf]
        %v3044 = vld [vmem:[#allocation74 + $0x40] sm:$0xf]
        %v3045 = vld [vmem:[#allocation74 + $0x44] sm:$0xf]
        %v3046 = vld [vmem:[#allocation74 + $0x48] sm:$0xf]
        %v3047 = vld [vmem:[#allocation74 + $0x4c] sm:$0xf]
        %v3048 = vld [vmem:[#allocation74 + $0x50] sm:$0xf]
        %v3049 = vld [vmem:[#allocation74 + $0x54] sm:$0xf]
        %v3050 = vld [vmem:[#allocation74 + $0x58] sm:$0xf]
        %v3051 = vld [vmem:[#allocation74 + $0x5c] sm:$0xf]
        %v3052 = vld [vmem:[#allocation74 + $0x60] sm:$0xf]
        %v3053 = vld [vmem:[#allocation74 + $0x64] sm:$0xf]
        %v3054 = vld [vmem:[#allocation74 + $0x68] sm:$0xf]
        %v3055 = vld [vmem:[#allocation74 + $0x6c] sm:$0xf]
        %v3056 = vld [vmem:[#allocation74 + $0x70] sm:$0xf]
        %v3057 = vld [vmem:[#allocation74 + $0x74] sm:$0xf]
        %v3058 = vld [vmem:[#allocation74 + $0x78] sm:$0xf]
        %v3059 = vld [vmem:[#allocation74 + $0x7c] sm:$0xf]
        %v3060 = vld [vmem:[%s111] sm:$0x1]
        %vm3061 = vcmp.gt.s32.totalorder %v2554, 0
        %v3062 = vsel %vm3061, 1, 0
        %v3063 = vcvt.s32.f32 %v3062
        %v3064 = vperm.slane %v3063, 0
        %v3065 = vlaneseq
        %v3066 = vshrl.u32 %v3065, 7
        %3068 = vset.pattern.permute.xlu0 %v3066
        %3069 = vperm.xlu0 %3068, %v3064
        %v3070 = vpop.permute.xlu0 %3069
        %v3071 = vperm.slane %v3063, 1
        %v3072 = vlaneseq
        %v3073 = vshrl.u32 %v3072, 7
        %3075 = vset.pattern.permute.xlu0 %v3073
        %3076 = vperm.xlu0 %3075, %v3071
        %v3077 = vpop.permute.xlu0 %3076
        %v3078 = vperm.slane %v3063, 2
        %v3079 = vlaneseq
        %v3080 = vshrl.u32 %v3079, 7
        %3082 = vset.pattern.permute.xlu0 %v3080
        %3083 = vperm.xlu0 %3082, %v3078
        %v3084 = vpop.permute.xlu0 %3083
        %v3085 = vperm.slane %v3063, 3
        %v3086 = vlaneseq
        %v3087 = vshrl.u32 %v3086, 7
        %3089 = vset.pattern.permute.xlu0 %v3087
        %3090 = vperm.xlu0 %3089, %v3085
        %v3091 = vpop.permute.xlu0 %3090
        %v3092 = vperm.slane %v3063, 4
        %v3093 = vlaneseq
        %v3094 = vshrl.u32 %v3093, 7
        %3096 = vset.pattern.permute.xlu0 %v3094
        %3097 = vperm.xlu0 %3096, %v3092
        %v3098 = vpop.permute.xlu0 %3097
        %v3099 = vperm.slane %v3063, 5
        %v3100 = vlaneseq
        %v3101 = vshrl.u32 %v3100, 7
        %3103 = vset.pattern.permute.xlu0 %v3101
        %3104 = vperm.xlu0 %3103, %v3099
        %v3105 = vpop.permute.xlu0 %3104
        %v3106 = vperm.slane %v3063, 6
        %v3107 = vlaneseq
        %v3108 = vshrl.u32 %v3107, 7
        %3110 = vset.pattern.permute.xlu0 %v3108
        %3111 = vperm.xlu0 %3110, %v3106
        %v3112 = vpop.permute.xlu0 %3111
        %v3113 = vperm.slane %v3063, 7
        %v3114 = vlaneseq
        %v3115 = vshrl.u32 %v3114, 7
        %3117 = vset.pattern.permute.xlu0 %v3115
        %3118 = vperm.xlu0 %3117, %v3113
        %v3119 = vpop.permute.xlu0 %3118
        %vm3120 = vcmp.gt.s32.totalorder %v2555, 0
        %v3121 = vsel %vm3120, 1, 0
        %v3122 = vcvt.s32.f32 %v3121
        %v3123 = vperm.slane %v3122, 0
        %v3124 = vlaneseq
        %v3125 = vshrl.u32 %v3124, 7
        %3127 = vset.pattern.permute.xlu0 %v3125
        %3128 = vperm.xlu0 %3127, %v3123
        %v3129 = vpop.permute.xlu0 %3128
        %v3130 = vperm.slane %v3122, 1
        %v3131 = vlaneseq
        %v3132 = vshrl.u32 %v3131, 7
        %3134 = vset.pattern.permute.xlu0 %v3132
        %3135 = vperm.xlu0 %3134, %v3130
        %v3136 = vpop.permute.xlu0 %3135
        %v3137 = vperm.slane %v3122, 2
        %v3138 = vlaneseq
        %v3139 = vshrl.u32 %v3138, 7
        %3141 = vset.pattern.permute.xlu0 %v3139
        %3142 = vperm.xlu0 %3141, %v3137
        %v3143 = vpop.permute.xlu0 %3142
        %v3144 = vperm.slane %v3122, 3
        %v3145 = vlaneseq
        %v3146 = vshrl.u32 %v3145, 7
        %3148 = vset.pattern.permute.xlu0 %v3146
        %3149 = vperm.xlu0 %3148, %v3144
        %v3150 = vpop.permute.xlu0 %3149
        %v3151 = vperm.slane %v3122, 4
        %v3152 = vlaneseq
        %v3153 = vshrl.u32 %v3152, 7
        %3155 = vset.pattern.permute.xlu0 %v3153
        %3156 = vperm.xlu0 %3155, %v3151
        %v3157 = vpop.permute.xlu0 %3156
        %v3158 = vperm.slane %v3122, 5
        %v3159 = vlaneseq
        %v3160 = vshrl.u32 %v3159, 7
        %3162 = vset.pattern.permute.xlu0 %v3160
        %3163 = vperm.xlu0 %3162, %v3158
        %v3164 = vpop.permute.xlu0 %3163
        %v3165 = vperm.slane %v3122, 6
        %v3166 = vlaneseq
        %v3167 = vshrl.u32 %v3166, 7
        %3169 = vset.pattern.permute.xlu0 %v3167
        %3170 = vperm.xlu0 %3169, %v3165
        %v3171 = vpop.permute.xlu0 %3170
        %v3172 = vperm.slane %v3122, 7
        %v3173 = vlaneseq
        %v3174 = vshrl.u32 %v3173, 7
        %3176 = vset.pattern.permute.xlu0 %v3174
        %3177 = vperm.xlu0 %3176, %v3172
        %v3178 = vpop.permute.xlu0 %3177
        %vm3179 = vcmp.gt.s32.totalorder %v2556, 0
        %vm3180 = vcmp.gt.s32.totalorder %v2557, 0
        %vm3181 = vcmp.gt.s32.totalorder %v2558, 0
        %vm3182 = vcmp.gt.s32.totalorder %v2559, 0
        %vm3183 = vcmp.gt.s32.totalorder %v2560, 0
        %vm3184 = vcmp.gt.s32.totalorder %v2561, 0
        %vm3185 = vcmp.gt.s32.totalorder %v2562, 0
        %vm3186 = vcmp.gt.s32.totalorder %v2563, 0
        %v3187 = vsel %vm3179, 1, 0
        %v3188 = vsel %vm3180, 1, 0
        %v3189 = vsel %vm3181, 1, 0
        %v3190 = vsel %vm3182, 1, 0
        %v3191 = vsel %vm3183, 1, 0
        %v3192 = vsel %vm3184, 1, 0
        %v3193 = vsel %vm3185, 1, 0
        %v3194 = vsel %vm3186, 1, 0
        %v3195 = vcvt.s32.f32 %v3187
        %v3196 = vcvt.s32.f32 %v3188
        %v3197 = vcvt.s32.f32 %v3189
        %v3198 = vcvt.s32.f32 %v3190
        %v3199 = vcvt.s32.f32 %v3191
        %v3200 = vcvt.s32.f32 %v3192
        %v3201 = vcvt.s32.f32 %v3193
        %v3202 = vcvt.s32.f32 %v3194
        %v3203 = vperm.slane %v3195, 0
        %v3204 = vlaneseq
        %v3205 = vshrl.u32 %v3204, 7
        %3207 = vset.pattern.permute.xlu0 %v3205
        %3208 = vperm.xlu0 %3207, %v3203
        %v3209 = vpop.permute.xlu0 %3208
        %v3210 = vperm.slane %v3195, 1
        %v3211 = vlaneseq
        %v3212 = vshrl.u32 %v3211, 7
        %3214 = vset.pattern.permute.xlu0 %v3212
        %3215 = vperm.xlu0 %3214, %v3210
        %v3216 = vpop.permute.xlu0 %3215
        %v3217 = vperm.slane %v3195, 2
        %v3218 = vlaneseq
        %v3219 = vshrl.u32 %v3218, 7
        %3221 = vset.pattern.permute.xlu0 %v3219
        %3222 = vperm.xlu0 %3221, %v3217
        %v3223 = vpop.permute.xlu0 %3222
        %v3224 = vperm.slane %v3195, 3
        %v3225 = vlaneseq
        %v3226 = vshrl.u32 %v3225, 7
        %3228 = vset.pattern.permute.xlu0 %v3226
        %3229 = vperm.xlu0 %3228, %v3224
        %v3230 = vpop.permute.xlu0 %3229
        %v3231 = vperm.slane %v3196, 0
        %v3232 = vlaneseq
        %v3233 = vshrl.u32 %v3232, 7
        %3235 = vset.pattern.permute.xlu0 %v3233
        %3236 = vperm.xlu0 %3235, %v3231
        %v3237 = vpop.permute.xlu0 %3236
        %v3238 = vperm.slane %v3196, 1
        %v3239 = vlaneseq
        %v3240 = vshrl.u32 %v3239, 7
        %3242 = vset.pattern.permute.xlu0 %v3240
        %3243 = vperm.xlu0 %3242, %v3238
        %v3244 = vpop.permute.xlu0 %3243
        %v3245 = vperm.slane %v3196, 2
        %v3246 = vlaneseq
        %v3247 = vshrl.u32 %v3246, 7
        %3249 = vset.pattern.permute.xlu0 %v3247
        %3250 = vperm.xlu0 %3249, %v3245
        %v3251 = vpop.permute.xlu0 %3250
        %v3252 = vperm.slane %v3196, 3
        %v3253 = vlaneseq
        %v3254 = vshrl.u32 %v3253, 7
        %3256 = vset.pattern.permute.xlu0 %v3254
        %3257 = vperm.xlu0 %3256, %v3252
        %v3258 = vpop.permute.xlu0 %3257
        %v3259 = vperm.slane %v3197, 0
        %v3260 = vlaneseq
        %v3261 = vshrl.u32 %v3260, 7
        %3263 = vset.pattern.permute.xlu0 %v3261
        %3264 = vperm.xlu0 %3263, %v3259
        %v3265 = vpop.permute.xlu0 %3264
        %v3266 = vperm.slane %v3197, 1
        %v3267 = vlaneseq
        %v3268 = vshrl.u32 %v3267, 7
        %3270 = vset.pattern.permute.xlu0 %v3268
        %3271 = vperm.xlu0 %3270, %v3266
        %v3272 = vpop.permute.xlu0 %3271
        %v3273 = vperm.slane %v3197, 2
        %v3274 = vlaneseq
        %v3275 = vshrl.u32 %v3274, 7
        %3277 = vset.pattern.permute.xlu0 %v3275
        %3278 = vperm.xlu0 %3277, %v3273
        %v3279 = vpop.permute.xlu0 %3278
        %v3280 = vperm.slane %v3197, 3
        %v3281 = vlaneseq
        %v3282 = vshrl.u32 %v3281, 7
        %3284 = vset.pattern.permute.xlu0 %v3282
        %3285 = vperm.xlu0 %3284, %v3280
        %v3286 = vpop.permute.xlu0 %3285
        %v3287 = vperm.slane %v3198, 0
        %v3288 = vlaneseq
        %v3289 = vshrl.u32 %v3288, 7
        %3291 = vset.pattern.permute.xlu0 %v3289
        %3292 = vperm.xlu0 %3291, %v3287
        %v3293 = vpop.permute.xlu0 %3292
        %v3294 = vperm.slane %v3198, 1
        %v3295 = vlaneseq
        %v3296 = vshrl.u32 %v3295, 7
        %3298 = vset.pattern.permute.xlu0 %v3296
        %3299 = vperm.xlu0 %3298, %v3294
        %v3300 = vpop.permute.xlu0 %3299
        %v3301 = vperm.slane %v3198, 2
        %v3302 = vlaneseq
        %v3303 = vshrl.u32 %v3302, 7
        %3305 = vset.pattern.permute.xlu0 %v3303
        %3306 = vperm.xlu0 %3305, %v3301
        %v3307 = vpop.permute.xlu0 %3306
        %v3308 = vperm.slane %v3198, 3
        %v3309 = vlaneseq
        %v3310 = vshrl.u32 %v3309, 7
        %3312 = vset.pattern.permute.xlu0 %v3310
        %3313 = vperm.xlu0 %3312, %v3308
        %v3314 = vpop.permute.xlu0 %3313
        %v3315 = vperm.slane %v3199, 0
        %v3316 = vlaneseq
        %v3317 = vshrl.u32 %v3316, 7
        %3319 = vset.pattern.permute.xlu0 %v3317
        %3320 = vperm.xlu0 %3319, %v3315
        %v3321 = vpop.permute.xlu0 %3320
        %v3322 = vperm.slane %v3199, 1
        %v3323 = vlaneseq
        %v3324 = vshrl.u32 %v3323, 7
        %3326 = vset.pattern.permute.xlu0 %v3324
        %3327 = vperm.xlu0 %3326, %v3322
        %v3328 = vpop.permute.xlu0 %3327
        %v3329 = vperm.slane %v3199, 2
        %v3330 = vlaneseq
        %v3331 = vshrl.u32 %v3330, 7
        %3333 = vset.pattern.permute.xlu0 %v3331
        %3334 = vperm.xlu0 %3333, %v3329
        %v3335 = vpop.permute.xlu0 %3334
        %v3336 = vperm.slane %v3199, 3
        %v3337 = vlaneseq
        %v3338 = vshrl.u32 %v3337, 7
        %3340 = vset.pattern.permute.xlu0 %v3338
        %3341 = vperm.xlu0 %3340, %v3336
        %v3342 = vpop.permute.xlu0 %3341
        %v3343 = vperm.slane %v3200, 0
        %v3344 = vlaneseq
        %v3345 = vshrl.u32 %v3344, 7
        %3347 = vset.pattern.permute.xlu0 %v3345
        %3348 = vperm.xlu0 %3347, %v3343
        %v3349 = vpop.permute.xlu0 %3348
        %v3350 = vperm.slane %v3200, 1
        %v3351 = vlaneseq
        %v3352 = vshrl.u32 %v3351, 7
        %3354 = vset.pattern.permute.xlu0 %v3352
        %3355 = vperm.xlu0 %3354, %v3350
        %v3356 = vpop.permute.xlu0 %3355
        %v3357 = vperm.slane %v3200, 2
        %v3358 = vlaneseq
        %v3359 = vshrl.u32 %v3358, 7
        %3361 = vset.pattern.permute.xlu0 %v3359
        %3362 = vperm.xlu0 %3361, %v3357
        %v3363 = vpop.permute.xlu0 %3362
        %v3364 = vperm.slane %v3200, 3
        %v3365 = vlaneseq
        %v3366 = vshrl.u32 %v3365, 7
        %3368 = vset.pattern.permute.xlu0 %v3366
        %3369 = vperm.xlu0 %3368, %v3364
        %v3370 = vpop.permute.xlu0 %3369
        %v3371 = vperm.slane %v3201, 0
        %v3372 = vlaneseq
        %v3373 = vshrl.u32 %v3372, 7
        %3375 = vset.pattern.permute.xlu0 %v3373
        %3376 = vperm.xlu0 %3375, %v3371
        %v3377 = vpop.permute.xlu0 %3376
        %v3378 = vperm.slane %v3201, 1
        %v3379 = vlaneseq
        %v3380 = vshrl.u32 %v3379, 7
        %3382 = vset.pattern.permute.xlu0 %v3380
        %3383 = vperm.xlu0 %3382, %v3378
        %v3384 = vpop.permute.xlu0 %3383
        %v3385 = vperm.slane %v3201, 2
        %v3386 = vlaneseq
        %v3387 = vshrl.u32 %v3386, 7
        %3389 = vset.pattern.permute.xlu0 %v3387
        %3390 = vperm.xlu0 %3389, %v3385
        %v3391 = vpop.permute.xlu0 %3390
        %v3392 = vperm.slane %v3201, 3
        %v3393 = vlaneseq
        %v3394 = vshrl.u32 %v3393, 7
        %3396 = vset.pattern.permute.xlu0 %v3394
        %3397 = vperm.xlu0 %3396, %v3392
        %v3398 = vpop.permute.xlu0 %3397
        %v3399 = vperm.slane %v3202, 0
        %v3400 = vlaneseq
        %v3401 = vshrl.u32 %v3400, 7
        %3403 = vset.pattern.permute.xlu0 %v3401
        %3404 = vperm.xlu0 %3403, %v3399
        %v3405 = vpop.permute.xlu0 %3404
        %v3406 = vperm.slane %v3202, 1
        %v3407 = vlaneseq
        %v3408 = vshrl.u32 %v3407, 7
        %3410 = vset.pattern.permute.xlu0 %v3408
        %3411 = vperm.xlu0 %3410, %v3406
        %v3412 = vpop.permute.xlu0 %3411
        %v3413 = vperm.slane %v3202, 2
        %v3414 = vlaneseq
        %v3415 = vshrl.u32 %v3414, 7
        %3417 = vset.pattern.permute.xlu0 %v3415
        %3418 = vperm.xlu0 %3417, %v3413
        %v3419 = vpop.permute.xlu0 %3418
        %v3420 = vperm.slane %v3202, 3
        %v3421 = vlaneseq
        %v3422 = vshrl.u32 %v3421, 7
        %3424 = vset.pattern.permute.xlu0 %v3422
        %3425 = vperm.xlu0 %3424, %v3420
        %v3426 = vpop.permute.xlu0 %3425
        %v3443 = vunpack.c.l.b16 %v2653
        %v3444 = vunpack.c.l.b16 %v2654
        %v3445 = vunpack.c.l.b16 %v2655
        %v3446 = vunpack.c.l.b16 %v2656
        %v3447 = vunpack.c.l.b16 %v2657
        %v3448 = vunpack.c.l.b16 %v2658
        %v3449 = vunpack.c.l.b16 %v2659
        %v3450 = vunpack.c.l.b16 %v2660
        %v3451 = vunpack.c.l.b16 %v2661
        %v3452 = vunpack.c.l.b16 %v2662
        %v3453 = vunpack.c.l.b16 %v2663
        %v3454 = vunpack.c.l.b16 %v2664
        %v3455 = vunpack.c.l.b16 %v2665
        %v3456 = vunpack.c.l.b16 %v2666
        %v3457 = vunpack.c.l.b16 %v2667
        %v3458 = vunpack.c.l.b16 %v2668
        %v3459 = vpack.c.b16 %v3444, %v3443
        %v3460 = vpack.c.b16 %v3446, %v3445
        %v3461 = vpack.c.b16 %v3448, %v3447
        %v3462 = vpack.c.b16 %v3450, %v3449
        %v3463 = vpack.c.b16 %v3452, %v3451
        %v3464 = vpack.c.b16 %v3454, %v3453
        %v3465 = vpack.c.b16 %v3456, %v3455
        %v3466 = vpack.c.b16 %v3458, %v3457
        %3475 = vmatpush.bf16.msra.mxu0 %v3466
        %3476 = vmatpush.bf16.msra.mxu0 %v3465
        %3477 = vmatpush.bf16.msra.mxu0 %v3464
        %3478 = vmatpush.bf16.msra.mxu0 %v3463
        %3479 = vmatpush.bf16.msra.mxu0 %v3462
        %3480 = vmatpush.bf16.msra.mxu0 %v3461
        %3481 = vmatpush.bf16.msra.mxu0 %v3460
        %3482 = vmatpush.bf16.msra.mxu0 %v3459
        %3483 = vmatmul.bf16.gmra.mxu0 %v2564
        %v3484 = vpop.f32.mrf.mxu0
        %v3485 = vadd.f32 0.0, %v3484
        %v3486 = vpop.f32.mrf.mxu0
        %3487 = vdwg.mxu0
        %v3504 = vunpack.c.l.b16 %v2670
        %v3505 = vunpack.c.l.b16 %v2671
        %v3506 = vunpack.c.l.b16 %v2672
        %v3507 = vunpack.c.l.b16 %v2673
        %v3508 = vunpack.c.l.b16 %v2674
        %v3509 = vunpack.c.l.b16 %v2675
        %v3510 = vunpack.c.l.b16 %v2676
        %v3511 = vunpack.c.l.b16 %v2677
        %v3512 = vunpack.c.l.b16 %v2678
        %v3513 = vunpack.c.l.b16 %v2679
        %v3514 = vunpack.c.l.b16 %v2680
        %v3515 = vunpack.c.l.b16 %v2681
        %v3516 = vunpack.c.l.b16 %v2682
        %v3517 = vunpack.c.l.b16 %v2683
        %v3518 = vunpack.c.l.b16 %v2684
        %v3519 = vunpack.c.l.b16 %v2685
        %v3520 = vpack.c.b16 %v3505, %v3504
        %v3521 = vpack.c.b16 %v3507, %v3506
        %v3522 = vpack.c.b16 %v3509, %v3508
        %v3523 = vpack.c.b16 %v3511, %v3510
        %v3524 = vpack.c.b16 %v3513, %v3512
        %v3525 = vpack.c.b16 %v3515, %v3514
        %v3526 = vpack.c.b16 %v3517, %v3516
        %v3527 = vpack.c.b16 %v3519, %v3518
        %3536 = vmatpush.bf16.msra.mxu0 %v3527
        %3537 = vmatpush.bf16.msra.mxu0 %v3526
        %3538 = vmatpush.bf16.msra.mxu0 %v3525
        %3539 = vmatpush.bf16.msra.mxu0 %v3524
        %3540 = vmatpush.bf16.msra.mxu0 %v3523
        %3541 = vmatpush.bf16.msra.mxu0 %v3522
        %3542 = vmatpush.bf16.msra.mxu0 %v3521
        %3543 = vmatpush.bf16.msra.mxu0 %v3520
        %3544 = vmatmul.bf16.gmra.mxu0 %v2564
        %v3545 = vpop.f32.mrf.mxu0
        %v3546 = vadd.f32 0.0, %v3545
        %v3547 = vpop.f32.mrf.mxu0
        %3548 = vdwg.mxu0
        %v3565 = vunpack.c.l.b16 %v2704
        %v3566 = vunpack.c.l.b16 %v2705
        %v3567 = vunpack.c.l.b16 %v2706
        %v3568 = vunpack.c.l.b16 %v2707
        %v3569 = vunpack.c.l.b16 %v2708
        %v3570 = vunpack.c.l.b16 %v2709
        %v3571 = vunpack.c.l.b16 %v2710
        %v3572 = vunpack.c.l.b16 %v2711
        %v3573 = vunpack.c.l.b16 %v2712
        %v3574 = vunpack.c.l.b16 %v2713
        %v3575 = vunpack.c.l.b16 %v2714
        %v3576 = vunpack.c.l.b16 %v2715
        %v3577 = vunpack.c.l.b16 %v2716
        %v3578 = vunpack.c.l.b16 %v2717
        %v3579 = vunpack.c.l.b16 %v2718
        %v3580 = vunpack.c.l.b16 %v2719
        %v3581 = vpack.c.b16 %v3566, %v3565
        %v3582 = vpack.c.b16 %v3568, %v3567
        %v3583 = vpack.c.b16 %v3570, %v3569
        %v3584 = vpack.c.b16 %v3572, %v3571
        %v3585 = vpack.c.b16 %v3574, %v3573
        %v3586 = vpack.c.b16 %v3576, %v3575
        %v3587 = vpack.c.b16 %v3578, %v3577
        %v3588 = vpack.c.b16 %v3580, %v3579
        %3597 = vmatpush.bf16.msra.mxu0 %v3588
        %3598 = vmatpush.bf16.msra.mxu0 %v3587
        %3599 = vmatpush.bf16.msra.mxu0 %v3586
        %3600 = vmatpush.bf16.msra.mxu0 %v3585
        %3601 = vmatpush.bf16.msra.mxu0 %v3584
        %3602 = vmatpush.bf16.msra.mxu0 %v3583
        %3603 = vmatpush.bf16.msra.mxu0 %v3582
        %3604 = vmatpush.bf16.msra.mxu0 %v3581
        %3605 = vmatmul.bf16.gmra.mxu0 %v2564
        %v3606 = vpop.f32.mrf.mxu0
        %v3607 = vadd.f32 0.0, %v3606
        %v3608 = vpop.f32.mrf.mxu0
        %3609 = vdwg.mxu0
        %3611 = vst [vmem:[#allocation1] ss:$4 sm:$0xff] %v2581
        %s3613 = scalar_lea.vmem [#allocation1], 1
        %3614 = vst [vmem:[%s3613] ss:$4 sm:$0xff] %v2582
        %s3616 = scalar_lea.vmem [#allocation1], 2
        %3617 = vst [vmem:[%s3616] ss:$4 sm:$0xff] %v2583
        %s3619 = scalar_lea.vmem [#allocation1], 3
        %3620 = vst [vmem:[%s3619] ss:$4 sm:$0xff] %v2584
        %s3622 = scalar_lea.vmem [#allocation1], 32
        %3623 = vst [vmem:[%s3622] ss:$4 sm:$0xff] %v2585
        %s3625 = scalar_lea.vmem [#allocation1], 33
        %3626 = vst [vmem:[%s3625] ss:$4 sm:$0xff] %v2586
        %s3628 = scalar_lea.vmem [#allocation1], 34
        %3629 = vst [vmem:[%s3628] ss:$4 sm:$0xff] %v2587
        %s3631 = scalar_lea.vmem [#allocation1], 35
        %3632 = vst [vmem:[%s3631] ss:$4 sm:$0xff] %v2588
        %v3633 = vld.sshfl [vmem:[#allocation1] sm:$0xff pattern:$0x73625140]
        %v3634 = vld.sshfl [vmem:[#allocation1 + $0x20] sm:$0xff pattern:$0x73625140]
        %v3653 = vunpack.c.l.b16 %v2687
        %v3654 = vunpack.c.l.b16 %v2688
        %v3655 = vunpack.c.l.b16 %v2689
        %v3656 = vunpack.c.l.b16 %v2690
        %v3657 = vunpack.c.l.b16 %v2691
        %v3658 = vunpack.c.l.b16 %v2692
        %v3659 = vunpack.c.l.b16 %v2693
        %v3660 = vunpack.c.l.b16 %v2694
        %v3661 = vunpack.c.l.b16 %v2695
        %v3662 = vunpack.c.l.b16 %v2696
        %v3663 = vunpack.c.l.b16 %v2697
        %v3664 = vunpack.c.l.b16 %v2698
        %v3665 = vunpack.c.l.b16 %v2699
        %v3666 = vunpack.c.l.b16 %v2700
        %v3667 = vunpack.c.l.b16 %v2701
        %v3668 = vunpack.c.l.b16 %v2702
        %v3669 = vpack.c.b16 %v3654, %v3653
        %v3670 = vpack.c.b16 %v3656, %v3655
        %v3671 = vpack.c.b16 %v3658, %v3657
        %v3672 = vpack.c.b16 %v3660, %v3659
        %v3673 = vpack.c.b16 %v3662, %v3661
        %v3674 = vpack.c.b16 %v3664, %v3663
        %v3675 = vpack.c.b16 %v3666, %v3665
        %v3676 = vpack.c.b16 %v3668, %v3667
        %3685 = vmatpush.bf16.msra.mxu0 %v3676
        %3686 = vmatpush.bf16.msra.mxu0 %v3675
        %3687 = vmatpush.bf16.msra.mxu0 %v3674
        %3688 = vmatpush.bf16.msra.mxu0 %v3673
        %3689 = vmatpush.bf16.msra.mxu0 %v3672
        %3690 = vmatpush.bf16.msra.mxu0 %v3671
        %3691 = vmatpush.bf16.msra.mxu0 %v3670
        %3692 = vmatpush.bf16.msra.mxu0 %v3669
        %3693 = vmatmul.bf16.gmra.mxu0 %v3633
        %v3694 = vpop.f32.mrf.mxu0
        %v3695 = vadd.f32 0.0, %v3694
        %v3696 = vpop.f32.mrf.mxu0
        %v3697 = vadd.f32 0.0, %v3696
        %3698 = vmatmul.bf16.gmra.mxu0 %v3634
        %v3699 = vpop.f32.mrf.mxu0
        %v3700 = vadd.f32 0.0, %v3699
        %v3701 = vpop.f32.mrf.mxu0
        %v3702 = vadd.f32 0.0, %v3701
        %3703 = vdwg.mxu0
        %v3712 = vunpack.c.l.b16 %v2573
        %v3713 = vunpack.c.l.b16 %v2574
        %v3714 = vunpack.c.l.b16 %v2575
        %v3715 = vunpack.c.l.b16 %v2576
        %v3716 = vunpack.c.l.b16 %v2577
        %v3717 = vunpack.c.l.b16 %v2578
        %v3718 = vunpack.c.l.b16 %v2579
        %v3719 = vunpack.c.l.b16 %v2580
        %v3720 = vpack.c.b16 %v3713, %v3712
        %v3721 = vpack.c.b16 %v3715, %v3714
        %v3722 = vpack.c.b16 %v3717, %v3716
        %v3723 = vpack.c.b16 %v3719, %v3718
        %v3744 = vunpack.c.l.b16 %v2737
        %v3745 = vunpack.c.l.b16 %v2738
        %v3746 = vunpack.c.l.b16 %v2739
        %v3747 = vunpack.c.l.b16 %v2740
        %v3748 = vunpack.c.l.b16 %v2741
        %v3749 = vunpack.c.l.b16 %v2742
        %v3750 = vunpack.c.l.b16 %v2743
        %v3751 = vunpack.c.l.b16 %v2744
        %v3752 = vunpack.c.l.b16 %v2745
        %v3753 = vunpack.c.l.b16 %v2746
        %v3754 = vunpack.c.l.b16 %v2747
        %v3755 = vunpack.c.l.b16 %v2748
        %v3756 = vunpack.c.l.b16 %v2749
        %v3757 = vunpack.c.l.b16 %v2750
        %v3758 = vunpack.c.l.b16 %v2751
        %v3759 = vunpack.c.l.b16 %v2752
        %v3760 = vpack.c.b16 %v3745, %v3744
        %v3761 = vpack.c.b16 %v3747, %v3746
        %v3762 = vpack.c.b16 %v3749, %v3748
        %v3763 = vpack.c.b16 %v3751, %v3750
        %v3764 = vpack.c.b16 %v3753, %v3752
        %v3765 = vpack.c.b16 %v3755, %v3754
        %v3766 = vpack.c.b16 %v3757, %v3756
        %v3767 = vpack.c.b16 %v3759, %v3758
        %3776 = vmatpush.bf16.msra.mxu0 %v3767
        %3777 = vmatpush.bf16.msra.mxu0 %v3766
        %3778 = vmatpush.bf16.msra.mxu0 %v3765
        %3779 = vmatpush.bf16.msra.mxu0 %v3764
        %3780 = vmatpush.bf16.msra.mxu0 %v3763
        %3781 = vmatpush.bf16.msra.mxu0 %v3762
        %3782 = vmatpush.bf16.msra.mxu0 %v3761
        %3783 = vmatpush.bf16.msra.mxu0 %v3760
        %3784 = vmatmul.bf16.gmra.mxu0 %v3720
        %v3785 = vpop.f32.mrf.mxu0
        %v3786 = vadd.f32 0.0, %v3785
        %v3787 = vpop.f32.mrf.mxu0
        %v3788 = vadd.f32 0.0, %v3787
        %3789 = vmatmul.bf16.gmra.mxu0 %v3721
        %v3790 = vpop.f32.mrf.mxu0
        %v3791 = vadd.f32 0.0, %v3790
        %v3792 = vpop.f32.mrf.mxu0
        %v3793 = vadd.f32 0.0, %v3792
        %3794 = vmatmul.bf16.gmra.mxu0 %v3722
        %v3795 = vpop.f32.mrf.mxu0
        %v3796 = vadd.f32 0.0, %v3795
        %v3797 = vpop.f32.mrf.mxu0
        %v3798 = vadd.f32 0.0, %v3797
        %3799 = vmatmul.bf16.gmra.mxu0 %v3723
        %v3800 = vpop.f32.mrf.mxu0
        %v3801 = vadd.f32 0.0, %v3800
        %v3802 = vpop.f32.mrf.mxu0
        %v3803 = vadd.f32 0.0, %v3802
        %3804 = vdwg.mxu0
        %v3813 = vunpack.c.l.b16 %v2565
        %v3814 = vunpack.c.l.b16 %v2566
        %v3815 = vunpack.c.l.b16 %v2567
        %v3816 = vunpack.c.l.b16 %v2568
        %v3817 = vunpack.c.l.b16 %v2569
        %v3818 = vunpack.c.l.b16 %v2570
        %v3819 = vunpack.c.l.b16 %v2571
        %v3820 = vunpack.c.l.b16 %v2572
        %v3821 = vpack.c.b16 %v3814, %v3813
        %v3822 = vpack.c.b16 %v3816, %v3815
        %v3823 = vpack.c.b16 %v3818, %v3817
        %v3824 = vpack.c.b16 %v3820, %v3819
        %v3845 = vunpack.c.l.b16 %v2721
        %v3846 = vunpack.c.l.b16 %v2722
        %v3847 = vunpack.c.l.b16 %v2723
        %v3848 = vunpack.c.l.b16 %v2724
        %v3849 = vunpack.c.l.b16 %v2725
        %v3850 = vunpack.c.l.b16 %v2726
        %v3851 = vunpack.c.l.b16 %v2727
        %v3852 = vunpack.c.l.b16 %v2728
        %v3853 = vunpack.c.l.b16 %v2729
        %v3854 = vunpack.c.l.b16 %v2730
        %v3855 = vunpack.c.l.b16 %v2731
        %v3856 = vunpack.c.l.b16 %v2732
        %v3857 = vunpack.c.l.b16 %v2733
        %v3858 = vunpack.c.l.b16 %v2734
        %v3859 = vunpack.c.l.b16 %v2735
        %v3860 = vunpack.c.l.b16 %v2736
        %v3861 = vpack.c.b16 %v3846, %v3845
        %v3862 = vpack.c.b16 %v3848, %v3847
        %v3863 = vpack.c.b16 %v3850, %v3849
        %v3864 = vpack.c.b16 %v3852, %v3851
        %v3865 = vpack.c.b16 %v3854, %v3853
        %v3866 = vpack.c.b16 %v3856, %v3855
        %v3867 = vpack.c.b16 %v3858, %v3857
        %v3868 = vpack.c.b16 %v3860, %v3859
        %3877 = vmatpush.bf16.msra.mxu0 %v3868
        %3878 = vmatpush.bf16.msra.mxu0 %v3867
        %3879 = vmatpush.bf16.msra.mxu0 %v3866
        %3880 = vmatpush.bf16.msra.mxu0 %v3865
        %3881 = vmatpush.bf16.msra.mxu0 %v3864
        %3882 = vmatpush.bf16.msra.mxu0 %v3863
        %3883 = vmatpush.bf16.msra.mxu0 %v3862
        %3884 = vmatpush.bf16.msra.mxu0 %v3861
        %3885 = vmatmul.bf16.gmra.mxu0 %v3821
        %v3886 = vpop.f32.mrf.mxu0
        %v3887 = vadd.f32 %v3786, %v3886
        %v3888 = vpop.f32.mrf.mxu0
        %v3889 = vadd.f32 %v3788, %v3888
        %3890 = vmatmul.bf16.gmra.mxu0 %v3822
        %v3891 = vpop.f32.mrf.mxu0
        %v3892 = vadd.f32 %v3791, %v3891
        %v3893 = vpop.f32.mrf.mxu0
        %v3894 = vadd.f32 %v3793, %v3893
        %3895 = vmatmul.bf16.gmra.mxu0 %v3823
        %v3896 = vpop.f32.mrf.mxu0
        %v3897 = vadd.f32 %v3796, %v3896
        %v3898 = vpop.f32.mrf.mxu0
        %v3899 = vadd.f32 %v3798, %v3898
        %3900 = vmatmul.bf16.gmra.mxu0 %v3824
        %v3901 = vpop.f32.mrf.mxu0
        %v3902 = vadd.f32 %v3801, %v3901
        %v3903 = vpop.f32.mrf.mxu0
        %v3904 = vadd.f32 %v3803, %v3903
        %3905 = vdwg.mxu0
        %v3907 = vperm.slane %v2753, 0
        %v3909 = vadd.f32 %v3887, %v3907
        %v3910 = vadd.f32 %v3889, %v3907
        %v3911 = vadd.f32 %v3892, %v3907
        %v3912 = vadd.f32 %v3894, %v3907
        %v3913 = vadd.f32 %v3897, %v3907
        %v3914 = vadd.f32 %v3899, %v3907
        %v3915 = vadd.f32 %v3902, %v3907
        %v3916 = vadd.f32 %v3904, %v3907
        %vm3917 = vcmp.gt.f32.partialorder %v3909, 0.0
        %vm3918 = vcmp.gt.f32.partialorder %v3910, 0.0
        %vm3919 = vcmp.gt.f32.partialorder %v3911, 0.0
        %vm3920 = vcmp.gt.f32.partialorder %v3912, 0.0
        %vm3921 = vcmp.gt.f32.partialorder %v3913, 0.0
        %vm3922 = vcmp.gt.f32.partialorder %v3914, 0.0
        %vm3923 = vcmp.gt.f32.partialorder %v3915, 0.0
        %vm3924 = vcmp.gt.f32.partialorder %v3916, 0.0
        %v3925 = vmul.f32 %v3909, 0.2
        %v3926 = vmul.f32 %v3910, 0.2
        %v3927 = vmul.f32 %v3911, 0.2
        %v3928 = vmul.f32 %v3912, 0.2
        %v3929 = vmul.f32 %v3913, 0.2
        %v3930 = vmul.f32 %v3914, 0.2
        %v3931 = vmul.f32 %v3915, 0.2
        %v3932 = vmul.f32 %v3916, 0.2
        %v3933 = vsel %vm3917, %v3909, %v3925
        %v3934 = vsel %vm3918, %v3910, %v3926
        %v3935 = vsel %vm3919, %v3911, %v3927
        %v3936 = vsel %vm3920, %v3912, %v3928
        %v3937 = vsel %vm3921, %v3913, %v3929
        %v3938 = vsel %vm3922, %v3914, %v3930
        %v3939 = vsel %vm3923, %v3915, %v3931
        %v3940 = vsel %vm3924, %v3916, %v3932
        %v3941 = vpack.c.bf16 %v3934, %v3933
        %v3942 = vpack.c.bf16 %v3936, %v3935
        %v3943 = vpack.c.bf16 %v3938, %v3937
        %v3944 = vpack.c.bf16 %v3940, %v3939
        %v3946 = vperm.slane %v2770, 0
        %v3964 = vunpack.c.l.b16 %v2754
        %v3965 = vunpack.c.l.b16 %v2755
        %v3966 = vunpack.c.l.b16 %v2756
        %v3967 = vunpack.c.l.b16 %v2757
        %v3968 = vunpack.c.l.b16 %v2758
        %v3969 = vunpack.c.l.b16 %v2759
        %v3970 = vunpack.c.l.b16 %v2760
        %v3971 = vunpack.c.l.b16 %v2761
        %v3972 = vunpack.c.l.b16 %v2762
        %v3973 = vunpack.c.l.b16 %v2763
        %v3974 = vunpack.c.l.b16 %v2764
        %v3975 = vunpack.c.l.b16 %v2765
        %v3976 = vunpack.c.l.b16 %v2766
        %v3977 = vunpack.c.l.b16 %v2767
        %v3978 = vunpack.c.l.b16 %v2768
        %v3979 = vunpack.c.l.b16 %v2769
        %v3980 = vpack.c.b16 %v3965, %v3964
        %v3981 = vpack.c.b16 %v3967, %v3966
        %v3982 = vpack.c.b16 %v3969, %v3968
        %v3983 = vpack.c.b16 %v3971, %v3970
        %v3984 = vpack.c.b16 %v3973, %v3972
        %v3985 = vpack.c.b16 %v3975, %v3974
        %v3986 = vpack.c.b16 %v3977, %v3976
        %v3987 = vpack.c.b16 %v3979, %v3978
        %3996 = vmatpush.bf16.msra.mxu0 %v3987
        %3997 = vmatpush.bf16.msra.mxu0 %v3986
        %3998 = vmatpush.bf16.msra.mxu0 %v3985
        %3999 = vmatpush.bf16.msra.mxu0 %v3984
        %4000 = vmatpush.bf16.msra.mxu0 %v3983
        %4001 = vmatpush.bf16.msra.mxu0 %v3982
        %4002 = vmatpush.bf16.msra.mxu0 %v3981
        %4003 = vmatpush.bf16.msra.mxu0 %v3980
        %4004 = vmatmul.bf16.gmra.mxu0 %v3941
        %v4005 = vpop.f32.mrf.mxu0
        %v4006 = vadd.f32 %v3946, %v4005
        %v4007 = vpop.f32.mrf.mxu0
        %v4008 = vadd.f32 %v3946, %v4007
        %4009 = vmatmul.bf16.gmra.mxu0 %v3942
        %v4010 = vpop.f32.mrf.mxu0
        %v4011 = vadd.f32 %v3946, %v4010
        %v4012 = vpop.f32.mrf.mxu0
        %v4013 = vadd.f32 %v3946, %v4012
        %4014 = vmatmul.bf16.gmra.mxu0 %v3943
        %v4015 = vpop.f32.mrf.mxu0
        %v4016 = vadd.f32 %v3946, %v4015
        %v4017 = vpop.f32.mrf.mxu0
        %v4018 = vadd.f32 %v3946, %v4017
        %4019 = vmatmul.bf16.gmra.mxu0 %v3944
        %v4020 = vpop.f32.mrf.mxu0
        %v4021 = vadd.f32 %v3946, %v4020
        %v4022 = vpop.f32.mrf.mxu0
        %v4023 = vadd.f32 %v3946, %v4022
        %4024 = vdwg.mxu0
        %v4025 = vpack.c.bf16 %v4008, %v4006
        %v4026 = vpack.c.bf16 %v4013, %v4011
        %v4027 = vpack.c.bf16 %v4018, %v4016
        %v4028 = vpack.c.bf16 %v4023, %v4021
        %v4030 = vperm.slane %v2669, 0
        %4032 = vmatpush.bf16.msra.mxu0 %v3466
        %4033 = vmatpush.bf16.msra.mxu0 %v3465
        %4034 = vmatpush.bf16.msra.mxu0 %v3464
        %4035 = vmatpush.bf16.msra.mxu0 %v3463
        %4036 = vmatpush.bf16.msra.mxu0 %v3462
        %4037 = vmatpush.bf16.msra.mxu0 %v3461
        %4038 = vmatpush.bf16.msra.mxu0 %v3460
        %4039 = vmatpush.bf16.msra.mxu0 %v3459
        %4040 = vmatmul.bf16.gmra.mxu0 %v4025
        %v4041 = vpop.f32.mrf.mxu0
        %v4042 = vadd.f32 %v4030, %v4041
        %v4043 = vpop.f32.mrf.mxu0
        %v4044 = vadd.f32 %v4030, %v4043
        %4045 = vmatmul.bf16.gmra.mxu0 %v4026
        %v4046 = vpop.f32.mrf.mxu0
        %v4047 = vadd.f32 %v4030, %v4046
        %v4048 = vpop.f32.mrf.mxu0
        %v4049 = vadd.f32 %v4030, %v4048
        %4050 = vmatmul.bf16.gmra.mxu0 %v4027
        %v4051 = vpop.f32.mrf.mxu0
        %v4052 = vadd.f32 %v4030, %v4051
        %v4053 = vpop.f32.mrf.mxu0
        %v4054 = vadd.f32 %v4030, %v4053
        %4055 = vmatmul.bf16.gmra.mxu0 %v4028
        %v4056 = vpop.f32.mrf.mxu0
        %v4057 = vadd.f32 %v4030, %v4056
        %v4058 = vpop.f32.mrf.mxu0
        %v4059 = vadd.f32 %v4030, %v4058
        %4060 = vdwg.mxu0
        %v4062 = vrot.slane %v3485, 1
        %v4063 = vrot.slane %v3485, 2
        %v4064 = vrot.slane %v3485, 3
        %v4065 = vrot.slane %v3485, 4
        %v4066 = vrot.slane %v3485, 5
        %v4067 = vrot.slane %v3485, 6
        %v4068 = vrot.slane %v3485, 7
        %v4069 = vperm.slane %v3485, 0
        %v4070 = vperm.slane %v4062, 0
        %v4071 = vperm.slane %v4063, 0
        %v4072 = vperm.slane %v4064, 0
        %v4073 = vperm.slane %v4065, 0
        %v4074 = vperm.slane %v4066, 0
        %v4075 = vperm.slane %v4067, 0
        %v4076 = vperm.slane %v4068, 0
        %v4085 = vmul.f32 %v3070, %v4069
        %v4086 = vmul.f32 %v3077, %v4070
        %v4087 = vmul.f32 %v3084, %v4071
        %v4088 = vmul.f32 %v3091, %v4072
        %v4089 = vmul.f32 %v3098, %v4073
        %v4090 = vmul.f32 %v3105, %v4074
        %v4091 = vmul.f32 %v3112, %v4075
        %v4092 = vmul.f32 %v3119, %v4076
        %v4093 = vadd.f32 %v4085, %v4030
        %v4094 = vadd.f32 %v4086, %v4030
        %v4095 = vadd.f32 %v4087, %v4030
        %v4096 = vadd.f32 %v4088, %v4030
        %v4097 = vadd.f32 %v4089, %v4030
        %v4098 = vadd.f32 %v4090, %v4030
        %v4099 = vadd.f32 %v4091, %v4030
        %v4100 = vadd.f32 %v4092, %v4030
        %v4101 = vpack.c.bf16 %v4044, %v4042
        %v4102 = vpack.c.bf16 %v4049, %v4047
        %v4103 = vpack.c.bf16 %v4054, %v4052
        %v4104 = vpack.c.bf16 %v4059, %v4057
        %v4105 = vpack.c.bf16 %v4094, %v4093
        %v4106 = vpack.c.bf16 %v4096, %v4095
        %v4107 = vpack.c.bf16 %v4098, %v4097
        %v4108 = vpack.c.bf16 %v4100, %v4099
        %v4125 = vunpack.c.l.b16 %v2787
        %v4126 = vunpack.c.l.b16 %v2788
        %v4127 = vunpack.c.l.b16 %v2789
        %v4128 = vunpack.c.l.b16 %v2790
        %v4129 = vunpack.c.l.b16 %v2791
        %v4130 = vunpack.c.l.b16 %v2792
        %v4131 = vunpack.c.l.b16 %v2793
        %v4132 = vunpack.c.l.b16 %v2794
        %v4133 = vunpack.c.l.b16 %v2795
        %v4134 = vunpack.c.l.b16 %v2796
        %v4135 = vunpack.c.l.b16 %v2797
        %v4136 = vunpack.c.l.b16 %v2798
        %v4137 = vunpack.c.l.b16 %v2799
        %v4138 = vunpack.c.l.b16 %v2800
        %v4139 = vunpack.c.l.b16 %v2801
        %v4140 = vunpack.c.l.b16 %v2802
        %v4141 = vpack.c.b16 %v4126, %v4125
        %v4142 = vpack.c.b16 %v4128, %v4127
        %v4143 = vpack.c.b16 %v4130, %v4129
        %v4144 = vpack.c.b16 %v4132, %v4131
        %v4145 = vpack.c.b16 %v4134, %v4133
        %v4146 = vpack.c.b16 %v4136, %v4135
        %v4147 = vpack.c.b16 %v4138, %v4137
        %v4148 = vpack.c.b16 %v4140, %v4139
        %4157 = vmatpush.bf16.msra.mxu0 %v4148
        %4158 = vmatpush.bf16.msra.mxu0 %v4147
        %4159 = vmatpush.bf16.msra.mxu0 %v4146
        %4160 = vmatpush.bf16.msra.mxu0 %v4145
        %4161 = vmatpush.bf16.msra.mxu0 %v4144
        %4162 = vmatpush.bf16.msra.mxu0 %v4143
        %4163 = vmatpush.bf16.msra.mxu0 %v4142
        %4164 = vmatpush.bf16.msra.mxu0 %v4141
        %4165 = vmatmul.bf16.gmra.mxu0 %v4105
        %v4166 = vpop.f32.mrf.mxu0
        %v4167 = vadd.f32 0.0, %v4166
        %v4168 = vpop.f32.mrf.mxu0
        %v4169 = vadd.f32 0.0, %v4168
        %4170 = vmatmul.bf16.gmra.mxu0 %v4106
        %v4171 = vpop.f32.mrf.mxu0
        %v4172 = vadd.f32 0.0, %v4171
        %v4173 = vpop.f32.mrf.mxu0
        %v4174 = vadd.f32 0.0, %v4173
        %4175 = vmatmul.bf16.gmra.mxu0 %v4107
        %v4176 = vpop.f32.mrf.mxu0
        %v4177 = vadd.f32 0.0, %v4176
        %v4178 = vpop.f32.mrf.mxu0
        %v4179 = vadd.f32 0.0, %v4178
        %4180 = vmatmul.bf16.gmra.mxu0 %v4108
        %v4181 = vpop.f32.mrf.mxu0
        %v4182 = vadd.f32 0.0, %v4181
        %v4183 = vpop.f32.mrf.mxu0
        %v4184 = vadd.f32 0.0, %v4183
        %4185 = vdwg.mxu0
        %v4202 = vunpack.c.l.b16 %v2771
        %v4203 = vunpack.c.l.b16 %v2772
        %v4204 = vunpack.c.l.b16 %v2773
        %v4205 = vunpack.c.l.b16 %v2774
        %v4206 = vunpack.c.l.b16 %v2775
        %v4207 = vunpack.c.l.b16 %v2776
        %v4208 = vunpack.c.l.b16 %v2777
        %v4209 = vunpack.c.l.b16 %v2778
        %v4210 = vunpack.c.l.b16 %v2779
        %v4211 = vunpack.c.l.b16 %v2780
        %v4212 = vunpack.c.l.b16 %v2781
        %v4213 = vunpack.c.l.b16 %v2782
        %v4214 = vunpack.c.l.b16 %v2783
        %v4215 = vunpack.c.l.b16 %v2784
        %v4216 = vunpack.c.l.b16 %v2785
        %v4217 = vunpack.c.l.b16 %v2786
        %v4218 = vpack.c.b16 %v4203, %v4202
        %v4219 = vpack.c.b16 %v4205, %v4204
        %v4220 = vpack.c.b16 %v4207, %v4206
        %v4221 = vpack.c.b16 %v4209, %v4208
        %v4222 = vpack.c.b16 %v4211, %v4210
        %v4223 = vpack.c.b16 %v4213, %v4212
        %v4224 = vpack.c.b16 %v4215, %v4214
        %v4225 = vpack.c.b16 %v4217, %v4216
        %4234 = vmatpush.bf16.msra.mxu0 %v4225
        %4235 = vmatpush.bf16.msra.mxu0 %v4224
        %4236 = vmatpush.bf16.msra.mxu0 %v4223
        %4237 = vmatpush.bf16.msra.mxu0 %v4222
        %4238 = vmatpush.bf16.msra.mxu0 %v4221
        %4239 = vmatpush.bf16.msra.mxu0 %v4220
        %4240 = vmatpush.bf16.msra.mxu0 %v4219
        %4241 = vmatpush.bf16.msra.mxu0 %v4218
        %4242 = vmatmul.bf16.gmra.mxu0 %v4101
        %v4243 = vpop.f32.mrf.mxu0
        %v4244 = vadd.f32 %v4167, %v4243
        %v4245 = vpop.f32.mrf.mxu0
        %v4246 = vadd.f32 %v4169, %v4245
        %4247 = vmatmul.bf16.gmra.mxu0 %v4102
        %v4248 = vpop.f32.mrf.mxu0
        %v4249 = vadd.f32 %v4172, %v4248
        %v4250 = vpop.f32.mrf.mxu0
        %v4251 = vadd.f32 %v4174, %v4250
        %4252 = vmatmul.bf16.gmra.mxu0 %v4103
        %v4253 = vpop.f32.mrf.mxu0
        %v4254 = vadd.f32 %v4177, %v4253
        %v4255 = vpop.f32.mrf.mxu0
        %v4256 = vadd.f32 %v4179, %v4255
        %4257 = vmatmul.bf16.gmra.mxu0 %v4104
        %v4258 = vpop.f32.mrf.mxu0
        %v4259 = vadd.f32 %v4182, %v4258
        %v4260 = vpop.f32.mrf.mxu0
        %v4261 = vadd.f32 %v4184, %v4260
        %4262 = vdwg.mxu0
        %v4264 = vperm.slane %v2803, 0
        %v4266 = vadd.f32 %v4244, %v4264
        %v4267 = vadd.f32 %v4246, %v4264
        %v4268 = vadd.f32 %v4249, %v4264
        %v4269 = vadd.f32 %v4251, %v4264
        %v4270 = vadd.f32 %v4254, %v4264
        %v4271 = vadd.f32 %v4256, %v4264
        %v4272 = vadd.f32 %v4259, %v4264
        %v4273 = vadd.f32 %v4261, %v4264
        %vm4274 = vcmp.gt.f32.partialorder %v4266, 0.0
        %vm4275 = vcmp.gt.f32.partialorder %v4267, 0.0
        %vm4276 = vcmp.gt.f32.partialorder %v4268, 0.0
        %vm4277 = vcmp.gt.f32.partialorder %v4269, 0.0
        %vm4278 = vcmp.gt.f32.partialorder %v4270, 0.0
        %vm4279 = vcmp.gt.f32.partialorder %v4271, 0.0
        %vm4280 = vcmp.gt.f32.partialorder %v4272, 0.0
        %vm4281 = vcmp.gt.f32.partialorder %v4273, 0.0
        %v4282 = vmul.f32 %v4266, 0.2
        %v4283 = vmul.f32 %v4267, 0.2
        %v4284 = vmul.f32 %v4268, 0.2
        %v4285 = vmul.f32 %v4269, 0.2
        %v4286 = vmul.f32 %v4270, 0.2
        %v4287 = vmul.f32 %v4271, 0.2
        %v4288 = vmul.f32 %v4272, 0.2
        %v4289 = vmul.f32 %v4273, 0.2
        %v4290 = vsel %vm4274, %v4266, %v4282
        %v4291 = vsel %vm4275, %v4267, %v4283
        %v4292 = vsel %vm4276, %v4268, %v4284
        %v4293 = vsel %vm4277, %v4269, %v4285
        %v4294 = vsel %vm4278, %v4270, %v4286
        %v4295 = vsel %vm4279, %v4271, %v4287
        %v4296 = vsel %vm4280, %v4272, %v4288
        %v4297 = vsel %vm4281, %v4273, %v4289
        %v4299 = vperm.slane %v2804, 0
        %v4301 = vmul.f32 %v4290, %v4299
        %v4302 = vmul.f32 %v4291, %v4299
        %v4303 = vmul.f32 %v4292, %v4299
        %v4304 = vmul.f32 %v4293, %v4299
        %v4305 = vmul.f32 %v4294, %v4299
        %v4306 = vmul.f32 %v4295, %v4299
        %v4307 = vmul.f32 %v4296, %v4299
        %v4308 = vmul.f32 %v4297, %v4299
        %4309 = vadd.xlane.f32.xlu0 %v4301
        %v4310 = vpop.xlane.xlu0 %4309
        %4311 = vadd.xlane.f32.xlu0 %v4302
        %v4312 = vpop.xlane.xlu0 %4311
        %4313 = vadd.xlane.f32.xlu0 %v4303
        %v4314 = vpop.xlane.xlu0 %4313
        %4315 = vadd.xlane.f32.xlu0 %v4304
        %v4316 = vpop.xlane.xlu0 %4315
        %4317 = vadd.xlane.f32.xlu0 %v4305
        %v4318 = vpop.xlane.xlu0 %4317
        %4319 = vadd.xlane.f32.xlu0 %v4306
        %v4320 = vpop.xlane.xlu0 %4319
        %4321 = vadd.xlane.f32.xlu0 %v4307
        %v4322 = vpop.xlane.xlu0 %4321
        %4323 = vadd.xlane.f32.xlu0 %v4308
        %v4324 = vpop.xlane.xlu0 %4323
        %v4326 = vperm.slane %v2805, 0
        %v4328 = vadd.f32 %v4310, %v4326
        %v4329 = vadd.f32 %v4312, %v4326
        %v4330 = vadd.f32 %v4314, %v4326
        %v4331 = vadd.f32 %v4316, %v4326
        %v4332 = vadd.f32 %v4318, %v4326
        %v4333 = vadd.f32 %v4320, %v4326
        %v4334 = vadd.f32 %v4322, %v4326
        %v4335 = vadd.f32 %v4324, %v4326
        %vm4336 = vcmp.gt.f32.partialorder %v3070, 0.0
        %vm4337 = vcmp.gt.f32.partialorder %v3077, 0.0
        %vm4338 = vcmp.gt.f32.partialorder %v3084, 0.0
        %vm4339 = vcmp.gt.f32.partialorder %v3091, 0.0
        %vm4340 = vcmp.gt.f32.partialorder %v3098, 0.0
        %vm4341 = vcmp.gt.f32.partialorder %v3105, 0.0
        %vm4342 = vcmp.gt.f32.partialorder %v3112, 0.0
        %vm4343 = vcmp.gt.f32.partialorder %v3119, 0.0
        %v4344 = vsel %vm4336, %v4328, -1e+30
        %v4345 = vsel %vm4337, %v4329, -1e+30
        %v4346 = vsel %vm4338, %v4330, -1e+30
        %v4347 = vsel %vm4339, %v4331, -1e+30
        %v4348 = vsel %vm4340, %v4332, -1e+30
        %v4349 = vsel %vm4341, %v4333, -1e+30
        %v4350 = vsel %vm4342, %v4334, -1e+30
        %v4351 = vsel %vm4343, %v4335, -1e+30
        %vm4352 = vcmask 7168
        %v4353 = vsel %vm4352, %v4344, -inf
        %v4354 = vrot.slane %v4353, 4
        %v4355 = vmax.f32 %v4353, %v4354
        %v4356 = vrot.slane %v4355, 2
        %v4357 = vmax.f32 %v4355, %v4356
        %v4358 = vrot.slane %v4357, 1
        %v4359 = vmax.f32 %v4357, %v4358
        %v4360 = vsel %vm4352, %v4345, -inf
        %v4361 = vrot.slane %v4360, 4
        %v4362 = vmax.f32 %v4360, %v4361
        %v4363 = vrot.slane %v4362, 2
        %v4364 = vmax.f32 %v4362, %v4363
        %v4365 = vrot.slane %v4364, 1
        %v4366 = vmax.f32 %v4364, %v4365
        %v4367 = vsel %vm4352, %v4346, -inf
        %v4368 = vrot.slane %v4367, 4
        %v4369 = vmax.f32 %v4367, %v4368
        %v4370 = vrot.slane %v4369, 2
        %v4371 = vmax.f32 %v4369, %v4370
        %v4372 = vrot.slane %v4371, 1
        %v4373 = vmax.f32 %v4371, %v4372
        %v4374 = vsel %vm4352, %v4347, -inf
        %v4375 = vrot.slane %v4374, 4
        %v4376 = vmax.f32 %v4374, %v4375
        %v4377 = vrot.slane %v4376, 2
        %v4378 = vmax.f32 %v4376, %v4377
        %v4379 = vrot.slane %v4378, 1
        %v4380 = vmax.f32 %v4378, %v4379
        %v4381 = vsel %vm4352, %v4348, -inf
        %v4382 = vrot.slane %v4381, 4
        %v4383 = vmax.f32 %v4381, %v4382
        %v4384 = vrot.slane %v4383, 2
        %v4385 = vmax.f32 %v4383, %v4384
        %v4386 = vrot.slane %v4385, 1
        %v4387 = vmax.f32 %v4385, %v4386
        %v4388 = vsel %vm4352, %v4349, -inf
        %v4389 = vrot.slane %v4388, 4
        %v4390 = vmax.f32 %v4388, %v4389
        %v4391 = vrot.slane %v4390, 2
        %v4392 = vmax.f32 %v4390, %v4391
        %v4393 = vrot.slane %v4392, 1
        %v4394 = vmax.f32 %v4392, %v4393
        %v4395 = vsel %vm4352, %v4350, -inf
        %v4396 = vrot.slane %v4395, 4
        %v4397 = vmax.f32 %v4395, %v4396
        %v4398 = vrot.slane %v4397, 2
        %v4399 = vmax.f32 %v4397, %v4398
        %v4400 = vrot.slane %v4399, 1
        %v4401 = vmax.f32 %v4399, %v4400
        %v4402 = vsel %vm4352, %v4351, -inf
        %v4403 = vrot.slane %v4402, 4
        %v4404 = vmax.f32 %v4402, %v4403
        %v4405 = vrot.slane %v4404, 2
        %v4406 = vmax.f32 %v4404, %v4405
        %v4407 = vrot.slane %v4406, 1
        %v4408 = vmax.f32 %v4406, %v4407
        %v4409 = vsub.f32 %v4344, %v4359
        %v4410 = vsub.f32 %v4345, %v4366
        %v4411 = vsub.f32 %v4346, %v4373
        %v4412 = vsub.f32 %v4347, %v4380
        %v4413 = vsub.f32 %v4348, %v4387
        %v4414 = vsub.f32 %v4349, %v4394
        %v4415 = vsub.f32 %v4350, %v4401
        %v4416 = vsub.f32 %v4351, %v4408
        %v4417 = vmul.f32 %v4409, 1.442695
        %v4418 = vpow.pop %v4417
        %v4419 = vmul.f32 %v4410, 1.442695
        %v4420 = vpow.pop %v4419
        %v4421 = vmul.f32 %v4411, 1.442695
        %v4422 = vpow.pop %v4421
        %v4423 = vmul.f32 %v4412, 1.442695
        %v4424 = vpow.pop %v4423
        %v4425 = vmul.f32 %v4413, 1.442695
        %v4426 = vpow.pop %v4425
        %v4427 = vmul.f32 %v4414, 1.442695
        %v4428 = vpow.pop %v4427
        %v4429 = vmul.f32 %v4415, 1.442695
        %v4430 = vpow.pop %v4429
        %v4431 = vmul.f32 %v4416, 1.442695
        %v4432 = vpow.pop %v4431
        %v4433 = vmul.f32 %v4418, %v3070
        %v4434 = vmul.f32 %v4420, %v3077
        %v4435 = vmul.f32 %v4422, %v3084
        %v4436 = vmul.f32 %v4424, %v3091
        %v4437 = vmul.f32 %v4426, %v3098
        %v4438 = vmul.f32 %v4428, %v3105
        %v4439 = vmul.f32 %v4430, %v3112
        %v4440 = vmul.f32 %v4432, %v3119
        %v4441 = vsel %vm4352, %v4433, 0.0
        %v4442 = vrot.slane %v4441, 4
        %v4443 = vadd.f32 %v4441, %v4442
        %v4444 = vrot.slane %v4443, 2
        %v4445 = vadd.f32 %v4443, %v4444
        %v4446 = vrot.slane %v4445, 1
        %v4447 = vadd.f32 %v4445, %v4446
        %v4448 = vsel %vm4352, %v4434, 0.0
        %v4449 = vrot.slane %v4448, 4
        %v4450 = vadd.f32 %v4448, %v4449
        %v4451 = vrot.slane %v4450, 2
        %v4452 = vadd.f32 %v4450, %v4451
        %v4453 = vrot.slane %v4452, 1
        %v4454 = vadd.f32 %v4452, %v4453
        %v4455 = vsel %vm4352, %v4435, 0.0
        %v4456 = vrot.slane %v4455, 4
        %v4457 = vadd.f32 %v4455, %v4456
        %v4458 = vrot.slane %v4457, 2
        %v4459 = vadd.f32 %v4457, %v4458
        %v4460 = vrot.slane %v4459, 1
        %v4461 = vadd.f32 %v4459, %v4460
        %v4462 = vsel %vm4352, %v4436, 0.0
        %v4463 = vrot.slane %v4462, 4
        %v4464 = vadd.f32 %v4462, %v4463
        %v4465 = vrot.slane %v4464, 2
        %v4466 = vadd.f32 %v4464, %v4465
        %v4467 = vrot.slane %v4466, 1
        %v4468 = vadd.f32 %v4466, %v4467
        %v4469 = vsel %vm4352, %v4437, 0.0
        %v4470 = vrot.slane %v4469, 4
        %v4471 = vadd.f32 %v4469, %v4470
        %v4472 = vrot.slane %v4471, 2
        %v4473 = vadd.f32 %v4471, %v4472
        %v4474 = vrot.slane %v4473, 1
        %v4475 = vadd.f32 %v4473, %v4474
        %v4476 = vsel %vm4352, %v4438, 0.0
        %v4477 = vrot.slane %v4476, 4
        %v4478 = vadd.f32 %v4476, %v4477
        %v4479 = vrot.slane %v4478, 2
        %v4480 = vadd.f32 %v4478, %v4479
        %v4481 = vrot.slane %v4480, 1
        %v4482 = vadd.f32 %v4480, %v4481
        %v4483 = vsel %vm4352, %v4439, 0.0
        %v4484 = vrot.slane %v4483, 4
        %v4485 = vadd.f32 %v4483, %v4484
        %v4486 = vrot.slane %v4485, 2
        %v4487 = vadd.f32 %v4485, %v4486
        %v4488 = vrot.slane %v4487, 1
        %v4489 = vadd.f32 %v4487, %v4488
        %v4490 = vsel %vm4352, %v4440, 0.0
        %v4491 = vrot.slane %v4490, 4
        %v4492 = vadd.f32 %v4490, %v4491
        %v4493 = vrot.slane %v4492, 2
        %v4494 = vadd.f32 %v4492, %v4493
        %v4495 = vrot.slane %v4494, 1
        %v4496 = vadd.f32 %v4494, %v4495
        %v4497 = vadd.f32 %v4447, 1e-10
        %v4498 = vadd.f32 %v4454, 1e-10
        %v4499 = vadd.f32 %v4461, 1e-10
        %v4500 = vadd.f32 %v4468, 1e-10
        %v4501 = vadd.f32 %v4475, 1e-10
        %v4502 = vadd.f32 %v4482, 1e-10
        %v4503 = vadd.f32 %v4489, 1e-10
        %v4504 = vadd.f32 %v4496, 1e-10
        %v4505 = vrcp.pop %v4497
        %v4506 = vrcp.pop %v4498
        %v4507 = vrcp.pop %v4499
        %v4508 = vrcp.pop %v4500
        %v4509 = vrcp.pop %v4501
        %v4510 = vrcp.pop %v4502
        %v4511 = vrcp.pop %v4503
        %v4512 = vrcp.pop %v4504
        %v4513 = vmul.f32 %v4433, %v4505
        %v4514 = vmul.f32 %v4434, %v4506
        %v4515 = vmul.f32 %v4435, %v4507
        %v4516 = vmul.f32 %v4436, %v4508
        %v4517 = vmul.f32 %v4437, %v4509
        %v4518 = vmul.f32 %v4438, %v4510
        %v4519 = vmul.f32 %v4439, %v4511
        %v4520 = vmul.f32 %v4440, %v4512
        %4522 = vset.pattern.permute.xlu0 0
        %4523 = vperm.xlu0 %4522, %v4513
        %v4524 = vpop.permute.xlu0 %4523
        %4527 = vset.pattern.permute.xlu0 0
        %4528 = vperm.xlu0 %4527, %v4514
        %v4529 = vpop.permute.xlu0 %4528
        %4532 = vset.pattern.permute.xlu0 0
        %4533 = vperm.xlu0 %4532, %v4515
        %v4534 = vpop.permute.xlu0 %4533
        %4537 = vset.pattern.permute.xlu0 0
        %4538 = vperm.xlu0 %4537, %v4516
        %v4539 = vpop.permute.xlu0 %4538
        %4542 = vset.pattern.permute.xlu0 0
        %4543 = vperm.xlu0 %4542, %v4517
        %v4544 = vpop.permute.xlu0 %4543
        %4547 = vset.pattern.permute.xlu0 0
        %4548 = vperm.xlu0 %4547, %v4518
        %v4549 = vpop.permute.xlu0 %4548
        %4552 = vset.pattern.permute.xlu0 0
        %4553 = vperm.xlu0 %4552, %v4519
        %v4554 = vpop.permute.xlu0 %4553
        %4557 = vset.pattern.permute.xlu0 0
        %4558 = vperm.xlu0 %4557, %v4520
        %v4559 = vpop.permute.xlu0 %4558
        %v4561 = vmul.f32 %v4524, %v4042
        %v4562 = vmul.f32 %v4529, %v4044
        %v4563 = vmul.f32 %v4534, %v4047
        %v4564 = vmul.f32 %v4539, %v4049
        %v4565 = vmul.f32 %v4544, %v4052
        %v4566 = vmul.f32 %v4549, %v4054
        %v4567 = vmul.f32 %v4554, %v4057
        %v4568 = vmul.f32 %v4559, %v4059
        %v4569 = vrot.slane %v4561, 4
        %v4570 = vadd.f32 %v4561, %v4569
        %v4571 = vrot.slane %v4570, 2
        %v4572 = vadd.f32 %v4570, %v4571
        %v4573 = vrot.slane %v4572, 1
        %v4574 = vadd.f32 %v4572, %v4573
        %v4575 = vrot.slane %v4562, 4
        %v4576 = vadd.f32 %v4562, %v4575
        %v4577 = vrot.slane %v4576, 2
        %v4578 = vadd.f32 %v4576, %v4577
        %v4579 = vrot.slane %v4578, 1
        %v4580 = vadd.f32 %v4578, %v4579
        %v4581 = vrot.slane %v4563, 4
        %v4582 = vadd.f32 %v4563, %v4581
        %v4583 = vrot.slane %v4582, 2
        %v4584 = vadd.f32 %v4582, %v4583
        %v4585 = vrot.slane %v4584, 1
        %v4586 = vadd.f32 %v4584, %v4585
        %v4587 = vrot.slane %v4564, 4
        %v4588 = vadd.f32 %v4564, %v4587
        %v4589 = vrot.slane %v4588, 2
        %v4590 = vadd.f32 %v4588, %v4589
        %v4591 = vrot.slane %v4590, 1
        %v4592 = vadd.f32 %v4590, %v4591
        %v4593 = vrot.slane %v4565, 4
        %v4594 = vadd.f32 %v4565, %v4593
        %v4595 = vrot.slane %v4594, 2
        %v4596 = vadd.f32 %v4594, %v4595
        %v4597 = vrot.slane %v4596, 1
        %v4598 = vadd.f32 %v4596, %v4597
        %v4599 = vrot.slane %v4566, 4
        %v4600 = vadd.f32 %v4566, %v4599
        %v4601 = vrot.slane %v4600, 2
        %v4602 = vadd.f32 %v4600, %v4601
        %v4603 = vrot.slane %v4602, 1
        %v4604 = vadd.f32 %v4602, %v4603
        %v4605 = vrot.slane %v4567, 4
        %v4606 = vadd.f32 %v4567, %v4605
        %v4607 = vrot.slane %v4606, 2
        %v4608 = vadd.f32 %v4606, %v4607
        %v4609 = vrot.slane %v4608, 1
        %v4610 = vadd.f32 %v4608, %v4609
        %v4611 = vrot.slane %v4568, 4
        %v4612 = vadd.f32 %v4568, %v4611
        %v4613 = vrot.slane %v4612, 2
        %v4614 = vadd.f32 %v4612, %v4613
        %v4615 = vrot.slane %v4614, 1
        %v4616 = vadd.f32 %v4614, %v4615
        %v4617 = vpack.c.bf16 %v4574, %v4574
        %v4618 = vpack.c.bf16 %v4580, %v4580
        %v4619 = vpack.c.bf16 %v4586, %v4586
        %v4620 = vpack.c.bf16 %v4592, %v4592
        %v4621 = vpack.c.bf16 %v4598, %v4598
        %v4622 = vpack.c.bf16 %v4604, %v4604
        %v4623 = vpack.c.bf16 %v4610, %v4610
        %v4624 = vpack.c.bf16 %v4616, %v4616
        %v4626 = vperm.slane %v2822, 0
        %v4636 = vunpack.c.l.b16 %v4617
        %v4637 = vunpack.c.l.b16 %v4618
        %v4638 = vunpack.c.l.b16 %v4619
        %v4639 = vunpack.c.l.b16 %v4620
        %v4640 = vunpack.c.l.b16 %v4621
        %v4641 = vunpack.c.l.b16 %v4622
        %v4642 = vunpack.c.l.b16 %v4623
        %v4643 = vunpack.c.l.b16 %v4624
        %vm4644 = vcmask 1041409
        %v4645 = vsel %vm4644, %v4637, %v4636
        %vm4646 = vcmask 1042434
        %v4647 = vsel %vm4646, %v4638, %v4645
        %vm4648 = vcmask 1043459
        %v4649 = vsel %vm4648, %v4639, %v4647
        %vm4650 = vcmask 1044484
        %v4651 = vsel %vm4650, %v4640, %v4649
        %vm4652 = vcmask 1045509
        %v4653 = vsel %vm4652, %v4641, %v4651
        %vm4654 = vcmask 1046534
        %v4655 = vsel %vm4654, %v4642, %v4653
        %vm4656 = vcmask 1047559
        %v4657 = vsel %vm4656, %v4643, %v4655
        %v4658 = vpack.c.b16 %v4657, %v4657
        %v4676 = vunpack.c.l.b16 %v2806
        %v4677 = vunpack.c.l.b16 %v2807
        %v4678 = vunpack.c.l.b16 %v2808
        %v4679 = vunpack.c.l.b16 %v2809
        %v4680 = vunpack.c.l.b16 %v2810
        %v4681 = vunpack.c.l.b16 %v2811
        %v4682 = vunpack.c.l.b16 %v2812
        %v4683 = vunpack.c.l.b16 %v2813
        %v4684 = vunpack.c.l.b16 %v2814
        %v4685 = vunpack.c.l.b16 %v2815
        %v4686 = vunpack.c.l.b16 %v2816
        %v4687 = vunpack.c.l.b16 %v2817
        %v4688 = vunpack.c.l.b16 %v2818
        %v4689 = vunpack.c.l.b16 %v2819
        %v4690 = vunpack.c.l.b16 %v2820
        %v4691 = vunpack.c.l.b16 %v2821
        %v4692 = vpack.c.b16 %v4677, %v4676
        %v4693 = vpack.c.b16 %v4679, %v4678
        %v4694 = vpack.c.b16 %v4681, %v4680
        %v4695 = vpack.c.b16 %v4683, %v4682
        %v4696 = vpack.c.b16 %v4685, %v4684
        %v4697 = vpack.c.b16 %v4687, %v4686
        %v4698 = vpack.c.b16 %v4689, %v4688
        %v4699 = vpack.c.b16 %v4691, %v4690
        %4708 = vmatpush.bf16.msra.mxu0 %v4699
        %4709 = vmatpush.bf16.msra.mxu0 %v4698
        %4710 = vmatpush.bf16.msra.mxu0 %v4697
        %4711 = vmatpush.bf16.msra.mxu0 %v4696
        %4712 = vmatpush.bf16.msra.mxu0 %v4695
        %4713 = vmatpush.bf16.msra.mxu0 %v4694
        %4714 = vmatpush.bf16.msra.mxu0 %v4693
        %4715 = vmatpush.bf16.msra.mxu0 %v4692
        %4716 = vmatmul.bf16.gmra.mxu0 %v4658
        %v4717 = vpop.f32.mrf.mxu0
        %v4718 = vadd.f32 %v4626, %v4717
        %v4719 = vpop.f32.mrf.mxu0
        %4720 = vdwg.mxu0
        %v4721 = vmax.f32 %v4718, 0.0
        %v4723 = vperm.slane %v2686, 0
        %4725 = vst [vmem:[#allocation1] ss:$4 sm:$0xff] %v2581
        %s4726 = scalar_lea.vmem [#allocation1], 1
        %4727 = vst [vmem:[%s4726] ss:$4 sm:$0xff] %v2582
        %s4728 = scalar_lea.vmem [#allocation1], 2
        %4729 = vst [vmem:[%s4728] ss:$4 sm:$0xff] %v2583
        %s4730 = scalar_lea.vmem [#allocation1], 3
        %4731 = vst [vmem:[%s4730] ss:$4 sm:$0xff] %v2584
        %s4732 = scalar_lea.vmem [#allocation1], 32
        %4733 = vst [vmem:[%s4732] ss:$4 sm:$0xff] %v2585
        %s4734 = scalar_lea.vmem [#allocation1], 33
        %4735 = vst [vmem:[%s4734] ss:$4 sm:$0xff] %v2586
        %s4736 = scalar_lea.vmem [#allocation1], 34
        %4737 = vst [vmem:[%s4736] ss:$4 sm:$0xff] %v2587
        %s4738 = scalar_lea.vmem [#allocation1], 35
        %4739 = vst [vmem:[%s4738] ss:$4 sm:$0xff] %v2588
        %v4740 = vld.sshfl [vmem:[#allocation1] sm:$0xff pattern:$0x73625140]
        %v4741 = vld.sshfl [vmem:[#allocation1 + $0x20] sm:$0xff pattern:$0x73625140]
        %4744 = vmatpush.bf16.msra.mxu0 %v3527
        %4745 = vmatpush.bf16.msra.mxu0 %v3526
        %4746 = vmatpush.bf16.msra.mxu0 %v3525
        %4747 = vmatpush.bf16.msra.mxu0 %v3524
        %4748 = vmatpush.bf16.msra.mxu0 %v3523
        %4749 = vmatpush.bf16.msra.mxu0 %v3522
        %4750 = vmatpush.bf16.msra.mxu0 %v3521
        %4751 = vmatpush.bf16.msra.mxu0 %v3520
        %4752 = vmatmul.bf16.gmra.mxu0 %v4740
        %v4753 = vpop.f32.mrf.mxu0
        %v4754 = vadd.f32 %v4723, %v4753
        %v4755 = vpop.f32.mrf.mxu0
        %v4756 = vadd.f32 %v4723, %v4755
        %4757 = vmatmul.bf16.gmra.mxu0 %v4741
        %v4758 = vpop.f32.mrf.mxu0
        %v4759 = vadd.f32 %v4723, %v4758
        %v4760 = vpop.f32.mrf.mxu0
        %v4761 = vadd.f32 %v4723, %v4760
        %4762 = vdwg.mxu0
        %v4764 = vrot.slane %v3546, 1
        %v4765 = vrot.slane %v3546, 2
        %v4766 = vrot.slane %v3546, 3
        %v4767 = vrot.slane %v3546, 4
        %v4768 = vrot.slane %v3546, 5
        %v4769 = vrot.slane %v3546, 6
        %v4770 = vrot.slane %v3546, 7
        %v4771 = vperm.slane %v3546, 0
        %v4772 = vperm.slane %v4764, 0
        %v4773 = vperm.slane %v4765, 0
        %v4774 = vperm.slane %v4766, 0
        %v4775 = vperm.slane %v4767, 0
        %v4776 = vperm.slane %v4768, 0
        %v4777 = vperm.slane %v4769, 0
        %v4778 = vperm.slane %v4770, 0
        %v4787 = vmul.f32 %v3129, %v4771
        %v4788 = vmul.f32 %v3136, %v4772
        %v4789 = vmul.f32 %v3143, %v4773
        %v4790 = vmul.f32 %v3150, %v4774
        %v4791 = vmul.f32 %v3157, %v4775
        %v4792 = vmul.f32 %v3164, %v4776
        %v4793 = vmul.f32 %v3171, %v4777
        %v4794 = vmul.f32 %v3178, %v4778
        %v4795 = vadd.f32 %v4787, %v4723
        %v4796 = vadd.f32 %v4788, %v4723
        %v4797 = vadd.f32 %v4789, %v4723
        %v4798 = vadd.f32 %v4790, %v4723
        %v4799 = vadd.f32 %v4791, %v4723
        %v4800 = vadd.f32 %v4792, %v4723
        %v4801 = vadd.f32 %v4793, %v4723
        %v4802 = vadd.f32 %v4794, %v4723
        %v4803 = vpack.c.bf16 %v4756, %v4754
        %v4804 = vpack.c.bf16 %v4761, %v4759
        %4813 = vst [vmem:[#allocation1] ss:$2 sm:$0xff] %v4795
        %s4814 = scalar_lea.vmem [#allocation1], 1
        %4815 = vst [vmem:[%s4814] ss:$2 sm:$0xff] %v4796
        %s4816 = scalar_lea.vmem [#allocation1], 16
        %4817 = vst [vmem:[%s4816] ss:$2 sm:$0xff] %v4797
        %s4818 = scalar_lea.vmem [#allocation1], 17
        %4819 = vst [vmem:[%s4818] ss:$2 sm:$0xff] %v4798
        %s4820 = scalar_lea.vmem [#allocation1], 32
        %4821 = vst [vmem:[%s4820] ss:$2 sm:$0xff] %v4799
        %s4822 = scalar_lea.vmem [#allocation1], 33
        %4823 = vst [vmem:[%s4822] ss:$2 sm:$0xff] %v4800
        %s4824 = scalar_lea.vmem [#allocation1], 48
        %4825 = vst [vmem:[%s4824] ss:$2 sm:$0xff] %v4801
        %s4826 = scalar_lea.vmem [#allocation1], 49
        %4827 = vst [vmem:[%s4826] ss:$2 sm:$0xff] %v4802
        %v4828 = vld.sshfl [vmem:[#allocation1] sm:$0xff pattern:$0x75316420]
        %v4829 = vld.sshfl [vmem:[#allocation1 + $0x10] sm:$0xff pattern:$0x75316420]
        %v4830 = vld.sshfl [vmem:[#allocation1 + $0x20] sm:$0xff pattern:$0x75316420]
        %v4831 = vld.sshfl [vmem:[#allocation1 + $0x30] sm:$0xff pattern:$0x75316420]
        %v4836 = vpack.c.bf16 %v4829, %v4828
        %v4837 = vpack.c.bf16 %v4831, %v4830
        %v4854 = vunpack.c.l.b16 %v2839
        %v4855 = vunpack.c.l.b16 %v2840
        %v4856 = vunpack.c.l.b16 %v2841
        %v4857 = vunpack.c.l.b16 %v2842
        %v4858 = vunpack.c.l.b16 %v2843
        %v4859 = vunpack.c.l.b16 %v2844
        %v4860 = vunpack.c.l.b16 %v2845
        %v4861 = vunpack.c.l.b16 %v2846
        %v4862 = vunpack.c.l.b16 %v2847
        %v4863 = vunpack.c.l.b16 %v2848
        %v4864 = vunpack.c.l.b16 %v2849
        %v4865 = vunpack.c.l.b16 %v2850
        %v4866 = vunpack.c.l.b16 %v2851
        %v4867 = vunpack.c.l.b16 %v2852
        %v4868 = vunpack.c.l.b16 %v2853
        %v4869 = vunpack.c.l.b16 %v2854
        %v4870 = vpack.c.b16 %v4855, %v4854
        %v4871 = vpack.c.b16 %v4857, %v4856
        %v4872 = vpack.c.b16 %v4859, %v4858
        %v4873 = vpack.c.b16 %v4861, %v4860
        %v4874 = vpack.c.b16 %v4863, %v4862
        %v4875 = vpack.c.b16 %v4865, %v4864
        %v4876 = vpack.c.b16 %v4867, %v4866
        %v4877 = vpack.c.b16 %v4869, %v4868
        %4886 = vmatpush.bf16.msra.mxu0 %v4877
        %4887 = vmatpush.bf16.msra.mxu0 %v4876
        %4888 = vmatpush.bf16.msra.mxu0 %v4875
        %4889 = vmatpush.bf16.msra.mxu0 %v4874
        %4890 = vmatpush.bf16.msra.mxu0 %v4873
        %4891 = vmatpush.bf16.msra.mxu0 %v4872
        %4892 = vmatpush.bf16.msra.mxu0 %v4871
        %4893 = vmatpush.bf16.msra.mxu0 %v4870
        %4894 = vmatmul.bf16.gmra.mxu0 %v4836
        %v4895 = vpop.f32.mrf.mxu0
        %v4896 = vadd.f32 0.0, %v4895
        %v4897 = vpop.f32.mrf.mxu0
        %v4898 = vadd.f32 0.0, %v4897
        %4899 = vmatmul.bf16.gmra.mxu0 %v4837
        %v4900 = vpop.f32.mrf.mxu0
        %v4901 = vadd.f32 0.0, %v4900
        %v4902 = vpop.f32.mrf.mxu0
        %v4903 = vadd.f32 0.0, %v4902
        %4904 = vdwg.mxu0
        %v4921 = vunpack.c.l.b16 %v2823
        %v4922 = vunpack.c.l.b16 %v2824
        %v4923 = vunpack.c.l.b16 %v2825
        %v4924 = vunpack.c.l.b16 %v2826
        %v4925 = vunpack.c.l.b16 %v2827
        %v4926 = vunpack.c.l.b16 %v2828
        %v4927 = vunpack.c.l.b16 %v2829
        %v4928 = vunpack.c.l.b16 %v2830
        %v4929 = vunpack.c.l.b16 %v2831
        %v4930 = vunpack.c.l.b16 %v2832
        %v4931 = vunpack.c.l.b16 %v2833
        %v4932 = vunpack.c.l.b16 %v2834
        %v4933 = vunpack.c.l.b16 %v2835
        %v4934 = vunpack.c.l.b16 %v2836
        %v4935 = vunpack.c.l.b16 %v2837
        %v4936 = vunpack.c.l.b16 %v2838
        %v4937 = vpack.c.b16 %v4922, %v4921
        %v4938 = vpack.c.b16 %v4924, %v4923
        %v4939 = vpack.c.b16 %v4926, %v4925
        %v4940 = vpack.c.b16 %v4928, %v4927
        %v4941 = vpack.c.b16 %v4930, %v4929
        %v4942 = vpack.c.b16 %v4932, %v4931
        %v4943 = vpack.c.b16 %v4934, %v4933
        %v4944 = vpack.c.b16 %v4936, %v4935
        %4953 = vmatpush.bf16.msra.mxu0 %v4944
        %4954 = vmatpush.bf16.msra.mxu0 %v4943
        %4955 = vmatpush.bf16.msra.mxu0 %v4942
        %4956 = vmatpush.bf16.msra.mxu0 %v4941
        %4957 = vmatpush.bf16.msra.mxu0 %v4940
        %4958 = vmatpush.bf16.msra.mxu0 %v4939
        %4959 = vmatpush.bf16.msra.mxu0 %v4938
        %4960 = vmatpush.bf16.msra.mxu0 %v4937
        %4961 = vmatmul.bf16.gmra.mxu0 %v4803
        %v4962 = vpop.f32.mrf.mxu0
        %v4963 = vadd.f32 %v4896, %v4962
        %v4964 = vpop.f32.mrf.mxu0
        %v4965 = vadd.f32 %v4898, %v4964
        %4966 = vmatmul.bf16.gmra.mxu0 %v4804
        %v4967 = vpop.f32.mrf.mxu0
        %v4968 = vadd.f32 %v4901, %v4967
        %v4969 = vpop.f32.mrf.mxu0
        %v4970 = vadd.f32 %v4903, %v4969
        %4971 = vdwg.mxu0
        %v4973 = vperm.slane %v2855, 0
        %v4975 = vadd.f32 %v4963, %v4973
        %v4976 = vadd.f32 %v4965, %v4973
        %v4977 = vadd.f32 %v4968, %v4973
        %v4978 = vadd.f32 %v4970, %v4973
        %vm4979 = vcmp.gt.f32.partialorder %v4975, 0.0
        %vm4980 = vcmp.gt.f32.partialorder %v4976, 0.0
        %vm4981 = vcmp.gt.f32.partialorder %v4977, 0.0
        %vm4982 = vcmp.gt.f32.partialorder %v4978, 0.0
        %v4983 = vmul.f32 %v4975, 0.2
        %v4984 = vmul.f32 %v4976, 0.2
        %v4985 = vmul.f32 %v4977, 0.2
        %v4986 = vmul.f32 %v4978, 0.2
        %v4987 = vsel %vm4979, %v4975, %v4983
        %v4988 = vsel %vm4980, %v4976, %v4984
        %v4989 = vsel %vm4981, %v4977, %v4985
        %v4990 = vsel %vm4982, %v4978, %v4986
        %v4995 = vrot.slane %v4987, 4
        %v4996 = vrot.slane %v4988, 4
        %v4997 = vrot.slane %v4989, 4
        %v4998 = vrot.slane %v4990, 4
        %v5004 = vperm.slane %v2856, 0
        %v5006 = vmul.f32 %v4987, %v5004
        %v5007 = vmul.f32 %v4995, %v5004
        %v5008 = vmul.f32 %v4988, %v5004
        %v5009 = vmul.f32 %v4996, %v5004
        %v5010 = vmul.f32 %v4989, %v5004
        %v5011 = vmul.f32 %v4997, %v5004
        %v5012 = vmul.f32 %v4990, %v5004
        %v5013 = vmul.f32 %v4998, %v5004
        %vm5014 = vcmask 1043456
        %v5015 = vsel %vm5014, %v5006, 0.0
        %5016 = vadd.xlane.f32.xlu0 %v5015
        %v5017 = vpop.xlane.xlu0 %5016
        %v5018 = vsel %vm5014, %v5007, 0.0
        %5019 = vadd.xlane.f32.xlu0 %v5018
        %v5020 = vpop.xlane.xlu0 %5019
        %v5021 = vsel %vm5014, %v5008, 0.0
        %5022 = vadd.xlane.f32.xlu0 %v5021
        %v5023 = vpop.xlane.xlu0 %5022
        %v5024 = vsel %vm5014, %v5009, 0.0
        %5025 = vadd.xlane.f32.xlu0 %v5024
        %v5026 = vpop.xlane.xlu0 %5025
        %v5027 = vsel %vm5014, %v5010, 0.0
        %5028 = vadd.xlane.f32.xlu0 %v5027
        %v5029 = vpop.xlane.xlu0 %5028
        %v5030 = vsel %vm5014, %v5011, 0.0
        %5031 = vadd.xlane.f32.xlu0 %v5030
        %v5032 = vpop.xlane.xlu0 %5031
        %v5033 = vsel %vm5014, %v5012, 0.0
        %5034 = vadd.xlane.f32.xlu0 %v5033
        %v5035 = vpop.xlane.xlu0 %5034
        %v5036 = vsel %vm5014, %v5013, 0.0
        %5037 = vadd.xlane.f32.xlu0 %v5036
        %v5038 = vpop.xlane.xlu0 %5037
        %v5040 = vperm.slane %v2857, 0
        %v5042 = vadd.f32 %v5017, %v5040
        %v5043 = vadd.f32 %v5020, %v5040
        %v5044 = vadd.f32 %v5023, %v5040
        %v5045 = vadd.f32 %v5026, %v5040
        %v5046 = vadd.f32 %v5029, %v5040
        %v5047 = vadd.f32 %v5032, %v5040
        %v5048 = vadd.f32 %v5035, %v5040
        %v5049 = vadd.f32 %v5038, %v5040
        %vm5050 = vcmp.gt.f32.partialorder %v3129, 0.0
        %vm5051 = vcmp.gt.f32.partialorder %v3136, 0.0
        %vm5052 = vcmp.gt.f32.partialorder %v3143, 0.0
        %vm5053 = vcmp.gt.f32.partialorder %v3150, 0.0
        %vm5054 = vcmp.gt.f32.partialorder %v3157, 0.0
        %vm5055 = vcmp.gt.f32.partialorder %v3164, 0.0
        %vm5056 = vcmp.gt.f32.partialorder %v3171, 0.0
        %vm5057 = vcmp.gt.f32.partialorder %v3178, 0.0
        %v5058 = vsel %vm5050, %v5042, -1e+30
        %v5059 = vsel %vm5051, %v5043, -1e+30
        %v5060 = vsel %vm5052, %v5044, -1e+30
        %v5061 = vsel %vm5053, %v5045, -1e+30
        %v5062 = vsel %vm5054, %v5046, -1e+30
        %v5063 = vsel %vm5055, %v5047, -1e+30
        %v5064 = vsel %vm5056, %v5048, -1e+30
        %v5065 = vsel %vm5057, %v5049, -1e+30
        %vm5066 = vcmask 3072
        %v5067 = vsel %vm5066, %v5058, -inf
        %v5068 = vrot.slane %v5067, 4
        %v5069 = vmax.f32 %v5067, %v5068
        %v5070 = vrot.slane %v5069, 2
        %v5071 = vmax.f32 %v5069, %v5070
        %v5072 = vrot.slane %v5071, 1
        %v5073 = vmax.f32 %v5071, %v5072
        %v5074 = vsel %vm5066, %v5059, -inf
        %v5075 = vrot.slane %v5074, 4
        %v5076 = vmax.f32 %v5074, %v5075
        %v5077 = vrot.slane %v5076, 2
        %v5078 = vmax.f32 %v5076, %v5077
        %v5079 = vrot.slane %v5078, 1
        %v5080 = vmax.f32 %v5078, %v5079
        %v5081 = vsel %vm5066, %v5060, -inf
        %v5082 = vrot.slane %v5081, 4
        %v5083 = vmax.f32 %v5081, %v5082
        %v5084 = vrot.slane %v5083, 2
        %v5085 = vmax.f32 %v5083, %v5084
        %v5086 = vrot.slane %v5085, 1
        %v5087 = vmax.f32 %v5085, %v5086
        %v5088 = vsel %vm5066, %v5061, -inf
        %v5089 = vrot.slane %v5088, 4
        %v5090 = vmax.f32 %v5088, %v5089
        %v5091 = vrot.slane %v5090, 2
        %v5092 = vmax.f32 %v5090, %v5091
        %v5093 = vrot.slane %v5092, 1
        %v5094 = vmax.f32 %v5092, %v5093
        %v5095 = vsel %vm5066, %v5062, -inf
        %v5096 = vrot.slane %v5095, 4
        %v5097 = vmax.f32 %v5095, %v5096
        %v5098 = vrot.slane %v5097, 2
        %v5099 = vmax.f32 %v5097, %v5098
        %v5100 = vrot.slane %v5099, 1
        %v5101 = vmax.f32 %v5099, %v5100
        %v5102 = vsel %vm5066, %v5063, -inf
        %v5103 = vrot.slane %v5102, 4
        %v5104 = vmax.f32 %v5102, %v5103
        %v5105 = vrot.slane %v5104, 2
        %v5106 = vmax.f32 %v5104, %v5105
        %v5107 = vrot.slane %v5106, 1
        %v5108 = vmax.f32 %v5106, %v5107
        %v5109 = vsel %vm5066, %v5064, -inf
        %v5110 = vrot.slane %v5109, 4
        %v5111 = vmax.f32 %v5109, %v5110
        %v5112 = vrot.slane %v5111, 2
        %v5113 = vmax.f32 %v5111, %v5112
        %v5114 = vrot.slane %v5113, 1
        %v5115 = vmax.f32 %v5113, %v5114
        %v5116 = vsel %vm5066, %v5065, -inf
        %v5117 = vrot.slane %v5116, 4
        %v5118 = vmax.f32 %v5116, %v5117
        %v5119 = vrot.slane %v5118, 2
        %v5120 = vmax.f32 %v5118, %v5119
        %v5121 = vrot.slane %v5120, 1
        %v5122 = vmax.f32 %v5120, %v5121
        %v5123 = vsub.f32 %v5058, %v5073
        %v5124 = vsub.f32 %v5059, %v5080
        %v5125 = vsub.f32 %v5060, %v5087
        %v5126 = vsub.f32 %v5061, %v5094
        %v5127 = vsub.f32 %v5062, %v5101
        %v5128 = vsub.f32 %v5063, %v5108
        %v5129 = vsub.f32 %v5064, %v5115
        %v5130 = vsub.f32 %v5065, %v5122
        %v5131 = vmul.f32 %v5123, 1.442695
        %v5132 = vpow.pop %v5131
        %v5133 = vmul.f32 %v5124, 1.442695
        %v5134 = vpow.pop %v5133
        %v5135 = vmul.f32 %v5125, 1.442695
        %v5136 = vpow.pop %v5135
        %v5137 = vmul.f32 %v5126, 1.442695
        %v5138 = vpow.pop %v5137
        %v5139 = vmul.f32 %v5127, 1.442695
        %v5140 = vpow.pop %v5139
        %v5141 = vmul.f32 %v5128, 1.442695
        %v5142 = vpow.pop %v5141
        %v5143 = vmul.f32 %v5129, 1.442695
        %v5144 = vpow.pop %v5143
        %v5145 = vmul.f32 %v5130, 1.442695
        %v5146 = vpow.pop %v5145
        %v5147 = vmul.f32 %v5132, %v3129
        %v5148 = vmul.f32 %v5134, %v3136
        %v5149 = vmul.f32 %v5136, %v3143
        %v5150 = vmul.f32 %v5138, %v3150
        %v5151 = vmul.f32 %v5140, %v3157
        %v5152 = vmul.f32 %v5142, %v3164
        %v5153 = vmul.f32 %v5144, %v3171
        %v5154 = vmul.f32 %v5146, %v3178
        %v5155 = vsel %vm5066, %v5147, 0.0
        %v5156 = vrot.slane %v5155, 4
        %v5157 = vadd.f32 %v5155, %v5156
        %v5158 = vrot.slane %v5157, 2
        %v5159 = vadd.f32 %v5157, %v5158
        %v5160 = vrot.slane %v5159, 1
        %v5161 = vadd.f32 %v5159, %v5160
        %v5162 = vsel %vm5066, %v5148, 0.0
        %v5163 = vrot.slane %v5162, 4
        %v5164 = vadd.f32 %v5162, %v5163
        %v5165 = vrot.slane %v5164, 2
        %v5166 = vadd.f32 %v5164, %v5165
        %v5167 = vrot.slane %v5166, 1
        %v5168 = vadd.f32 %v5166, %v5167
        %v5169 = vsel %vm5066, %v5149, 0.0
        %v5170 = vrot.slane %v5169, 4
        %v5171 = vadd.f32 %v5169, %v5170
        %v5172 = vrot.slane %v5171, 2
        %v5173 = vadd.f32 %v5171, %v5172
        %v5174 = vrot.slane %v5173, 1
        %v5175 = vadd.f32 %v5173, %v5174
        %v5176 = vsel %vm5066, %v5150, 0.0
        %v5177 = vrot.slane %v5176, 4
        %v5178 = vadd.f32 %v5176, %v5177
        %v5179 = vrot.slane %v5178, 2
        %v5180 = vadd.f32 %v5178, %v5179
        %v5181 = vrot.slane %v5180, 1
        %v5182 = vadd.f32 %v5180, %v5181
        %v5183 = vsel %vm5066, %v5151, 0.0
        %v5184 = vrot.slane %v5183, 4
        %v5185 = vadd.f32 %v5183, %v5184
        %v5186 = vrot.slane %v5185, 2
        %v5187 = vadd.f32 %v5185, %v5186
        %v5188 = vrot.slane %v5187, 1
        %v5189 = vadd.f32 %v5187, %v5188
        %v5190 = vsel %vm5066, %v5152, 0.0
        %v5191 = vrot.slane %v5190, 4
        %v5192 = vadd.f32 %v5190, %v5191
        %v5193 = vrot.slane %v5192, 2
        %v5194 = vadd.f32 %v5192, %v5193
        %v5195 = vrot.slane %v5194, 1
        %v5196 = vadd.f32 %v5194, %v5195
        %v5197 = vsel %vm5066, %v5153, 0.0
        %v5198 = vrot.slane %v5197, 4
        %v5199 = vadd.f32 %v5197, %v5198
        %v5200 = vrot.slane %v5199, 2
        %v5201 = vadd.f32 %v5199, %v5200
        %v5202 = vrot.slane %v5201, 1
        %v5203 = vadd.f32 %v5201, %v5202
        %v5204 = vsel %vm5066, %v5154, 0.0
        %v5205 = vrot.slane %v5204, 4
        %v5206 = vadd.f32 %v5204, %v5205
        %v5207 = vrot.slane %v5206, 2
        %v5208 = vadd.f32 %v5206, %v5207
        %v5209 = vrot.slane %v5208, 1
        %v5210 = vadd.f32 %v5208, %v5209
        %v5211 = vadd.f32 %v5161, 1e-10
        %v5212 = vadd.f32 %v5168, 1e-10
        %v5213 = vadd.f32 %v5175, 1e-10
        %v5214 = vadd.f32 %v5182, 1e-10
        %v5215 = vadd.f32 %v5189, 1e-10
        %v5216 = vadd.f32 %v5196, 1e-10
        %v5217 = vadd.f32 %v5203, 1e-10
        %v5218 = vadd.f32 %v5210, 1e-10
        %v5219 = vrcp.pop %v5211
        %v5220 = vrcp.pop %v5212
        %v5221 = vrcp.pop %v5213
        %v5222 = vrcp.pop %v5214
        %v5223 = vrcp.pop %v5215
        %v5224 = vrcp.pop %v5216
        %v5225 = vrcp.pop %v5217
        %v5226 = vrcp.pop %v5218
        %v5227 = vmul.f32 %v5147, %v5219
        %v5228 = vmul.f32 %v5148, %v5220
        %v5229 = vmul.f32 %v5149, %v5221
        %v5230 = vmul.f32 %v5150, %v5222
        %v5231 = vmul.f32 %v5151, %v5223
        %v5232 = vmul.f32 %v5152, %v5224
        %v5233 = vmul.f32 %v5153, %v5225
        %v5234 = vmul.f32 %v5154, %v5226
        %v5239 = vrot.slane %v4754, 4
        %v5240 = vrot.slane %v4756, 4
        %v5241 = vrot.slane %v4759, 4
        %v5242 = vrot.slane %v4761, 4
        %5248 = vset.pattern.permute.xlu0 0
        %5249 = vperm.xlu0 %5248, %v5227
        %v5250 = vpop.permute.xlu0 %5249
        %5253 = vset.pattern.permute.xlu0 0
        %5254 = vperm.xlu0 %5253, %v5228
        %v5255 = vpop.permute.xlu0 %5254
        %5258 = vset.pattern.permute.xlu0 0
        %5259 = vperm.xlu0 %5258, %v5229
        %v5260 = vpop.permute.xlu0 %5259
        %5263 = vset.pattern.permute.xlu0 0
        %5264 = vperm.xlu0 %5263, %v5230
        %v5265 = vpop.permute.xlu0 %5264
        %5268 = vset.pattern.permute.xlu0 0
        %5269 = vperm.xlu0 %5268, %v5231
        %v5270 = vpop.permute.xlu0 %5269
        %5273 = vset.pattern.permute.xlu0 0
        %5274 = vperm.xlu0 %5273, %v5232
        %v5275 = vpop.permute.xlu0 %5274
        %5278 = vset.pattern.permute.xlu0 0
        %5279 = vperm.xlu0 %5278, %v5233
        %v5280 = vpop.permute.xlu0 %5279
        %5283 = vset.pattern.permute.xlu0 0
        %5284 = vperm.xlu0 %5283, %v5234
        %v5285 = vpop.permute.xlu0 %5284
        %v5287 = vmul.f32 %v5250, %v4754
        %v5288 = vmul.f32 %v5255, %v5239
        %v5289 = vmul.f32 %v5260, %v4756
        %v5290 = vmul.f32 %v5265, %v5240
        %v5291 = vmul.f32 %v5270, %v4759
        %v5292 = vmul.f32 %v5275, %v5241
        %v5293 = vmul.f32 %v5280, %v4761
        %v5294 = vmul.f32 %v5285, %v5242
        %v5295 = vsel %vm5014, %v5287, 0.0
        %v5296 = vrot.slane %v5295, 4
        %v5297 = vadd.f32 %v5295, %v5296
        %v5298 = vrot.slane %v5297, 2
        %v5299 = vadd.f32 %v5297, %v5298
        %v5300 = vrot.slane %v5299, 1
        %v5301 = vadd.f32 %v5299, %v5300
        %v5302 = vsel %vm5014, %v5288, 0.0
        %v5303 = vrot.slane %v5302, 4
        %v5304 = vadd.f32 %v5302, %v5303
        %v5305 = vrot.slane %v5304, 2
        %v5306 = vadd.f32 %v5304, %v5305
        %v5307 = vrot.slane %v5306, 1
        %v5308 = vadd.f32 %v5306, %v5307
        %v5309 = vsel %vm5014, %v5289, 0.0
        %v5310 = vrot.slane %v5309, 4
        %v5311 = vadd.f32 %v5309, %v5310
        %v5312 = vrot.slane %v5311, 2
        %v5313 = vadd.f32 %v5311, %v5312
        %v5314 = vrot.slane %v5313, 1
        %v5315 = vadd.f32 %v5313, %v5314
        %v5316 = vsel %vm5014, %v5290, 0.0
        %v5317 = vrot.slane %v5316, 4
        %v5318 = vadd.f32 %v5316, %v5317
        %v5319 = vrot.slane %v5318, 2
        %v5320 = vadd.f32 %v5318, %v5319
        %v5321 = vrot.slane %v5320, 1
        %v5322 = vadd.f32 %v5320, %v5321
        %v5323 = vsel %vm5014, %v5291, 0.0
        %v5324 = vrot.slane %v5323, 4
        %v5325 = vadd.f32 %v5323, %v5324
        %v5326 = vrot.slane %v5325, 2
        %v5327 = vadd.f32 %v5325, %v5326
        %v5328 = vrot.slane %v5327, 1
        %v5329 = vadd.f32 %v5327, %v5328
        %v5330 = vsel %vm5014, %v5292, 0.0
        %v5331 = vrot.slane %v5330, 4
        %v5332 = vadd.f32 %v5330, %v5331
        %v5333 = vrot.slane %v5332, 2
        %v5334 = vadd.f32 %v5332, %v5333
        %v5335 = vrot.slane %v5334, 1
        %v5336 = vadd.f32 %v5334, %v5335
        %v5337 = vsel %vm5014, %v5293, 0.0
        %v5338 = vrot.slane %v5337, 4
        %v5339 = vadd.f32 %v5337, %v5338
        %v5340 = vrot.slane %v5339, 2
        %v5341 = vadd.f32 %v5339, %v5340
        %v5342 = vrot.slane %v5341, 1
        %v5343 = vadd.f32 %v5341, %v5342
        %v5344 = vsel %vm5014, %v5294, 0.0
        %v5345 = vrot.slane %v5344, 4
        %v5346 = vadd.f32 %v5344, %v5345
        %v5347 = vrot.slane %v5346, 2
        %v5348 = vadd.f32 %v5346, %v5347
        %v5349 = vrot.slane %v5348, 1
        %v5350 = vadd.f32 %v5348, %v5349
        %v5351 = vpack.c.bf16 %v5301, %v5301
        %v5352 = vpack.c.bf16 %v5308, %v5308
        %v5353 = vpack.c.bf16 %v5315, %v5315
        %v5354 = vpack.c.bf16 %v5322, %v5322
        %v5355 = vpack.c.bf16 %v5329, %v5329
        %v5356 = vpack.c.bf16 %v5336, %v5336
        %v5357 = vpack.c.bf16 %v5343, %v5343
        %v5358 = vpack.c.bf16 %v5350, %v5350
        %v5360 = vperm.slane %v2874, 0
        %v5370 = vunpack.c.l.b16 %v5351
        %v5371 = vunpack.c.l.b16 %v5352
        %v5372 = vunpack.c.l.b16 %v5353
        %v5373 = vunpack.c.l.b16 %v5354
        %v5374 = vunpack.c.l.b16 %v5355
        %v5375 = vunpack.c.l.b16 %v5356
        %v5376 = vunpack.c.l.b16 %v5357
        %v5377 = vunpack.c.l.b16 %v5358
        %v5378 = vsel %vm4644, %v5371, %v5370
        %v5379 = vsel %vm4646, %v5372, %v5378
        %v5380 = vsel %vm4648, %v5373, %v5379
        %v5381 = vsel %vm4650, %v5374, %v5380
        %v5382 = vsel %vm4652, %v5375, %v5381
        %v5383 = vsel %vm4654, %v5376, %v5382
        %v5384 = vsel %vm4656, %v5377, %v5383
        %v5385 = vpack.c.b16 %v5384, %v5384
        %v5403 = vunpack.c.l.b16 %v2858
        %v5404 = vunpack.c.l.b16 %v2859
        %v5405 = vunpack.c.l.b16 %v2860
        %v5406 = vunpack.c.l.b16 %v2861
        %v5407 = vunpack.c.l.b16 %v2862
        %v5408 = vunpack.c.l.b16 %v2863
        %v5409 = vunpack.c.l.b16 %v2864
        %v5410 = vunpack.c.l.b16 %v2865
        %v5411 = vunpack.c.l.b16 %v2866
        %v5412 = vunpack.c.l.b16 %v2867
        %v5413 = vunpack.c.l.b16 %v2868
        %v5414 = vunpack.c.l.b16 %v2869
        %v5415 = vunpack.c.l.b16 %v2870
        %v5416 = vunpack.c.l.b16 %v2871
        %v5417 = vunpack.c.l.b16 %v2872
        %v5418 = vunpack.c.l.b16 %v2873
        %v5419 = vpack.c.b16 %v5404, %v5403
        %v5420 = vpack.c.b16 %v5406, %v5405
        %v5421 = vpack.c.b16 %v5408, %v5407
        %v5422 = vpack.c.b16 %v5410, %v5409
        %v5423 = vpack.c.b16 %v5412, %v5411
        %v5424 = vpack.c.b16 %v5414, %v5413
        %v5425 = vpack.c.b16 %v5416, %v5415
        %v5426 = vpack.c.b16 %v5418, %v5417
        %5435 = vmatpush.bf16.msra.mxu0 %v5426
        %5436 = vmatpush.bf16.msra.mxu0 %v5425
        %5437 = vmatpush.bf16.msra.mxu0 %v5424
        %5438 = vmatpush.bf16.msra.mxu0 %v5423
        %5439 = vmatpush.bf16.msra.mxu0 %v5422
        %5440 = vmatpush.bf16.msra.mxu0 %v5421
        %5441 = vmatpush.bf16.msra.mxu0 %v5420
        %5442 = vmatpush.bf16.msra.mxu0 %v5419
        %5443 = vmatmul.bf16.gmra.mxu0 %v5385
        %v5444 = vpop.f32.mrf.mxu0
        %v5445 = vadd.f32 %v5360, %v5444
        %v5446 = vpop.f32.mrf.mxu0
        %5447 = vdwg.mxu0
        %v5448 = vmax.f32 %v5445, 0.0
        %v5481 = vunpack.c.l.b16 %v2621
        %v5482 = vunpack.c.l.b16 %v2622
        %v5483 = vunpack.c.l.b16 %v2623
        %v5484 = vunpack.c.l.b16 %v2624
        %v5485 = vunpack.c.l.b16 %v2625
        %v5486 = vunpack.c.l.b16 %v2626
        %v5487 = vunpack.c.l.b16 %v2627
        %v5488 = vunpack.c.l.b16 %v2628
        %v5489 = vunpack.c.l.b16 %v2629
        %v5490 = vunpack.c.l.b16 %v2630
        %v5491 = vunpack.c.l.b16 %v2631
        %v5492 = vunpack.c.l.b16 %v2632
        %v5493 = vunpack.c.l.b16 %v2633
        %v5494 = vunpack.c.l.b16 %v2634
        %v5495 = vunpack.c.l.b16 %v2635
        %v5496 = vunpack.c.l.b16 %v2636
        %v5497 = vunpack.c.l.b16 %v2637
        %v5498 = vunpack.c.l.b16 %v2638
        %v5499 = vunpack.c.l.b16 %v2639
        %v5500 = vunpack.c.l.b16 %v2640
        %v5501 = vunpack.c.l.b16 %v2641
        %v5502 = vunpack.c.l.b16 %v2642
        %v5503 = vunpack.c.l.b16 %v2643
        %v5504 = vunpack.c.l.b16 %v2644
        %v5505 = vunpack.c.l.b16 %v2645
        %v5506 = vunpack.c.l.b16 %v2646
        %v5507 = vunpack.c.l.b16 %v2647
        %v5508 = vunpack.c.l.b16 %v2648
        %v5509 = vunpack.c.l.b16 %v2649
        %v5510 = vunpack.c.l.b16 %v2650
        %v5511 = vunpack.c.l.b16 %v2651
        %v5512 = vunpack.c.l.b16 %v2652
        %v5513 = vpack.c.b16 %v5482, %v5481
        %v5514 = vpack.c.b16 %v5484, %v5483
        %v5515 = vpack.c.b16 %v5486, %v5485
        %v5516 = vpack.c.b16 %v5488, %v5487
        %v5517 = vpack.c.b16 %v5490, %v5489
        %v5518 = vpack.c.b16 %v5492, %v5491
        %v5519 = vpack.c.b16 %v5494, %v5493
        %v5520 = vpack.c.b16 %v5496, %v5495
        %v5521 = vpack.c.b16 %v5498, %v5497
        %v5522 = vpack.c.b16 %v5500, %v5499
        %v5523 = vpack.c.b16 %v5502, %v5501
        %v5524 = vpack.c.b16 %v5504, %v5503
        %v5525 = vpack.c.b16 %v5506, %v5505
        %v5526 = vpack.c.b16 %v5508, %v5507
        %v5527 = vpack.c.b16 %v5510, %v5509
        %v5528 = vpack.c.b16 %v5512, %v5511
        %5545 = vmatpush.bf16.msra.mxu0 %v3767
        %5546 = vmatpush.bf16.msra.mxu0 %v3766
        %5547 = vmatpush.bf16.msra.mxu0 %v3765
        %5548 = vmatpush.bf16.msra.mxu0 %v3764
        %5549 = vmatpush.bf16.msra.mxu0 %v3763
        %5550 = vmatpush.bf16.msra.mxu0 %v3762
        %5551 = vmatpush.bf16.msra.mxu0 %v3761
        %5552 = vmatpush.bf16.msra.mxu0 %v3760
        %5553 = vmatmul.bf16.gmra.mxu0 %v5513
        %v5554 = vpop.f32.mrf.mxu0
        %v5555 = vadd.f32 0.0, %v5554
        %v5556 = vpop.f32.mrf.mxu0
        %v5557 = vadd.f32 0.0, %v5556
        %5558 = vmatmul.bf16.gmra.mxu0 %v5514
        %v5559 = vpop.f32.mrf.mxu0
        %v5560 = vadd.f32 0.0, %v5559
        %v5561 = vpop.f32.mrf.mxu0
        %v5562 = vadd.f32 0.0, %v5561
        %5563 = vmatmul.bf16.gmra.mxu0 %v5515
        %v5564 = vpop.f32.mrf.mxu0
        %v5565 = vadd.f32 0.0, %v5564
        %v5566 = vpop.f32.mrf.mxu0
        %v5567 = vadd.f32 0.0, %v5566
        %5568 = vmatmul.bf16.gmra.mxu0 %v5516
        %v5569 = vpop.f32.mrf.mxu0
        %v5570 = vadd.f32 0.0, %v5569
        %v5571 = vpop.f32.mrf.mxu0
        %v5572 = vadd.f32 0.0, %v5571
        %5573 = vmatmul.bf16.gmra.mxu0 %v5517
        %v5574 = vpop.f32.mrf.mxu0
        %v5575 = vadd.f32 0.0, %v5574
        %v5576 = vpop.f32.mrf.mxu0
        %v5577 = vadd.f32 0.0, %v5576
        %5578 = vmatmul.bf16.gmra.mxu0 %v5518
        %v5579 = vpop.f32.mrf.mxu0
        %v5580 = vadd.f32 0.0, %v5579
        %v5581 = vpop.f32.mrf.mxu0
        %v5582 = vadd.f32 0.0, %v5581
        %5583 = vmatmul.bf16.gmra.mxu0 %v5519
        %v5584 = vpop.f32.mrf.mxu0
        %v5585 = vadd.f32 0.0, %v5584
        %v5586 = vpop.f32.mrf.mxu0
        %v5587 = vadd.f32 0.0, %v5586
        %5588 = vmatmul.bf16.gmra.mxu0 %v5520
        %v5589 = vpop.f32.mrf.mxu0
        %v5590 = vadd.f32 0.0, %v5589
        %v5591 = vpop.f32.mrf.mxu0
        %v5592 = vadd.f32 0.0, %v5591
        %5593 = vmatmul.bf16.gmra.mxu0 %v5521
        %v5594 = vpop.f32.mrf.mxu0
        %v5595 = vadd.f32 0.0, %v5594
        %v5596 = vpop.f32.mrf.mxu0
        %v5597 = vadd.f32 0.0, %v5596
        %5598 = vmatmul.bf16.gmra.mxu0 %v5522
        %v5599 = vpop.f32.mrf.mxu0
        %v5600 = vadd.f32 0.0, %v5599
        %v5601 = vpop.f32.mrf.mxu0
        %v5602 = vadd.f32 0.0, %v5601
        %5603 = vmatmul.bf16.gmra.mxu0 %v5523
        %v5604 = vpop.f32.mrf.mxu0
        %v5605 = vadd.f32 0.0, %v5604
        %v5606 = vpop.f32.mrf.mxu0
        %v5607 = vadd.f32 0.0, %v5606
        %5608 = vmatmul.bf16.gmra.mxu0 %v5524
        %v5609 = vpop.f32.mrf.mxu0
        %v5610 = vadd.f32 0.0, %v5609
        %v5611 = vpop.f32.mrf.mxu0
        %v5612 = vadd.f32 0.0, %v5611
        %5613 = vmatmul.bf16.gmra.mxu0 %v5525
        %v5614 = vpop.f32.mrf.mxu0
        %v5615 = vadd.f32 0.0, %v5614
        %v5616 = vpop.f32.mrf.mxu0
        %v5617 = vadd.f32 0.0, %v5616
        %5618 = vmatmul.bf16.gmra.mxu0 %v5526
        %v5619 = vpop.f32.mrf.mxu0
        %v5620 = vadd.f32 0.0, %v5619
        %v5621 = vpop.f32.mrf.mxu0
        %v5622 = vadd.f32 0.0, %v5621
        %5623 = vmatmul.bf16.gmra.mxu0 %v5527
        %v5624 = vpop.f32.mrf.mxu0
        %v5625 = vadd.f32 0.0, %v5624
        %v5626 = vpop.f32.mrf.mxu0
        %v5627 = vadd.f32 0.0, %v5626
        %5628 = vmatmul.bf16.gmra.mxu0 %v5528
        %v5629 = vpop.f32.mrf.mxu0
        %v5630 = vadd.f32 0.0, %v5629
        %v5631 = vpop.f32.mrf.mxu0
        %v5632 = vadd.f32 0.0, %v5631
        %5633 = vdwg.mxu0
        %v5666 = vunpack.c.l.b16 %v2589
        %v5667 = vunpack.c.l.b16 %v2590
        %v5668 = vunpack.c.l.b16 %v2591
        %v5669 = vunpack.c.l.b16 %v2592
        %v5670 = vunpack.c.l.b16 %v2593
        %v5671 = vunpack.c.l.b16 %v2594
        %v5672 = vunpack.c.l.b16 %v2595
        %v5673 = vunpack.c.l.b16 %v2596
        %v5674 = vunpack.c.l.b16 %v2597
        %v5675 = vunpack.c.l.b16 %v2598
        %v5676 = vunpack.c.l.b16 %v2599
        %v5677 = vunpack.c.l.b16 %v2600
        %v5678 = vunpack.c.l.b16 %v2601
        %v5679 = vunpack.c.l.b16 %v2602
        %v5680 = vunpack.c.l.b16 %v2603
        %v5681 = vunpack.c.l.b16 %v2604
        %v5682 = vunpack.c.l.b16 %v2605
        %v5683 = vunpack.c.l.b16 %v2606
        %v5684 = vunpack.c.l.b16 %v2607
        %v5685 = vunpack.c.l.b16 %v2608
        %v5686 = vunpack.c.l.b16 %v2609
        %v5687 = vunpack.c.l.b16 %v2610
        %v5688 = vunpack.c.l.b16 %v2611
        %v5689 = vunpack.c.l.b16 %v2612
        %v5690 = vunpack.c.l.b16 %v2613
        %v5691 = vunpack.c.l.b16 %v2614
        %v5692 = vunpack.c.l.b16 %v2615
        %v5693 = vunpack.c.l.b16 %v2616
        %v5694 = vunpack.c.l.b16 %v2617
        %v5695 = vunpack.c.l.b16 %v2618
        %v5696 = vunpack.c.l.b16 %v2619
        %v5697 = vunpack.c.l.b16 %v2620
        %v5698 = vpack.c.b16 %v5667, %v5666
        %v5699 = vpack.c.b16 %v5669, %v5668
        %v5700 = vpack.c.b16 %v5671, %v5670
        %v5701 = vpack.c.b16 %v5673, %v5672
        %v5702 = vpack.c.b16 %v5675, %v5674
        %v5703 = vpack.c.b16 %v5677, %v5676
        %v5704 = vpack.c.b16 %v5679, %v5678
        %v5705 = vpack.c.b16 %v5681, %v5680
        %v5706 = vpack.c.b16 %v5683, %v5682
        %v5707 = vpack.c.b16 %v5685, %v5684
        %v5708 = vpack.c.b16 %v5687, %v5686
        %v5709 = vpack.c.b16 %v5689, %v5688
        %v5710 = vpack.c.b16 %v5691, %v5690
        %v5711 = vpack.c.b16 %v5693, %v5692
        %v5712 = vpack.c.b16 %v5695, %v5694
        %v5713 = vpack.c.b16 %v5697, %v5696
        %5730 = vmatpush.bf16.msra.mxu0 %v3868
        %5731 = vmatpush.bf16.msra.mxu0 %v3867
        %5732 = vmatpush.bf16.msra.mxu0 %v3866
        %5733 = vmatpush.bf16.msra.mxu0 %v3865
        %5734 = vmatpush.bf16.msra.mxu0 %v3864
        %5735 = vmatpush.bf16.msra.mxu0 %v3863
        %5736 = vmatpush.bf16.msra.mxu0 %v3862
        %5737 = vmatpush.bf16.msra.mxu0 %v3861
        %5738 = vmatmul.bf16.gmra.mxu0 %v5698
        %v5739 = vpop.f32.mrf.mxu0
        %v5740 = vadd.f32 %v5555, %v5739
        %v5741 = vpop.f32.mrf.mxu0
        %v5742 = vadd.f32 %v5557, %v5741
        %5743 = vmatmul.bf16.gmra.mxu0 %v5699
        %v5744 = vpop.f32.mrf.mxu0
        %v5745 = vadd.f32 %v5560, %v5744
        %v5746 = vpop.f32.mrf.mxu0
        %v5747 = vadd.f32 %v5562, %v5746
        %5748 = vmatmul.bf16.gmra.mxu0 %v5700
        %v5749 = vpop.f32.mrf.mxu0
        %v5750 = vadd.f32 %v5565, %v5749
        %v5751 = vpop.f32.mrf.mxu0
        %v5752 = vadd.f32 %v5567, %v5751
        %5753 = vmatmul.bf16.gmra.mxu0 %v5701
        %v5754 = vpop.f32.mrf.mxu0
        %v5755 = vadd.f32 %v5570, %v5754
        %v5756 = vpop.f32.mrf.mxu0
        %v5757 = vadd.f32 %v5572, %v5756
        %5758 = vmatmul.bf16.gmra.mxu0 %v5702
        %v5759 = vpop.f32.mrf.mxu0
        %v5760 = vadd.f32 %v5575, %v5759
        %v5761 = vpop.f32.mrf.mxu0
        %v5762 = vadd.f32 %v5577, %v5761
        %5763 = vmatmul.bf16.gmra.mxu0 %v5703
        %v5764 = vpop.f32.mrf.mxu0
        %v5765 = vadd.f32 %v5580, %v5764
        %v5766 = vpop.f32.mrf.mxu0
        %v5767 = vadd.f32 %v5582, %v5766
        %5768 = vmatmul.bf16.gmra.mxu0 %v5704
        %v5769 = vpop.f32.mrf.mxu0
        %v5770 = vadd.f32 %v5585, %v5769
        %v5771 = vpop.f32.mrf.mxu0
        %v5772 = vadd.f32 %v5587, %v5771
        %5773 = vmatmul.bf16.gmra.mxu0 %v5705
        %v5774 = vpop.f32.mrf.mxu0
        %v5775 = vadd.f32 %v5590, %v5774
        %v5776 = vpop.f32.mrf.mxu0
        %v5777 = vadd.f32 %v5592, %v5776
        %5778 = vmatmul.bf16.gmra.mxu0 %v5706
        %v5779 = vpop.f32.mrf.mxu0
        %v5780 = vadd.f32 %v5595, %v5779
        %v5781 = vpop.f32.mrf.mxu0
        %v5782 = vadd.f32 %v5597, %v5781
        %5783 = vmatmul.bf16.gmra.mxu0 %v5707
        %v5784 = vpop.f32.mrf.mxu0
        %v5785 = vadd.f32 %v5600, %v5784
        %v5786 = vpop.f32.mrf.mxu0
        %v5787 = vadd.f32 %v5602, %v5786
        %5788 = vmatmul.bf16.gmra.mxu0 %v5708
        %v5789 = vpop.f32.mrf.mxu0
        %v5790 = vadd.f32 %v5605, %v5789
        %v5791 = vpop.f32.mrf.mxu0
        %v5792 = vadd.f32 %v5607, %v5791
        %5793 = vmatmul.bf16.gmra.mxu0 %v5709
        %v5794 = vpop.f32.mrf.mxu0
        %v5795 = vadd.f32 %v5610, %v5794
        %v5796 = vpop.f32.mrf.mxu0
        %v5797 = vadd.f32 %v5612, %v5796
        %5798 = vmatmul.bf16.gmra.mxu0 %v5710
        %v5799 = vpop.f32.mrf.mxu0
        %v5800 = vadd.f32 %v5615, %v5799
        %v5801 = vpop.f32.mrf.mxu0
        %v5802 = vadd.f32 %v5617, %v5801
        %5803 = vmatmul.bf16.gmra.mxu0 %v5711
        %v5804 = vpop.f32.mrf.mxu0
        %v5805 = vadd.f32 %v5620, %v5804
        %v5806 = vpop.f32.mrf.mxu0
        %v5807 = vadd.f32 %v5622, %v5806
        %5808 = vmatmul.bf16.gmra.mxu0 %v5712
        %v5809 = vpop.f32.mrf.mxu0
        %v5810 = vadd.f32 %v5625, %v5809
        %v5811 = vpop.f32.mrf.mxu0
        %v5812 = vadd.f32 %v5627, %v5811
        %5813 = vmatmul.bf16.gmra.mxu0 %v5713
        %v5814 = vpop.f32.mrf.mxu0
        %v5815 = vadd.f32 %v5630, %v5814
        %v5816 = vpop.f32.mrf.mxu0
        %v5817 = vadd.f32 %v5632, %v5816
        %5818 = vdwg.mxu0
        %v5819 = vadd.f32 %v5740, %v3907
        %v5820 = vadd.f32 %v5742, %v3907
        %v5821 = vadd.f32 %v5745, %v3907
        %v5822 = vadd.f32 %v5747, %v3907
        %v5823 = vadd.f32 %v5750, %v3907
        %v5824 = vadd.f32 %v5752, %v3907
        %v5825 = vadd.f32 %v5755, %v3907
        %v5826 = vadd.f32 %v5757, %v3907
        %v5827 = vadd.f32 %v5760, %v3907
        %v5828 = vadd.f32 %v5762, %v3907
        %v5829 = vadd.f32 %v5765, %v3907
        %v5830 = vadd.f32 %v5767, %v3907
        %v5831 = vadd.f32 %v5770, %v3907
        %v5832 = vadd.f32 %v5772, %v3907
        %v5833 = vadd.f32 %v5775, %v3907
        %v5834 = vadd.f32 %v5777, %v3907
        %v5835 = vadd.f32 %v5780, %v3907
        %v5836 = vadd.f32 %v5782, %v3907
        %v5837 = vadd.f32 %v5785, %v3907
        %v5838 = vadd.f32 %v5787, %v3907
        %v5839 = vadd.f32 %v5790, %v3907
        %v5840 = vadd.f32 %v5792, %v3907
        %v5841 = vadd.f32 %v5795, %v3907
        %v5842 = vadd.f32 %v5797, %v3907
        %v5843 = vadd.f32 %v5800, %v3907
        %v5844 = vadd.f32 %v5802, %v3907
        %v5845 = vadd.f32 %v5805, %v3907
        %v5846 = vadd.f32 %v5807, %v3907
        %v5847 = vadd.f32 %v5810, %v3907
        %v5848 = vadd.f32 %v5812, %v3907
        %v5849 = vadd.f32 %v5815, %v3907
        %v5850 = vadd.f32 %v5817, %v3907
        %vm5851 = vcmp.gt.f32.partialorder %v5819, 0.0
        %vm5852 = vcmp.gt.f32.partialorder %v5820, 0.0
        %vm5853 = vcmp.gt.f32.partialorder %v5821, 0.0
        %vm5854 = vcmp.gt.f32.partialorder %v5822, 0.0
        %vm5855 = vcmp.gt.f32.partialorder %v5823, 0.0
        %vm5856 = vcmp.gt.f32.partialorder %v5824, 0.0
        %vm5857 = vcmp.gt.f32.partialorder %v5825, 0.0
        %vm5858 = vcmp.gt.f32.partialorder %v5826, 0.0
        %vm5859 = vcmp.gt.f32.partialorder %v5827, 0.0
        %vm5860 = vcmp.gt.f32.partialorder %v5828, 0.0
        %vm5861 = vcmp.gt.f32.partialorder %v5829, 0.0
        %vm5862 = vcmp.gt.f32.partialorder %v5830, 0.0
        %vm5863 = vcmp.gt.f32.partialorder %v5831, 0.0
        %vm5864 = vcmp.gt.f32.partialorder %v5832, 0.0
        %vm5865 = vcmp.gt.f32.partialorder %v5833, 0.0
        %vm5866 = vcmp.gt.f32.partialorder %v5834, 0.0
        %vm5867 = vcmp.gt.f32.partialorder %v5835, 0.0
        %vm5868 = vcmp.gt.f32.partialorder %v5836, 0.0
        %vm5869 = vcmp.gt.f32.partialorder %v5837, 0.0
        %vm5870 = vcmp.gt.f32.partialorder %v5838, 0.0
        %vm5871 = vcmp.gt.f32.partialorder %v5839, 0.0
        %vm5872 = vcmp.gt.f32.partialorder %v5840, 0.0
        %vm5873 = vcmp.gt.f32.partialorder %v5841, 0.0
        %vm5874 = vcmp.gt.f32.partialorder %v5842, 0.0
        %vm5875 = vcmp.gt.f32.partialorder %v5843, 0.0
        %vm5876 = vcmp.gt.f32.partialorder %v5844, 0.0
        %vm5877 = vcmp.gt.f32.partialorder %v5845, 0.0
        %vm5878 = vcmp.gt.f32.partialorder %v5846, 0.0
        %vm5879 = vcmp.gt.f32.partialorder %v5847, 0.0
        %vm5880 = vcmp.gt.f32.partialorder %v5848, 0.0
        %vm5881 = vcmp.gt.f32.partialorder %v5849, 0.0
        %vm5882 = vcmp.gt.f32.partialorder %v5850, 0.0
        %v5883 = vmul.f32 %v5819, 0.2
        %v5884 = vmul.f32 %v5820, 0.2
        %v5885 = vmul.f32 %v5821, 0.2
        %v5886 = vmul.f32 %v5822, 0.2
        %v5887 = vmul.f32 %v5823, 0.2
        %v5888 = vmul.f32 %v5824, 0.2
        %v5889 = vmul.f32 %v5825, 0.2
        %v5890 = vmul.f32 %v5826, 0.2
        %v5891 = vmul.f32 %v5827, 0.2
        %v5892 = vmul.f32 %v5828, 0.2
        %v5893 = vmul.f32 %v5829, 0.2
        %v5894 = vmul.f32 %v5830, 0.2
        %v5895 = vmul.f32 %v5831, 0.2
        %v5896 = vmul.f32 %v5832, 0.2
        %v5897 = vmul.f32 %v5833, 0.2
        %v5898 = vmul.f32 %v5834, 0.2
        %v5899 = vmul.f32 %v5835, 0.2
        %v5900 = vmul.f32 %v5836, 0.2
        %v5901 = vmul.f32 %v5837, 0.2
        %v5902 = vmul.f32 %v5838, 0.2
        %v5903 = vmul.f32 %v5839, 0.2
        %v5904 = vmul.f32 %v5840, 0.2
        %v5905 = vmul.f32 %v5841, 0.2
        %v5906 = vmul.f32 %v5842, 0.2
        %v5907 = vmul.f32 %v5843, 0.2
        %v5908 = vmul.f32 %v5844, 0.2
        %v5909 = vmul.f32 %v5845, 0.2
        %v5910 = vmul.f32 %v5846, 0.2
        %v5911 = vmul.f32 %v5847, 0.2
        %v5912 = vmul.f32 %v5848, 0.2
        %v5913 = vmul.f32 %v5849, 0.2
        %v5914 = vmul.f32 %v5850, 0.2
        %v5915 = vsel %vm5851, %v5819, %v5883
        %v5916 = vsel %vm5852, %v5820, %v5884
        %v5917 = vsel %vm5853, %v5821, %v5885
        %v5918 = vsel %vm5854, %v5822, %v5886
        %v5919 = vsel %vm5855, %v5823, %v5887
        %v5920 = vsel %vm5856, %v5824, %v5888
        %v5921 = vsel %vm5857, %v5825, %v5889
        %v5922 = vsel %vm5858, %v5826, %v5890
        %v5923 = vsel %vm5859, %v5827, %v5891
        %v5924 = vsel %vm5860, %v5828, %v5892
        %v5925 = vsel %vm5861, %v5829, %v5893
        %v5926 = vsel %vm5862, %v5830, %v5894
        %v5927 = vsel %vm5863, %v5831, %v5895
        %v5928 = vsel %vm5864, %v5832, %v5896
        %v5929 = vsel %vm5865, %v5833, %v5897
        %v5930 = vsel %vm5866, %v5834, %v5898
        %v5931 = vsel %vm5867, %v5835, %v5899
        %v5932 = vsel %vm5868, %v5836, %v5900
        %v5933 = vsel %vm5869, %v5837, %v5901
        %v5934 = vsel %vm5870, %v5838, %v5902
        %v5935 = vsel %vm5871, %v5839, %v5903
        %v5936 = vsel %vm5872, %v5840, %v5904
        %v5937 = vsel %vm5873, %v5841, %v5905
        %v5938 = vsel %vm5874, %v5842, %v5906
        %v5939 = vsel %vm5875, %v5843, %v5907
        %v5940 = vsel %vm5876, %v5844, %v5908
        %v5941 = vsel %vm5877, %v5845, %v5909
        %v5942 = vsel %vm5878, %v5846, %v5910
        %v5943 = vsel %vm5879, %v5847, %v5911
        %v5944 = vsel %vm5880, %v5848, %v5912
        %v5945 = vsel %vm5881, %v5849, %v5913
        %v5946 = vsel %vm5882, %v5850, %v5914
        %v5947 = vpack.c.bf16 %v5916, %v5915
        %v5948 = vpack.c.bf16 %v5918, %v5917
        %v5949 = vpack.c.bf16 %v5920, %v5919
        %v5950 = vpack.c.bf16 %v5922, %v5921
        %v5951 = vpack.c.bf16 %v5924, %v5923
        %v5952 = vpack.c.bf16 %v5926, %v5925
        %v5953 = vpack.c.bf16 %v5928, %v5927
        %v5954 = vpack.c.bf16 %v5930, %v5929
        %v5955 = vpack.c.bf16 %v5932, %v5931
        %v5956 = vpack.c.bf16 %v5934, %v5933
        %v5957 = vpack.c.bf16 %v5936, %v5935
        %v5958 = vpack.c.bf16 %v5938, %v5937
        %v5959 = vpack.c.bf16 %v5940, %v5939
        %v5960 = vpack.c.bf16 %v5942, %v5941
        %v5961 = vpack.c.bf16 %v5944, %v5943
        %v5962 = vpack.c.bf16 %v5946, %v5945
        %5963 = vmatpush.bf16.msra.mxu0 %v3987
        %5964 = vmatpush.bf16.msra.mxu0 %v3986
        %5965 = vmatpush.bf16.msra.mxu0 %v3985
        %5966 = vmatpush.bf16.msra.mxu0 %v3984
        %5967 = vmatpush.bf16.msra.mxu0 %v3983
        %5968 = vmatpush.bf16.msra.mxu0 %v3982
        %5969 = vmatpush.bf16.msra.mxu0 %v3981
        %5970 = vmatpush.bf16.msra.mxu0 %v3980
        %5971 = vmatmul.bf16.gmra.mxu0 %v5947
        %v5972 = vpop.f32.mrf.mxu0
        %v5973 = vadd.f32 %v3946, %v5972
        %v5974 = vpop.f32.mrf.mxu0
        %v5975 = vadd.f32 %v3946, %v5974
        %5976 = vmatmul.bf16.gmra.mxu0 %v5948
        %v5977 = vpop.f32.mrf.mxu0
        %v5978 = vadd.f32 %v3946, %v5977
        %v5979 = vpop.f32.mrf.mxu0
        %v5980 = vadd.f32 %v3946, %v5979
        %5981 = vmatmul.bf16.gmra.mxu0 %v5949
        %v5982 = vpop.f32.mrf.mxu0
        %v5983 = vadd.f32 %v3946, %v5982
        %v5984 = vpop.f32.mrf.mxu0
        %v5985 = vadd.f32 %v3946, %v5984
        %5986 = vmatmul.bf16.gmra.mxu0 %v5950
        %v5987 = vpop.f32.mrf.mxu0
        %v5988 = vadd.f32 %v3946, %v5987
        %v5989 = vpop.f32.mrf.mxu0
        %v5990 = vadd.f32 %v3946, %v5989
        %5991 = vmatmul.bf16.gmra.mxu0 %v5951
        %v5992 = vpop.f32.mrf.mxu0
        %v5993 = vadd.f32 %v3946, %v5992
        %v5994 = vpop.f32.mrf.mxu0
        %v5995 = vadd.f32 %v3946, %v5994
        %5996 = vmatmul.bf16.gmra.mxu0 %v5952
        %v5997 = vpop.f32.mrf.mxu0
        %v5998 = vadd.f32 %v3946, %v5997
        %v5999 = vpop.f32.mrf.mxu0
        %v6000 = vadd.f32 %v3946, %v5999
        %6001 = vmatmul.bf16.gmra.mxu0 %v5953
        %v6002 = vpop.f32.mrf.mxu0
        %v6003 = vadd.f32 %v3946, %v6002
        %v6004 = vpop.f32.mrf.mxu0
        %v6005 = vadd.f32 %v3946, %v6004
        %6006 = vmatmul.bf16.gmra.mxu0 %v5954
        %v6007 = vpop.f32.mrf.mxu0
        %v6008 = vadd.f32 %v3946, %v6007
        %v6009 = vpop.f32.mrf.mxu0
        %v6010 = vadd.f32 %v3946, %v6009
        %6011 = vmatmul.bf16.gmra.mxu0 %v5955
        %v6012 = vpop.f32.mrf.mxu0
        %v6013 = vadd.f32 %v3946, %v6012
        %v6014 = vpop.f32.mrf.mxu0
        %v6015 = vadd.f32 %v3946, %v6014
        %6016 = vmatmul.bf16.gmra.mxu0 %v5956
        %v6017 = vpop.f32.mrf.mxu0
        %v6018 = vadd.f32 %v3946, %v6017
        %v6019 = vpop.f32.mrf.mxu0
        %v6020 = vadd.f32 %v3946, %v6019
        %6021 = vmatmul.bf16.gmra.mxu0 %v5957
        %v6022 = vpop.f32.mrf.mxu0
        %v6023 = vadd.f32 %v3946, %v6022
        %v6024 = vpop.f32.mrf.mxu0
        %v6025 = vadd.f32 %v3946, %v6024
        %6026 = vmatmul.bf16.gmra.mxu0 %v5958
        %v6027 = vpop.f32.mrf.mxu0
        %v6028 = vadd.f32 %v3946, %v6027
        %v6029 = vpop.f32.mrf.mxu0
        %v6030 = vadd.f32 %v3946, %v6029
        %6031 = vmatmul.bf16.gmra.mxu0 %v5959
        %v6032 = vpop.f32.mrf.mxu0
        %v6033 = vadd.f32 %v3946, %v6032
        %v6034 = vpop.f32.mrf.mxu0
        %v6035 = vadd.f32 %v3946, %v6034
        %6036 = vmatmul.bf16.gmra.mxu0 %v5960
        %v6037 = vpop.f32.mrf.mxu0
        %v6038 = vadd.f32 %v3946, %v6037
        %v6039 = vpop.f32.mrf.mxu0
        %v6040 = vadd.f32 %v3946, %v6039
        %6041 = vmatmul.bf16.gmra.mxu0 %v5961
        %v6042 = vpop.f32.mrf.mxu0
        %v6043 = vadd.f32 %v3946, %v6042
        %v6044 = vpop.f32.mrf.mxu0
        %v6045 = vadd.f32 %v3946, %v6044
        %6046 = vmatmul.bf16.gmra.mxu0 %v5962
        %v6047 = vpop.f32.mrf.mxu0
        %v6048 = vadd.f32 %v3946, %v6047
        %v6049 = vpop.f32.mrf.mxu0
        %v6050 = vadd.f32 %v3946, %v6049
        %6051 = vdwg.mxu0
        %v6052 = vpack.c.bf16 %v5975, %v5973
        %v6053 = vpack.c.bf16 %v5980, %v5978
        %v6054 = vpack.c.bf16 %v5985, %v5983
        %v6055 = vpack.c.bf16 %v5990, %v5988
        %v6056 = vpack.c.bf16 %v5995, %v5993
        %v6057 = vpack.c.bf16 %v6000, %v5998
        %v6058 = vpack.c.bf16 %v6005, %v6003
        %v6059 = vpack.c.bf16 %v6010, %v6008
        %v6060 = vpack.c.bf16 %v6015, %v6013
        %v6061 = vpack.c.bf16 %v6020, %v6018
        %v6062 = vpack.c.bf16 %v6025, %v6023
        %v6063 = vpack.c.bf16 %v6030, %v6028
        %v6064 = vpack.c.bf16 %v6035, %v6033
        %v6065 = vpack.c.bf16 %v6040, %v6038
        %v6066 = vpack.c.bf16 %v6045, %v6043
        %v6067 = vpack.c.bf16 %v6050, %v6048
        %v6069 = vperm.slane %v2703, 0
        %6071 = vmatpush.bf16.msra.mxu0 %v3676
        %6072 = vmatpush.bf16.msra.mxu0 %v3675
        %6073 = vmatpush.bf16.msra.mxu0 %v3674
        %6074 = vmatpush.bf16.msra.mxu0 %v3673
        %6075 = vmatpush.bf16.msra.mxu0 %v3672
        %6076 = vmatpush.bf16.msra.mxu0 %v3671
        %6077 = vmatpush.bf16.msra.mxu0 %v3670
        %6078 = vmatpush.bf16.msra.mxu0 %v3669
        %6079 = vmatmul.bf16.gmra.mxu0 %v6052
        %v6080 = vpop.f32.mrf.mxu0
        %v6081 = vadd.f32 %v6069, %v6080
        %v6082 = vpop.f32.mrf.mxu0
        %v6083 = vadd.f32 %v6069, %v6082
        %6084 = vmatmul.bf16.gmra.mxu0 %v6053
        %v6085 = vpop.f32.mrf.mxu0
        %v6086 = vadd.f32 %v6069, %v6085
        %v6087 = vpop.f32.mrf.mxu0
        %v6088 = vadd.f32 %v6069, %v6087
        %6089 = vmatmul.bf16.gmra.mxu0 %v6054
        %v6090 = vpop.f32.mrf.mxu0
        %v6091 = vadd.f32 %v6069, %v6090
        %v6092 = vpop.f32.mrf.mxu0
        %v6093 = vadd.f32 %v6069, %v6092
        %6094 = vmatmul.bf16.gmra.mxu0 %v6055
        %v6095 = vpop.f32.mrf.mxu0
        %v6096 = vadd.f32 %v6069, %v6095
        %v6097 = vpop.f32.mrf.mxu0
        %v6098 = vadd.f32 %v6069, %v6097
        %6099 = vmatmul.bf16.gmra.mxu0 %v6056
        %v6100 = vpop.f32.mrf.mxu0
        %v6101 = vadd.f32 %v6069, %v6100
        %v6102 = vpop.f32.mrf.mxu0
        %v6103 = vadd.f32 %v6069, %v6102
        %6104 = vmatmul.bf16.gmra.mxu0 %v6057
        %v6105 = vpop.f32.mrf.mxu0
        %v6106 = vadd.f32 %v6069, %v6105
        %v6107 = vpop.f32.mrf.mxu0
        %v6108 = vadd.f32 %v6069, %v6107
        %6109 = vmatmul.bf16.gmra.mxu0 %v6058
        %v6110 = vpop.f32.mrf.mxu0
        %v6111 = vadd.f32 %v6069, %v6110
        %v6112 = vpop.f32.mrf.mxu0
        %v6113 = vadd.f32 %v6069, %v6112
        %6114 = vmatmul.bf16.gmra.mxu0 %v6059
        %v6115 = vpop.f32.mrf.mxu0
        %v6116 = vadd.f32 %v6069, %v6115
        %v6117 = vpop.f32.mrf.mxu0
        %v6118 = vadd.f32 %v6069, %v6117
        %6119 = vmatmul.bf16.gmra.mxu0 %v6060
        %v6120 = vpop.f32.mrf.mxu0
        %v6121 = vadd.f32 %v6069, %v6120
        %v6122 = vpop.f32.mrf.mxu0
        %v6123 = vadd.f32 %v6069, %v6122
        %6124 = vmatmul.bf16.gmra.mxu0 %v6061
        %v6125 = vpop.f32.mrf.mxu0
        %v6126 = vadd.f32 %v6069, %v6125
        %v6127 = vpop.f32.mrf.mxu0
        %v6128 = vadd.f32 %v6069, %v6127
        %6129 = vmatmul.bf16.gmra.mxu0 %v6062
        %v6130 = vpop.f32.mrf.mxu0
        %v6131 = vadd.f32 %v6069, %v6130
        %v6132 = vpop.f32.mrf.mxu0
        %v6133 = vadd.f32 %v6069, %v6132
        %6134 = vmatmul.bf16.gmra.mxu0 %v6063
        %v6135 = vpop.f32.mrf.mxu0
        %v6136 = vadd.f32 %v6069, %v6135
        %v6137 = vpop.f32.mrf.mxu0
        %v6138 = vadd.f32 %v6069, %v6137
        %6139 = vmatmul.bf16.gmra.mxu0 %v6064
        %v6140 = vpop.f32.mrf.mxu0
        %v6141 = vadd.f32 %v6069, %v6140
        %v6142 = vpop.f32.mrf.mxu0
        %v6143 = vadd.f32 %v6069, %v6142
        %6144 = vmatmul.bf16.gmra.mxu0 %v6065
        %v6145 = vpop.f32.mrf.mxu0
        %v6146 = vadd.f32 %v6069, %v6145
        %v6147 = vpop.f32.mrf.mxu0
        %v6148 = vadd.f32 %v6069, %v6147
        %6149 = vmatmul.bf16.gmra.mxu0 %v6066
        %v6150 = vpop.f32.mrf.mxu0
        %v6151 = vadd.f32 %v6069, %v6150
        %v6152 = vpop.f32.mrf.mxu0
        %v6153 = vadd.f32 %v6069, %v6152
        %6154 = vmatmul.bf16.gmra.mxu0 %v6067
        %v6155 = vpop.f32.mrf.mxu0
        %v6156 = vadd.f32 %v6069, %v6155
        %v6157 = vpop.f32.mrf.mxu0
        %v6158 = vadd.f32 %v6069, %v6157
        %6159 = vdwg.mxu0
        %v6164 = vrot.slane %v3695, 1
        %v6165 = vrot.slane %v3695, 2
        %v6166 = vrot.slane %v3695, 3
        %v6167 = vrot.slane %v3695, 4
        %v6168 = vrot.slane %v3695, 5
        %v6169 = vrot.slane %v3695, 6
        %v6170 = vrot.slane %v3695, 7
        %v6171 = vrot.slane %v3697, 1
        %v6172 = vrot.slane %v3697, 2
        %v6173 = vrot.slane %v3697, 3
        %v6174 = vrot.slane %v3697, 4
        %v6175 = vrot.slane %v3697, 5
        %v6176 = vrot.slane %v3697, 6
        %v6177 = vrot.slane %v3697, 7
        %v6178 = vrot.slane %v3700, 1
        %v6179 = vrot.slane %v3700, 2
        %v6180 = vrot.slane %v3700, 3
        %v6181 = vrot.slane %v3700, 4
        %v6182 = vrot.slane %v3700, 5
        %v6183 = vrot.slane %v3700, 6
        %v6184 = vrot.slane %v3700, 7
        %v6185 = vrot.slane %v3702, 1
        %v6186 = vrot.slane %v3702, 2
        %v6187 = vrot.slane %v3702, 3
        %v6188 = vrot.slane %v3702, 4
        %v6189 = vrot.slane %v3702, 5
        %v6190 = vrot.slane %v3702, 6
        %v6191 = vrot.slane %v3702, 7
        %v6192 = vperm.slane %v3695, 0
        %v6193 = vperm.slane %v6164, 0
        %v6194 = vperm.slane %v6165, 0
        %v6195 = vperm.slane %v6166, 0
        %v6196 = vperm.slane %v6167, 0
        %v6197 = vperm.slane %v6168, 0
        %v6198 = vperm.slane %v6169, 0
        %v6199 = vperm.slane %v6170, 0
        %v6200 = vperm.slane %v3697, 0
        %v6201 = vperm.slane %v6171, 0
        %v6202 = vperm.slane %v6172, 0
        %v6203 = vperm.slane %v6173, 0
        %v6204 = vperm.slane %v6174, 0
        %v6205 = vperm.slane %v6175, 0
        %v6206 = vperm.slane %v6176, 0
        %v6207 = vperm.slane %v6177, 0
        %v6208 = vperm.slane %v3700, 0
        %v6209 = vperm.slane %v6178, 0
        %v6210 = vperm.slane %v6179, 0
        %v6211 = vperm.slane %v6180, 0
        %v6212 = vperm.slane %v6181, 0
        %v6213 = vperm.slane %v6182, 0
        %v6214 = vperm.slane %v6183, 0
        %v6215 = vperm.slane %v6184, 0
        %v6216 = vperm.slane %v3702, 0
        %v6217 = vperm.slane %v6185, 0
        %v6218 = vperm.slane %v6186, 0
        %v6219 = vperm.slane %v6187, 0
        %v6220 = vperm.slane %v6188, 0
        %v6221 = vperm.slane %v6189, 0
        %v6222 = vperm.slane %v6190, 0
        %v6223 = vperm.slane %v6191, 0
        %v6256 = vmul.f32 %v3209, %v6192
        %v6257 = vmul.f32 %v3216, %v6193
        %v6258 = vmul.f32 %v3223, %v6194
        %v6259 = vmul.f32 %v3230, %v6195
        %v6260 = vmul.f32 %v3237, %v6196
        %v6261 = vmul.f32 %v3244, %v6197
        %v6262 = vmul.f32 %v3251, %v6198
        %v6263 = vmul.f32 %v3258, %v6199
        %v6264 = vmul.f32 %v3265, %v6200
        %v6265 = vmul.f32 %v3272, %v6201
        %v6266 = vmul.f32 %v3279, %v6202
        %v6267 = vmul.f32 %v3286, %v6203
        %v6268 = vmul.f32 %v3293, %v6204
        %v6269 = vmul.f32 %v3300, %v6205
        %v6270 = vmul.f32 %v3307, %v6206
        %v6271 = vmul.f32 %v3314, %v6207
        %v6272 = vmul.f32 %v3321, %v6208
        %v6273 = vmul.f32 %v3328, %v6209
        %v6274 = vmul.f32 %v3335, %v6210
        %v6275 = vmul.f32 %v3342, %v6211
        %v6276 = vmul.f32 %v3349, %v6212
        %v6277 = vmul.f32 %v3356, %v6213
        %v6278 = vmul.f32 %v3363, %v6214
        %v6279 = vmul.f32 %v3370, %v6215
        %v6280 = vmul.f32 %v3377, %v6216
        %v6281 = vmul.f32 %v3384, %v6217
        %v6282 = vmul.f32 %v3391, %v6218
        %v6283 = vmul.f32 %v3398, %v6219
        %v6284 = vmul.f32 %v3405, %v6220
        %v6285 = vmul.f32 %v3412, %v6221
        %v6286 = vmul.f32 %v3419, %v6222
        %v6287 = vmul.f32 %v3426, %v6223
        %v6288 = vadd.f32 %v6256, %v6069
        %v6289 = vadd.f32 %v6257, %v6069
        %v6290 = vadd.f32 %v6258, %v6069
        %v6291 = vadd.f32 %v6259, %v6069
        %v6292 = vadd.f32 %v6260, %v6069
        %v6293 = vadd.f32 %v6261, %v6069
        %v6294 = vadd.f32 %v6262, %v6069
        %v6295 = vadd.f32 %v6263, %v6069
        %v6296 = vadd.f32 %v6264, %v6069
        %v6297 = vadd.f32 %v6265, %v6069
        %v6298 = vadd.f32 %v6266, %v6069
        %v6299 = vadd.f32 %v6267, %v6069
        %v6300 = vadd.f32 %v6268, %v6069
        %v6301 = vadd.f32 %v6269, %v6069
        %v6302 = vadd.f32 %v6270, %v6069
        %v6303 = vadd.f32 %v6271, %v6069
        %v6304 = vadd.f32 %v6272, %v6069
        %v6305 = vadd.f32 %v6273, %v6069
        %v6306 = vadd.f32 %v6274, %v6069
        %v6307 = vadd.f32 %v6275, %v6069
        %v6308 = vadd.f32 %v6276, %v6069
        %v6309 = vadd.f32 %v6277, %v6069
        %v6310 = vadd.f32 %v6278, %v6069
        %v6311 = vadd.f32 %v6279, %v6069
        %v6312 = vadd.f32 %v6280, %v6069
        %v6313 = vadd.f32 %v6281, %v6069
        %v6314 = vadd.f32 %v6282, %v6069
        %v6315 = vadd.f32 %v6283, %v6069
        %v6316 = vadd.f32 %v6284, %v6069
        %v6317 = vadd.f32 %v6285, %v6069
        %v6318 = vadd.f32 %v6286, %v6069
        %v6319 = vadd.f32 %v6287, %v6069
        %v6320 = vpack.c.bf16 %v6083, %v6081
        %v6321 = vpack.c.bf16 %v6088, %v6086
        %v6322 = vpack.c.bf16 %v6093, %v6091
        %v6323 = vpack.c.bf16 %v6098, %v6096
        %v6324 = vpack.c.bf16 %v6103, %v6101
        %v6325 = vpack.c.bf16 %v6108, %v6106
        %v6326 = vpack.c.bf16 %v6113, %v6111
        %v6327 = vpack.c.bf16 %v6118, %v6116
        %v6328 = vpack.c.bf16 %v6123, %v6121
        %v6329 = vpack.c.bf16 %v6128, %v6126
        %v6330 = vpack.c.bf16 %v6133, %v6131
        %v6331 = vpack.c.bf16 %v6138, %v6136
        %v6332 = vpack.c.bf16 %v6143, %v6141
        %v6333 = vpack.c.bf16 %v6148, %v6146
        %v6334 = vpack.c.bf16 %v6153, %v6151
        %v6335 = vpack.c.bf16 %v6158, %v6156
        %v6336 = vpack.c.bf16 %v6289, %v6288
        %v6337 = vpack.c.bf16 %v6291, %v6290
        %v6338 = vpack.c.bf16 %v6293, %v6292
        %v6339 = vpack.c.bf16 %v6295, %v6294
        %v6340 = vpack.c.bf16 %v6297, %v6296
        %v6341 = vpack.c.bf16 %v6299, %v6298
        %v6342 = vpack.c.bf16 %v6301, %v6300
        %v6343 = vpack.c.bf16 %v6303, %v6302
        %v6344 = vpack.c.bf16 %v6305, %v6304
        %v6345 = vpack.c.bf16 %v6307, %v6306
        %v6346 = vpack.c.bf16 %v6309, %v6308
        %v6347 = vpack.c.bf16 %v6311, %v6310
        %v6348 = vpack.c.bf16 %v6313, %v6312
        %v6349 = vpack.c.bf16 %v6315, %v6314
        %v6350 = vpack.c.bf16 %v6317, %v6316
        %v6351 = vpack.c.bf16 %v6319, %v6318
        %v6368 = vunpack.c.l.b16 %v2891
        %v6369 = vunpack.c.l.b16 %v2892
        %v6370 = vunpack.c.l.b16 %v2893
        %v6371 = vunpack.c.l.b16 %v2894
        %v6372 = vunpack.c.l.b16 %v2895
        %v6373 = vunpack.c.l.b16 %v2896
        %v6374 = vunpack.c.l.b16 %v2897
        %v6375 = vunpack.c.l.b16 %v2898
        %v6376 = vunpack.c.l.b16 %v2899
        %v6377 = vunpack.c.l.b16 %v2900
        %v6378 = vunpack.c.l.b16 %v2901
        %v6379 = vunpack.c.l.b16 %v2902
        %v6380 = vunpack.c.l.b16 %v2903
        %v6381 = vunpack.c.l.b16 %v2904
        %v6382 = vunpack.c.l.b16 %v2905
        %v6383 = vunpack.c.l.b16 %v2906
        %v6384 = vpack.c.b16 %v6369, %v6368
        %v6385 = vpack.c.b16 %v6371, %v6370
        %v6386 = vpack.c.b16 %v6373, %v6372
        %v6387 = vpack.c.b16 %v6375, %v6374
        %v6388 = vpack.c.b16 %v6377, %v6376
        %v6389 = vpack.c.b16 %v6379, %v6378
        %v6390 = vpack.c.b16 %v6381, %v6380
        %v6391 = vpack.c.b16 %v6383, %v6382
        %6400 = vmatpush.bf16.msra.mxu0 %v6391
        %6401 = vmatpush.bf16.msra.mxu0 %v6390
        %6402 = vmatpush.bf16.msra.mxu0 %v6389
        %6403 = vmatpush.bf16.msra.mxu0 %v6388
        %6404 = vmatpush.bf16.msra.mxu0 %v6387
        %6405 = vmatpush.bf16.msra.mxu0 %v6386
        %6406 = vmatpush.bf16.msra.mxu0 %v6385
        %6407 = vmatpush.bf16.msra.mxu0 %v6384
        %6408 = vmatmul.bf16.gmra.mxu0 %v6336
        %v6409 = vpop.f32.mrf.mxu0
        %v6410 = vadd.f32 0.0, %v6409
        %v6411 = vpop.f32.mrf.mxu0
        %v6412 = vadd.f32 0.0, %v6411
        %6413 = vmatmul.bf16.gmra.mxu0 %v6337
        %v6414 = vpop.f32.mrf.mxu0
        %v6415 = vadd.f32 0.0, %v6414
        %v6416 = vpop.f32.mrf.mxu0
        %v6417 = vadd.f32 0.0, %v6416
        %6418 = vmatmul.bf16.gmra.mxu0 %v6338
        %v6419 = vpop.f32.mrf.mxu0
        %v6420 = vadd.f32 0.0, %v6419
        %v6421 = vpop.f32.mrf.mxu0
        %v6422 = vadd.f32 0.0, %v6421
        %6423 = vmatmul.bf16.gmra.mxu0 %v6339
        %v6424 = vpop.f32.mrf.mxu0
        %v6425 = vadd.f32 0.0, %v6424
        %v6426 = vpop.f32.mrf.mxu0
        %v6427 = vadd.f32 0.0, %v6426
        %6428 = vmatmul.bf16.gmra.mxu0 %v6340
        %v6429 = vpop.f32.mrf.mxu0
        %v6430 = vadd.f32 0.0, %v6429
        %v6431 = vpop.f32.mrf.mxu0
        %v6432 = vadd.f32 0.0, %v6431
        %6433 = vmatmul.bf16.gmra.mxu0 %v6341
        %v6434 = vpop.f32.mrf.mxu0
        %v6435 = vadd.f32 0.0, %v6434
        %v6436 = vpop.f32.mrf.mxu0
        %v6437 = vadd.f32 0.0, %v6436
        %6438 = vmatmul.bf16.gmra.mxu0 %v6342
        %v6439 = vpop.f32.mrf.mxu0
        %v6440 = vadd.f32 0.0, %v6439
        %v6441 = vpop.f32.mrf.mxu0
        %v6442 = vadd.f32 0.0, %v6441
        %6443 = vmatmul.bf16.gmra.mxu0 %v6343
        %v6444 = vpop.f32.mrf.mxu0
        %v6445 = vadd.f32 0.0, %v6444
        %v6446 = vpop.f32.mrf.mxu0
        %v6447 = vadd.f32 0.0, %v6446
        %6448 = vmatmul.bf16.gmra.mxu0 %v6344
        %v6449 = vpop.f32.mrf.mxu0
        %v6450 = vadd.f32 0.0, %v6449
        %v6451 = vpop.f32.mrf.mxu0
        %v6452 = vadd.f32 0.0, %v6451
        %6453 = vmatmul.bf16.gmra.mxu0 %v6345
        %v6454 = vpop.f32.mrf.mxu0
        %v6455 = vadd.f32 0.0, %v6454
        %v6456 = vpop.f32.mrf.mxu0
        %v6457 = vadd.f32 0.0, %v6456
        %6458 = vmatmul.bf16.gmra.mxu0 %v6346
        %v6459 = vpop.f32.mrf.mxu0
        %v6460 = vadd.f32 0.0, %v6459
        %v6461 = vpop.f32.mrf.mxu0
        %v6462 = vadd.f32 0.0, %v6461
        %6463 = vmatmul.bf16.gmra.mxu0 %v6347
        %v6464 = vpop.f32.mrf.mxu0
        %v6465 = vadd.f32 0.0, %v6464
        %v6466 = vpop.f32.mrf.mxu0
        %v6467 = vadd.f32 0.0, %v6466
        %6468 = vmatmul.bf16.gmra.mxu0 %v6348
        %v6469 = vpop.f32.mrf.mxu0
        %v6470 = vadd.f32 0.0, %v6469
        %v6471 = vpop.f32.mrf.mxu0
        %v6472 = vadd.f32 0.0, %v6471
        %6473 = vmatmul.bf16.gmra.mxu0 %v6349
        %v6474 = vpop.f32.mrf.mxu0
        %v6475 = vadd.f32 0.0, %v6474
        %v6476 = vpop.f32.mrf.mxu0
        %v6477 = vadd.f32 0.0, %v6476
        %6478 = vmatmul.bf16.gmra.mxu0 %v6350
        %v6479 = vpop.f32.mrf.mxu0
        %v6480 = vadd.f32 0.0, %v6479
        %v6481 = vpop.f32.mrf.mxu0
        %v6482 = vadd.f32 0.0, %v6481
        %6483 = vmatmul.bf16.gmra.mxu0 %v6351
        %v6484 = vpop.f32.mrf.mxu0
        %v6485 = vadd.f32 0.0, %v6484
        %v6486 = vpop.f32.mrf.mxu0
        %v6487 = vadd.f32 0.0, %v6486
        %6488 = vdwg.mxu0
        %v6505 = vunpack.c.l.b16 %v2875
        %v6506 = vunpack.c.l.b16 %v2876
        %v6507 = vunpack.c.l.b16 %v2877
        %v6508 = vunpack.c.l.b16 %v2878
        %v6509 = vunpack.c.l.b16 %v2879
        %v6510 = vunpack.c.l.b16 %v2880
        %v6511 = vunpack.c.l.b16 %v2881
        %v6512 = vunpack.c.l.b16 %v2882
        %v6513 = vunpack.c.l.b16 %v2883
        %v6514 = vunpack.c.l.b16 %v2884
        %v6515 = vunpack.c.l.b16 %v2885
        %v6516 = vunpack.c.l.b16 %v2886
        %v6517 = vunpack.c.l.b16 %v2887
        %v6518 = vunpack.c.l.b16 %v2888
        %v6519 = vunpack.c.l.b16 %v2889
        %v6520 = vunpack.c.l.b16 %v2890
        %v6521 = vpack.c.b16 %v6506, %v6505
        %v6522 = vpack.c.b16 %v6508, %v6507
        %v6523 = vpack.c.b16 %v6510, %v6509
        %v6524 = vpack.c.b16 %v6512, %v6511
        %v6525 = vpack.c.b16 %v6514, %v6513
        %v6526 = vpack.c.b16 %v6516, %v6515
        %v6527 = vpack.c.b16 %v6518, %v6517
        %v6528 = vpack.c.b16 %v6520, %v6519
        %6537 = vmatpush.bf16.msra.mxu0 %v6528
        %6538 = vmatpush.bf16.msra.mxu0 %v6527
        %6539 = vmatpush.bf16.msra.mxu0 %v6526
        %6540 = vmatpush.bf16.msra.mxu0 %v6525
        %6541 = vmatpush.bf16.msra.mxu0 %v6524
        %6542 = vmatpush.bf16.msra.mxu0 %v6523
        %6543 = vmatpush.bf16.msra.mxu0 %v6522
        %6544 = vmatpush.bf16.msra.mxu0 %v6521
        %6545 = vmatmul.bf16.gmra.mxu0 %v6320
        %v6546 = vpop.f32.mrf.mxu0
        %v6547 = vadd.f32 %v6410, %v6546
        %v6548 = vpop.f32.mrf.mxu0
        %v6549 = vadd.f32 %v6412, %v6548
        %6550 = vmatmul.bf16.gmra.mxu0 %v6321
        %v6551 = vpop.f32.mrf.mxu0
        %v6552 = vadd.f32 %v6415, %v6551
        %v6553 = vpop.f32.mrf.mxu0
        %v6554 = vadd.f32 %v6417, %v6553
        %6555 = vmatmul.bf16.gmra.mxu0 %v6322
        %v6556 = vpop.f32.mrf.mxu0
        %v6557 = vadd.f32 %v6420, %v6556
        %v6558 = vpop.f32.mrf.mxu0
        %v6559 = vadd.f32 %v6422, %v6558
        %6560 = vmatmul.bf16.gmra.mxu0 %v6323
        %v6561 = vpop.f32.mrf.mxu0
        %v6562 = vadd.f32 %v6425, %v6561
        %v6563 = vpop.f32.mrf.mxu0
        %v6564 = vadd.f32 %v6427, %v6563
        %6565 = vmatmul.bf16.gmra.mxu0 %v6324
        %v6566 = vpop.f32.mrf.mxu0
        %v6567 = vadd.f32 %v6430, %v6566
        %v6568 = vpop.f32.mrf.mxu0
        %v6569 = vadd.f32 %v6432, %v6568
        %6570 = vmatmul.bf16.gmra.mxu0 %v6325
        %v6571 = vpop.f32.mrf.mxu0
        %v6572 = vadd.f32 %v6435, %v6571
        %v6573 = vpop.f32.mrf.mxu0
        %v6574 = vadd.f32 %v6437, %v6573
        %6575 = vmatmul.bf16.gmra.mxu0 %v6326
        %v6576 = vpop.f32.mrf.mxu0
        %v6577 = vadd.f32 %v6440, %v6576
        %v6578 = vpop.f32.mrf.mxu0
        %v6579 = vadd.f32 %v6442, %v6578
        %6580 = vmatmul.bf16.gmra.mxu0 %v6327
        %v6581 = vpop.f32.mrf.mxu0
        %v6582 = vadd.f32 %v6445, %v6581
        %v6583 = vpop.f32.mrf.mxu0
        %v6584 = vadd.f32 %v6447, %v6583
        %6585 = vmatmul.bf16.gmra.mxu0 %v6328
        %v6586 = vpop.f32.mrf.mxu0
        %v6587 = vadd.f32 %v6450, %v6586
        %v6588 = vpop.f32.mrf.mxu0
        %v6589 = vadd.f32 %v6452, %v6588
        %6590 = vmatmul.bf16.gmra.mxu0 %v6329
        %v6591 = vpop.f32.mrf.mxu0
        %v6592 = vadd.f32 %v6455, %v6591
        %v6593 = vpop.f32.mrf.mxu0
        %v6594 = vadd.f32 %v6457, %v6593
        %6595 = vmatmul.bf16.gmra.mxu0 %v6330
        %v6596 = vpop.f32.mrf.mxu0
        %v6597 = vadd.f32 %v6460, %v6596
        %v6598 = vpop.f32.mrf.mxu0
        %v6599 = vadd.f32 %v6462, %v6598
        %6600 = vmatmul.bf16.gmra.mxu0 %v6331
        %v6601 = vpop.f32.mrf.mxu0
        %v6602 = vadd.f32 %v6465, %v6601
        %v6603 = vpop.f32.mrf.mxu0
        %v6604 = vadd.f32 %v6467, %v6603
        %6605 = vmatmul.bf16.gmra.mxu0 %v6332
        %v6606 = vpop.f32.mrf.mxu0
        %v6607 = vadd.f32 %v6470, %v6606
        %v6608 = vpop.f32.mrf.mxu0
        %v6609 = vadd.f32 %v6472, %v6608
        %6610 = vmatmul.bf16.gmra.mxu0 %v6333
        %v6611 = vpop.f32.mrf.mxu0
        %v6612 = vadd.f32 %v6475, %v6611
        %v6613 = vpop.f32.mrf.mxu0
        %v6614 = vadd.f32 %v6477, %v6613
        %6615 = vmatmul.bf16.gmra.mxu0 %v6334
        %v6616 = vpop.f32.mrf.mxu0
        %v6617 = vadd.f32 %v6480, %v6616
        %v6618 = vpop.f32.mrf.mxu0
        %v6619 = vadd.f32 %v6482, %v6618
        %6620 = vmatmul.bf16.gmra.mxu0 %v6335
        %v6621 = vpop.f32.mrf.mxu0
        %v6622 = vadd.f32 %v6485, %v6621
        %v6623 = vpop.f32.mrf.mxu0
        %v6624 = vadd.f32 %v6487, %v6623
        %6625 = vdwg.mxu0
        %v6627 = vperm.slane %v2907, 0
        %v6629 = vadd.f32 %v6547, %v6627
        %v6630 = vadd.f32 %v6549, %v6627
        %v6631 = vadd.f32 %v6552, %v6627
        %v6632 = vadd.f32 %v6554, %v6627
        %v6633 = vadd.f32 %v6557, %v6627
        %v6634 = vadd.f32 %v6559, %v6627
        %v6635 = vadd.f32 %v6562, %v6627
        %v6636 = vadd.f32 %v6564, %v6627
        %v6637 = vadd.f32 %v6567, %v6627
        %v6638 = vadd.f32 %v6569, %v6627
        %v6639 = vadd.f32 %v6572, %v6627
        %v6640 = vadd.f32 %v6574, %v6627
        %v6641 = vadd.f32 %v6577, %v6627
        %v6642 = vadd.f32 %v6579, %v6627
        %v6643 = vadd.f32 %v6582, %v6627
        %v6644 = vadd.f32 %v6584, %v6627
        %v6645 = vadd.f32 %v6587, %v6627
        %v6646 = vadd.f32 %v6589, %v6627
        %v6647 = vadd.f32 %v6592, %v6627
        %v6648 = vadd.f32 %v6594, %v6627
        %v6649 = vadd.f32 %v6597, %v6627
        %v6650 = vadd.f32 %v6599, %v6627
        %v6651 = vadd.f32 %v6602, %v6627
        %v6652 = vadd.f32 %v6604, %v6627
        %v6653 = vadd.f32 %v6607, %v6627
        %v6654 = vadd.f32 %v6609, %v6627
        %v6655 = vadd.f32 %v6612, %v6627
        %v6656 = vadd.f32 %v6614, %v6627
        %v6657 = vadd.f32 %v6617, %v6627
        %v6658 = vadd.f32 %v6619, %v6627
        %v6659 = vadd.f32 %v6622, %v6627
        %v6660 = vadd.f32 %v6624, %v6627
        %vm6661 = vcmp.gt.f32.partialorder %v6629, 0.0
        %vm6662 = vcmp.gt.f32.partialorder %v6630, 0.0
        %vm6663 = vcmp.gt.f32.partialorder %v6631, 0.0
        %vm6664 = vcmp.gt.f32.partialorder %v6632, 0.0
        %vm6665 = vcmp.gt.f32.partialorder %v6633, 0.0
        %vm6666 = vcmp.gt.f32.partialorder %v6634, 0.0
        %vm6667 = vcmp.gt.f32.partialorder %v6635, 0.0
        %vm6668 = vcmp.gt.f32.partialorder %v6636, 0.0
        %vm6669 = vcmp.gt.f32.partialorder %v6637, 0.0
        %vm6670 = vcmp.gt.f32.partialorder %v6638, 0.0
        %vm6671 = vcmp.gt.f32.partialorder %v6639, 0.0
        %vm6672 = vcmp.gt.f32.partialorder %v6640, 0.0
        %vm6673 = vcmp.gt.f32.partialorder %v6641, 0.0
        %vm6674 = vcmp.gt.f32.partialorder %v6642, 0.0
        %vm6675 = vcmp.gt.f32.partialorder %v6643, 0.0
        %vm6676 = vcmp.gt.f32.partialorder %v6644, 0.0
        %vm6677 = vcmp.gt.f32.partialorder %v6645, 0.0
        %vm6678 = vcmp.gt.f32.partialorder %v6646, 0.0
        %vm6679 = vcmp.gt.f32.partialorder %v6647, 0.0
        %vm6680 = vcmp.gt.f32.partialorder %v6648, 0.0
        %vm6681 = vcmp.gt.f32.partialorder %v6649, 0.0
        %vm6682 = vcmp.gt.f32.partialorder %v6650, 0.0
        %vm6683 = vcmp.gt.f32.partialorder %v6651, 0.0
        %vm6684 = vcmp.gt.f32.partialorder %v6652, 0.0
        %vm6685 = vcmp.gt.f32.partialorder %v6653, 0.0
        %vm6686 = vcmp.gt.f32.partialorder %v6654, 0.0
        %vm6687 = vcmp.gt.f32.partialorder %v6655, 0.0
        %vm6688 = vcmp.gt.f32.partialorder %v6656, 0.0
        %vm6689 = vcmp.gt.f32.partialorder %v6657, 0.0
        %vm6690 = vcmp.gt.f32.partialorder %v6658, 0.0
        %vm6691 = vcmp.gt.f32.partialorder %v6659, 0.0
        %vm6692 = vcmp.gt.f32.partialorder %v6660, 0.0
        %v6693 = vmul.f32 %v6629, 0.2
        %v6694 = vmul.f32 %v6630, 0.2
        %v6695 = vmul.f32 %v6631, 0.2
        %v6696 = vmul.f32 %v6632, 0.2
        %v6697 = vmul.f32 %v6633, 0.2
        %v6698 = vmul.f32 %v6634, 0.2
        %v6699 = vmul.f32 %v6635, 0.2
        %v6700 = vmul.f32 %v6636, 0.2
        %v6701 = vmul.f32 %v6637, 0.2
        %v6702 = vmul.f32 %v6638, 0.2
        %v6703 = vmul.f32 %v6639, 0.2
        %v6704 = vmul.f32 %v6640, 0.2
        %v6705 = vmul.f32 %v6641, 0.2
        %v6706 = vmul.f32 %v6642, 0.2
        %v6707 = vmul.f32 %v6643, 0.2
        %v6708 = vmul.f32 %v6644, 0.2
        %v6709 = vmul.f32 %v6645, 0.2
        %v6710 = vmul.f32 %v6646, 0.2
        %v6711 = vmul.f32 %v6647, 0.2
        %v6712 = vmul.f32 %v6648, 0.2
        %v6713 = vmul.f32 %v6649, 0.2
        %v6714 = vmul.f32 %v6650, 0.2
        %v6715 = vmul.f32 %v6651, 0.2
        %v6716 = vmul.f32 %v6652, 0.2
        %v6717 = vmul.f32 %v6653, 0.2
        %v6718 = vmul.f32 %v6654, 0.2
        %v6719 = vmul.f32 %v6655, 0.2
        %v6720 = vmul.f32 %v6656, 0.2
        %v6721 = vmul.f32 %v6657, 0.2
        %v6722 = vmul.f32 %v6658, 0.2
        %v6723 = vmul.f32 %v6659, 0.2
        %v6724 = vmul.f32 %v6660, 0.2
        %v6725 = vsel %vm6661, %v6629, %v6693
        %v6726 = vsel %vm6662, %v6630, %v6694
        %v6727 = vsel %vm6663, %v6631, %v6695
        %v6728 = vsel %vm6664, %v6632, %v6696
        %v6729 = vsel %vm6665, %v6633, %v6697
        %v6730 = vsel %vm6666, %v6634, %v6698
        %v6731 = vsel %vm6667, %v6635, %v6699
        %v6732 = vsel %vm6668, %v6636, %v6700
        %v6733 = vsel %vm6669, %v6637, %v6701
        %v6734 = vsel %vm6670, %v6638, %v6702
        %v6735 = vsel %vm6671, %v6639, %v6703
        %v6736 = vsel %vm6672, %v6640, %v6704
        %v6737 = vsel %vm6673, %v6641, %v6705
        %v6738 = vsel %vm6674, %v6642, %v6706
        %v6739 = vsel %vm6675, %v6643, %v6707
        %v6740 = vsel %vm6676, %v6644, %v6708
        %v6741 = vsel %vm6677, %v6645, %v6709
        %v6742 = vsel %vm6678, %v6646, %v6710
        %v6743 = vsel %vm6679, %v6647, %v6711
        %v6744 = vsel %vm6680, %v6648, %v6712
        %v6745 = vsel %vm6681, %v6649, %v6713
        %v6746 = vsel %vm6682, %v6650, %v6714
        %v6747 = vsel %vm6683, %v6651, %v6715
        %v6748 = vsel %vm6684, %v6652, %v6716
        %v6749 = vsel %vm6685, %v6653, %v6717
        %v6750 = vsel %vm6686, %v6654, %v6718
        %v6751 = vsel %vm6687, %v6655, %v6719
        %v6752 = vsel %vm6688, %v6656, %v6720
        %v6753 = vsel %vm6689, %v6657, %v6721
        %v6754 = vsel %vm6690, %v6658, %v6722
        %v6755 = vsel %vm6691, %v6659, %v6723
        %v6756 = vsel %vm6692, %v6660, %v6724
        %v6758 = vperm.slane %v2908, 0
        %v6760 = vmul.f32 %v6725, %v6758
        %v6761 = vmul.f32 %v6726, %v6758
        %v6762 = vmul.f32 %v6727, %v6758
        %v6763 = vmul.f32 %v6728, %v6758
        %v6764 = vmul.f32 %v6729, %v6758
        %v6765 = vmul.f32 %v6730, %v6758
        %v6766 = vmul.f32 %v6731, %v6758
        %v6767 = vmul.f32 %v6732, %v6758
        %v6768 = vmul.f32 %v6733, %v6758
        %v6769 = vmul.f32 %v6734, %v6758
        %v6770 = vmul.f32 %v6735, %v6758
        %v6771 = vmul.f32 %v6736, %v6758
        %v6772 = vmul.f32 %v6737, %v6758
        %v6773 = vmul.f32 %v6738, %v6758
        %v6774 = vmul.f32 %v6739, %v6758
        %v6775 = vmul.f32 %v6740, %v6758
        %v6776 = vmul.f32 %v6741, %v6758
        %v6777 = vmul.f32 %v6742, %v6758
        %v6778 = vmul.f32 %v6743, %v6758
        %v6779 = vmul.f32 %v6744, %v6758
        %v6780 = vmul.f32 %v6745, %v6758
        %v6781 = vmul.f32 %v6746, %v6758
        %v6782 = vmul.f32 %v6747, %v6758
        %v6783 = vmul.f32 %v6748, %v6758
        %v6784 = vmul.f32 %v6749, %v6758
        %v6785 = vmul.f32 %v6750, %v6758
        %v6786 = vmul.f32 %v6751, %v6758
        %v6787 = vmul.f32 %v6752, %v6758
        %v6788 = vmul.f32 %v6753, %v6758
        %v6789 = vmul.f32 %v6754, %v6758
        %v6790 = vmul.f32 %v6755, %v6758
        %v6791 = vmul.f32 %v6756, %v6758
        %6792 = vadd.xlane.f32.xlu0 %v6760
        %v6793 = vpop.xlane.xlu0 %6792
        %6794 = vadd.xlane.f32.xlu0 %v6761
        %v6795 = vpop.xlane.xlu0 %6794
        %6796 = vadd.xlane.f32.xlu0 %v6762
        %v6797 = vpop.xlane.xlu0 %6796
        %6798 = vadd.xlane.f32.xlu0 %v6763
        %v6799 = vpop.xlane.xlu0 %6798
        %6800 = vadd.xlane.f32.xlu0 %v6764
        %v6801 = vpop.xlane.xlu0 %6800
        %6802 = vadd.xlane.f32.xlu0 %v6765
        %v6803 = vpop.xlane.xlu0 %6802
        %6804 = vadd.xlane.f32.xlu0 %v6766
        %v6805 = vpop.xlane.xlu0 %6804
        %6806 = vadd.xlane.f32.xlu0 %v6767
        %v6807 = vpop.xlane.xlu0 %6806
        %6808 = vadd.xlane.f32.xlu0 %v6768
        %v6809 = vpop.xlane.xlu0 %6808
        %6810 = vadd.xlane.f32.xlu0 %v6769
        %v6811 = vpop.xlane.xlu0 %6810
        %6812 = vadd.xlane.f32.xlu0 %v6770
        %v6813 = vpop.xlane.xlu0 %6812
        %6814 = vadd.xlane.f32.xlu0 %v6771
        %v6815 = vpop.xlane.xlu0 %6814
        %6816 = vadd.xlane.f32.xlu0 %v6772
        %v6817 = vpop.xlane.xlu0 %6816
        %6818 = vadd.xlane.f32.xlu0 %v6773
        %v6819 = vpop.xlane.xlu0 %6818
        %6820 = vadd.xlane.f32.xlu0 %v6774
        %v6821 = vpop.xlane.xlu0 %6820
        %6822 = vadd.xlane.f32.xlu0 %v6775
        %v6823 = vpop.xlane.xlu0 %6822
        %6824 = vadd.xlane.f32.xlu0 %v6776
        %v6825 = vpop.xlane.xlu0 %6824
        %6826 = vadd.xlane.f32.xlu0 %v6777
        %v6827 = vpop.xlane.xlu0 %6826
        %6828 = vadd.xlane.f32.xlu0 %v6778
        %v6829 = vpop.xlane.xlu0 %6828
        %6830 = vadd.xlane.f32.xlu0 %v6779
        %v6831 = vpop.xlane.xlu0 %6830
        %6832 = vadd.xlane.f32.xlu0 %v6780
        %v6833 = vpop.xlane.xlu0 %6832
        %6834 = vadd.xlane.f32.xlu0 %v6781
        %v6835 = vpop.xlane.xlu0 %6834
        %6836 = vadd.xlane.f32.xlu0 %v6782
        %v6837 = vpop.xlane.xlu0 %6836
        %6838 = vadd.xlane.f32.xlu0 %v6783
        %v6839 = vpop.xlane.xlu0 %6838
        %6840 = vadd.xlane.f32.xlu0 %v6784
        %v6841 = vpop.xlane.xlu0 %6840
        %6842 = vadd.xlane.f32.xlu0 %v6785
        %v6843 = vpop.xlane.xlu0 %6842
        %6844 = vadd.xlane.f32.xlu0 %v6786
        %v6845 = vpop.xlane.xlu0 %6844
        %6846 = vadd.xlane.f32.xlu0 %v6787
        %v6847 = vpop.xlane.xlu0 %6846
        %6848 = vadd.xlane.f32.xlu0 %v6788
        %v6849 = vpop.xlane.xlu0 %6848
        %6850 = vadd.xlane.f32.xlu0 %v6789
        %v6851 = vpop.xlane.xlu0 %6850
        %6852 = vadd.xlane.f32.xlu0 %v6790
        %v6853 = vpop.xlane.xlu0 %6852
        %6854 = vadd.xlane.f32.xlu0 %v6791
        %v6855 = vpop.xlane.xlu0 %6854
        %v6857 = vperm.slane %v2909, 0
        %v6859 = vadd.f32 %v6793, %v6857
        %v6860 = vadd.f32 %v6795, %v6857
        %v6861 = vadd.f32 %v6797, %v6857
        %v6862 = vadd.f32 %v6799, %v6857
        %v6863 = vadd.f32 %v6801, %v6857
        %v6864 = vadd.f32 %v6803, %v6857
        %v6865 = vadd.f32 %v6805, %v6857
        %v6866 = vadd.f32 %v6807, %v6857
        %v6867 = vadd.f32 %v6809, %v6857
        %v6868 = vadd.f32 %v6811, %v6857
        %v6869 = vadd.f32 %v6813, %v6857
        %v6870 = vadd.f32 %v6815, %v6857
        %v6871 = vadd.f32 %v6817, %v6857
        %v6872 = vadd.f32 %v6819, %v6857
        %v6873 = vadd.f32 %v6821, %v6857
        %v6874 = vadd.f32 %v6823, %v6857
        %v6875 = vadd.f32 %v6825, %v6857
        %v6876 = vadd.f32 %v6827, %v6857
        %v6877 = vadd.f32 %v6829, %v6857
        %v6878 = vadd.f32 %v6831, %v6857
        %v6879 = vadd.f32 %v6833, %v6857
        %v6880 = vadd.f32 %v6835, %v6857
        %v6881 = vadd.f32 %v6837, %v6857
        %v6882 = vadd.f32 %v6839, %v6857
        %v6883 = vadd.f32 %v6841, %v6857
        %v6884 = vadd.f32 %v6843, %v6857
        %v6885 = vadd.f32 %v6845, %v6857
        %v6886 = vadd.f32 %v6847, %v6857
        %v6887 = vadd.f32 %v6849, %v6857
        %v6888 = vadd.f32 %v6851, %v6857
        %v6889 = vadd.f32 %v6853, %v6857
        %v6890 = vadd.f32 %v6855, %v6857
        %vm6891 = vcmp.gt.f32.partialorder %v3209, 0.0
        %vm6892 = vcmp.gt.f32.partialorder %v3216, 0.0
        %vm6893 = vcmp.gt.f32.partialorder %v3223, 0.0
        %vm6894 = vcmp.gt.f32.partialorder %v3230, 0.0
        %vm6895 = vcmp.gt.f32.partialorder %v3237, 0.0
        %vm6896 = vcmp.gt.f32.partialorder %v3244, 0.0
        %vm6897 = vcmp.gt.f32.partialorder %v3251, 0.0
        %vm6898 = vcmp.gt.f32.partialorder %v3258, 0.0
        %vm6899 = vcmp.gt.f32.partialorder %v3265, 0.0
        %vm6900 = vcmp.gt.f32.partialorder %v3272, 0.0
        %vm6901 = vcmp.gt.f32.partialorder %v3279, 0.0
        %vm6902 = vcmp.gt.f32.partialorder %v3286, 0.0
        %vm6903 = vcmp.gt.f32.partialorder %v3293, 0.0
        %vm6904 = vcmp.gt.f32.partialorder %v3300, 0.0
        %vm6905 = vcmp.gt.f32.partialorder %v3307, 0.0
        %vm6906 = vcmp.gt.f32.partialorder %v3314, 0.0
        %vm6907 = vcmp.gt.f32.partialorder %v3321, 0.0
        %vm6908 = vcmp.gt.f32.partialorder %v3328, 0.0
        %vm6909 = vcmp.gt.f32.partialorder %v3335, 0.0
        %vm6910 = vcmp.gt.f32.partialorder %v3342, 0.0
        %vm6911 = vcmp.gt.f32.partialorder %v3349, 0.0
        %vm6912 = vcmp.gt.f32.partialorder %v3356, 0.0
        %vm6913 = vcmp.gt.f32.partialorder %v3363, 0.0
        %vm6914 = vcmp.gt.f32.partialorder %v3370, 0.0
        %vm6915 = vcmp.gt.f32.partialorder %v3377, 0.0
        %vm6916 = vcmp.gt.f32.partialorder %v3384, 0.0
        %vm6917 = vcmp.gt.f32.partialorder %v3391, 0.0
        %vm6918 = vcmp.gt.f32.partialorder %v3398, 0.0
        %vm6919 = vcmp.gt.f32.partialorder %v3405, 0.0
        %vm6920 = vcmp.gt.f32.partialorder %v3412, 0.0
        %vm6921 = vcmp.gt.f32.partialorder %v3419, 0.0
        %vm6922 = vcmp.gt.f32.partialorder %v3426, 0.0
        %v6923 = vsel %vm6891, %v6859, -1e+30
        %v6924 = vsel %vm6892, %v6860, -1e+30
        %v6925 = vsel %vm6893, %v6861, -1e+30
        %v6926 = vsel %vm6894, %v6862, -1e+30
        %v6927 = vsel %vm6895, %v6863, -1e+30
        %v6928 = vsel %vm6896, %v6864, -1e+30
        %v6929 = vsel %vm6897, %v6865, -1e+30
        %v6930 = vsel %vm6898, %v6866, -1e+30
        %v6931 = vsel %vm6899, %v6867, -1e+30
        %v6932 = vsel %vm6900, %v6868, -1e+30
        %v6933 = vsel %vm6901, %v6869, -1e+30
        %v6934 = vsel %vm6902, %v6870, -1e+30
        %v6935 = vsel %vm6903, %v6871, -1e+30
        %v6936 = vsel %vm6904, %v6872, -1e+30
        %v6937 = vsel %vm6905, %v6873, -1e+30
        %v6938 = vsel %vm6906, %v6874, -1e+30
        %v6939 = vsel %vm6907, %v6875, -1e+30
        %v6940 = vsel %vm6908, %v6876, -1e+30
        %v6941 = vsel %vm6909, %v6877, -1e+30
        %v6942 = vsel %vm6910, %v6878, -1e+30
        %v6943 = vsel %vm6911, %v6879, -1e+30
        %v6944 = vsel %vm6912, %v6880, -1e+30
        %v6945 = vsel %vm6913, %v6881, -1e+30
        %v6946 = vsel %vm6914, %v6882, -1e+30
        %v6947 = vsel %vm6915, %v6883, -1e+30
        %v6948 = vsel %vm6916, %v6884, -1e+30
        %v6949 = vsel %vm6917, %v6885, -1e+30
        %v6950 = vsel %vm6918, %v6886, -1e+30
        %v6951 = vsel %vm6919, %v6887, -1e+30
        %v6952 = vsel %vm6920, %v6888, -1e+30
        %v6953 = vsel %vm6921, %v6889, -1e+30
        %v6954 = vsel %vm6922, %v6890, -1e+30
        %v6955 = vsel %vm4352, %v6923, -inf
        %v6956 = vrot.slane %v6955, 4
        %v6957 = vmax.f32 %v6955, %v6956
        %v6958 = vrot.slane %v6957, 2
        %v6959 = vmax.f32 %v6957, %v6958
        %v6960 = vrot.slane %v6959, 1
        %v6961 = vmax.f32 %v6959, %v6960
        %v6962 = vsel %vm4352, %v6924, -inf
        %v6963 = vrot.slane %v6962, 4
        %v6964 = vmax.f32 %v6962, %v6963
        %v6965 = vrot.slane %v6964, 2
        %v6966 = vmax.f32 %v6964, %v6965
        %v6967 = vrot.slane %v6966, 1
        %v6968 = vmax.f32 %v6966, %v6967
        %v6969 = vsel %vm4352, %v6925, -inf
        %v6970 = vrot.slane %v6969, 4
        %v6971 = vmax.f32 %v6969, %v6970
        %v6972 = vrot.slane %v6971, 2
        %v6973 = vmax.f32 %v6971, %v6972
        %v6974 = vrot.slane %v6973, 1
        %v6975 = vmax.f32 %v6973, %v6974
        %v6976 = vsel %vm4352, %v6926, -inf
        %v6977 = vrot.slane %v6976, 4
        %v6978 = vmax.f32 %v6976, %v6977
        %v6979 = vrot.slane %v6978, 2
        %v6980 = vmax.f32 %v6978, %v6979
        %v6981 = vrot.slane %v6980, 1
        %v6982 = vmax.f32 %v6980, %v6981
        %v6983 = vsel %vm4352, %v6927, -inf
        %v6984 = vrot.slane %v6983, 4
        %v6985 = vmax.f32 %v6983, %v6984
        %v6986 = vrot.slane %v6985, 2
        %v6987 = vmax.f32 %v6985, %v6986
        %v6988 = vrot.slane %v6987, 1
        %v6989 = vmax.f32 %v6987, %v6988
        %v6990 = vsel %vm4352, %v6928, -inf
        %v6991 = vrot.slane %v6990, 4
        %v6992 = vmax.f32 %v6990, %v6991
        %v6993 = vrot.slane %v6992, 2
        %v6994 = vmax.f32 %v6992, %v6993
        %v6995 = vrot.slane %v6994, 1
        %v6996 = vmax.f32 %v6994, %v6995
        %v6997 = vsel %vm4352, %v6929, -inf
        %v6998 = vrot.slane %v6997, 4
        %v6999 = vmax.f32 %v6997, %v6998
        %v7000 = vrot.slane %v6999, 2
        %v7001 = vmax.f32 %v6999, %v7000
        %v7002 = vrot.slane %v7001, 1
        %v7003 = vmax.f32 %v7001, %v7002
        %v7004 = vsel %vm4352, %v6930, -inf
        %v7005 = vrot.slane %v7004, 4
        %v7006 = vmax.f32 %v7004, %v7005
        %v7007 = vrot.slane %v7006, 2
        %v7008 = vmax.f32 %v7006, %v7007
        %v7009 = vrot.slane %v7008, 1
        %v7010 = vmax.f32 %v7008, %v7009
        %v7011 = vsel %vm4352, %v6931, -inf
        %v7012 = vrot.slane %v7011, 4
        %v7013 = vmax.f32 %v7011, %v7012
        %v7014 = vrot.slane %v7013, 2
        %v7015 = vmax.f32 %v7013, %v7014
        %v7016 = vrot.slane %v7015, 1
        %v7017 = vmax.f32 %v7015, %v7016
        %v7018 = vsel %vm4352, %v6932, -inf
        %v7019 = vrot.slane %v7018, 4
        %v7020 = vmax.f32 %v7018, %v7019
        %v7021 = vrot.slane %v7020, 2
        %v7022 = vmax.f32 %v7020, %v7021
        %v7023 = vrot.slane %v7022, 1
        %v7024 = vmax.f32 %v7022, %v7023
        %v7025 = vsel %vm4352, %v6933, -inf
        %v7026 = vrot.slane %v7025, 4
        %v7027 = vmax.f32 %v7025, %v7026
        %v7028 = vrot.slane %v7027, 2
        %v7029 = vmax.f32 %v7027, %v7028
        %v7030 = vrot.slane %v7029, 1
        %v7031 = vmax.f32 %v7029, %v7030
        %v7032 = vsel %vm4352, %v6934, -inf
        %v7033 = vrot.slane %v7032, 4
        %v7034 = vmax.f32 %v7032, %v7033
        %v7035 = vrot.slane %v7034, 2
        %v7036 = vmax.f32 %v7034, %v7035
        %v7037 = vrot.slane %v7036, 1
        %v7038 = vmax.f32 %v7036, %v7037
        %v7039 = vsel %vm4352, %v6935, -inf
        %v7040 = vrot.slane %v7039, 4
        %v7041 = vmax.f32 %v7039, %v7040
        %v7042 = vrot.slane %v7041, 2
        %v7043 = vmax.f32 %v7041, %v7042
        %v7044 = vrot.slane %v7043, 1
        %v7045 = vmax.f32 %v7043, %v7044
        %v7046 = vsel %vm4352, %v6936, -inf
        %v7047 = vrot.slane %v7046, 4
        %v7048 = vmax.f32 %v7046, %v7047
        %v7049 = vrot.slane %v7048, 2
        %v7050 = vmax.f32 %v7048, %v7049
        %v7051 = vrot.slane %v7050, 1
        %v7052 = vmax.f32 %v7050, %v7051
        %v7053 = vsel %vm4352, %v6937, -inf
        %v7054 = vrot.slane %v7053, 4
        %v7055 = vmax.f32 %v7053, %v7054
        %v7056 = vrot.slane %v7055, 2
        %v7057 = vmax.f32 %v7055, %v7056
        %v7058 = vrot.slane %v7057, 1
        %v7059 = vmax.f32 %v7057, %v7058
        %v7060 = vsel %vm4352, %v6938, -inf
        %v7061 = vrot.slane %v7060, 4
        %v7062 = vmax.f32 %v7060, %v7061
        %v7063 = vrot.slane %v7062, 2
        %v7064 = vmax.f32 %v7062, %v7063
        %v7065 = vrot.slane %v7064, 1
        %v7066 = vmax.f32 %v7064, %v7065
        %v7067 = vsel %vm4352, %v6939, -inf
        %v7068 = vrot.slane %v7067, 4
        %v7069 = vmax.f32 %v7067, %v7068
        %v7070 = vrot.slane %v7069, 2
        %v7071 = vmax.f32 %v7069, %v7070
        %v7072 = vrot.slane %v7071, 1
        %v7073 = vmax.f32 %v7071, %v7072
        %v7074 = vsel %vm4352, %v6940, -inf
        %v7075 = vrot.slane %v7074, 4
        %v7076 = vmax.f32 %v7074, %v7075
        %v7077 = vrot.slane %v7076, 2
        %v7078 = vmax.f32 %v7076, %v7077
        %v7079 = vrot.slane %v7078, 1
        %v7080 = vmax.f32 %v7078, %v7079
        %v7081 = vsel %vm4352, %v6941, -inf
        %v7082 = vrot.slane %v7081, 4
        %v7083 = vmax.f32 %v7081, %v7082
        %v7084 = vrot.slane %v7083, 2
        %v7085 = vmax.f32 %v7083, %v7084
        %v7086 = vrot.slane %v7085, 1
        %v7087 = vmax.f32 %v7085, %v7086
        %v7088 = vsel %vm4352, %v6942, -inf
        %v7089 = vrot.slane %v7088, 4
        %v7090 = vmax.f32 %v7088, %v7089
        %v7091 = vrot.slane %v7090, 2
        %v7092 = vmax.f32 %v7090, %v7091
        %v7093 = vrot.slane %v7092, 1
        %v7094 = vmax.f32 %v7092, %v7093
        %v7095 = vsel %vm4352, %v6943, -inf
        %v7096 = vrot.slane %v7095, 4
        %v7097 = vmax.f32 %v7095, %v7096
        %v7098 = vrot.slane %v7097, 2
        %v7099 = vmax.f32 %v7097, %v7098
        %v7100 = vrot.slane %v7099, 1
        %v7101 = vmax.f32 %v7099, %v7100
        %v7102 = vsel %vm4352, %v6944, -inf
        %v7103 = vrot.slane %v7102, 4
        %v7104 = vmax.f32 %v7102, %v7103
        %v7105 = vrot.slane %v7104, 2
        %v7106 = vmax.f32 %v7104, %v7105
        %v7107 = vrot.slane %v7106, 1
        %v7108 = vmax.f32 %v7106, %v7107
        %v7109 = vsel %vm4352, %v6945, -inf
        %v7110 = vrot.slane %v7109, 4
        %v7111 = vmax.f32 %v7109, %v7110
        %v7112 = vrot.slane %v7111, 2
        %v7113 = vmax.f32 %v7111, %v7112
        %v7114 = vrot.slane %v7113, 1
        %v7115 = vmax.f32 %v7113, %v7114
        %v7116 = vsel %vm4352, %v6946, -inf
        %v7117 = vrot.slane %v7116, 4
        %v7118 = vmax.f32 %v7116, %v7117
        %v7119 = vrot.slane %v7118, 2
        %v7120 = vmax.f32 %v7118, %v7119
        %v7121 = vrot.slane %v7120, 1
        %v7122 = vmax.f32 %v7120, %v7121
        %v7123 = vsel %vm4352, %v6947, -inf
        %v7124 = vrot.slane %v7123, 4
        %v7125 = vmax.f32 %v7123, %v7124
        %v7126 = vrot.slane %v7125, 2
        %v7127 = vmax.f32 %v7125, %v7126
        %v7128 = vrot.slane %v7127, 1
        %v7129 = vmax.f32 %v7127, %v7128
        %v7130 = vsel %vm4352, %v6948, -inf
        %v7131 = vrot.slane %v7130, 4
        %v7132 = vmax.f32 %v7130, %v7131
        %v7133 = vrot.slane %v7132, 2
        %v7134 = vmax.f32 %v7132, %v7133
        %v7135 = vrot.slane %v7134, 1
        %v7136 = vmax.f32 %v7134, %v7135
        %v7137 = vsel %vm4352, %v6949, -inf
        %v7138 = vrot.slane %v7137, 4
        %v7139 = vmax.f32 %v7137, %v7138
        %v7140 = vrot.slane %v7139, 2
        %v7141 = vmax.f32 %v7139, %v7140
        %v7142 = vrot.slane %v7141, 1
        %v7143 = vmax.f32 %v7141, %v7142
        %v7144 = vsel %vm4352, %v6950, -inf
        %v7145 = vrot.slane %v7144, 4
        %v7146 = vmax.f32 %v7144, %v7145
        %v7147 = vrot.slane %v7146, 2
        %v7148 = vmax.f32 %v7146, %v7147
        %v7149 = vrot.slane %v7148, 1
        %v7150 = vmax.f32 %v7148, %v7149
        %v7151 = vsel %vm4352, %v6951, -inf
        %v7152 = vrot.slane %v7151, 4
        %v7153 = vmax.f32 %v7151, %v7152
        %v7154 = vrot.slane %v7153, 2
        %v7155 = vmax.f32 %v7153, %v7154
        %v7156 = vrot.slane %v7155, 1
        %v7157 = vmax.f32 %v7155, %v7156
        %v7158 = vsel %vm4352, %v6952, -inf
        %v7159 = vrot.slane %v7158, 4
        %v7160 = vmax.f32 %v7158, %v7159
        %v7161 = vrot.slane %v7160, 2
        %v7162 = vmax.f32 %v7160, %v7161
        %v7163 = vrot.slane %v7162, 1
        %v7164 = vmax.f32 %v7162, %v7163
        %v7165 = vsel %vm4352, %v6953, -inf
        %v7166 = vrot.slane %v7165, 4
        %v7167 = vmax.f32 %v7165, %v7166
        %v7168 = vrot.slane %v7167, 2
        %v7169 = vmax.f32 %v7167, %v7168
        %v7170 = vrot.slane %v7169, 1
        %v7171 = vmax.f32 %v7169, %v7170
        %v7172 = vsel %vm4352, %v6954, -inf
        %v7173 = vrot.slane %v7172, 4
        %v7174 = vmax.f32 %v7172, %v7173
        %v7175 = vrot.slane %v7174, 2
        %v7176 = vmax.f32 %v7174, %v7175
        %v7177 = vrot.slane %v7176, 1
        %v7178 = vmax.f32 %v7176, %v7177
        %v7179 = vsub.f32 %v6923, %v6961
        %v7180 = vsub.f32 %v6924, %v6968
        %v7181 = vsub.f32 %v6925, %v6975
        %v7182 = vsub.f32 %v6926, %v6982
        %v7183 = vsub.f32 %v6927, %v6989
        %v7184 = vsub.f32 %v6928, %v6996
        %v7185 = vsub.f32 %v6929, %v7003
        %v7186 = vsub.f32 %v6930, %v7010
        %v7187 = vsub.f32 %v6931, %v7017
        %v7188 = vsub.f32 %v6932, %v7024
        %v7189 = vsub.f32 %v6933, %v7031
        %v7190 = vsub.f32 %v6934, %v7038
        %v7191 = vsub.f32 %v6935, %v7045
        %v7192 = vsub.f32 %v6936, %v7052
        %v7193 = vsub.f32 %v6937, %v7059
        %v7194 = vsub.f32 %v6938, %v7066
        %v7195 = vsub.f32 %v6939, %v7073
        %v7196 = vsub.f32 %v6940, %v7080
        %v7197 = vsub.f32 %v6941, %v7087
        %v7198 = vsub.f32 %v6942, %v7094
        %v7199 = vsub.f32 %v6943, %v7101
        %v7200 = vsub.f32 %v6944, %v7108
        %v7201 = vsub.f32 %v6945, %v7115
        %v7202 = vsub.f32 %v6946, %v7122
        %v7203 = vsub.f32 %v6947, %v7129
        %v7204 = vsub.f32 %v6948, %v7136
        %v7205 = vsub.f32 %v6949, %v7143
        %v7206 = vsub.f32 %v6950, %v7150
        %v7207 = vsub.f32 %v6951, %v7157
        %v7208 = vsub.f32 %v6952, %v7164
        %v7209 = vsub.f32 %v6953, %v7171
        %v7210 = vsub.f32 %v6954, %v7178
        %v7211 = vmul.f32 %v7179, 1.442695
        %v7212 = vpow.pop %v7211
        %v7213 = vmul.f32 %v7180, 1.442695
        %v7214 = vpow.pop %v7213
        %v7215 = vmul.f32 %v7181, 1.442695
        %v7216 = vpow.pop %v7215
        %v7217 = vmul.f32 %v7182, 1.442695
        %v7218 = vpow.pop %v7217
        %v7219 = vmul.f32 %v7183, 1.442695
        %v7220 = vpow.pop %v7219
        %v7221 = vmul.f32 %v7184, 1.442695
        %v7222 = vpow.pop %v7221
        %v7223 = vmul.f32 %v7185, 1.442695
        %v7224 = vpow.pop %v7223
        %v7225 = vmul.f32 %v7186, 1.442695
        %v7226 = vpow.pop %v7225
        %v7227 = vmul.f32 %v7187, 1.442695
        %v7228 = vpow.pop %v7227
        %v7229 = vmul.f32 %v7188, 1.442695
        %v7230 = vpow.pop %v7229
        %v7231 = vmul.f32 %v7189, 1.442695
        %v7232 = vpow.pop %v7231
        %v7233 = vmul.f32 %v7190, 1.442695
        %v7234 = vpow.pop %v7233
        %v7235 = vmul.f32 %v7191, 1.442695
        %v7236 = vpow.pop %v7235
        %v7237 = vmul.f32 %v7192, 1.442695
        %v7238 = vpow.pop %v7237
        %v7239 = vmul.f32 %v7193, 1.442695
        %v7240 = vpow.pop %v7239
        %v7241 = vmul.f32 %v7194, 1.442695
        %v7242 = vpow.pop %v7241
        %v7243 = vmul.f32 %v7195, 1.442695
        %v7244 = vpow.pop %v7243
        %v7245 = vmul.f32 %v7196, 1.442695
        %v7246 = vpow.pop %v7245
        %v7247 = vmul.f32 %v7197, 1.442695
        %v7248 = vpow.pop %v7247
        %v7249 = vmul.f32 %v7198, 1.442695
        %v7250 = vpow.pop %v7249
        %v7251 = vmul.f32 %v7199, 1.442695
        %v7252 = vpow.pop %v7251
        %v7253 = vmul.f32 %v7200, 1.442695
        %v7254 = vpow.pop %v7253
        %v7255 = vmul.f32 %v7201, 1.442695
        %v7256 = vpow.pop %v7255
        %v7257 = vmul.f32 %v7202, 1.442695
        %v7258 = vpow.pop %v7257
        %v7259 = vmul.f32 %v7203, 1.442695
        %v7260 = vpow.pop %v7259
        %v7261 = vmul.f32 %v7204, 1.442695
        %v7262 = vpow.pop %v7261
        %v7263 = vmul.f32 %v7205, 1.442695
        %v7264 = vpow.pop %v7263
        %v7265 = vmul.f32 %v7206, 1.442695
        %v7266 = vpow.pop %v7265
        %v7267 = vmul.f32 %v7207, 1.442695
        %v7268 = vpow.pop %v7267
        %v7269 = vmul.f32 %v7208, 1.442695
        %v7270 = vpow.pop %v7269
        %v7271 = vmul.f32 %v7209, 1.442695
        %v7272 = vpow.pop %v7271
        %v7273 = vmul.f32 %v7210, 1.442695
        %v7274 = vpow.pop %v7273
        %v7275 = vmul.f32 %v7212, %v3209
        %v7276 = vmul.f32 %v7214, %v3216
        %v7277 = vmul.f32 %v7216, %v3223
        %v7278 = vmul.f32 %v7218, %v3230
        %v7279 = vmul.f32 %v7220, %v3237
        %v7280 = vmul.f32 %v7222, %v3244
        %v7281 = vmul.f32 %v7224, %v3251
        %v7282 = vmul.f32 %v7226, %v3258
        %v7283 = vmul.f32 %v7228, %v3265
        %v7284 = vmul.f32 %v7230, %v3272
        %v7285 = vmul.f32 %v7232, %v3279
        %v7286 = vmul.f32 %v7234, %v3286
        %v7287 = vmul.f32 %v7236, %v3293
        %v7288 = vmul.f32 %v7238, %v3300
        %v7289 = vmul.f32 %v7240, %v3307
        %v7290 = vmul.f32 %v7242, %v3314
        %v7291 = vmul.f32 %v7244, %v3321
        %v7292 = vmul.f32 %v7246, %v3328
        %v7293 = vmul.f32 %v7248, %v3335
        %v7294 = vmul.f32 %v7250, %v3342
        %v7295 = vmul.f32 %v7252, %v3349
        %v7296 = vmul.f32 %v7254, %v3356
        %v7297 = vmul.f32 %v7256, %v3363
        %v7298 = vmul.f32 %v7258, %v3370
        %v7299 = vmul.f32 %v7260, %v3377
        %v7300 = vmul.f32 %v7262, %v3384
        %v7301 = vmul.f32 %v7264, %v3391
        %v7302 = vmul.f32 %v7266, %v3398
        %v7303 = vmul.f32 %v7268, %v3405
        %v7304 = vmul.f32 %v7270, %v3412
        %v7305 = vmul.f32 %v7272, %v3419
        %v7306 = vmul.f32 %v7274, %v3426
        %v7307 = vsel %vm4352, %v7275, 0.0
        %v7308 = vrot.slane %v7307, 4
        %v7309 = vadd.f32 %v7307, %v7308
        %v7310 = vrot.slane %v7309, 2
        %v7311 = vadd.f32 %v7309, %v7310
        %v7312 = vrot.slane %v7311, 1
        %v7313 = vadd.f32 %v7311, %v7312
        %v7314 = vsel %vm4352, %v7276, 0.0
        %v7315 = vrot.slane %v7314, 4
        %v7316 = vadd.f32 %v7314, %v7315
        %v7317 = vrot.slane %v7316, 2
        %v7318 = vadd.f32 %v7316, %v7317
        %v7319 = vrot.slane %v7318, 1
        %v7320 = vadd.f32 %v7318, %v7319
        %v7321 = vsel %vm4352, %v7277, 0.0
        %v7322 = vrot.slane %v7321, 4
        %v7323 = vadd.f32 %v7321, %v7322
        %v7324 = vrot.slane %v7323, 2
        %v7325 = vadd.f32 %v7323, %v7324
        %v7326 = vrot.slane %v7325, 1
        %v7327 = vadd.f32 %v7325, %v7326
        %v7328 = vsel %vm4352, %v7278, 0.0
        %v7329 = vrot.slane %v7328, 4
        %v7330 = vadd.f32 %v7328, %v7329
        %v7331 = vrot.slane %v7330, 2
        %v7332 = vadd.f32 %v7330, %v7331
        %v7333 = vrot.slane %v7332, 1
        %v7334 = vadd.f32 %v7332, %v7333
        %v7335 = vsel %vm4352, %v7279, 0.0
        %v7336 = vrot.slane %v7335, 4
        %v7337 = vadd.f32 %v7335, %v7336
        %v7338 = vrot.slane %v7337, 2
        %v7339 = vadd.f32 %v7337, %v7338
        %v7340 = vrot.slane %v7339, 1
        %v7341 = vadd.f32 %v7339, %v7340
        %v7342 = vsel %vm4352, %v7280, 0.0
        %v7343 = vrot.slane %v7342, 4
        %v7344 = vadd.f32 %v7342, %v7343
        %v7345 = vrot.slane %v7344, 2
        %v7346 = vadd.f32 %v7344, %v7345
        %v7347 = vrot.slane %v7346, 1
        %v7348 = vadd.f32 %v7346, %v7347
        %v7349 = vsel %vm4352, %v7281, 0.0
        %v7350 = vrot.slane %v7349, 4
        %v7351 = vadd.f32 %v7349, %v7350
        %v7352 = vrot.slane %v7351, 2
        %v7353 = vadd.f32 %v7351, %v7352
        %v7354 = vrot.slane %v7353, 1
        %v7355 = vadd.f32 %v7353, %v7354
        %v7356 = vsel %vm4352, %v7282, 0.0
        %v7357 = vrot.slane %v7356, 4
        %v7358 = vadd.f32 %v7356, %v7357
        %v7359 = vrot.slane %v7358, 2
        %v7360 = vadd.f32 %v7358, %v7359
        %v7361 = vrot.slane %v7360, 1
        %v7362 = vadd.f32 %v7360, %v7361
        %v7363 = vsel %vm4352, %v7283, 0.0
        %v7364 = vrot.slane %v7363, 4
        %v7365 = vadd.f32 %v7363, %v7364
        %v7366 = vrot.slane %v7365, 2
        %v7367 = vadd.f32 %v7365, %v7366
        %v7368 = vrot.slane %v7367, 1
        %v7369 = vadd.f32 %v7367, %v7368
        %v7370 = vsel %vm4352, %v7284, 0.0
        %v7371 = vrot.slane %v7370, 4
        %v7372 = vadd.f32 %v7370, %v7371
        %v7373 = vrot.slane %v7372, 2
        %v7374 = vadd.f32 %v7372, %v7373
        %v7375 = vrot.slane %v7374, 1
        %v7376 = vadd.f32 %v7374, %v7375
        %v7377 = vsel %vm4352, %v7285, 0.0
        %v7378 = vrot.slane %v7377, 4
        %v7379 = vadd.f32 %v7377, %v7378
        %v7380 = vrot.slane %v7379, 2
        %v7381 = vadd.f32 %v7379, %v7380
        %v7382 = vrot.slane %v7381, 1
        %v7383 = vadd.f32 %v7381, %v7382
        %v7384 = vsel %vm4352, %v7286, 0.0
        %v7385 = vrot.slane %v7384, 4
        %v7386 = vadd.f32 %v7384, %v7385
        %v7387 = vrot.slane %v7386, 2
        %v7388 = vadd.f32 %v7386, %v7387
        %v7389 = vrot.slane %v7388, 1
        %v7390 = vadd.f32 %v7388, %v7389
        %v7391 = vsel %vm4352, %v7287, 0.0
        %v7392 = vrot.slane %v7391, 4
        %v7393 = vadd.f32 %v7391, %v7392
        %v7394 = vrot.slane %v7393, 2
        %v7395 = vadd.f32 %v7393, %v7394
        %v7396 = vrot.slane %v7395, 1
        %v7397 = vadd.f32 %v7395, %v7396
        %v7398 = vsel %vm4352, %v7288, 0.0
        %v7399 = vrot.slane %v7398, 4
        %v7400 = vadd.f32 %v7398, %v7399
        %v7401 = vrot.slane %v7400, 2
        %v7402 = vadd.f32 %v7400, %v7401
        %v7403 = vrot.slane %v7402, 1
        %v7404 = vadd.f32 %v7402, %v7403
        %v7405 = vsel %vm4352, %v7289, 0.0
        %v7406 = vrot.slane %v7405, 4
        %v7407 = vadd.f32 %v7405, %v7406
        %v7408 = vrot.slane %v7407, 2
        %v7409 = vadd.f32 %v7407, %v7408
        %v7410 = vrot.slane %v7409, 1
        %v7411 = vadd.f32 %v7409, %v7410
        %v7412 = vsel %vm4352, %v7290, 0.0
        %v7413 = vrot.slane %v7412, 4
        %v7414 = vadd.f32 %v7412, %v7413
        %v7415 = vrot.slane %v7414, 2
        %v7416 = vadd.f32 %v7414, %v7415
        %v7417 = vrot.slane %v7416, 1
        %v7418 = vadd.f32 %v7416, %v7417
        %v7419 = vsel %vm4352, %v7291, 0.0
        %v7420 = vrot.slane %v7419, 4
        %v7421 = vadd.f32 %v7419, %v7420
        %v7422 = vrot.slane %v7421, 2
        %v7423 = vadd.f32 %v7421, %v7422
        %v7424 = vrot.slane %v7423, 1
        %v7425 = vadd.f32 %v7423, %v7424
        %v7426 = vsel %vm4352, %v7292, 0.0
        %v7427 = vrot.slane %v7426, 4
        %v7428 = vadd.f32 %v7426, %v7427
        %v7429 = vrot.slane %v7428, 2
        %v7430 = vadd.f32 %v7428, %v7429
        %v7431 = vrot.slane %v7430, 1
        %v7432 = vadd.f32 %v7430, %v7431
        %v7433 = vsel %vm4352, %v7293, 0.0
        %v7434 = vrot.slane %v7433, 4
        %v7435 = vadd.f32 %v7433, %v7434
        %v7436 = vrot.slane %v7435, 2
        %v7437 = vadd.f32 %v7435, %v7436
        %v7438 = vrot.slane %v7437, 1
        %v7439 = vadd.f32 %v7437, %v7438
        %v7440 = vsel %vm4352, %v7294, 0.0
        %v7441 = vrot.slane %v7440, 4
        %v7442 = vadd.f32 %v7440, %v7441
        %v7443 = vrot.slane %v7442, 2
        %v7444 = vadd.f32 %v7442, %v7443
        %v7445 = vrot.slane %v7444, 1
        %v7446 = vadd.f32 %v7444, %v7445
        %v7447 = vsel %vm4352, %v7295, 0.0
        %v7448 = vrot.slane %v7447, 4
        %v7449 = vadd.f32 %v7447, %v7448
        %v7450 = vrot.slane %v7449, 2
        %v7451 = vadd.f32 %v7449, %v7450
        %v7452 = vrot.slane %v7451, 1
        %v7453 = vadd.f32 %v7451, %v7452
        %v7454 = vsel %vm4352, %v7296, 0.0
        %v7455 = vrot.slane %v7454, 4
        %v7456 = vadd.f32 %v7454, %v7455
        %v7457 = vrot.slane %v7456, 2
        %v7458 = vadd.f32 %v7456, %v7457
        %v7459 = vrot.slane %v7458, 1
        %v7460 = vadd.f32 %v7458, %v7459
        %v7461 = vsel %vm4352, %v7297, 0.0
        %v7462 = vrot.slane %v7461, 4
        %v7463 = vadd.f32 %v7461, %v7462
        %v7464 = vrot.slane %v7463, 2
        %v7465 = vadd.f32 %v7463, %v7464
        %v7466 = vrot.slane %v7465, 1
        %v7467 = vadd.f32 %v7465, %v7466
        %v7468 = vsel %vm4352, %v7298, 0.0
        %v7469 = vrot.slane %v7468, 4
        %v7470 = vadd.f32 %v7468, %v7469
        %v7471 = vrot.slane %v7470, 2
        %v7472 = vadd.f32 %v7470, %v7471
        %v7473 = vrot.slane %v7472, 1
        %v7474 = vadd.f32 %v7472, %v7473
        %v7475 = vsel %vm4352, %v7299, 0.0
        %v7476 = vrot.slane %v7475, 4
        %v7477 = vadd.f32 %v7475, %v7476
        %v7478 = vrot.slane %v7477, 2
        %v7479 = vadd.f32 %v7477, %v7478
        %v7480 = vrot.slane %v7479, 1
        %v7481 = vadd.f32 %v7479, %v7480
        %v7482 = vsel %vm4352, %v7300, 0.0
        %v7483 = vrot.slane %v7482, 4
        %v7484 = vadd.f32 %v7482, %v7483
        %v7485 = vrot.slane %v7484, 2
        %v7486 = vadd.f32 %v7484, %v7485
        %v7487 = vrot.slane %v7486, 1
        %v7488 = vadd.f32 %v7486, %v7487
        %v7489 = vsel %vm4352, %v7301, 0.0
        %v7490 = vrot.slane %v7489, 4
        %v7491 = vadd.f32 %v7489, %v7490
        %v7492 = vrot.slane %v7491, 2
        %v7493 = vadd.f32 %v7491, %v7492
        %v7494 = vrot.slane %v7493, 1
        %v7495 = vadd.f32 %v7493, %v7494
        %v7496 = vsel %vm4352, %v7302, 0.0
        %v7497 = vrot.slane %v7496, 4
        %v7498 = vadd.f32 %v7496, %v7497
        %v7499 = vrot.slane %v7498, 2
        %v7500 = vadd.f32 %v7498, %v7499
        %v7501 = vrot.slane %v7500, 1
        %v7502 = vadd.f32 %v7500, %v7501
        %v7503 = vsel %vm4352, %v7303, 0.0
        %v7504 = vrot.slane %v7503, 4
        %v7505 = vadd.f32 %v7503, %v7504
        %v7506 = vrot.slane %v7505, 2
        %v7507 = vadd.f32 %v7505, %v7506
        %v7508 = vrot.slane %v7507, 1
        %v7509 = vadd.f32 %v7507, %v7508
        %v7510 = vsel %vm4352, %v7304, 0.0
        %v7511 = vrot.slane %v7510, 4
        %v7512 = vadd.f32 %v7510, %v7511
        %v7513 = vrot.slane %v7512, 2
        %v7514 = vadd.f32 %v7512, %v7513
        %v7515 = vrot.slane %v7514, 1
        %v7516 = vadd.f32 %v7514, %v7515
        %v7517 = vsel %vm4352, %v7305, 0.0
        %v7518 = vrot.slane %v7517, 4
        %v7519 = vadd.f32 %v7517, %v7518
        %v7520 = vrot.slane %v7519, 2
        %v7521 = vadd.f32 %v7519, %v7520
        %v7522 = vrot.slane %v7521, 1
        %v7523 = vadd.f32 %v7521, %v7522
        %v7524 = vsel %vm4352, %v7306, 0.0
        %v7525 = vrot.slane %v7524, 4
        %v7526 = vadd.f32 %v7524, %v7525
        %v7527 = vrot.slane %v7526, 2
        %v7528 = vadd.f32 %v7526, %v7527
        %v7529 = vrot.slane %v7528, 1
        %v7530 = vadd.f32 %v7528, %v7529
        %v7531 = vadd.f32 %v7313, 1e-10
        %v7532 = vadd.f32 %v7320, 1e-10
        %v7533 = vadd.f32 %v7327, 1e-10
        %v7534 = vadd.f32 %v7334, 1e-10
        %v7535 = vadd.f32 %v7341, 1e-10
        %v7536 = vadd.f32 %v7348, 1e-10
        %v7537 = vadd.f32 %v7355, 1e-10
        %v7538 = vadd.f32 %v7362, 1e-10
        %v7539 = vadd.f32 %v7369, 1e-10
        %v7540 = vadd.f32 %v7376, 1e-10
        %v7541 = vadd.f32 %v7383, 1e-10
        %v7542 = vadd.f32 %v7390, 1e-10
        %v7543 = vadd.f32 %v7397, 1e-10
        %v7544 = vadd.f32 %v7404, 1e-10
        %v7545 = vadd.f32 %v7411, 1e-10
        %v7546 = vadd.f32 %v7418, 1e-10
        %v7547 = vadd.f32 %v7425, 1e-10
        %v7548 = vadd.f32 %v7432, 1e-10
        %v7549 = vadd.f32 %v7439, 1e-10
        %v7550 = vadd.f32 %v7446, 1e-10
        %v7551 = vadd.f32 %v7453, 1e-10
        %v7552 = vadd.f32 %v7460, 1e-10
        %v7553 = vadd.f32 %v7467, 1e-10
        %v7554 = vadd.f32 %v7474, 1e-10
        %v7555 = vadd.f32 %v7481, 1e-10
        %v7556 = vadd.f32 %v7488, 1e-10
        %v7557 = vadd.f32 %v7495, 1e-10
        %v7558 = vadd.f32 %v7502, 1e-10
        %v7559 = vadd.f32 %v7509, 1e-10
        %v7560 = vadd.f32 %v7516, 1e-10
        %v7561 = vadd.f32 %v7523, 1e-10
        %v7562 = vadd.f32 %v7530, 1e-10
        %v7563 = vrcp.pop %v7531
        %v7564 = vrcp.pop %v7532
        %v7565 = vrcp.pop %v7533
        %v7566 = vrcp.pop %v7534
        %v7567 = vrcp.pop %v7535
        %v7568 = vrcp.pop %v7536
        %v7569 = vrcp.pop %v7537
        %v7570 = vrcp.pop %v7538
        %v7571 = vrcp.pop %v7539
        %v7572 = vrcp.pop %v7540
        %v7573 = vrcp.pop %v7541
        %v7574 = vrcp.pop %v7542
        %v7575 = vrcp.pop %v7543
        %v7576 = vrcp.pop %v7544
        %v7577 = vrcp.pop %v7545
        %v7578 = vrcp.pop %v7546
        %v7579 = vrcp.pop %v7547
        %v7580 = vrcp.pop %v7548
        %v7581 = vrcp.pop %v7549
        %v7582 = vrcp.pop %v7550
        %v7583 = vrcp.pop %v7551
        %v7584 = vrcp.pop %v7552
        %v7585 = vrcp.pop %v7553
        %v7586 = vrcp.pop %v7554
        %v7587 = vrcp.pop %v7555
        %v7588 = vrcp.pop %v7556
        %v7589 = vrcp.pop %v7557
        %v7590 = vrcp.pop %v7558
        %v7591 = vrcp.pop %v7559
        %v7592 = vrcp.pop %v7560
        %v7593 = vrcp.pop %v7561
        %v7594 = vrcp.pop %v7562
        %v7595 = vmul.f32 %v7275, %v7563
        %v7596 = vmul.f32 %v7276, %v7564
        %v7597 = vmul.f32 %v7277, %v7565
        %v7598 = vmul.f32 %v7278, %v7566
        %v7599 = vmul.f32 %v7279, %v7567
        %v7600 = vmul.f32 %v7280, %v7568
        %v7601 = vmul.f32 %v7281, %v7569
        %v7602 = vmul.f32 %v7282, %v7570
        %v7603 = vmul.f32 %v7283, %v7571
        %v7604 = vmul.f32 %v7284, %v7572
        %v7605 = vmul.f32 %v7285, %v7573
        %v7606 = vmul.f32 %v7286, %v7574
        %v7607 = vmul.f32 %v7287, %v7575
        %v7608 = vmul.f32 %v7288, %v7576
        %v7609 = vmul.f32 %v7289, %v7577
        %v7610 = vmul.f32 %v7290, %v7578
        %v7611 = vmul.f32 %v7291, %v7579
        %v7612 = vmul.f32 %v7292, %v7580
        %v7613 = vmul.f32 %v7293, %v7581
        %v7614 = vmul.f32 %v7294, %v7582
        %v7615 = vmul.f32 %v7295, %v7583
        %v7616 = vmul.f32 %v7296, %v7584
        %v7617 = vmul.f32 %v7297, %v7585
        %v7618 = vmul.f32 %v7298, %v7586
        %v7619 = vmul.f32 %v7299, %v7587
        %v7620 = vmul.f32 %v7300, %v7588
        %v7621 = vmul.f32 %v7301, %v7589
        %v7622 = vmul.f32 %v7302, %v7590
        %v7623 = vmul.f32 %v7303, %v7591
        %v7624 = vmul.f32 %v7304, %v7592
        %v7625 = vmul.f32 %v7305, %v7593
        %v7626 = vmul.f32 %v7306, %v7594
        %7628 = vset.pattern.permute.xlu0 0
        %7629 = vperm.xlu0 %7628, %v7595
        %v7630 = vpop.permute.xlu0 %7629
        %7633 = vset.pattern.permute.xlu0 0
        %7634 = vperm.xlu0 %7633, %v7596
        %v7635 = vpop.permute.xlu0 %7634
        %7638 = vset.pattern.permute.xlu0 0
        %7639 = vperm.xlu0 %7638, %v7597
        %v7640 = vpop.permute.xlu0 %7639
        %7643 = vset.pattern.permute.xlu0 0
        %7644 = vperm.xlu0 %7643, %v7598
        %v7645 = vpop.permute.xlu0 %7644
        %7648 = vset.pattern.permute.xlu0 0
        %7649 = vperm.xlu0 %7648, %v7599
        %v7650 = vpop.permute.xlu0 %7649
        %7653 = vset.pattern.permute.xlu0 0
        %7654 = vperm.xlu0 %7653, %v7600
        %v7655 = vpop.permute.xlu0 %7654
        %7658 = vset.pattern.permute.xlu0 0
        %7659 = vperm.xlu0 %7658, %v7601
        %v7660 = vpop.permute.xlu0 %7659
        %7663 = vset.pattern.permute.xlu0 0
        %7664 = vperm.xlu0 %7663, %v7602
        %v7665 = vpop.permute.xlu0 %7664
        %7668 = vset.pattern.permute.xlu0 0
        %7669 = vperm.xlu0 %7668, %v7603
        %v7670 = vpop.permute.xlu0 %7669
        %7673 = vset.pattern.permute.xlu0 0
        %7674 = vperm.xlu0 %7673, %v7604
        %v7675 = vpop.permute.xlu0 %7674
        %7678 = vset.pattern.permute.xlu0 0
        %7679 = vperm.xlu0 %7678, %v7605
        %v7680 = vpop.permute.xlu0 %7679
        %7683 = vset.pattern.permute.xlu0 0
        %7684 = vperm.xlu0 %7683, %v7606
        %v7685 = vpop.permute.xlu0 %7684
        %7688 = vset.pattern.permute.xlu0 0
        %7689 = vperm.xlu0 %7688, %v7607
        %v7690 = vpop.permute.xlu0 %7689
        %7693 = vset.pattern.permute.xlu0 0
        %7694 = vperm.xlu0 %7693, %v7608
        %v7695 = vpop.permute.xlu0 %7694
        %7698 = vset.pattern.permute.xlu0 0
        %7699 = vperm.xlu0 %7698, %v7609
        %v7700 = vpop.permute.xlu0 %7699
        %7703 = vset.pattern.permute.xlu0 0
        %7704 = vperm.xlu0 %7703, %v7610
        %v7705 = vpop.permute.xlu0 %7704
        %7708 = vset.pattern.permute.xlu0 0
        %7709 = vperm.xlu0 %7708, %v7611
        %v7710 = vpop.permute.xlu0 %7709
        %7713 = vset.pattern.permute.xlu0 0
        %7714 = vperm.xlu0 %7713, %v7612
        %v7715 = vpop.permute.xlu0 %7714
        %7718 = vset.pattern.permute.xlu0 0
        %7719 = vperm.xlu0 %7718, %v7613
        %v7720 = vpop.permute.xlu0 %7719
        %7723 = vset.pattern.permute.xlu0 0
        %7724 = vperm.xlu0 %7723, %v7614
        %v7725 = vpop.permute.xlu0 %7724
        %7728 = vset.pattern.permute.xlu0 0
        %7729 = vperm.xlu0 %7728, %v7615
        %v7730 = vpop.permute.xlu0 %7729
        %7733 = vset.pattern.permute.xlu0 0
        %7734 = vperm.xlu0 %7733, %v7616
        %v7735 = vpop.permute.xlu0 %7734
        %7738 = vset.pattern.permute.xlu0 0
        %7739 = vperm.xlu0 %7738, %v7617
        %v7740 = vpop.permute.xlu0 %7739
        %7743 = vset.pattern.permute.xlu0 0
        %7744 = vperm.xlu0 %7743, %v7618
        %v7745 = vpop.permute.xlu0 %7744
        %7748 = vset.pattern.permute.xlu0 0
        %7749 = vperm.xlu0 %7748, %v7619
        %v7750 = vpop.permute.xlu0 %7749
        %7753 = vset.pattern.permute.xlu0 0
        %7754 = vperm.xlu0 %7753, %v7620
        %v7755 = vpop.permute.xlu0 %7754
        %7758 = vset.pattern.permute.xlu0 0
        %7759 = vperm.xlu0 %7758, %v7621
        %v7760 = vpop.permute.xlu0 %7759
        %7763 = vset.pattern.permute.xlu0 0
        %7764 = vperm.xlu0 %7763, %v7622
        %v7765 = vpop.permute.xlu0 %7764
        %7768 = vset.pattern.permute.xlu0 0
        %7769 = vperm.xlu0 %7768, %v7623
        %v7770 = vpop.permute.xlu0 %7769
        %7773 = vset.pattern.permute.xlu0 0
        %7774 = vperm.xlu0 %7773, %v7624
        %v7775 = vpop.permute.xlu0 %7774
        %7778 = vset.pattern.permute.xlu0 0
        %7779 = vperm.xlu0 %7778, %v7625
        %v7780 = vpop.permute.xlu0 %7779
        %7783 = vset.pattern.permute.xlu0 0
        %7784 = vperm.xlu0 %7783, %v7626
        %v7785 = vpop.permute.xlu0 %7784
        %v7787 = vmul.f32 %v7630, %v6081
        %v7788 = vmul.f32 %v7635, %v6083
        %v7789 = vmul.f32 %v7640, %v6086
        %v7790 = vmul.f32 %v7645, %v6088
        %v7791 = vmul.f32 %v7650, %v6091
        %v7792 = vmul.f32 %v7655, %v6093
        %v7793 = vmul.f32 %v7660, %v6096
        %v7794 = vmul.f32 %v7665, %v6098
        %v7795 = vmul.f32 %v7670, %v6101
        %v7796 = vmul.f32 %v7675, %v6103
        %v7797 = vmul.f32 %v7680, %v6106
        %v7798 = vmul.f32 %v7685, %v6108
        %v7799 = vmul.f32 %v7690, %v6111
        %v7800 = vmul.f32 %v7695, %v6113
        %v7801 = vmul.f32 %v7700, %v6116
        %v7802 = vmul.f32 %v7705, %v6118
        %v7803 = vmul.f32 %v7710, %v6121
        %v7804 = vmul.f32 %v7715, %v6123
        %v7805 = vmul.f32 %v7720, %v6126
        %v7806 = vmul.f32 %v7725, %v6128
        %v7807 = vmul.f32 %v7730, %v6131
        %v7808 = vmul.f32 %v7735, %v6133
        %v7809 = vmul.f32 %v7740, %v6136
        %v7810 = vmul.f32 %v7745, %v6138
        %v7811 = vmul.f32 %v7750, %v6141
        %v7812 = vmul.f32 %v7755, %v6143
        %v7813 = vmul.f32 %v7760, %v6146
        %v7814 = vmul.f32 %v7765, %v6148
        %v7815 = vmul.f32 %v7770, %v6151
        %v7816 = vmul.f32 %v7775, %v6153
        %v7817 = vmul.f32 %v7780, %v6156
        %v7818 = vmul.f32 %v7785, %v6158
        %v7819 = vrot.slane %v7787, 4
        %v7820 = vadd.f32 %v7787, %v7819
        %v7821 = vrot.slane %v7820, 2
        %v7822 = vadd.f32 %v7820, %v7821
        %v7823 = vrot.slane %v7822, 1
        %v7824 = vadd.f32 %v7822, %v7823
        %v7825 = vrot.slane %v7788, 4
        %v7826 = vadd.f32 %v7788, %v7825
        %v7827 = vrot.slane %v7826, 2
        %v7828 = vadd.f32 %v7826, %v7827
        %v7829 = vrot.slane %v7828, 1
        %v7830 = vadd.f32 %v7828, %v7829
        %v7831 = vrot.slane %v7789, 4
        %v7832 = vadd.f32 %v7789, %v7831
        %v7833 = vrot.slane %v7832, 2
        %v7834 = vadd.f32 %v7832, %v7833
        %v7835 = vrot.slane %v7834, 1
        %v7836 = vadd.f32 %v7834, %v7835
        %v7837 = vrot.slane %v7790, 4
        %v7838 = vadd.f32 %v7790, %v7837
        %v7839 = vrot.slane %v7838, 2
        %v7840 = vadd.f32 %v7838, %v7839
        %v7841 = vrot.slane %v7840, 1
        %v7842 = vadd.f32 %v7840, %v7841
        %v7843 = vrot.slane %v7791, 4
        %v7844 = vadd.f32 %v7791, %v7843
        %v7845 = vrot.slane %v7844, 2
        %v7846 = vadd.f32 %v7844, %v7845
        %v7847 = vrot.slane %v7846, 1
        %v7848 = vadd.f32 %v7846, %v7847
        %v7849 = vrot.slane %v7792, 4
        %v7850 = vadd.f32 %v7792, %v7849
        %v7851 = vrot.slane %v7850, 2
        %v7852 = vadd.f32 %v7850, %v7851
        %v7853 = vrot.slane %v7852, 1
        %v7854 = vadd.f32 %v7852, %v7853
        %v7855 = vrot.slane %v7793, 4
        %v7856 = vadd.f32 %v7793, %v7855
        %v7857 = vrot.slane %v7856, 2
        %v7858 = vadd.f32 %v7856, %v7857
        %v7859 = vrot.slane %v7858, 1
        %v7860 = vadd.f32 %v7858, %v7859
        %v7861 = vrot.slane %v7794, 4
        %v7862 = vadd.f32 %v7794, %v7861
        %v7863 = vrot.slane %v7862, 2
        %v7864 = vadd.f32 %v7862, %v7863
        %v7865 = vrot.slane %v7864, 1
        %v7866 = vadd.f32 %v7864, %v7865
        %v7867 = vrot.slane %v7795, 4
        %v7868 = vadd.f32 %v7795, %v7867
        %v7869 = vrot.slane %v7868, 2
        %v7870 = vadd.f32 %v7868, %v7869
        %v7871 = vrot.slane %v7870, 1
        %v7872 = vadd.f32 %v7870, %v7871
        %v7873 = vrot.slane %v7796, 4
        %v7874 = vadd.f32 %v7796, %v7873
        %v7875 = vrot.slane %v7874, 2
        %v7876 = vadd.f32 %v7874, %v7875
        %v7877 = vrot.slane %v7876, 1
        %v7878 = vadd.f32 %v7876, %v7877
        %v7879 = vrot.slane %v7797, 4
        %v7880 = vadd.f32 %v7797, %v7879
        %v7881 = vrot.slane %v7880, 2
        %v7882 = vadd.f32 %v7880, %v7881
        %v7883 = vrot.slane %v7882, 1
        %v7884 = vadd.f32 %v7882, %v7883
        %v7885 = vrot.slane %v7798, 4
        %v7886 = vadd.f32 %v7798, %v7885
        %v7887 = vrot.slane %v7886, 2
        %v7888 = vadd.f32 %v7886, %v7887
        %v7889 = vrot.slane %v7888, 1
        %v7890 = vadd.f32 %v7888, %v7889
        %v7891 = vrot.slane %v7799, 4
        %v7892 = vadd.f32 %v7799, %v7891
        %v7893 = vrot.slane %v7892, 2
        %v7894 = vadd.f32 %v7892, %v7893
        %v7895 = vrot.slane %v7894, 1
        %v7896 = vadd.f32 %v7894, %v7895
        %v7897 = vrot.slane %v7800, 4
        %v7898 = vadd.f32 %v7800, %v7897
        %v7899 = vrot.slane %v7898, 2
        %v7900 = vadd.f32 %v7898, %v7899
        %v7901 = vrot.slane %v7900, 1
        %v7902 = vadd.f32 %v7900, %v7901
        %v7903 = vrot.slane %v7801, 4
        %v7904 = vadd.f32 %v7801, %v7903
        %v7905 = vrot.slane %v7904, 2
        %v7906 = vadd.f32 %v7904, %v7905
        %v7907 = vrot.slane %v7906, 1
        %v7908 = vadd.f32 %v7906, %v7907
        %v7909 = vrot.slane %v7802, 4
        %v7910 = vadd.f32 %v7802, %v7909
        %v7911 = vrot.slane %v7910, 2
        %v7912 = vadd.f32 %v7910, %v7911
        %v7913 = vrot.slane %v7912, 1
        %v7914 = vadd.f32 %v7912, %v7913
        %v7915 = vrot.slane %v7803, 4
        %v7916 = vadd.f32 %v7803, %v7915
        %v7917 = vrot.slane %v7916, 2
        %v7918 = vadd.f32 %v7916, %v7917
        %v7919 = vrot.slane %v7918, 1
        %v7920 = vadd.f32 %v7918, %v7919
        %v7921 = vrot.slane %v7804, 4
        %v7922 = vadd.f32 %v7804, %v7921
        %v7923 = vrot.slane %v7922, 2
        %v7924 = vadd.f32 %v7922, %v7923
        %v7925 = vrot.slane %v7924, 1
        %v7926 = vadd.f32 %v7924, %v7925
        %v7927 = vrot.slane %v7805, 4
        %v7928 = vadd.f32 %v7805, %v7927
        %v7929 = vrot.slane %v7928, 2
        %v7930 = vadd.f32 %v7928, %v7929
        %v7931 = vrot.slane %v7930, 1
        %v7932 = vadd.f32 %v7930, %v7931
        %v7933 = vrot.slane %v7806, 4
        %v7934 = vadd.f32 %v7806, %v7933
        %v7935 = vrot.slane %v7934, 2
        %v7936 = vadd.f32 %v7934, %v7935
        %v7937 = vrot.slane %v7936, 1
        %v7938 = vadd.f32 %v7936, %v7937
        %v7939 = vrot.slane %v7807, 4
        %v7940 = vadd.f32 %v7807, %v7939
        %v7941 = vrot.slane %v7940, 2
        %v7942 = vadd.f32 %v7940, %v7941
        %v7943 = vrot.slane %v7942, 1
        %v7944 = vadd.f32 %v7942, %v7943
        %v7945 = vrot.slane %v7808, 4
        %v7946 = vadd.f32 %v7808, %v7945
        %v7947 = vrot.slane %v7946, 2
        %v7948 = vadd.f32 %v7946, %v7947
        %v7949 = vrot.slane %v7948, 1
        %v7950 = vadd.f32 %v7948, %v7949
        %v7951 = vrot.slane %v7809, 4
        %v7952 = vadd.f32 %v7809, %v7951
        %v7953 = vrot.slane %v7952, 2
        %v7954 = vadd.f32 %v7952, %v7953
        %v7955 = vrot.slane %v7954, 1
        %v7956 = vadd.f32 %v7954, %v7955
        %v7957 = vrot.slane %v7810, 4
        %v7958 = vadd.f32 %v7810, %v7957
        %v7959 = vrot.slane %v7958, 2
        %v7960 = vadd.f32 %v7958, %v7959
        %v7961 = vrot.slane %v7960, 1
        %v7962 = vadd.f32 %v7960, %v7961
        %v7963 = vrot.slane %v7811, 4
        %v7964 = vadd.f32 %v7811, %v7963
        %v7965 = vrot.slane %v7964, 2
        %v7966 = vadd.f32 %v7964, %v7965
        %v7967 = vrot.slane %v7966, 1
        %v7968 = vadd.f32 %v7966, %v7967
        %v7969 = vrot.slane %v7812, 4
        %v7970 = vadd.f32 %v7812, %v7969
        %v7971 = vrot.slane %v7970, 2
        %v7972 = vadd.f32 %v7970, %v7971
        %v7973 = vrot.slane %v7972, 1
        %v7974 = vadd.f32 %v7972, %v7973
        %v7975 = vrot.slane %v7813, 4
        %v7976 = vadd.f32 %v7813, %v7975
        %v7977 = vrot.slane %v7976, 2
        %v7978 = vadd.f32 %v7976, %v7977
        %v7979 = vrot.slane %v7978, 1
        %v7980 = vadd.f32 %v7978, %v7979
        %v7981 = vrot.slane %v7814, 4
        %v7982 = vadd.f32 %v7814, %v7981
        %v7983 = vrot.slane %v7982, 2
        %v7984 = vadd.f32 %v7982, %v7983
        %v7985 = vrot.slane %v7984, 1
        %v7986 = vadd.f32 %v7984, %v7985
        %v7987 = vrot.slane %v7815, 4
        %v7988 = vadd.f32 %v7815, %v7987
        %v7989 = vrot.slane %v7988, 2
        %v7990 = vadd.f32 %v7988, %v7989
        %v7991 = vrot.slane %v7990, 1
        %v7992 = vadd.f32 %v7990, %v7991
        %v7993 = vrot.slane %v7816, 4
        %v7994 = vadd.f32 %v7816, %v7993
        %v7995 = vrot.slane %v7994, 2
        %v7996 = vadd.f32 %v7994, %v7995
        %v7997 = vrot.slane %v7996, 1
        %v7998 = vadd.f32 %v7996, %v7997
        %v7999 = vrot.slane %v7817, 4
        %v8000 = vadd.f32 %v7817, %v7999
        %v8001 = vrot.slane %v8000, 2
        %v8002 = vadd.f32 %v8000, %v8001
        %v8003 = vrot.slane %v8002, 1
        %v8004 = vadd.f32 %v8002, %v8003
        %v8005 = vrot.slane %v7818, 4
        %v8006 = vadd.f32 %v7818, %v8005
        %v8007 = vrot.slane %v8006, 2
        %v8008 = vadd.f32 %v8006, %v8007
        %v8009 = vrot.slane %v8008, 1
        %v8010 = vadd.f32 %v8008, %v8009
        %v8011 = vpack.c.bf16 %v7824, %v7824
        %v8012 = vpack.c.bf16 %v7830, %v7830
        %v8013 = vpack.c.bf16 %v7836, %v7836
        %v8014 = vpack.c.bf16 %v7842, %v7842
        %v8015 = vpack.c.bf16 %v7848, %v7848
        %v8016 = vpack.c.bf16 %v7854, %v7854
        %v8017 = vpack.c.bf16 %v7860, %v7860
        %v8018 = vpack.c.bf16 %v7866, %v7866
        %v8019 = vpack.c.bf16 %v7872, %v7872
        %v8020 = vpack.c.bf16 %v7878, %v7878
        %v8021 = vpack.c.bf16 %v7884, %v7884
        %v8022 = vpack.c.bf16 %v7890, %v7890
        %v8023 = vpack.c.bf16 %v7896, %v7896
        %v8024 = vpack.c.bf16 %v7902, %v7902
        %v8025 = vpack.c.bf16 %v7908, %v7908
        %v8026 = vpack.c.bf16 %v7914, %v7914
        %v8027 = vpack.c.bf16 %v7920, %v7920
        %v8028 = vpack.c.bf16 %v7926, %v7926
        %v8029 = vpack.c.bf16 %v7932, %v7932
        %v8030 = vpack.c.bf16 %v7938, %v7938
        %v8031 = vpack.c.bf16 %v7944, %v7944
        %v8032 = vpack.c.bf16 %v7950, %v7950
        %v8033 = vpack.c.bf16 %v7956, %v7956
        %v8034 = vpack.c.bf16 %v7962, %v7962
        %v8035 = vpack.c.bf16 %v7968, %v7968
        %v8036 = vpack.c.bf16 %v7974, %v7974
        %v8037 = vpack.c.bf16 %v7980, %v7980
        %v8038 = vpack.c.bf16 %v7986, %v7986
        %v8039 = vpack.c.bf16 %v7992, %v7992
        %v8040 = vpack.c.bf16 %v7998, %v7998
        %v8041 = vpack.c.bf16 %v8004, %v8004
        %v8042 = vpack.c.bf16 %v8010, %v8010
        %v8044 = vperm.slane %v2926, 0
        %v8078 = vunpack.c.l.b16 %v8011
        %v8079 = vunpack.c.l.b16 %v8012
        %v8080 = vunpack.c.l.b16 %v8013
        %v8081 = vunpack.c.l.b16 %v8014
        %v8082 = vunpack.c.l.b16 %v8015
        %v8083 = vunpack.c.l.b16 %v8016
        %v8084 = vunpack.c.l.b16 %v8017
        %v8085 = vunpack.c.l.b16 %v8018
        %v8086 = vunpack.c.l.b16 %v8019
        %v8087 = vunpack.c.l.b16 %v8020
        %v8088 = vunpack.c.l.b16 %v8021
        %v8089 = vunpack.c.l.b16 %v8022
        %v8090 = vunpack.c.l.b16 %v8023
        %v8091 = vunpack.c.l.b16 %v8024
        %v8092 = vunpack.c.l.b16 %v8025
        %v8093 = vunpack.c.l.b16 %v8026
        %v8094 = vunpack.c.l.b16 %v8027
        %v8095 = vunpack.c.l.b16 %v8028
        %v8096 = vunpack.c.l.b16 %v8029
        %v8097 = vunpack.c.l.b16 %v8030
        %v8098 = vunpack.c.l.b16 %v8031
        %v8099 = vunpack.c.l.b16 %v8032
        %v8100 = vunpack.c.l.b16 %v8033
        %v8101 = vunpack.c.l.b16 %v8034
        %v8102 = vunpack.c.l.b16 %v8035
        %v8103 = vunpack.c.l.b16 %v8036
        %v8104 = vunpack.c.l.b16 %v8037
        %v8105 = vunpack.c.l.b16 %v8038
        %v8106 = vunpack.c.l.b16 %v8039
        %v8107 = vunpack.c.l.b16 %v8040
        %v8108 = vunpack.c.l.b16 %v8041
        %v8109 = vunpack.c.l.b16 %v8042
        %v8110 = vsel %vm4644, %v8079, %v8078
        %v8111 = vsel %vm4646, %v8080, %v8110
        %v8112 = vsel %vm4648, %v8081, %v8111
        %v8113 = vsel %vm4650, %v8082, %v8112
        %v8114 = vsel %vm4652, %v8083, %v8113
        %v8115 = vsel %vm4654, %v8084, %v8114
        %v8116 = vsel %vm4656, %v8085, %v8115
        %v8117 = vsel %vm4644, %v8087, %v8086
        %v8118 = vsel %vm4646, %v8088, %v8117
        %v8119 = vsel %vm4648, %v8089, %v8118
        %v8120 = vsel %vm4650, %v8090, %v8119
        %v8121 = vsel %vm4652, %v8091, %v8120
        %v8122 = vsel %vm4654, %v8092, %v8121
        %v8123 = vsel %vm4656, %v8093, %v8122
        %v8124 = vsel %vm4644, %v8095, %v8094
        %v8125 = vsel %vm4646, %v8096, %v8124
        %v8126 = vsel %vm4648, %v8097, %v8125
        %v8127 = vsel %vm4650, %v8098, %v8126
        %v8128 = vsel %vm4652, %v8099, %v8127
        %v8129 = vsel %vm4654, %v8100, %v8128
        %v8130 = vsel %vm4656, %v8101, %v8129
        %v8131 = vsel %vm4644, %v8103, %v8102
        %v8132 = vsel %vm4646, %v8104, %v8131
        %v8133 = vsel %vm4648, %v8105, %v8132
        %v8134 = vsel %vm4650, %v8106, %v8133
        %v8135 = vsel %vm4652, %v8107, %v8134
        %v8136 = vsel %vm4654, %v8108, %v8135
        %v8137 = vsel %vm4656, %v8109, %v8136
        %v8138 = vpack.c.b16 %v8123, %v8116
        %v8139 = vpack.c.b16 %v8137, %v8130
        %v8158 = vunpack.c.l.b16 %v2910
        %v8159 = vunpack.c.l.b16 %v2911
        %v8160 = vunpack.c.l.b16 %v2912
        %v8161 = vunpack.c.l.b16 %v2913
        %v8162 = vunpack.c.l.b16 %v2914
        %v8163 = vunpack.c.l.b16 %v2915
        %v8164 = vunpack.c.l.b16 %v2916
        %v8165 = vunpack.c.l.b16 %v2917
        %v8166 = vunpack.c.l.b16 %v2918
        %v8167 = vunpack.c.l.b16 %v2919
        %v8168 = vunpack.c.l.b16 %v2920
        %v8169 = vunpack.c.l.b16 %v2921
        %v8170 = vunpack.c.l.b16 %v2922
        %v8171 = vunpack.c.l.b16 %v2923
        %v8172 = vunpack.c.l.b16 %v2924
        %v8173 = vunpack.c.l.b16 %v2925
        %v8174 = vpack.c.b16 %v8159, %v8158
        %v8175 = vpack.c.b16 %v8161, %v8160
        %v8176 = vpack.c.b16 %v8163, %v8162
        %v8177 = vpack.c.b16 %v8165, %v8164
        %v8178 = vpack.c.b16 %v8167, %v8166
        %v8179 = vpack.c.b16 %v8169, %v8168
        %v8180 = vpack.c.b16 %v8171, %v8170
        %v8181 = vpack.c.b16 %v8173, %v8172
        %8190 = vmatpush.bf16.msra.mxu0 %v8181
        %8191 = vmatpush.bf16.msra.mxu0 %v8180
        %8192 = vmatpush.bf16.msra.mxu0 %v8179
        %8193 = vmatpush.bf16.msra.mxu0 %v8178
        %8194 = vmatpush.bf16.msra.mxu0 %v8177
        %8195 = vmatpush.bf16.msra.mxu0 %v8176
        %8196 = vmatpush.bf16.msra.mxu0 %v8175
        %8197 = vmatpush.bf16.msra.mxu0 %v8174
        %8198 = vmatmul.bf16.gmra.mxu0 %v8138
        %v8199 = vpop.f32.mrf.mxu0
        %v8200 = vadd.f32 %v8044, %v8199
        %v8201 = vpop.f32.mrf.mxu0
        %v8202 = vadd.f32 %v8044, %v8201
        %8203 = vmatmul.bf16.gmra.mxu0 %v8139
        %v8204 = vpop.f32.mrf.mxu0
        %v8205 = vadd.f32 %v8044, %v8204
        %v8206 = vpop.f32.mrf.mxu0
        %v8207 = vadd.f32 %v8044, %v8206
        %8208 = vdwg.mxu0
        %v8209 = vmax.f32 %v8200, 0.0
        %v8210 = vmax.f32 %v8202, 0.0
        %v8211 = vmax.f32 %v8205, 0.0
        %v8212 = vmax.f32 %v8207, 0.0
        %v8217 = vrot.slane %v8209, 4
        %v8218 = vrot.slane %v8210, 4
        %v8219 = vrot.slane %v8211, 4
        %v8220 = vrot.slane %v8212, 4
        %v8225 = vpack.c.bf16 %v8210, %v8209
        %v8226 = vpack.c.bf16 %v8212, %v8211
        %v8228 = vperm.slane %v2720, 0
        %8230 = vmatpush.bf16.msra.mxu0 %v3588
        %8231 = vmatpush.bf16.msra.mxu0 %v3587
        %8232 = vmatpush.bf16.msra.mxu0 %v3586
        %8233 = vmatpush.bf16.msra.mxu0 %v3585
        %8234 = vmatpush.bf16.msra.mxu0 %v3584
        %8235 = vmatpush.bf16.msra.mxu0 %v3583
        %8236 = vmatpush.bf16.msra.mxu0 %v3582
        %8237 = vmatpush.bf16.msra.mxu0 %v3581
        %8238 = vmatmul.bf16.gmra.mxu0 %v8225
        %v8239 = vpop.f32.mrf.mxu0
        %v8240 = vadd.f32 %v8228, %v8239
        %v8241 = vpop.f32.mrf.mxu0
        %v8242 = vadd.f32 %v8228, %v8241
        %8243 = vmatmul.bf16.gmra.mxu0 %v8226
        %v8244 = vpop.f32.mrf.mxu0
        %v8245 = vadd.f32 %v8228, %v8244
        %v8246 = vpop.f32.mrf.mxu0
        %v8247 = vadd.f32 %v8228, %v8246
        %8248 = vdwg.mxu0
        %v8250 = vrot.slane %v3607, 1
        %v8251 = vrot.slane %v3607, 2
        %v8252 = vrot.slane %v3607, 3
        %v8253 = vrot.slane %v3607, 4
        %v8254 = vrot.slane %v3607, 5
        %v8255 = vrot.slane %v3607, 6
        %v8256 = vrot.slane %v3607, 7
        %v8257 = vperm.slane %v3607, 0
        %v8258 = vperm.slane %v8250, 0
        %v8259 = vperm.slane %v8251, 0
        %v8260 = vperm.slane %v8252, 0
        %v8261 = vperm.slane %v8253, 0
        %v8262 = vperm.slane %v8254, 0
        %v8263 = vperm.slane %v8255, 0
        %v8264 = vperm.slane %v8256, 0
        %v8273 = vmul.f32 %v3129, %v8257
        %v8274 = vmul.f32 %v3136, %v8258
        %v8275 = vmul.f32 %v3143, %v8259
        %v8276 = vmul.f32 %v3150, %v8260
        %v8277 = vmul.f32 %v3157, %v8261
        %v8278 = vmul.f32 %v3164, %v8262
        %v8279 = vmul.f32 %v3171, %v8263
        %v8280 = vmul.f32 %v3178, %v8264
        %v8281 = vadd.f32 %v8273, %v8228
        %v8282 = vadd.f32 %v8274, %v8228
        %v8283 = vadd.f32 %v8275, %v8228
        %v8284 = vadd.f32 %v8276, %v8228
        %v8285 = vadd.f32 %v8277, %v8228
        %v8286 = vadd.f32 %v8278, %v8228
        %v8287 = vadd.f32 %v8279, %v8228
        %v8288 = vadd.f32 %v8280, %v8228
        %v8289 = vpack.c.bf16 %v8242, %v8240
        %v8290 = vpack.c.bf16 %v8247, %v8245
        %8299 = vst [vmem:[#allocation1] ss:$2 sm:$0xff] %v8281
        %s8300 = scalar_lea.vmem [#allocation1], 1
        %8301 = vst [vmem:[%s8300] ss:$2 sm:$0xff] %v8282
        %s8302 = scalar_lea.vmem [#allocation1], 16
        %8303 = vst [vmem:[%s8302] ss:$2 sm:$0xff] %v8283
        %s8304 = scalar_lea.vmem [#allocation1], 17
        %8305 = vst [vmem:[%s8304] ss:$2 sm:$0xff] %v8284
        %s8306 = scalar_lea.vmem [#allocation1], 32
        %8307 = vst [vmem:[%s8306] ss:$2 sm:$0xff] %v8285
        %s8308 = scalar_lea.vmem [#allocation1], 33
        %8309 = vst [vmem:[%s8308] ss:$2 sm:$0xff] %v8286
        %s8310 = scalar_lea.vmem [#allocation1], 48
        %8311 = vst [vmem:[%s8310] ss:$2 sm:$0xff] %v8287
        %s8312 = scalar_lea.vmem [#allocation1], 49
        %8313 = vst [vmem:[%s8312] ss:$2 sm:$0xff] %v8288
        %v8314 = vld.sshfl [vmem:[#allocation1] sm:$0xff pattern:$0x75316420]
        %v8315 = vld.sshfl [vmem:[#allocation1 + $0x10] sm:$0xff pattern:$0x75316420]
        %v8316 = vld.sshfl [vmem:[#allocation1 + $0x20] sm:$0xff pattern:$0x75316420]
        %v8317 = vld.sshfl [vmem:[#allocation1 + $0x30] sm:$0xff pattern:$0x75316420]
        %v8322 = vpack.c.bf16 %v8315, %v8314
        %v8323 = vpack.c.bf16 %v8317, %v8316
        %v8340 = vunpack.c.l.b16 %v2943
        %v8341 = vunpack.c.l.b16 %v2944
        %v8342 = vunpack.c.l.b16 %v2945
        %v8343 = vunpack.c.l.b16 %v2946
        %v8344 = vunpack.c.l.b16 %v2947
        %v8345 = vunpack.c.l.b16 %v2948
        %v8346 = vunpack.c.l.b16 %v2949
        %v8347 = vunpack.c.l.b16 %v2950
        %v8348 = vunpack.c.l.b16 %v2951
        %v8349 = vunpack.c.l.b16 %v2952
        %v8350 = vunpack.c.l.b16 %v2953
        %v8351 = vunpack.c.l.b16 %v2954
        %v8352 = vunpack.c.l.b16 %v2955
        %v8353 = vunpack.c.l.b16 %v2956
        %v8354 = vunpack.c.l.b16 %v2957
        %v8355 = vunpack.c.l.b16 %v2958
        %v8356 = vpack.c.b16 %v8341, %v8340
        %v8357 = vpack.c.b16 %v8343, %v8342
        %v8358 = vpack.c.b16 %v8345, %v8344
        %v8359 = vpack.c.b16 %v8347, %v8346
        %v8360 = vpack.c.b16 %v8349, %v8348
        %v8361 = vpack.c.b16 %v8351, %v8350
        %v8362 = vpack.c.b16 %v8353, %v8352
        %v8363 = vpack.c.b16 %v8355, %v8354
        %8372 = vmatpush.bf16.msra.mxu0 %v8363
        %8373 = vmatpush.bf16.msra.mxu0 %v8362
        %8374 = vmatpush.bf16.msra.mxu0 %v8361
        %8375 = vmatpush.bf16.msra.mxu0 %v8360
        %8376 = vmatpush.bf16.msra.mxu0 %v8359
        %8377 = vmatpush.bf16.msra.mxu0 %v8358
        %8378 = vmatpush.bf16.msra.mxu0 %v8357
        %8379 = vmatpush.bf16.msra.mxu0 %v8356
        %8380 = vmatmul.bf16.gmra.mxu0 %v8322
        %v8381 = vpop.f32.mrf.mxu0
        %v8382 = vadd.f32 0.0, %v8381
        %v8383 = vpop.f32.mrf.mxu0
        %v8384 = vadd.f32 0.0, %v8383
        %8385 = vmatmul.bf16.gmra.mxu0 %v8323
        %v8386 = vpop.f32.mrf.mxu0
        %v8387 = vadd.f32 0.0, %v8386
        %v8388 = vpop.f32.mrf.mxu0
        %v8389 = vadd.f32 0.0, %v8388
        %8390 = vdwg.mxu0
        %v8407 = vunpack.c.l.b16 %v2927
        %v8408 = vunpack.c.l.b16 %v2928
        %v8409 = vunpack.c.l.b16 %v2929
        %v8410 = vunpack.c.l.b16 %v2930
        %v8411 = vunpack.c.l.b16 %v2931
        %v8412 = vunpack.c.l.b16 %v2932
        %v8413 = vunpack.c.l.b16 %v2933
        %v8414 = vunpack.c.l.b16 %v2934
        %v8415 = vunpack.c.l.b16 %v2935
        %v8416 = vunpack.c.l.b16 %v2936
        %v8417 = vunpack.c.l.b16 %v2937
        %v8418 = vunpack.c.l.b16 %v2938
        %v8419 = vunpack.c.l.b16 %v2939
        %v8420 = vunpack.c.l.b16 %v2940
        %v8421 = vunpack.c.l.b16 %v2941
        %v8422 = vunpack.c.l.b16 %v2942
        %v8423 = vpack.c.b16 %v8408, %v8407
        %v8424 = vpack.c.b16 %v8410, %v8409
        %v8425 = vpack.c.b16 %v8412, %v8411
        %v8426 = vpack.c.b16 %v8414, %v8413
        %v8427 = vpack.c.b16 %v8416, %v8415
        %v8428 = vpack.c.b16 %v8418, %v8417
        %v8429 = vpack.c.b16 %v8420, %v8419
        %v8430 = vpack.c.b16 %v8422, %v8421
        %8439 = vmatpush.bf16.msra.mxu0 %v8430
        %8440 = vmatpush.bf16.msra.mxu0 %v8429
        %8441 = vmatpush.bf16.msra.mxu0 %v8428
        %8442 = vmatpush.bf16.msra.mxu0 %v8427
        %8443 = vmatpush.bf16.msra.mxu0 %v8426
        %8444 = vmatpush.bf16.msra.mxu0 %v8425
        %8445 = vmatpush.bf16.msra.mxu0 %v8424
        %8446 = vmatpush.bf16.msra.mxu0 %v8423
        %8447 = vmatmul.bf16.gmra.mxu0 %v8289
        %v8448 = vpop.f32.mrf.mxu0
        %v8449 = vadd.f32 %v8382, %v8448
        %v8450 = vpop.f32.mrf.mxu0
        %v8451 = vadd.f32 %v8384, %v8450
        %8452 = vmatmul.bf16.gmra.mxu0 %v8290
        %v8453 = vpop.f32.mrf.mxu0
        %v8454 = vadd.f32 %v8387, %v8453
        %v8455 = vpop.f32.mrf.mxu0
        %v8456 = vadd.f32 %v8389, %v8455
        %8457 = vdwg.mxu0
        %v8459 = vperm.slane %v2959, 0
        %v8461 = vadd.f32 %v8449, %v8459
        %v8462 = vadd.f32 %v8451, %v8459
        %v8463 = vadd.f32 %v8454, %v8459
        %v8464 = vadd.f32 %v8456, %v8459
        %vm8465 = vcmp.gt.f32.partialorder %v8461, 0.0
        %vm8466 = vcmp.gt.f32.partialorder %v8462, 0.0
        %vm8467 = vcmp.gt.f32.partialorder %v8463, 0.0
        %vm8468 = vcmp.gt.f32.partialorder %v8464, 0.0
        %v8469 = vmul.f32 %v8461, 0.2
        %v8470 = vmul.f32 %v8462, 0.2
        %v8471 = vmul.f32 %v8463, 0.2
        %v8472 = vmul.f32 %v8464, 0.2
        %v8473 = vsel %vm8465, %v8461, %v8469
        %v8474 = vsel %vm8466, %v8462, %v8470
        %v8475 = vsel %vm8467, %v8463, %v8471
        %v8476 = vsel %vm8468, %v8464, %v8472
        %v8481 = vrot.slane %v8473, 4
        %v8482 = vrot.slane %v8474, 4
        %v8483 = vrot.slane %v8475, 4
        %v8484 = vrot.slane %v8476, 4
        %v8490 = vperm.slane %v2960, 0
        %v8492 = vmul.f32 %v8473, %v8490
        %v8493 = vmul.f32 %v8481, %v8490
        %v8494 = vmul.f32 %v8474, %v8490
        %v8495 = vmul.f32 %v8482, %v8490
        %v8496 = vmul.f32 %v8475, %v8490
        %v8497 = vmul.f32 %v8483, %v8490
        %v8498 = vmul.f32 %v8476, %v8490
        %v8499 = vmul.f32 %v8484, %v8490
        %v8500 = vsel %vm5014, %v8492, 0.0
        %8501 = vadd.xlane.f32.xlu0 %v8500
        %v8502 = vpop.xlane.xlu0 %8501
        %v8503 = vsel %vm5014, %v8493, 0.0
        %8504 = vadd.xlane.f32.xlu0 %v8503
        %v8505 = vpop.xlane.xlu0 %8504
        %v8506 = vsel %vm5014, %v8494, 0.0
        %8507 = vadd.xlane.f32.xlu0 %v8506
        %v8508 = vpop.xlane.xlu0 %8507
        %v8509 = vsel %vm5014, %v8495, 0.0
        %8510 = vadd.xlane.f32.xlu0 %v8509
        %v8511 = vpop.xlane.xlu0 %8510
        %v8512 = vsel %vm5014, %v8496, 0.0
        %8513 = vadd.xlane.f32.xlu0 %v8512
        %v8514 = vpop.xlane.xlu0 %8513
        %v8515 = vsel %vm5014, %v8497, 0.0
        %8516 = vadd.xlane.f32.xlu0 %v8515
        %v8517 = vpop.xlane.xlu0 %8516
        %v8518 = vsel %vm5014, %v8498, 0.0
        %8519 = vadd.xlane.f32.xlu0 %v8518
        %v8520 = vpop.xlane.xlu0 %8519
        %v8521 = vsel %vm5014, %v8499, 0.0
        %8522 = vadd.xlane.f32.xlu0 %v8521
        %v8523 = vpop.xlane.xlu0 %8522
        %v8525 = vperm.slane %v2961, 0
        %v8527 = vadd.f32 %v8502, %v8525
        %v8528 = vadd.f32 %v8505, %v8525
        %v8529 = vadd.f32 %v8508, %v8525
        %v8530 = vadd.f32 %v8511, %v8525
        %v8531 = vadd.f32 %v8514, %v8525
        %v8532 = vadd.f32 %v8517, %v8525
        %v8533 = vadd.f32 %v8520, %v8525
        %v8534 = vadd.f32 %v8523, %v8525
        %v8535 = vsel %vm5050, %v8527, -1e+30
        %v8536 = vsel %vm5051, %v8528, -1e+30
        %v8537 = vsel %vm5052, %v8529, -1e+30
        %v8538 = vsel %vm5053, %v8530, -1e+30
        %v8539 = vsel %vm5054, %v8531, -1e+30
        %v8540 = vsel %vm5055, %v8532, -1e+30
        %v8541 = vsel %vm5056, %v8533, -1e+30
        %v8542 = vsel %vm5057, %v8534, -1e+30
        %v8543 = vsel %vm5066, %v8535, -inf
        %v8544 = vrot.slane %v8543, 4
        %v8545 = vmax.f32 %v8543, %v8544
        %v8546 = vrot.slane %v8545, 2
        %v8547 = vmax.f32 %v8545, %v8546
        %v8548 = vrot.slane %v8547, 1
        %v8549 = vmax.f32 %v8547, %v8548
        %v8550 = vsel %vm5066, %v8536, -inf
        %v8551 = vrot.slane %v8550, 4
        %v8552 = vmax.f32 %v8550, %v8551
        %v8553 = vrot.slane %v8552, 2
        %v8554 = vmax.f32 %v8552, %v8553
        %v8555 = vrot.slane %v8554, 1
        %v8556 = vmax.f32 %v8554, %v8555
        %v8557 = vsel %vm5066, %v8537, -inf
        %v8558 = vrot.slane %v8557, 4
        %v8559 = vmax.f32 %v8557, %v8558
        %v8560 = vrot.slane %v8559, 2
        %v8561 = vmax.f32 %v8559, %v8560
        %v8562 = vrot.slane %v8561, 1
        %v8563 = vmax.f32 %v8561, %v8562
        %v8564 = vsel %vm5066, %v8538, -inf
        %v8565 = vrot.slane %v8564, 4
        %v8566 = vmax.f32 %v8564, %v8565
        %v8567 = vrot.slane %v8566, 2
        %v8568 = vmax.f32 %v8566, %v8567
        %v8569 = vrot.slane %v8568, 1
        %v8570 = vmax.f32 %v8568, %v8569
        %v8571 = vsel %vm5066, %v8539, -inf
        %v8572 = vrot.slane %v8571, 4
        %v8573 = vmax.f32 %v8571, %v8572
        %v8574 = vrot.slane %v8573, 2
        %v8575 = vmax.f32 %v8573, %v8574
        %v8576 = vrot.slane %v8575, 1
        %v8577 = vmax.f32 %v8575, %v8576
        %v8578 = vsel %vm5066, %v8540, -inf
        %v8579 = vrot.slane %v8578, 4
        %v8580 = vmax.f32 %v8578, %v8579
        %v8581 = vrot.slane %v8580, 2
        %v8582 = vmax.f32 %v8580, %v8581
        %v8583 = vrot.slane %v8582, 1
        %v8584 = vmax.f32 %v8582, %v8583
        %v8585 = vsel %vm5066, %v8541, -inf
        %v8586 = vrot.slane %v8585, 4
        %v8587 = vmax.f32 %v8585, %v8586
        %v8588 = vrot.slane %v8587, 2
        %v8589 = vmax.f32 %v8587, %v8588
        %v8590 = vrot.slane %v8589, 1
        %v8591 = vmax.f32 %v8589, %v8590
        %v8592 = vsel %vm5066, %v8542, -inf
        %v8593 = vrot.slane %v8592, 4
        %v8594 = vmax.f32 %v8592, %v8593
        %v8595 = vrot.slane %v8594, 2
        %v8596 = vmax.f32 %v8594, %v8595
        %v8597 = vrot.slane %v8596, 1
        %v8598 = vmax.f32 %v8596, %v8597
        %v8599 = vsub.f32 %v8535, %v8549
        %v8600 = vsub.f32 %v8536, %v8556
        %v8601 = vsub.f32 %v8537, %v8563
        %v8602 = vsub.f32 %v8538, %v8570
        %v8603 = vsub.f32 %v8539, %v8577
        %v8604 = vsub.f32 %v8540, %v8584
        %v8605 = vsub.f32 %v8541, %v8591
        %v8606 = vsub.f32 %v8542, %v8598
        %v8607 = vmul.f32 %v8599, 1.442695
        %v8608 = vpow.pop %v8607
        %v8609 = vmul.f32 %v8600, 1.442695
        %v8610 = vpow.pop %v8609
        %v8611 = vmul.f32 %v8601, 1.442695
        %v8612 = vpow.pop %v8611
        %v8613 = vmul.f32 %v8602, 1.442695
        %v8614 = vpow.pop %v8613
        %v8615 = vmul.f32 %v8603, 1.442695
        %v8616 = vpow.pop %v8615
        %v8617 = vmul.f32 %v8604, 1.442695
        %v8618 = vpow.pop %v8617
        %v8619 = vmul.f32 %v8605, 1.442695
        %v8620 = vpow.pop %v8619
        %v8621 = vmul.f32 %v8606, 1.442695
        %v8622 = vpow.pop %v8621
        %v8623 = vmul.f32 %v8608, %v3129
        %v8624 = vmul.f32 %v8610, %v3136
        %v8625 = vmul.f32 %v8612, %v3143
        %v8626 = vmul.f32 %v8614, %v3150
        %v8627 = vmul.f32 %v8616, %v3157
        %v8628 = vmul.f32 %v8618, %v3164
        %v8629 = vmul.f32 %v8620, %v3171
        %v8630 = vmul.f32 %v8622, %v3178
        %v8631 = vsel %vm5066, %v8623, 0.0
        %v8632 = vrot.slane %v8631, 4
        %v8633 = vadd.f32 %v8631, %v8632
        %v8634 = vrot.slane %v8633, 2
        %v8635 = vadd.f32 %v8633, %v8634
        %v8636 = vrot.slane %v8635, 1
        %v8637 = vadd.f32 %v8635, %v8636
        %v8638 = vsel %vm5066, %v8624, 0.0
        %v8639 = vrot.slane %v8638, 4
        %v8640 = vadd.f32 %v8638, %v8639
        %v8641 = vrot.slane %v8640, 2
        %v8642 = vadd.f32 %v8640, %v8641
        %v8643 = vrot.slane %v8642, 1
        %v8644 = vadd.f32 %v8642, %v8643
        %v8645 = vsel %vm5066, %v8625, 0.0
        %v8646 = vrot.slane %v8645, 4
        %v8647 = vadd.f32 %v8645, %v8646
        %v8648 = vrot.slane %v8647, 2
        %v8649 = vadd.f32 %v8647, %v8648
        %v8650 = vrot.slane %v8649, 1
        %v8651 = vadd.f32 %v8649, %v8650
        %v8652 = vsel %vm5066, %v8626, 0.0
        %v8653 = vrot.slane %v8652, 4
        %v8654 = vadd.f32 %v8652, %v8653
        %v8655 = vrot.slane %v8654, 2
        %v8656 = vadd.f32 %v8654, %v8655
        %v8657 = vrot.slane %v8656, 1
        %v8658 = vadd.f32 %v8656, %v8657
        %v8659 = vsel %vm5066, %v8627, 0.0
        %v8660 = vrot.slane %v8659, 4
        %v8661 = vadd.f32 %v8659, %v8660
        %v8662 = vrot.slane %v8661, 2
        %v8663 = vadd.f32 %v8661, %v8662
        %v8664 = vrot.slane %v8663, 1
        %v8665 = vadd.f32 %v8663, %v8664
        %v8666 = vsel %vm5066, %v8628, 0.0
        %v8667 = vrot.slane %v8666, 4
        %v8668 = vadd.f32 %v8666, %v8667
        %v8669 = vrot.slane %v8668, 2
        %v8670 = vadd.f32 %v8668, %v8669
        %v8671 = vrot.slane %v8670, 1
        %v8672 = vadd.f32 %v8670, %v8671
        %v8673 = vsel %vm5066, %v8629, 0.0
        %v8674 = vrot.slane %v8673, 4
        %v8675 = vadd.f32 %v8673, %v8674
        %v8676 = vrot.slane %v8675, 2
        %v8677 = vadd.f32 %v8675, %v8676
        %v8678 = vrot.slane %v8677, 1
        %v8679 = vadd.f32 %v8677, %v8678
        %v8680 = vsel %vm5066, %v8630, 0.0
        %v8681 = vrot.slane %v8680, 4
        %v8682 = vadd.f32 %v8680, %v8681
        %v8683 = vrot.slane %v8682, 2
        %v8684 = vadd.f32 %v8682, %v8683
        %v8685 = vrot.slane %v8684, 1
        %v8686 = vadd.f32 %v8684, %v8685
        %v8687 = vadd.f32 %v8637, 1e-10
        %v8688 = vadd.f32 %v8644, 1e-10
        %v8689 = vadd.f32 %v8651, 1e-10
        %v8690 = vadd.f32 %v8658, 1e-10
        %v8691 = vadd.f32 %v8665, 1e-10
        %v8692 = vadd.f32 %v8672, 1e-10
        %v8693 = vadd.f32 %v8679, 1e-10
        %v8694 = vadd.f32 %v8686, 1e-10
        %v8695 = vrcp.pop %v8687
        %v8696 = vrcp.pop %v8688
        %v8697 = vrcp.pop %v8689
        %v8698 = vrcp.pop %v8690
        %v8699 = vrcp.pop %v8691
        %v8700 = vrcp.pop %v8692
        %v8701 = vrcp.pop %v8693
        %v8702 = vrcp.pop %v8694
        %v8703 = vmul.f32 %v8623, %v8695
        %v8704 = vmul.f32 %v8624, %v8696
        %v8705 = vmul.f32 %v8625, %v8697
        %v8706 = vmul.f32 %v8626, %v8698
        %v8707 = vmul.f32 %v8627, %v8699
        %v8708 = vmul.f32 %v8628, %v8700
        %v8709 = vmul.f32 %v8629, %v8701
        %v8710 = vmul.f32 %v8630, %v8702
        %8712 = vset.pattern.permute.xlu0 0
        %8713 = vperm.xlu0 %8712, %v8703
        %v8714 = vpop.permute.xlu0 %8713
        %8717 = vset.pattern.permute.xlu0 0
        %8718 = vperm.xlu0 %8717, %v8704
        %v8719 = vpop.permute.xlu0 %8718
        %8722 = vset.pattern.permute.xlu0 0
        %8723 = vperm.xlu0 %8722, %v8705
        %v8724 = vpop.permute.xlu0 %8723
        %8727 = vset.pattern.permute.xlu0 0
        %8728 = vperm.xlu0 %8727, %v8706
        %v8729 = vpop.permute.xlu0 %8728
        %8732 = vset.pattern.permute.xlu0 0
        %8733 = vperm.xlu0 %8732, %v8707
        %v8734 = vpop.permute.xlu0 %8733
        %8737 = vset.pattern.permute.xlu0 0
        %8738 = vperm.xlu0 %8737, %v8708
        %v8739 = vpop.permute.xlu0 %8738
        %8742 = vset.pattern.permute.xlu0 0
        %8743 = vperm.xlu0 %8742, %v8709
        %v8744 = vpop.permute.xlu0 %8743
        %8747 = vset.pattern.permute.xlu0 0
        %8748 = vperm.xlu0 %8747, %v8710
        %v8749 = vpop.permute.xlu0 %8748
        %v8751 = vmul.f32 %v8714, %v8209
        %v8752 = vmul.f32 %v8719, %v8217
        %v8753 = vmul.f32 %v8724, %v8210
        %v8754 = vmul.f32 %v8729, %v8218
        %v8755 = vmul.f32 %v8734, %v8211
        %v8756 = vmul.f32 %v8739, %v8219
        %v8757 = vmul.f32 %v8744, %v8212
        %v8758 = vmul.f32 %v8749, %v8220
        %v8759 = vsel %vm5014, %v8751, 0.0
        %v8760 = vrot.slane %v8759, 4
        %v8761 = vadd.f32 %v8759, %v8760
        %v8762 = vrot.slane %v8761, 2
        %v8763 = vadd.f32 %v8761, %v8762
        %v8764 = vrot.slane %v8763, 1
        %v8765 = vadd.f32 %v8763, %v8764
        %v8766 = vsel %vm5014, %v8752, 0.0
        %v8767 = vrot.slane %v8766, 4
        %v8768 = vadd.f32 %v8766, %v8767
        %v8769 = vrot.slane %v8768, 2
        %v8770 = vadd.f32 %v8768, %v8769
        %v8771 = vrot.slane %v8770, 1
        %v8772 = vadd.f32 %v8770, %v8771
        %v8773 = vsel %vm5014, %v8753, 0.0
        %v8774 = vrot.slane %v8773, 4
        %v8775 = vadd.f32 %v8773, %v8774
        %v8776 = vrot.slane %v8775, 2
        %v8777 = vadd.f32 %v8775, %v8776
        %v8778 = vrot.slane %v8777, 1
        %v8779 = vadd.f32 %v8777, %v8778
        %v8780 = vsel %vm5014, %v8754, 0.0
        %v8781 = vrot.slane %v8780, 4
        %v8782 = vadd.f32 %v8780, %v8781
        %v8783 = vrot.slane %v8782, 2
        %v8784 = vadd.f32 %v8782, %v8783
        %v8785 = vrot.slane %v8784, 1
        %v8786 = vadd.f32 %v8784, %v8785
        %v8787 = vsel %vm5014, %v8755, 0.0
        %v8788 = vrot.slane %v8787, 4
        %v8789 = vadd.f32 %v8787, %v8788
        %v8790 = vrot.slane %v8789, 2
        %v8791 = vadd.f32 %v8789, %v8790
        %v8792 = vrot.slane %v8791, 1
        %v8793 = vadd.f32 %v8791, %v8792
        %v8794 = vsel %vm5014, %v8756, 0.0
        %v8795 = vrot.slane %v8794, 4
        %v8796 = vadd.f32 %v8794, %v8795
        %v8797 = vrot.slane %v8796, 2
        %v8798 = vadd.f32 %v8796, %v8797
        %v8799 = vrot.slane %v8798, 1
        %v8800 = vadd.f32 %v8798, %v8799
        %v8801 = vsel %vm5014, %v8757, 0.0
        %v8802 = vrot.slane %v8801, 4
        %v8803 = vadd.f32 %v8801, %v8802
        %v8804 = vrot.slane %v8803, 2
        %v8805 = vadd.f32 %v8803, %v8804
        %v8806 = vrot.slane %v8805, 1
        %v8807 = vadd.f32 %v8805, %v8806
        %v8808 = vsel %vm5014, %v8758, 0.0
        %v8809 = vrot.slane %v8808, 4
        %v8810 = vadd.f32 %v8808, %v8809
        %v8811 = vrot.slane %v8810, 2
        %v8812 = vadd.f32 %v8810, %v8811
        %v8813 = vrot.slane %v8812, 1
        %v8814 = vadd.f32 %v8812, %v8813
        %v8815 = vpack.c.bf16 %v8765, %v8765
        %v8816 = vpack.c.bf16 %v8772, %v8772
        %v8817 = vpack.c.bf16 %v8779, %v8779
        %v8818 = vpack.c.bf16 %v8786, %v8786
        %v8819 = vpack.c.bf16 %v8793, %v8793
        %v8820 = vpack.c.bf16 %v8800, %v8800
        %v8821 = vpack.c.bf16 %v8807, %v8807
        %v8822 = vpack.c.bf16 %v8814, %v8814
        %v8824 = vperm.slane %v2978, 0
        %v8834 = vunpack.c.l.b16 %v8815
        %v8835 = vunpack.c.l.b16 %v8816
        %v8836 = vunpack.c.l.b16 %v8817
        %v8837 = vunpack.c.l.b16 %v8818
        %v8838 = vunpack.c.l.b16 %v8819
        %v8839 = vunpack.c.l.b16 %v8820
        %v8840 = vunpack.c.l.b16 %v8821
        %v8841 = vunpack.c.l.b16 %v8822
        %v8842 = vsel %vm4644, %v8835, %v8834
        %v8843 = vsel %vm4646, %v8836, %v8842
        %v8844 = vsel %vm4648, %v8837, %v8843
        %v8845 = vsel %vm4650, %v8838, %v8844
        %v8846 = vsel %vm4652, %v8839, %v8845
        %v8847 = vsel %vm4654, %v8840, %v8846
        %v8848 = vsel %vm4656, %v8841, %v8847
        %v8849 = vpack.c.b16 %v8848, %v8848
        %v8867 = vunpack.c.l.b16 %v2962
        %v8868 = vunpack.c.l.b16 %v2963
        %v8869 = vunpack.c.l.b16 %v2964
        %v8870 = vunpack.c.l.b16 %v2965
        %v8871 = vunpack.c.l.b16 %v2966
        %v8872 = vunpack.c.l.b16 %v2967
        %v8873 = vunpack.c.l.b16 %v2968
        %v8874 = vunpack.c.l.b16 %v2969
        %v8875 = vunpack.c.l.b16 %v2970
        %v8876 = vunpack.c.l.b16 %v2971
        %v8877 = vunpack.c.l.b16 %v2972
        %v8878 = vunpack.c.l.b16 %v2973
        %v8879 = vunpack.c.l.b16 %v2974
        %v8880 = vunpack.c.l.b16 %v2975
        %v8881 = vunpack.c.l.b16 %v2976
        %v8882 = vunpack.c.l.b16 %v2977
        %v8883 = vpack.c.b16 %v8868, %v8867
        %v8884 = vpack.c.b16 %v8870, %v8869
        %v8885 = vpack.c.b16 %v8872, %v8871
        %v8886 = vpack.c.b16 %v8874, %v8873
        %v8887 = vpack.c.b16 %v8876, %v8875
        %v8888 = vpack.c.b16 %v8878, %v8877
        %v8889 = vpack.c.b16 %v8880, %v8879
        %v8890 = vpack.c.b16 %v8882, %v8881
        %8899 = vmatpush.bf16.msra.mxu0 %v8890
        %8900 = vmatpush.bf16.msra.mxu0 %v8889
        %8901 = vmatpush.bf16.msra.mxu0 %v8888
        %8902 = vmatpush.bf16.msra.mxu0 %v8887
        %8903 = vmatpush.bf16.msra.mxu0 %v8886
        %8904 = vmatpush.bf16.msra.mxu0 %v8885
        %8905 = vmatpush.bf16.msra.mxu0 %v8884
        %8906 = vmatpush.bf16.msra.mxu0 %v8883
        %8907 = vmatmul.bf16.gmra.mxu0 %v8849
        %v8908 = vpop.f32.mrf.mxu0
        %v8909 = vadd.f32 %v8824, %v8908
        %v8910 = vpop.f32.mrf.mxu0
        %8911 = vdwg.mxu0
        %v8912 = vmax.f32 %v8909, 0.0
        %v8913 = vpack.c.bf16 %v5448, %v5448
        %v8914 = vpack.c.bf16 %v4721, %v4721
        %v8931 = vunpack.c.l.b16 %v2995
        %v8932 = vunpack.c.h.b16 %v2995
        %v8933 = vunpack.c.l.b16 %v2996
        %v8934 = vunpack.c.h.b16 %v2996
        %v8935 = vunpack.c.l.b16 %v2997
        %v8936 = vunpack.c.h.b16 %v2997
        %v8937 = vunpack.c.l.b16 %v2998
        %v8938 = vunpack.c.h.b16 %v2998
        %v8939 = vunpack.c.l.b16 %v2999
        %v8940 = vunpack.c.h.b16 %v2999
        %v8941 = vunpack.c.l.b16 %v3000
        %v8942 = vunpack.c.h.b16 %v3000
        %v8943 = vunpack.c.l.b16 %v3001
        %v8944 = vunpack.c.h.b16 %v3001
        %v8945 = vunpack.c.l.b16 %v3002
        %v8946 = vunpack.c.h.b16 %v3002
        %v8947 = vunpack.c.l.b16 %v3003
        %v8948 = vunpack.c.h.b16 %v3003
        %v8949 = vunpack.c.l.b16 %v3004
        %v8950 = vunpack.c.h.b16 %v3004
        %v8951 = vunpack.c.l.b16 %v3005
        %v8952 = vunpack.c.h.b16 %v3005
        %v8953 = vunpack.c.l.b16 %v3006
        %v8954 = vunpack.c.h.b16 %v3006
        %v8955 = vunpack.c.l.b16 %v3007
        %v8956 = vunpack.c.h.b16 %v3007
        %v8957 = vunpack.c.l.b16 %v3008
        %v8958 = vunpack.c.h.b16 %v3008
        %v8959 = vunpack.c.l.b16 %v3009
        %v8960 = vunpack.c.h.b16 %v3009
        %v8961 = vunpack.c.l.b16 %v3010
        %v8962 = vunpack.c.h.b16 %v3010
        %v8963 = vpack.c.b16 %v8933, %v8931
        %v8964 = vpack.c.b16 %v8934, %v8932
        %v8965 = vpack.c.b16 %v8937, %v8935
        %v8966 = vpack.c.b16 %v8938, %v8936
        %v8967 = vpack.c.b16 %v8941, %v8939
        %v8968 = vpack.c.b16 %v8942, %v8940
        %v8969 = vpack.c.b16 %v8945, %v8943
        %v8970 = vpack.c.b16 %v8946, %v8944
        %v8971 = vpack.c.b16 %v8949, %v8947
        %v8972 = vpack.c.b16 %v8950, %v8948
        %v8973 = vpack.c.b16 %v8953, %v8951
        %v8974 = vpack.c.b16 %v8954, %v8952
        %v8975 = vpack.c.b16 %v8957, %v8955
        %v8976 = vpack.c.b16 %v8958, %v8956
        %v8977 = vpack.c.b16 %v8961, %v8959
        %v8978 = vpack.c.b16 %v8962, %v8960
        %8995 = vmatpush.bf16.msra.mxu0 %v8977
        %8996 = vmatpush.bf16.msra.mxu0 %v8975
        %8997 = vmatpush.bf16.msra.mxu0 %v8973
        %8998 = vmatpush.bf16.msra.mxu0 %v8971
        %8999 = vmatpush.bf16.msra.mxu0 %v8969
        %9000 = vmatpush.bf16.msra.mxu0 %v8967
        %9001 = vmatpush.bf16.msra.mxu0 %v8965
        %9002 = vmatpush.bf16.msra.mxu0 %v8963
        %9003 = vmatmul.bf16.gmra.mxu0 %v8914
        %v9004 = vpop.f32.mrf.mxu0
        %v9005 = vadd.f32 0.0, %v9004
        %v9006 = vpop.f32.mrf.mxu0
        %9007 = vdwg.mxu0
        %9008 = vmatpush.bf16.msra.mxu0 %v8978
        %9009 = vmatpush.bf16.msra.mxu0 %v8976
        %9010 = vmatpush.bf16.msra.mxu0 %v8974
        %9011 = vmatpush.bf16.msra.mxu0 %v8972
        %9012 = vmatpush.bf16.msra.mxu0 %v8970
        %9013 = vmatpush.bf16.msra.mxu0 %v8968
        %9014 = vmatpush.bf16.msra.mxu0 %v8966
        %9015 = vmatpush.bf16.msra.mxu0 %v8964
        %9016 = vmatmul.bf16.gmra.mxu0 %v8914
        %v9017 = vpop.f32.mrf.mxu0
        %v9018 = vadd.f32 0.0, %v9017
        %v9019 = vpop.f32.mrf.mxu0
        %9020 = vdwg.mxu0
        %v9037 = vunpack.c.l.b16 %v2979
        %v9038 = vunpack.c.h.b16 %v2979
        %v9039 = vunpack.c.l.b16 %v2980
        %v9040 = vunpack.c.h.b16 %v2980
        %v9041 = vunpack.c.l.b16 %v2981
        %v9042 = vunpack.c.h.b16 %v2981
        %v9043 = vunpack.c.l.b16 %v2982
        %v9044 = vunpack.c.h.b16 %v2982
        %v9045 = vunpack.c.l.b16 %v2983
        %v9046 = vunpack.c.h.b16 %v2983
        %v9047 = vunpack.c.l.b16 %v2984
        %v9048 = vunpack.c.h.b16 %v2984
        %v9049 = vunpack.c.l.b16 %v2985
        %v9050 = vunpack.c.h.b16 %v2985
        %v9051 = vunpack.c.l.b16 %v2986
        %v9052 = vunpack.c.h.b16 %v2986
        %v9053 = vunpack.c.l.b16 %v2987
        %v9054 = vunpack.c.h.b16 %v2987
        %v9055 = vunpack.c.l.b16 %v2988
        %v9056 = vunpack.c.h.b16 %v2988
        %v9057 = vunpack.c.l.b16 %v2989
        %v9058 = vunpack.c.h.b16 %v2989
        %v9059 = vunpack.c.l.b16 %v2990
        %v9060 = vunpack.c.h.b16 %v2990
        %v9061 = vunpack.c.l.b16 %v2991
        %v9062 = vunpack.c.h.b16 %v2991
        %v9063 = vunpack.c.l.b16 %v2992
        %v9064 = vunpack.c.h.b16 %v2992
        %v9065 = vunpack.c.l.b16 %v2993
        %v9066 = vunpack.c.h.b16 %v2993
        %v9067 = vunpack.c.l.b16 %v2994
        %v9068 = vunpack.c.h.b16 %v2994
        %v9069 = vpack.c.b16 %v9039, %v9037
        %v9070 = vpack.c.b16 %v9040, %v9038
        %v9071 = vpack.c.b16 %v9043, %v9041
        %v9072 = vpack.c.b16 %v9044, %v9042
        %v9073 = vpack.c.b16 %v9047, %v9045
        %v9074 = vpack.c.b16 %v9048, %v9046
        %v9075 = vpack.c.b16 %v9051, %v9049
        %v9076 = vpack.c.b16 %v9052, %v9050
        %v9077 = vpack.c.b16 %v9055, %v9053
        %v9078 = vpack.c.b16 %v9056, %v9054
        %v9079 = vpack.c.b16 %v9059, %v9057
        %v9080 = vpack.c.b16 %v9060, %v9058
        %v9081 = vpack.c.b16 %v9063, %v9061
        %v9082 = vpack.c.b16 %v9064, %v9062
        %v9083 = vpack.c.b16 %v9067, %v9065
        %v9084 = vpack.c.b16 %v9068, %v9066
        %9101 = vmatpush.bf16.msra.mxu0 %v9083
        %9102 = vmatpush.bf16.msra.mxu0 %v9081
        %9103 = vmatpush.bf16.msra.mxu0 %v9079
        %9104 = vmatpush.bf16.msra.mxu0 %v9077
        %9105 = vmatpush.bf16.msra.mxu0 %v9075
        %9106 = vmatpush.bf16.msra.mxu0 %v9073
        %9107 = vmatpush.bf16.msra.mxu0 %v9071
        %9108 = vmatpush.bf16.msra.mxu0 %v9069
        %9109 = vmatmul.bf16.gmra.mxu0 %v8913
        %v9110 = vpop.f32.mrf.mxu0
        %v9111 = vadd.f32 %v9005, %v9110
        %v9112 = vpop.f32.mrf.mxu0
        %9113 = vdwg.mxu0
        %9114 = vmatpush.bf16.msra.mxu0 %v9084
        %9115 = vmatpush.bf16.msra.mxu0 %v9082
        %9116 = vmatpush.bf16.msra.mxu0 %v9080
        %9117 = vmatpush.bf16.msra.mxu0 %v9078
        %9118 = vmatpush.bf16.msra.mxu0 %v9076
        %9119 = vmatpush.bf16.msra.mxu0 %v9074
        %9120 = vmatpush.bf16.msra.mxu0 %v9072
        %9121 = vmatpush.bf16.msra.mxu0 %v9070
        %9122 = vmatmul.bf16.gmra.mxu0 %v8913
        %v9123 = vpop.f32.mrf.mxu0
        %v9124 = vadd.f32 %v9018, %v9123
        %v9125 = vpop.f32.mrf.mxu0
        %9126 = vdwg.mxu0
        %v9127 = vpack.c.bf16 %v8912, %v8912
        %v9144 = vunpack.c.l.b16 %v3011
        %v9145 = vunpack.c.h.b16 %v3011
        %v9146 = vunpack.c.l.b16 %v3012
        %v9147 = vunpack.c.h.b16 %v3012
        %v9148 = vunpack.c.l.b16 %v3013
        %v9149 = vunpack.c.h.b16 %v3013
        %v9150 = vunpack.c.l.b16 %v3014
        %v9151 = vunpack.c.h.b16 %v3014
        %v9152 = vunpack.c.l.b16 %v3015
        %v9153 = vunpack.c.h.b16 %v3015
        %v9154 = vunpack.c.l.b16 %v3016
        %v9155 = vunpack.c.h.b16 %v3016
        %v9156 = vunpack.c.l.b16 %v3017
        %v9157 = vunpack.c.h.b16 %v3017
        %v9158 = vunpack.c.l.b16 %v3018
        %v9159 = vunpack.c.h.b16 %v3018
        %v9160 = vunpack.c.l.b16 %v3019
        %v9161 = vunpack.c.h.b16 %v3019
        %v9162 = vunpack.c.l.b16 %v3020
        %v9163 = vunpack.c.h.b16 %v3020
        %v9164 = vunpack.c.l.b16 %v3021
        %v9165 = vunpack.c.h.b16 %v3021
        %v9166 = vunpack.c.l.b16 %v3022
        %v9167 = vunpack.c.h.b16 %v3022
        %v9168 = vunpack.c.l.b16 %v3023
        %v9169 = vunpack.c.h.b16 %v3023
        %v9170 = vunpack.c.l.b16 %v3024
        %v9171 = vunpack.c.h.b16 %v3024
        %v9172 = vunpack.c.l.b16 %v3025
        %v9173 = vunpack.c.h.b16 %v3025
        %v9174 = vunpack.c.l.b16 %v3026
        %v9175 = vunpack.c.h.b16 %v3026
        %v9176 = vpack.c.b16 %v9146, %v9144
        %v9177 = vpack.c.b16 %v9147, %v9145
        %v9178 = vpack.c.b16 %v9150, %v9148
        %v9179 = vpack.c.b16 %v9151, %v9149
        %v9180 = vpack.c.b16 %v9154, %v9152
        %v9181 = vpack.c.b16 %v9155, %v9153
        %v9182 = vpack.c.b16 %v9158, %v9156
        %v9183 = vpack.c.b16 %v9159, %v9157
        %v9184 = vpack.c.b16 %v9162, %v9160
        %v9185 = vpack.c.b16 %v9163, %v9161
        %v9186 = vpack.c.b16 %v9166, %v9164
        %v9187 = vpack.c.b16 %v9167, %v9165
        %v9188 = vpack.c.b16 %v9170, %v9168
        %v9189 = vpack.c.b16 %v9171, %v9169
        %v9190 = vpack.c.b16 %v9174, %v9172
        %v9191 = vpack.c.b16 %v9175, %v9173
        %9208 = vmatpush.bf16.msra.mxu0 %v9190
        %9209 = vmatpush.bf16.msra.mxu0 %v9188
        %9210 = vmatpush.bf16.msra.mxu0 %v9186
        %9211 = vmatpush.bf16.msra.mxu0 %v9184
        %9212 = vmatpush.bf16.msra.mxu0 %v9182
        %9213 = vmatpush.bf16.msra.mxu0 %v9180
        %9214 = vmatpush.bf16.msra.mxu0 %v9178
        %9215 = vmatpush.bf16.msra.mxu0 %v9176
        %9216 = vmatmul.bf16.gmra.mxu0 %v9127
        %v9217 = vpop.f32.mrf.mxu0
        %v9218 = vadd.f32 0.0, %v9217
        %v9219 = vpop.f32.mrf.mxu0
        %9220 = vdwg.mxu0
        %9221 = vmatpush.bf16.msra.mxu0 %v9191
        %9222 = vmatpush.bf16.msra.mxu0 %v9189
        %9223 = vmatpush.bf16.msra.mxu0 %v9187
        %9224 = vmatpush.bf16.msra.mxu0 %v9185
        %9225 = vmatpush.bf16.msra.mxu0 %v9183
        %9226 = vmatpush.bf16.msra.mxu0 %v9181
        %9227 = vmatpush.bf16.msra.mxu0 %v9179
        %9228 = vmatpush.bf16.msra.mxu0 %v9177
        %9229 = vmatmul.bf16.gmra.mxu0 %v9127
        %v9230 = vpop.f32.mrf.mxu0
        %v9231 = vadd.f32 0.0, %v9230
        %v9232 = vpop.f32.mrf.mxu0
        %9233 = vdwg.mxu0
        %v9234 = vadd.f32 %v9111, %v9218
        %v9235 = vadd.f32 %v9124, %v9231
        %v9237 = vperm.slane %v3027, 0
        %v9238 = vperm.slane %v3027, 1
        %v9241 = vadd.f32 %v9234, %v9237
        %v9242 = vadd.f32 %v9235, %v9238
        %v9243 = vmax.f32 %v9241, 0.0
        %v9244 = vmax.f32 %v9242, 0.0
        %v9245 = vpack.c.bf16 %v9243, %v9243
        %v9246 = vpack.c.bf16 %v9244, %v9244
        %v9248 = vperm.slane %v3060, 0
        %v9282 = vunpack.c.l.b16 %v3028
        %v9283 = vunpack.c.l.b16 %v3029
        %v9284 = vunpack.c.l.b16 %v3030
        %v9285 = vunpack.c.l.b16 %v3031
        %v9286 = vunpack.c.l.b16 %v3032
        %v9287 = vunpack.c.l.b16 %v3033
        %v9288 = vunpack.c.l.b16 %v3034
        %v9289 = vunpack.c.l.b16 %v3035
        %v9290 = vunpack.c.l.b16 %v3036
        %v9291 = vunpack.c.l.b16 %v3037
        %v9292 = vunpack.c.l.b16 %v3038
        %v9293 = vunpack.c.l.b16 %v3039
        %v9294 = vunpack.c.l.b16 %v3040
        %v9295 = vunpack.c.l.b16 %v3041
        %v9296 = vunpack.c.l.b16 %v3042
        %v9297 = vunpack.c.l.b16 %v3043
        %v9298 = vunpack.c.l.b16 %v3044
        %v9299 = vunpack.c.l.b16 %v3045
        %v9300 = vunpack.c.l.b16 %v3046
        %v9301 = vunpack.c.l.b16 %v3047
        %v9302 = vunpack.c.l.b16 %v3048
        %v9303 = vunpack.c.l.b16 %v3049
        %v9304 = vunpack.c.l.b16 %v3050
        %v9305 = vunpack.c.l.b16 %v3051
        %v9306 = vunpack.c.l.b16 %v3052
        %v9307 = vunpack.c.l.b16 %v3053
        %v9308 = vunpack.c.l.b16 %v3054
        %v9309 = vunpack.c.l.b16 %v3055
        %v9310 = vunpack.c.l.b16 %v3056
        %v9311 = vunpack.c.l.b16 %v3057
        %v9312 = vunpack.c.l.b16 %v3058
        %v9313 = vunpack.c.l.b16 %v3059
        %v9314 = vpack.c.b16 %v9283, %v9282
        %v9315 = vpack.c.b16 %v9285, %v9284
        %v9316 = vpack.c.b16 %v9287, %v9286
        %v9317 = vpack.c.b16 %v9289, %v9288
        %v9318 = vpack.c.b16 %v9291, %v9290
        %v9319 = vpack.c.b16 %v9293, %v9292
        %v9320 = vpack.c.b16 %v9295, %v9294
        %v9321 = vpack.c.b16 %v9297, %v9296
        %v9322 = vpack.c.b16 %v9299, %v9298
        %v9323 = vpack.c.b16 %v9301, %v9300
        %v9324 = vpack.c.b16 %v9303, %v9302
        %v9325 = vpack.c.b16 %v9305, %v9304
        %v9326 = vpack.c.b16 %v9307, %v9306
        %v9327 = vpack.c.b16 %v9309, %v9308
        %v9328 = vpack.c.b16 %v9311, %v9310
        %v9329 = vpack.c.b16 %v9313, %v9312
        %9346 = vmatpush.bf16.msra.mxu0 %v9321
        %9347 = vmatpush.bf16.msra.mxu0 %v9320
        %9348 = vmatpush.bf16.msra.mxu0 %v9319
        %9349 = vmatpush.bf16.msra.mxu0 %v9318
        %9350 = vmatpush.bf16.msra.mxu0 %v9317
        %9351 = vmatpush.bf16.msra.mxu0 %v9316
        %9352 = vmatpush.bf16.msra.mxu0 %v9315
        %9353 = vmatpush.bf16.msra.mxu0 %v9314
        %9354 = vmatmul.bf16.gmra.mxu0 %v9245
        %v9355 = vpop.f32.mrf.mxu0
        %v9356 = vadd.f32 %v9248, %v9355
        %v9357 = vpop.f32.mrf.mxu0
        %9358 = vdwg.mxu0
        %9359 = vmatpush.bf16.msra.mxu0 %v9329
        %9360 = vmatpush.bf16.msra.mxu0 %v9328
        %9361 = vmatpush.bf16.msra.mxu0 %v9327
        %9362 = vmatpush.bf16.msra.mxu0 %v9326
        %9363 = vmatpush.bf16.msra.mxu0 %v9325
        %9364 = vmatpush.bf16.msra.mxu0 %v9324
        %9365 = vmatpush.bf16.msra.mxu0 %v9323
        %9366 = vmatpush.bf16.msra.mxu0 %v9322
        %9367 = vmatmul.bf16.gmra.mxu0 %v9246
        %v9368 = vpop.f32.mrf.mxu0
        %v9369 = vadd.f32 %v9356, %v9368
        %v9370 = vpop.f32.mrf.mxu0
        %9371 = vdwg.mxu0
        %v9372 = vmax.f32 %v9369, 0.0
        %9373 = vst [vmem:[%s2529] sm:$0xff] %v9372
        %s9374 = sand.u32 %s1393, 1
        %s9375 = scalar_lea.sflag [#allocation8], %s9374
        %s9376 = sand.u32 %s1393, 1
        %s9377 = smul.addr %s9376, 8
        %s9378 = scalar_lea.vmem [#allocation75], %s9377
        // Predicated region
        $region425: #{tpu_custom_call.1} parent=243 // pred_check
          %p9379 = pneg %p1403
        $region426: #{tpu_custom_call.1} parent=243 // pred_check_branch
          %9381 = sbr.rel (%p9379) target = $region428
        $region427: #{tpu_custom_call.1} parent=243 // pred_region
          %9383 = vsyncadd %s9375, 0
          %s9384 = smul.addr %s164, 8
          %s9385 = scalar_lea.hbm %s113, %s9384
          %s9387 = sshll.u32 %s9378, 4
          %s9388 = int_to_ptr.vmem [resolvable:$true] %s9387
          %s9389 = sshll.u32 %s9385, 4
          %s9390 = int_to_ptr.hbm [resolvable:$true] %s9389
          %9392 = dma.vmem_to_hbm [thread:$0]  %s9388, 128, %s9390, %s9375
        $region428: #{tpu_custom_call.1} parent=243 // pred_fallthru
          _
      $region244: #{tpu_custom_call.1} parent=5 // pred_fallthru
        _
      %p9393 = scmp.le.s32.totalorder 2, %s159
      // Predicated region
      $region429: #{tpu_custom_call.1} parent=5 // pred_check
        %p9394 = pneg %p9393
      $region430: #{tpu_custom_call.1} parent=5 // pred_check_branch
        %9396 = sbr.rel (%p9394) target = $region432
      $region431: #{tpu_custom_call.1} parent=5 // pred_region
        %s9397 = ssub.s32 %s159, 2
        // Predicated region
        $region433: #{tpu_custom_call.1} parent=431 // pred_check
          %p9398 = pneg %p1409
        $region434: #{tpu_custom_call.1} parent=431 // pred_check_branch
          %9400 = sbr.rel (%p9398) target = $region436
        $region435: #{tpu_custom_call.1} parent=431 // pred_region
          %s9401 = sand.u32 %s1394, 1
          %s9402 = scalar_lea.sflag [#allocation8], %s9401
          %s9403 = sand.u32 %s1394, 1
          %s9404 = smul.addr %s9403, 8
          %s9405 = scalar_lea.vmem [#allocation75], %s9404
          %9407 = dma.done %s9402, 128
        $region436: #{tpu_custom_call.1} parent=431 // pred_fallthru
          _
      $region432: #{tpu_custom_call.1} parent=5 // pred_fallthru
        _
    $region6: #{tpu_custom_call.1} parent=1 // loop_footer
      %s163 = sadd.s32 1, %s159
    $region7: #{tpu_custom_call.1} parent=1 // loop_footer_branch
      %158 = sbr.rel target = $region3
    $region8: #{tpu_custom_call.1} parent=1 // loop_exit
      _
    %9408 = vsyncpa [#allocation7], 1
    %s9409 = scalar_lea.sflag [#allocation7], 1
    %9410 = vsyncpa %s9409, 1
    %9411 = vsyncpa [#allocation10], 1
    %s9412 = scalar_lea.sflag [#allocation10], 1
    %9413 = vsyncpa %s9412, 1
    %9414 = vsyncpa [#allocation13], 1
    %s9415 = scalar_lea.sflag [#allocation13], 1
    %9416 = vsyncpa %s9415, 1
    %9417 = vsyncpa [#allocation16], 1
    %9418 = vsyncpa [#allocation19], 1
    %9419 = vsyncpa [#allocation22], 1
    %9420 = vsyncpa [#allocation25], 1
    %9421 = vsyncpa [#allocation28], 1
    %9422 = vsyncpa [#allocation31], 1
    %9423 = vsyncpa [#allocation34], 1
    %9424 = vsyncpa [#allocation37], 1
    %9425 = vsyncpa [#allocation40], 1
    %9426 = vsyncpa [#allocation43], 1
    %9427 = vsyncpa [#allocation46], 1
    %9428 = vsyncpa [#allocation49], 1
    %9429 = vsyncpa [#allocation52], 1
    %9430 = vsyncpa [#allocation55], 1
    %9431 = vsyncpa [#allocation58], 1
    %9432 = vsyncpa [#allocation61], 1
    %9433 = vsyncpa [#allocation64], 1
    %9434 = vsyncpa [#allocation67], 1
    %9435 = vsyncpa [#allocation70], 1
    %9436 = vsyncpa [#allocation73], 1
    %9437 = vsyncpa [#allocation8], 1
    %s9438 = scalar_lea.sflag [#allocation8], 1
    %9439 = vsyncpa %s9438, 1

</llo_original>
